<compile_context>
chip_gen: v5e
topology: v5e:2x2
jax: 0.10.0
libtpu: 0.0.40
codegen_flags: <defaults>
</compile_context>

<pallas_src>
import jax
import jax.numpy as jnp
from jax.experimental import pallas as pl
from jax.experimental.pallas import tpu as pltpu

N_MEL = 80
LCHUNK = 200
D_IN = N_MEL * LCHUNK   # 16000
HID = 128
OUT = 2
OUT_PAD = 128           # lane-dense padded logit width (sliced to 2 in wrapper)


def _disc_kernel(x_ref, w1_ref, b1_ref, w2_ref, b2_ref, o_ref):
    # Hot path: (B_TILE, 16000) bf16 @ (16000, 128) bf16 -> f32 on the MXU.
    acc = jnp.dot(x_ref[...], w1_ref[...], preferred_element_type=jnp.float32)
    h = jnp.maximum(acc + b1_ref[...], 0.0)                       # bias + ReLU
    logits = jnp.dot(h, w2_ref[...], preferred_element_type=jnp.float32)
    o_ref[...] = (logits + b2_ref[...]).astype(o_ref.dtype)


def discriminator_forward(generated_mel, w1, b1, w2, b2):
    """generated_mel: (B, 80, 200) float32 -> logits (B, 2) float32."""
    B = generated_mel.shape[0]
    x = generated_mel.reshape(B, D_IN).astype(jnp.bfloat16)   # same semantics as torch .view

    # Batch tile: sublane-aligned (>=8); large batches use 128-row tiles so the
    # "parallel" grid axis can be sharded across v7x's two TensorCores.
    b_tile = 128 if B >= 128 else ((B + 7) // 8) * 8
    b_pad = ((B + b_tile - 1) // b_tile) * b_tile
    if b_pad != B:
        x = jnp.pad(x, ((0, b_pad - B), (0, 0)))

    # Weight prep (one-time, outside the hot loop):
    w1_bf16 = w1.astype(jnp.bfloat16)                         # (16000, 128) bf16 stream
    b1_2d = b1.reshape(1, HID).astype(jnp.float32)
    w2_pad = jnp.zeros((HID, OUT_PAD), jnp.float32).at[:, :OUT].set(w2)
    b2_pad = jnp.zeros((1, OUT_PAD), jnp.float32).at[0, :OUT].set(b2)

    grid = (b_pad // b_tile,)
    out = pl.pallas_call(
        _disc_kernel,
        out_shape=jax.ShapeDtypeStruct((b_pad, OUT_PAD), jnp.float32),
        grid_spec=pltpu.PrefetchScalarGridSpec(
            num_scalar_prefetch=0,
            grid=grid,
            in_specs=[
                pl.BlockSpec((b_tile, D_IN), lambda i: (i, 0)),    # x batch tile
                pl.BlockSpec((D_IN, HID), lambda i: (0, 0)),       # full W1, resident
                pl.BlockSpec((1, HID), lambda i: (0, 0)),          # b1, resident
                pl.BlockSpec((HID, OUT_PAD), lambda i: (0, 0)),    # W2 (lane-padded), resident
                pl.BlockSpec((1, OUT_PAD), lambda i: (0, 0)),      # b2 (lane-padded), resident
            ],
            out_specs=pl.BlockSpec((b_tile, OUT_PAD), lambda i: (i, 0)),
        ),
        compiler_params=pltpu.CompilerParams(
            dimension_semantics=("parallel",),
        ),
    )(x, w1_bf16, b1_2d, w2_pad, b2_pad)

    return out[:B, :OUT]


def init_params(key):
    """Deterministic synthetic params, shapes matching torch.nn.Linear layers."""
    k1, k2, k3, k4 = jax.random.split(key, 4)
    # torch Linear(16000,128): weight (128,16000) -> store transposed (16000,128)
    lim1 = 1.0 / jnp.sqrt(D_IN)
    w1 = jax.random.uniform(k1, (D_IN, HID), jnp.float32, -lim1, lim1)
    b1 = jax.random.uniform(k2, (HID,), jnp.float32, -lim1, lim1)
    # torch Linear(128,2): weight (2,128) -> store transposed (128,2)
    lim2 = 1.0 / jnp.sqrt(HID)
    w2 = jax.random.uniform(k3, (HID, OUT), jnp.float32, -lim2, lim2)
    b2 = jax.random.uniform(k4, (OUT,), jnp.float32, -lim2, lim2)
    return w1, b1, w2, b2


if __name__ == "__main__":
    key = jax.random.PRNGKey(0)
    k_params, k_x = jax.random.split(key)
    w1, b1, w2, b2 = init_params(k_params)

    B = 2
    generated_mel = jax.random.normal(k_x, (B, N_MEL, LCHUNK), jnp.float32)

    out = discriminator_forward(generated_mel, w1, b1, w2, b2)
    out = jax.block_until_ready(out)
    assert out.shape == (B, OUT)

    x_flat = generated_mel.reshape(B, D_IN)

    # Tight check against a bf16-weight-streaming reference (matches kernel math).
    ref_bf16 = (
        jnp.maximum(
            jnp.dot(
                x_flat.astype(jnp.bfloat16),
                w1.astype(jnp.bfloat16),
                preferred_element_type=jnp.float32,
            )
            + b1,
            0.0,
        )
        @ w2
        + b2
    )
    assert jnp.allclose(out, ref_bf16, atol=1e-2, rtol=1e-2), (out, ref_bf16)

    # Loose check against the full-f32 PyTorch-equivalent forward.
    ref_f32 = jnp.maximum(x_flat @ w1 + b1, 0.0) @ w2 + b2
    assert jnp.allclose(out, ref_f32, atol=5e-2, rtol=5e-2), (out, ref_f32)

    print("KERNEL_OK")
</pallas_src>

<mosaic_0001>
module attributes {stable_mosaic.version = 11 : i64} {
  func.func @_disc_kernel(%arg0: i32, %arg1: memref<8x16000xbf16, #tpu.memory_space<vmem>>, %arg2: memref<16000x128xbf16, #tpu.memory_space<vmem>>, %arg3: memref<1x128xf32, #tpu.memory_space<vmem>>, %arg4: memref<128x128xf32, #tpu.memory_space<vmem>>, %arg5: memref<1x128xf32, #tpu.memory_space<vmem>>, %arg6: memref<8x128xf32, #tpu.memory_space<vmem>>) attributes {dimension_semantics = [#tpu.dimension_semantics<parallel>], iteration_bounds = array<i64: 1>, scalar_prefetch = 0 : i64, scratch_operands = 0 : i64, tpu.core_type = #tpu.core_type<tc>, window_params = [{transform_indices = @transform_0, window_bounds = array<i64: 8, 16000>}, {pipeline_mode = #tpu.pipeline_mode<synchronous>, transform_indices = @transform_1, window_bounds = array<i64: 16000, 128>}, {pipeline_mode = #tpu.pipeline_mode<synchronous>, transform_indices = @transform_2, window_bounds = array<i64: 1, 128>}, {pipeline_mode = #tpu.pipeline_mode<synchronous>, transform_indices = @transform_3, window_bounds = array<i64: 128, 128>}, {pipeline_mode = #tpu.pipeline_mode<synchronous>, transform_indices = @transform_4, window_bounds = array<i64: 1, 128>}, {transform_indices = @transform_5, window_bounds = array<i64: 8, 128>}]} {
    %c0 = arith.constant 0 : index
    %c0_0 = arith.constant 0 : index
    %0 = vector.load %arg1[%c0, %c0_0] : memref<8x16000xbf16, #tpu.memory_space<vmem>>, vector<8x16000xbf16>
    %c0_1 = arith.constant 0 : index
    %c0_2 = arith.constant 0 : index
    %1 = vector.load %arg2[%c0_1, %c0_2] : memref<16000x128xbf16, #tpu.memory_space<vmem>>, vector<16000x128xbf16>
    %cst = arith.constant dense<0.000000e+00> : vector<8x128xf32>
    %2 = tpu.matmul %0, %1, %cst {dimension_numbers = #tpu.dot_dimension_numbers<[1], [0], [0], [1], [0, 0, 1, 1], [], []>} : vector<8x16000xbf16>, vector<16000x128xbf16>, vector<8x128xf32> -> vector<8x128xf32>
    %c0_3 = arith.constant 0 : index
    %c0_4 = arith.constant 0 : index
    %3 = vector.load %arg3[%c0_3, %c0_4] : memref<1x128xf32, #tpu.memory_space<vmem>>, vector<1x128xf32>
    %4 = vector.broadcast %3 : vector<1x128xf32> to vector<8x128xf32>
    %5 = arith.addf %2, %4 : vector<8x128xf32>
    %cst_5 = arith.constant 0.000000e+00 : f32
    %6 = vector.broadcast %cst_5 : f32 to vector<8x128xf32>
    %7 = arith.maximumf %5, %6 : vector<8x128xf32>
    %c0_6 = arith.constant 0 : index
    %c0_7 = arith.constant 0 : index
    %8 = vector.load %arg4[%c0_6, %c0_7] : memref<128x128xf32, #tpu.memory_space<vmem>>, vector<128x128xf32>
    %cst_8 = arith.constant dense<0.000000e+00> : vector<8x128xf32>
    %9 = tpu.matmul %7, %8, %cst_8 {dimension_numbers = #tpu.dot_dimension_numbers<[1], [0], [0], [1], [0, 0, 1, 1], [], []>} : vector<8x128xf32>, vector<128x128xf32>, vector<8x128xf32> -> vector<8x128xf32>
    %c0_9 = arith.constant 0 : index
    %c0_10 = arith.constant 0 : index
    %10 = vector.load %arg5[%c0_9, %c0_10] : memref<1x128xf32, #tpu.memory_space<vmem>>, vector<1x128xf32>
    %11 = vector.broadcast %10 : vector<1x128xf32> to vector<8x128xf32>
    %12 = arith.addf %9, %11 : vector<8x128xf32>
    %c0_11 = arith.constant 0 : index
    %c0_12 = arith.constant 0 : index
    %13 = vector.load %arg6[%c0_11, %c0_12] : memref<8x128xf32, #tpu.memory_space<vmem>>, vector<8x128xf32>
    tpu.vector_store %arg6[%c0_11, %c0_12], %12 {strides = array<i32>} : memref<8x128xf32, #tpu.memory_space<vmem>>, vector<8x128xf32>,
    return
  }
  func.func @transform_0(%arg0: i32) -> (i32, i32) {
    %c0_i32 = arith.constant 0 : i32
    %c0_i32_0 = arith.constant 0 : i32
    return %arg0, %c0_i32 : i32, i32
  }
  func.func @transform_1(%arg0: i32) -> (i32, i32) {
    %c0_i32 = arith.constant 0 : i32
    %c0_i32_0 = arith.constant 0 : i32
    %c0_i32_1 = arith.constant 0 : i32
    return %c0_i32, %c0_i32_0 : i32, i32
  }
  func.func @transform_2(%arg0: i32) -> (i32, i32) {
    %c0_i32 = arith.constant 0 : i32
    %c0_i32_0 = arith.constant 0 : i32
    %c0_i32_1 = arith.constant 0 : i32
    return %c0_i32, %c0_i32_0 : i32, i32
  }
  func.func @transform_3(%arg0: i32) -> (i32, i32) {
    %c0_i32 = arith.constant 0 : i32
    %c0_i32_0 = arith.constant 0 : i32
    %c0_i32_1 = arith.constant 0 : i32
    return %c0_i32, %c0_i32_0 : i32, i32
  }
  func.func @transform_4(%arg0: i32) -> (i32, i32) {
    %c0_i32 = arith.constant 0 : i32
    %c0_i32_0 = arith.constant 0 : i32
    %c0_i32_1 = arith.constant 0 : i32
    return %c0_i32, %c0_i32_0 : i32, i32
  }
  func.func @transform_5(%arg0: i32) -> (i32, i32) {
    %c0_i32 = arith.constant 0 : i32
    %c0_i32_0 = arith.constant 0 : i32
    return %arg0, %c0_i32 : i32, i32
  }
}

</mosaic_0001>

<llo_original>
// kernel: tpu_custom_call.1
$region0: #{tpu_custom_call.1}
  #allocation0 [shape = 'u32[]', space=smem, size = 0x4, offset = 0x4, fixed_abs, tag = 'smem constant byte address 0x4 - core index']
  #allocation1 [shape = 'u32[72,128]{1,0:T(1,128)}', space=vmem, size = 0x9000, scoped, tag = 'internal scratch']
  %s0 = inlined_call_operand.hbm [shape: bf16[8,16000], index: 0, kind: input, shape index: {}]
  %s1 = inlined_call_operand.hbm [shape: bf16[16000,128], index: 1, kind: input, shape index: {}]
  %s2 = inlined_call_operand.hbm [shape: f32[1,128], index: 2, kind: input, shape index: {}]
  %s3 = inlined_call_operand.hbm [shape: f32[128,128], index: 3, kind: input, shape index: {}]
  %s4 = inlined_call_operand.hbm [shape: f32[1,128], index: 4, kind: input, shape index: {}]
  %s5 = inlined_call_operand.hbm [shape: f32[8,128], index: 5, kind: output, shape index: {}]
  %s6 = sld [smem:[#allocation0]]
  $region50: #{tpu_custom_call.1} parent=0
    _
  %s8 = ssub.s32 1, %s6
  %s9 = scalar_select 0, %s8, %s6
  $region1: #{tpu_custom_call.1} parent=0
    #allocation2 [shape = 'u8[256000]{0}', space=vmem, size = 0x3e800, scoped, tag = 'input window, operand 0, single buffered']
    #allocation3 [shape = 's32[1]{0}', space=sflag, size = 0x4, scoped, tag = 'scoped memory for tpu_custom_call.1']
    #allocation4 [shape = 's32[1]{0}', space=sflag, size = 0x4, scoped, tag = 'scoped memory for tpu_custom_call.1']
    #allocation5 [shape = 'u8[4096000]{0}', space=vmem, size = 0x3e8000, scoped, tag = 'input window, operand 1, single buffered']
    #allocation6 [shape = 's32[1]{0}', space=sflag, size = 0x4, scoped, tag = 'scoped memory for tpu_custom_call.1']
    #allocation7 [shape = 'u8[512]{0}', space=vmem, size = 0x400, scoped, tag = 'input window, operand 2, single buffered']
    #allocation8 [shape = 'u8[65536]{0}', space=vmem, size = 0x10000, scoped, tag = 'input window, operand 3, single buffered']
    #allocation9 [shape = 's32[1]{0}', space=sflag, size = 0x4, scoped, tag = 'scoped memory for tpu_custom_call.1']
    #allocation10 [shape = 'u8[512]{0}', space=vmem, size = 0x400, scoped, tag = 'input window, operand 4, single buffered']
    #allocation11 [shape = 'u8[4096]{0}', space=vmem, size = 0x1000, scoped, tag = 'output window, operand 0, single buffered']
    %10 = vsyncpa [#allocation3], 0
    %11 = vsyncpa [#allocation6], 0
    %12 = vsyncpa [#allocation9], 0
    %13 = vsyncpa [#allocation4], 0
    // Predicated region
    $region2: #{tpu_custom_call.1} parent=1 // pred_check
      _
    $region3: #{tpu_custom_call.1} parent=1 // pred_check_branch
      %15 = sbr.rel (0) target = $region5
    $region4: #{tpu_custom_call.1} parent=1 // pred_region
      %17 = vsyncadd [#allocation3], 0
      %s19 = sshll.u32 %s0, 4
      %s20 = int_to_ptr.hbm [resolvable:$true] %s19
      %s21 = sshll.u32 [#allocation2], 4
      %s22 = int_to_ptr.vmem [resolvable:$true] %s21
      %24 = dma.hbm_to_vmem [thread:$0]  %s20, 8000, %s22, [#allocation3]
    $region5: #{tpu_custom_call.1} parent=1 // pred_fallthru
      _
    // Predicated region
    $region6: #{tpu_custom_call.1} parent=1 // pred_check
      _
    $region7: #{tpu_custom_call.1} parent=1 // pred_check_branch
      %26 = sbr.rel (0) target = $region9
    $region8: #{tpu_custom_call.1} parent=1 // pred_region
      %28 = vsyncadd [#allocation6], 0
      %s29 = sshll.u32 %s1, 4
      %s30 = int_to_ptr.hbm [resolvable:$true] %s29
      %s31 = sshll.u32 [#allocation5], 4
      %s32 = int_to_ptr.vmem [resolvable:$true] %s31
      %37 = dma.hbm_to_vmem [thread:$0]  %s30, 128000, %s32, [#allocation6], 64, 64, 4
    $region9: #{tpu_custom_call.1} parent=1 // pred_fallthru
      _
    // Predicated region
    $region10: #{tpu_custom_call.1} parent=1 // pred_check
      _
    $region11: #{tpu_custom_call.1} parent=1 // pred_check_branch
      %39 = sbr.rel (0) target = $region13
    $region12: #{tpu_custom_call.1} parent=1 // pred_region
      %41 = vsyncadd [#allocation6], 0
      %s43 = sshll.u32 %s2, 4
      %s44 = int_to_ptr.hbm [resolvable:$true] %s43
      %s45 = sshll.u32 [#allocation7], 4
      %s46 = int_to_ptr.vmem [resolvable:$true] %s45
      %48 = dma.hbm_to_vmem [thread:$0]  %s44, 16, %s46, [#allocation6]
    $region13: #{tpu_custom_call.1} parent=1 // pred_fallthru
      _
    // Predicated region
    $region14: #{tpu_custom_call.1} parent=1 // pred_check
      _
    $region15: #{tpu_custom_call.1} parent=1 // pred_check_branch
      %50 = sbr.rel (0) target = $region17
    $region16: #{tpu_custom_call.1} parent=1 // pred_region
      %52 = vsyncadd [#allocation9], 0
      %s53 = sshll.u32 %s3, 4
      %s54 = int_to_ptr.hbm [resolvable:$true] %s53
      %s55 = sshll.u32 [#allocation8], 4
      %s56 = int_to_ptr.vmem [resolvable:$true] %s55
      %61 = dma.hbm_to_vmem [thread:$0]  %s54, 2048, %s56, [#allocation9], 128, 128, 8
    $region17: #{tpu_custom_call.1} parent=1 // pred_fallthru
      _
    // Predicated region
    $region18: #{tpu_custom_call.1} parent=1 // pred_check
      _
    $region19: #{tpu_custom_call.1} parent=1 // pred_check_branch
      %63 = sbr.rel (0) target = $region21
    $region20: #{tpu_custom_call.1} parent=1 // pred_region
      %65 = vsyncadd [#allocation9], 0
      %s67 = sshll.u32 %s4, 4
      %s68 = int_to_ptr.hbm [resolvable:$true] %s67
      %s69 = sshll.u32 [#allocation10], 4
      %s70 = int_to_ptr.vmem [resolvable:$true] %s69
      %72 = dma.hbm_to_vmem [thread:$0]  %s68, 16, %s70, [#allocation9]
    $region21: #{tpu_custom_call.1} parent=1 // pred_fallthru
      _
    // Predicated region
    $region22: #{tpu_custom_call.1} parent=1 // pred_check
      _
    $region23: #{tpu_custom_call.1} parent=1 // pred_check_branch
      %74 = sbr.rel (0) target = $region25
    $region24: #{tpu_custom_call.1} parent=1 // pred_region
      %76 = dma.done [#allocation3], 8000
    $region25: #{tpu_custom_call.1} parent=1 // pred_fallthru
      _
    // Predicated region
    $region26: #{tpu_custom_call.1} parent=1 // pred_check
      _
    $region27: #{tpu_custom_call.1} parent=1 // pred_check_branch
      %78 = sbr.rel (0) target = $region29
    $region28: #{tpu_custom_call.1} parent=1 // pred_region
      %80 = dma.done [#allocation6], 128000
    $region29: #{tpu_custom_call.1} parent=1 // pred_fallthru
      _
    // Predicated region
    $region30: #{tpu_custom_call.1} parent=1 // pred_check
      _
    $region31: #{tpu_custom_call.1} parent=1 // pred_check_branch
      %82 = sbr.rel (0) target = $region33
    $region32: #{tpu_custom_call.1} parent=1 // pred_region
      %84 = dma.done [#allocation6], 16
    $region33: #{tpu_custom_call.1} parent=1 // pred_fallthru
      _
    // Predicated region
    $region34: #{tpu_custom_call.1} parent=1 // pred_check
      _
    $region35: #{tpu_custom_call.1} parent=1 // pred_check_branch
      %86 = sbr.rel (0) target = $region37
    $region36: #{tpu_custom_call.1} parent=1 // pred_region
      %88 = dma.done [#allocation9], 2048
    $region37: #{tpu_custom_call.1} parent=1 // pred_fallthru
      _
    // Predicated region
    $region38: #{tpu_custom_call.1} parent=1 // pred_check
      _
    $region39: #{tpu_custom_call.1} parent=1 // pred_check_branch
      %90 = sbr.rel (0) target = $region41
    $region40: #{tpu_custom_call.1} parent=1 // pred_region
      %92 = dma.done [#allocation9], 16
    $region41: #{tpu_custom_call.1} parent=1 // pred_fallthru
      _
    %v93 = vld [vmem:[#allocation2] sm:$0xff]
    %v94 = vld [vmem:[#allocation2 + $0x8] sm:$0xff]
    %v95 = vld [vmem:[#allocation2 + $0x10] sm:$0xff]
    %v96 = vld [vmem:[#allocation2 + $0x18] sm:$0xff]
    %v97 = vld [vmem:[#allocation2 + $0x20] sm:$0xff]
    %v98 = vld [vmem:[#allocation2 + $0x28] sm:$0xff]
    %v99 = vld [vmem:[#allocation2 + $0x30] sm:$0xff]
    %v100 = vld [vmem:[#allocation2 + $0x38] sm:$0xff]
    %v101 = vld [vmem:[#allocation2 + $0x40] sm:$0xff]
    %v102 = vld [vmem:[#allocation2 + $0x48] sm:$0xff]
    %v103 = vld [vmem:[#allocation2 + $0x50] sm:$0xff]
    %v104 = vld [vmem:[#allocation2 + $0x58] sm:$0xff]
    %v105 = vld [vmem:[#allocation2 + $0x60] sm:$0xff]
    %v106 = vld [vmem:[#allocation2 + $0x68] sm:$0xff]
    %v107 = vld [vmem:[#allocation2 + $0x70] sm:$0xff]
    %v108 = vld [vmem:[#allocation2 + $0x78] sm:$0xff]
    %v109 = vld [vmem:[#allocation2 + $0x80] sm:$0xff]
    %v110 = vld [vmem:[#allocation2 + $0x88] sm:$0xff]
    %v111 = vld [vmem:[#allocation2 + $0x90] sm:$0xff]
    %v112 = vld [vmem:[#allocation2 + $0x98] sm:$0xff]
    %v113 = vld [vmem:[#allocation2 + $0xa0] sm:$0xff]
    %v114 = vld [vmem:[#allocation2 + $0xa8] sm:$0xff]
    %v115 = vld [vmem:[#allocation2 + $0xb0] sm:$0xff]
    %v116 = vld [vmem:[#allocation2 + $0xb8] sm:$0xff]
    %v117 = vld [vmem:[#allocation2 + $0xc0] sm:$0xff]
    %v118 = vld [vmem:[#allocation2 + $0xc8] sm:$0xff]
    %v119 = vld [vmem:[#allocation2 + $0xd0] sm:$0xff]
    %v120 = vld [vmem:[#allocation2 + $0xd8] sm:$0xff]
    %v121 = vld [vmem:[#allocation2 + $0xe0] sm:$0xff]
    %v122 = vld [vmem:[#allocation2 + $0xe8] sm:$0xff]
    %v123 = vld [vmem:[#allocation2 + $0xf0] sm:$0xff]
    %v124 = vld [vmem:[#allocation2 + $0xf8] sm:$0xff]
    %v125 = vld [vmem:[#allocation2 + $0x100] sm:$0xff]
    %v126 = vld [vmem:[#allocation2 + $0x108] sm:$0xff]
    %v127 = vld [vmem:[#allocation2 + $0x110] sm:$0xff]
    %v128 = vld [vmem:[#allocation2 + $0x118] sm:$0xff]
    %v129 = vld [vmem:[#allocation2 + $0x120] sm:$0xff]
    %v130 = vld [vmem:[#allocation2 + $0x128] sm:$0xff]
    %v131 = vld [vmem:[#allocation2 + $0x130] sm:$0xff]
    %v132 = vld [vmem:[#allocation2 + $0x138] sm:$0xff]
    %v133 = vld [vmem:[#allocation2 + $0x140] sm:$0xff]
    %v134 = vld [vmem:[#allocation2 + $0x148] sm:$0xff]
    %v135 = vld [vmem:[#allocation2 + $0x150] sm:$0xff]
    %v136 = vld [vmem:[#allocation2 + $0x158] sm:$0xff]
    %v137 = vld [vmem:[#allocation2 + $0x160] sm:$0xff]
    %v138 = vld [vmem:[#allocation2 + $0x168] sm:$0xff]
    %v139 = vld [vmem:[#allocation2 + $0x170] sm:$0xff]
    %v140 = vld [vmem:[#allocation2 + $0x178] sm:$0xff]
    %v141 = vld [vmem:[#allocation2 + $0x180] sm:$0xff]
    %v142 = vld [vmem:[#allocation2 + $0x188] sm:$0xff]
    %v143 = vld [vmem:[#allocation2 + $0x190] sm:$0xff]
    %v144 = vld [vmem:[#allocation2 + $0x198] sm:$0xff]
    %v145 = vld [vmem:[#allocation2 + $0x1a0] sm:$0xff]
    %v146 = vld [vmem:[#allocation2 + $0x1a8] sm:$0xff]
    %v147 = vld [vmem:[#allocation2 + $0x1b0] sm:$0xff]
    %v148 = vld [vmem:[#allocation2 + $0x1b8] sm:$0xff]
    %v149 = vld [vmem:[#allocation2 + $0x1c0] sm:$0xff]
    %v150 = vld [vmem:[#allocation2 + $0x1c8] sm:$0xff]
    %v151 = vld [vmem:[#allocation2 + $0x1d0] sm:$0xff]
    %v152 = vld [vmem:[#allocation2 + $0x1d8] sm:$0xff]
    %v153 = vld [vmem:[#allocation2 + $0x1e0] sm:$0xff]
    %v154 = vld [vmem:[#allocation2 + $0x1e8] sm:$0xff]
    %v155 = vld [vmem:[#allocation2 + $0x1f0] sm:$0xf]
    %v156 = vld [vmem:[#allocation5] sm:$0xf]
    %v157 = vld [vmem:[#allocation5 + $0x4] sm:$0xf]
    %v158 = vld [vmem:[#allocation5 + $0x8] sm:$0xf]
    %v159 = vld [vmem:[#allocation5 + $0xc] sm:$0xf]
    %v160 = vld [vmem:[#allocation5 + $0x10] sm:$0xf]
    %v161 = vld [vmem:[#allocation5 + $0x14] sm:$0xf]
    %v162 = vld [vmem:[#allocation5 + $0x18] sm:$0xf]
    %v163 = vld [vmem:[#allocation5 + $0x1c] sm:$0xf]
    %v164 = vld [vmem:[#allocation5 + $0x20] sm:$0xf]
    %v165 = vld [vmem:[#allocation5 + $0x24] sm:$0xf]
    %v166 = vld [vmem:[#allocation5 + $0x28] sm:$0xf]
    %v167 = vld [vmem:[#allocation5 + $0x2c] sm:$0xf]
    %v168 = vld [vmem:[#allocation5 + $0x30] sm:$0xf]
    %v169 = vld [vmem:[#allocation5 + $0x34] sm:$0xf]
    %v170 = vld [vmem:[#allocation5 + $0x38] sm:$0xf]
    %v171 = vld [vmem:[#allocation5 + $0x3c] sm:$0xf]
    %v172 = vld [vmem:[#allocation5 + $0x40] sm:$0xf]
    %v173 = vld [vmem:[#allocation5 + $0x44] sm:$0xf]
    %v174 = vld [vmem:[#allocation5 + $0x48] sm:$0xf]
    %v175 = vld [vmem:[#allocation5 + $0x4c] sm:$0xf]
    %v176 = vld [vmem:[#allocation5 + $0x50] sm:$0xf]
    %v177 = vld [vmem:[#allocation5 + $0x54] sm:$0xf]
    %v178 = vld [vmem:[#allocation5 + $0x58] sm:$0xf]
    %v179 = vld [vmem:[#allocation5 + $0x5c] sm:$0xf]
    %v180 = vld [vmem:[#allocation5 + $0x60] sm:$0xf]
    %v181 = vld [vmem:[#allocation5 + $0x64] sm:$0xf]
    %v182 = vld [vmem:[#allocation5 + $0x68] sm:$0xf]
    %v183 = vld [vmem:[#allocation5 + $0x6c] sm:$0xf]
    %v184 = vld [vmem:[#allocation5 + $0x70] sm:$0xf]
    %v185 = vld [vmem:[#allocation5 + $0x74] sm:$0xf]
    %v186 = vld [vmem:[#allocation5 + $0x78] sm:$0xf]
    %v187 = vld [vmem:[#allocation5 + $0x7c] sm:$0xf]
    %v188 = vld [vmem:[#allocation5 + $0x80] sm:$0xf]
    %v189 = vld [vmem:[#allocation5 + $0x84] sm:$0xf]
    %v190 = vld [vmem:[#allocation5 + $0x88] sm:$0xf]
    %v191 = vld [vmem:[#allocation5 + $0x8c] sm:$0xf]
    %v192 = vld [vmem:[#allocation5 + $0x90] sm:$0xf]
    %v193 = vld [vmem:[#allocation5 + $0x94] sm:$0xf]
    %v194 = vld [vmem:[#allocation5 + $0x98] sm:$0xf]
    %v195 = vld [vmem:[#allocation5 + $0x9c] sm:$0xf]
    %v196 = vld [vmem:[#allocation5 + $0xa0] sm:$0xf]
    %v197 = vld [vmem:[#allocation5 + $0xa4] sm:$0xf]
    %v198 = vld [vmem:[#allocation5 + $0xa8] sm:$0xf]
    %v199 = vld [vmem:[#allocation5 + $0xac] sm:$0xf]
    %v200 = vld [vmem:[#allocation5 + $0xb0] sm:$0xf]
    %v201 = vld [vmem:[#allocation5 + $0xb4] sm:$0xf]
    %v202 = vld [vmem:[#allocation5 + $0xb8] sm:$0xf]
    %v203 = vld [vmem:[#allocation5 + $0xbc] sm:$0xf]
    %v204 = vld [vmem:[#allocation5 + $0xc0] sm:$0xf]
    %v205 = vld [vmem:[#allocation5 + $0xc4] sm:$0xf]
    %v206 = vld [vmem:[#allocation5 + $0xc8] sm:$0xf]
    %v207 = vld [vmem:[#allocation5 + $0xcc] sm:$0xf]
    %v208 = vld [vmem:[#allocation5 + $0xd0] sm:$0xf]
    %v209 = vld [vmem:[#allocation5 + $0xd4] sm:$0xf]
    %v210 = vld [vmem:[#allocation5 + $0xd8] sm:$0xf]
    %v211 = vld [vmem:[#allocation5 + $0xdc] sm:$0xf]
    %v212 = vld [vmem:[#allocation5 + $0xe0] sm:$0xf]
    %v213 = vld [vmem:[#allocation5 + $0xe4] sm:$0xf]
    %v214 = vld [vmem:[#allocation5 + $0xe8] sm:$0xf]
    %v215 = vld [vmem:[#allocation5 + $0xec] sm:$0xf]
    %v216 = vld [vmem:[#allocation5 + $0xf0] sm:$0xf]
    %v217 = vld [vmem:[#allocation5 + $0xf4] sm:$0xf]
    %v218 = vld [vmem:[#allocation5 + $0xf8] sm:$0xf]
    %v219 = vld [vmem:[#allocation5 + $0xfc] sm:$0xf]
    %v220 = vld [vmem:[#allocation5 + $0x100] sm:$0xf]
    %v221 = vld [vmem:[#allocation5 + $0x104] sm:$0xf]
    %v222 = vld [vmem:[#allocation5 + $0x108] sm:$0xf]
    %v223 = vld [vmem:[#allocation5 + $0x10c] sm:$0xf]
    %v224 = vld [vmem:[#allocation5 + $0x110] sm:$0xf]
    %v225 = vld [vmem:[#allocation5 + $0x114] sm:$0xf]
    %v226 = vld [vmem:[#allocation5 + $0x118] sm:$0xf]
    %v227 = vld [vmem:[#allocation5 + $0x11c] sm:$0xf]
    %v228 = vld [vmem:[#allocation5 + $0x120] sm:$0xf]
    %v229 = vld [vmem:[#allocation5 + $0x124] sm:$0xf]
    %v230 = vld [vmem:[#allocation5 + $0x128] sm:$0xf]
    %v231 = vld [vmem:[#allocation5 + $0x12c] sm:$0xf]
    %v232 = vld [vmem:[#allocation5 + $0x130] sm:$0xf]
    %v233 = vld [vmem:[#allocation5 + $0x134] sm:$0xf]
    %v234 = vld [vmem:[#allocation5 + $0x138] sm:$0xf]
    %v235 = vld [vmem:[#allocation5 + $0x13c] sm:$0xf]
    %v236 = vld [vmem:[#allocation5 + $0x140] sm:$0xf]
    %v237 = vld [vmem:[#allocation5 + $0x144] sm:$0xf]
    %v238 = vld [vmem:[#allocation5 + $0x148] sm:$0xf]
    %v239 = vld [vmem:[#allocation5 + $0x14c] sm:$0xf]
    %v240 = vld [vmem:[#allocation5 + $0x150] sm:$0xf]
    %v241 = vld [vmem:[#allocation5 + $0x154] sm:$0xf]
    %v242 = vld [vmem:[#allocation5 + $0x158] sm:$0xf]
    %v243 = vld [vmem:[#allocation5 + $0x15c] sm:$0xf]
    %v244 = vld [vmem:[#allocation5 + $0x160] sm:$0xf]
    %v245 = vld [vmem:[#allocation5 + $0x164] sm:$0xf]
    %v246 = vld [vmem:[#allocation5 + $0x168] sm:$0xf]
    %v247 = vld [vmem:[#allocation5 + $0x16c] sm:$0xf]
    %v248 = vld [vmem:[#allocation5 + $0x170] sm:$0xf]
    %v249 = vld [vmem:[#allocation5 + $0x174] sm:$0xf]
    %v250 = vld [vmem:[#allocation5 + $0x178] sm:$0xf]
    %v251 = vld [vmem:[#allocation5 + $0x17c] sm:$0xf]
    %v252 = vld [vmem:[#allocation5 + $0x180] sm:$0xf]
    %v253 = vld [vmem:[#allocation5 + $0x184] sm:$0xf]
    %v254 = vld [vmem:[#allocation5 + $0x188] sm:$0xf]
    %v255 = vld [vmem:[#allocation5 + $0x18c] sm:$0xf]
    %v256 = vld [vmem:[#allocation5 + $0x190] sm:$0xf]
    %v257 = vld [vmem:[#allocation5 + $0x194] sm:$0xf]
    %v258 = vld [vmem:[#allocation5 + $0x198] sm:$0xf]
    %v259 = vld [vmem:[#allocation5 + $0x19c] sm:$0xf]
    %v260 = vld [vmem:[#allocation5 + $0x1a0] sm:$0xf]
    %v261 = vld [vmem:[#allocation5 + $0x1a4] sm:$0xf]
    %v262 = vld [vmem:[#allocation5 + $0x1a8] sm:$0xf]
    %v263 = vld [vmem:[#allocation5 + $0x1ac] sm:$0xf]
    %v264 = vld [vmem:[#allocation5 + $0x1b0] sm:$0xf]
    %v265 = vld [vmem:[#allocation5 + $0x1b4] sm:$0xf]
    %v266 = vld [vmem:[#allocation5 + $0x1b8] sm:$0xf]
    %v267 = vld [vmem:[#allocation5 + $0x1bc] sm:$0xf]
    %v268 = vld [vmem:[#allocation5 + $0x1c0] sm:$0xf]
    %v269 = vld [vmem:[#allocation5 + $0x1c4] sm:$0xf]
    %v270 = vld [vmem:[#allocation5 + $0x1c8] sm:$0xf]
    %v271 = vld [vmem:[#allocation5 + $0x1cc] sm:$0xf]
    %v272 = vld [vmem:[#allocation5 + $0x1d0] sm:$0xf]
    %v273 = vld [vmem:[#allocation5 + $0x1d4] sm:$0xf]
    %v274 = vld [vmem:[#allocation5 + $0x1d8] sm:$0xf]
    %v275 = vld [vmem:[#allocation5 + $0x1dc] sm:$0xf]
    %v276 = vld [vmem:[#allocation5 + $0x1e0] sm:$0xf]
    %v277 = vld [vmem:[#allocation5 + $0x1e4] sm:$0xf]
    %v278 = vld [vmem:[#allocation5 + $0x1e8] sm:$0xf]
    %v279 = vld [vmem:[#allocation5 + $0x1ec] sm:$0xf]
    %v280 = vld [vmem:[#allocation5 + $0x1f0] sm:$0xf]
    %v281 = vld [vmem:[#allocation5 + $0x1f4] sm:$0xf]
    %v282 = vld [vmem:[#allocation5 + $0x1f8] sm:$0xf]
    %v283 = vld [vmem:[#allocation5 + $0x1fc] sm:$0xf]
    %v284 = vld [vmem:[#allocation5 + $0x200] sm:$0xf]
    %v285 = vld [vmem:[#allocation5 + $0x204] sm:$0xf]
    %v286 = vld [vmem:[#allocation5 + $0x208] sm:$0xf]
    %v287 = vld [vmem:[#allocation5 + $0x20c] sm:$0xf]
    %v288 = vld [vmem:[#allocation5 + $0x210] sm:$0xf]
    %v289 = vld [vmem:[#allocation5 + $0x214] sm:$0xf]
    %v290 = vld [vmem:[#allocation5 + $0x218] sm:$0xf]
    %v291 = vld [vmem:[#allocation5 + $0x21c] sm:$0xf]
    %v292 = vld [vmem:[#allocation5 + $0x220] sm:$0xf]
    %v293 = vld [vmem:[#allocation5 + $0x224] sm:$0xf]
    %v294 = vld [vmem:[#allocation5 + $0x228] sm:$0xf]
    %v295 = vld [vmem:[#allocation5 + $0x22c] sm:$0xf]
    %v296 = vld [vmem:[#allocation5 + $0x230] sm:$0xf]
    %v297 = vld [vmem:[#allocation5 + $0x234] sm:$0xf]
    %v298 = vld [vmem:[#allocation5 + $0x238] sm:$0xf]
    %v299 = vld [vmem:[#allocation5 + $0x23c] sm:$0xf]
    %v300 = vld [vmem:[#allocation5 + $0x240] sm:$0xf]
    %v301 = vld [vmem:[#allocation5 + $0x244] sm:$0xf]
    %v302 = vld [vmem:[#allocation5 + $0x248] sm:$0xf]
    %v303 = vld [vmem:[#allocation5 + $0x24c] sm:$0xf]
    %v304 = vld [vmem:[#allocation5 + $0x250] sm:$0xf]
    %v305 = vld [vmem:[#allocation5 + $0x254] sm:$0xf]
    %v306 = vld [vmem:[#allocation5 + $0x258] sm:$0xf]
    %v307 = vld [vmem:[#allocation5 + $0x25c] sm:$0xf]
    %v308 = vld [vmem:[#allocation5 + $0x260] sm:$0xf]
    %v309 = vld [vmem:[#allocation5 + $0x264] sm:$0xf]
    %v310 = vld [vmem:[#allocation5 + $0x268] sm:$0xf]
    %v311 = vld [vmem:[#allocation5 + $0x26c] sm:$0xf]
    %v312 = vld [vmem:[#allocation5 + $0x270] sm:$0xf]
    %v313 = vld [vmem:[#allocation5 + $0x274] sm:$0xf]
    %v314 = vld [vmem:[#allocation5 + $0x278] sm:$0xf]
    %v315 = vld [vmem:[#allocation5 + $0x27c] sm:$0xf]
    %v316 = vld [vmem:[#allocation5 + $0x280] sm:$0xf]
    %v317 = vld [vmem:[#allocation5 + $0x284] sm:$0xf]
    %v318 = vld [vmem:[#allocation5 + $0x288] sm:$0xf]
    %v319 = vld [vmem:[#allocation5 + $0x28c] sm:$0xf]
    %v320 = vld [vmem:[#allocation5 + $0x290] sm:$0xf]
    %v321 = vld [vmem:[#allocation5 + $0x294] sm:$0xf]
    %v322 = vld [vmem:[#allocation5 + $0x298] sm:$0xf]
    %v323 = vld [vmem:[#allocation5 + $0x29c] sm:$0xf]
    %v324 = vld [vmem:[#allocation5 + $0x2a0] sm:$0xf]
    %v325 = vld [vmem:[#allocation5 + $0x2a4] sm:$0xf]
    %v326 = vld [vmem:[#allocation5 + $0x2a8] sm:$0xf]
    %v327 = vld [vmem:[#allocation5 + $0x2ac] sm:$0xf]
    %v328 = vld [vmem:[#allocation5 + $0x2b0] sm:$0xf]
    %v329 = vld [vmem:[#allocation5 + $0x2b4] sm:$0xf]
    %v330 = vld [vmem:[#allocation5 + $0x2b8] sm:$0xf]
    %v331 = vld [vmem:[#allocation5 + $0x2bc] sm:$0xf]
    %v332 = vld [vmem:[#allocation5 + $0x2c0] sm:$0xf]
    %v333 = vld [vmem:[#allocation5 + $0x2c4] sm:$0xf]
    %v334 = vld [vmem:[#allocation5 + $0x2c8] sm:$0xf]
    %v335 = vld [vmem:[#allocation5 + $0x2cc] sm:$0xf]
    %v336 = vld [vmem:[#allocation5 + $0x2d0] sm:$0xf]
    %v337 = vld [vmem:[#allocation5 + $0x2d4] sm:$0xf]
    %v338 = vld [vmem:[#allocation5 + $0x2d8] sm:$0xf]
    %v339 = vld [vmem:[#allocation5 + $0x2dc] sm:$0xf]
    %v340 = vld [vmem:[#allocation5 + $0x2e0] sm:$0xf]
    %v341 = vld [vmem:[#allocation5 + $0x2e4] sm:$0xf]
    %v342 = vld [vmem:[#allocation5 + $0x2e8] sm:$0xf]
    %v343 = vld [vmem:[#allocation5 + $0x2ec] sm:$0xf]
    %v344 = vld [vmem:[#allocation5 + $0x2f0] sm:$0xf]
    %v345 = vld [vmem:[#allocation5 + $0x2f4] sm:$0xf]
    %v346 = vld [vmem:[#allocation5 + $0x2f8] sm:$0xf]
    %v347 = vld [vmem:[#allocation5 + $0x2fc] sm:$0xf]
    %v348 = vld [vmem:[#allocation5 + $0x300] sm:$0xf]
    %v349 = vld [vmem:[#allocation5 + $0x304] sm:$0xf]
    %v350 = vld [vmem:[#allocation5 + $0x308] sm:$0xf]
    %v351 = vld [vmem:[#allocation5 + $0x30c] sm:$0xf]
    %v352 = vld [vmem:[#allocation5 + $0x310] sm:$0xf]
    %v353 = vld [vmem:[#allocation5 + $0x314] sm:$0xf]
    %v354 = vld [vmem:[#allocation5 + $0x318] sm:$0xf]
    %v355 = vld [vmem:[#allocation5 + $0x31c] sm:$0xf]
    %v356 = vld [vmem:[#allocation5 + $0x320] sm:$0xf]
    %v357 = vld [vmem:[#allocation5 + $0x324] sm:$0xf]
    %v358 = vld [vmem:[#allocation5 + $0x328] sm:$0xf]
    %v359 = vld [vmem:[#allocation5 + $0x32c] sm:$0xf]
    %v360 = vld [vmem:[#allocation5 + $0x330] sm:$0xf]
    %v361 = vld [vmem:[#allocation5 + $0x334] sm:$0xf]
    %v362 = vld [vmem:[#allocation5 + $0x338] sm:$0xf]
    %v363 = vld [vmem:[#allocation5 + $0x33c] sm:$0xf]
    %v364 = vld [vmem:[#allocation5 + $0x340] sm:$0xf]
    %v365 = vld [vmem:[#allocation5 + $0x344] sm:$0xf]
    %v366 = vld [vmem:[#allocation5 + $0x348] sm:$0xf]
    %v367 = vld [vmem:[#allocation5 + $0x34c] sm:$0xf]
    %v368 = vld [vmem:[#allocation5 + $0x350] sm:$0xf]
    %v369 = vld [vmem:[#allocation5 + $0x354] sm:$0xf]
    %v370 = vld [vmem:[#allocation5 + $0x358] sm:$0xf]
    %v371 = vld [vmem:[#allocation5 + $0x35c] sm:$0xf]
    %v372 = vld [vmem:[#allocation5 + $0x360] sm:$0xf]
    %v373 = vld [vmem:[#allocation5 + $0x364] sm:$0xf]
    %v374 = vld [vmem:[#allocation5 + $0x368] sm:$0xf]
    %v375 = vld [vmem:[#allocation5 + $0x36c] sm:$0xf]
    %v376 = vld [vmem:[#allocation5 + $0x370] sm:$0xf]
    %v377 = vld [vmem:[#allocation5 + $0x374] sm:$0xf]
    %v378 = vld [vmem:[#allocation5 + $0x378] sm:$0xf]
    %v379 = vld [vmem:[#allocation5 + $0x37c] sm:$0xf]
    %v380 = vld [vmem:[#allocation5 + $0x380] sm:$0xf]
    %v381 = vld [vmem:[#allocation5 + $0x384] sm:$0xf]
    %v382 = vld [vmem:[#allocation5 + $0x388] sm:$0xf]
    %v383 = vld [vmem:[#allocation5 + $0x38c] sm:$0xf]
    %v384 = vld [vmem:[#allocation5 + $0x390] sm:$0xf]
    %v385 = vld [vmem:[#allocation5 + $0x394] sm:$0xf]
    %v386 = vld [vmem:[#allocation5 + $0x398] sm:$0xf]
    %v387 = vld [vmem:[#allocation5 + $0x39c] sm:$0xf]
    %v388 = vld [vmem:[#allocation5 + $0x3a0] sm:$0xf]
    %v389 = vld [vmem:[#allocation5 + $0x3a4] sm:$0xf]
    %v390 = vld [vmem:[#allocation5 + $0x3a8] sm:$0xf]
    %v391 = vld [vmem:[#allocation5 + $0x3ac] sm:$0xf]
    %v392 = vld [vmem:[#allocation5 + $0x3b0] sm:$0xf]
    %v393 = vld [vmem:[#allocation5 + $0x3b4] sm:$0xf]
    %v394 = vld [vmem:[#allocation5 + $0x3b8] sm:$0xf]
    %v395 = vld [vmem:[#allocation5 + $0x3bc] sm:$0xf]
    %v396 = vld [vmem:[#allocation5 + $0x3c0] sm:$0xf]
    %v397 = vld [vmem:[#allocation5 + $0x3c4] sm:$0xf]
    %v398 = vld [vmem:[#allocation5 + $0x3c8] sm:$0xf]
    %v399 = vld [vmem:[#allocation5 + $0x3cc] sm:$0xf]
    %v400 = vld [vmem:[#allocation5 + $0x3d0] sm:$0xf]
    %v401 = vld [vmem:[#allocation5 + $0x3d4] sm:$0xf]
    %v402 = vld [vmem:[#allocation5 + $0x3d8] sm:$0xf]
    %v403 = vld [vmem:[#allocation5 + $0x3dc] sm:$0xf]
    %v404 = vld [vmem:[#allocation5 + $0x3e0] sm:$0xf]
    %v405 = vld [vmem:[#allocation5 + $0x3e4] sm:$0xf]
    %v406 = vld [vmem:[#allocation5 + $0x3e8] sm:$0xf]
    %v407 = vld [vmem:[#allocation5 + $0x3ec] sm:$0xf]
    %v408 = vld [vmem:[#allocation5 + $0x3f0] sm:$0xf]
    %v409 = vld [vmem:[#allocation5 + $0x3f4] sm:$0xf]
    %v410 = vld [vmem:[#allocation5 + $0x3f8] sm:$0xf]
    %v411 = vld [vmem:[#allocation5 + $0x3fc] sm:$0xf]
    %v412 = vld [vmem:[#allocation5 + $0x400] sm:$0xf]
    %v413 = vld [vmem:[#allocation5 + $0x404] sm:$0xf]
    %v414 = vld [vmem:[#allocation5 + $0x408] sm:$0xf]
    %v415 = vld [vmem:[#allocation5 + $0x40c] sm:$0xf]
    %v416 = vld [vmem:[#allocation5 + $0x410] sm:$0xf]
    %v417 = vld [vmem:[#allocation5 + $0x414] sm:$0xf]
    %v418 = vld [vmem:[#allocation5 + $0x418] sm:$0xf]
    %v419 = vld [vmem:[#allocation5 + $0x41c] sm:$0xf]
    %v420 = vld [vmem:[#allocation5 + $0x420] sm:$0xf]
    %v421 = vld [vmem:[#allocation5 + $0x424] sm:$0xf]
    %v422 = vld [vmem:[#allocation5 + $0x428] sm:$0xf]
    %v423 = vld [vmem:[#allocation5 + $0x42c] sm:$0xf]
    %v424 = vld [vmem:[#allocation5 + $0x430] sm:$0xf]
    %v425 = vld [vmem:[#allocation5 + $0x434] sm:$0xf]
    %v426 = vld [vmem:[#allocation5 + $0x438] sm:$0xf]
    %v427 = vld [vmem:[#allocation5 + $0x43c] sm:$0xf]
    %v428 = vld [vmem:[#allocation5 + $0x440] sm:$0xf]
    %v429 = vld [vmem:[#allocation5 + $0x444] sm:$0xf]
    %v430 = vld [vmem:[#allocation5 + $0x448] sm:$0xf]
    %v431 = vld [vmem:[#allocation5 + $0x44c] sm:$0xf]
    %v432 = vld [vmem:[#allocation5 + $0x450] sm:$0xf]
    %v433 = vld [vmem:[#allocation5 + $0x454] sm:$0xf]
    %v434 = vld [vmem:[#allocation5 + $0x458] sm:$0xf]
    %v435 = vld [vmem:[#allocation5 + $0x45c] sm:$0xf]
    %v436 = vld [vmem:[#allocation5 + $0x460] sm:$0xf]
    %v437 = vld [vmem:[#allocation5 + $0x464] sm:$0xf]
    %v438 = vld [vmem:[#allocation5 + $0x468] sm:$0xf]
    %v439 = vld [vmem:[#allocation5 + $0x46c] sm:$0xf]
    %v440 = vld [vmem:[#allocation5 + $0x470] sm:$0xf]
    %v441 = vld [vmem:[#allocation5 + $0x474] sm:$0xf]
    %v442 = vld [vmem:[#allocation5 + $0x478] sm:$0xf]
    %v443 = vld [vmem:[#allocation5 + $0x47c] sm:$0xf]
    %v444 = vld [vmem:[#allocation5 + $0x480] sm:$0xf]
    %v445 = vld [vmem:[#allocation5 + $0x484] sm:$0xf]
    %v446 = vld [vmem:[#allocation5 + $0x488] sm:$0xf]
    %v447 = vld [vmem:[#allocation5 + $0x48c] sm:$0xf]
    %v448 = vld [vmem:[#allocation5 + $0x490] sm:$0xf]
    %v449 = vld [vmem:[#allocation5 + $0x494] sm:$0xf]
    %v450 = vld [vmem:[#allocation5 + $0x498] sm:$0xf]
    %v451 = vld [vmem:[#allocation5 + $0x49c] sm:$0xf]
    %v452 = vld [vmem:[#allocation5 + $0x4a0] sm:$0xf]
    %v453 = vld [vmem:[#allocation5 + $0x4a4] sm:$0xf]
    %v454 = vld [vmem:[#allocation5 + $0x4a8] sm:$0xf]
    %v455 = vld [vmem:[#allocation5 + $0x4ac] sm:$0xf]
    %v456 = vld [vmem:[#allocation5 + $0x4b0] sm:$0xf]
    %v457 = vld [vmem:[#allocation5 + $0x4b4] sm:$0xf]
    %v458 = vld [vmem:[#allocation5 + $0x4b8] sm:$0xf]
    %v459 = vld [vmem:[#allocation5 + $0x4bc] sm:$0xf]
    %v460 = vld [vmem:[#allocation5 + $0x4c0] sm:$0xf]
    %v461 = vld [vmem:[#allocation5 + $0x4c4] sm:$0xf]
    %v462 = vld [vmem:[#allocation5 + $0x4c8] sm:$0xf]
    %v463 = vld [vmem:[#allocation5 + $0x4cc] sm:$0xf]
    %v464 = vld [vmem:[#allocation5 + $0x4d0] sm:$0xf]
    %v465 = vld [vmem:[#allocation5 + $0x4d4] sm:$0xf]
    %v466 = vld [vmem:[#allocation5 + $0x4d8] sm:$0xf]
    %v467 = vld [vmem:[#allocation5 + $0x4dc] sm:$0xf]
    %v468 = vld [vmem:[#allocation5 + $0x4e0] sm:$0xf]
    %v469 = vld [vmem:[#allocation5 + $0x4e4] sm:$0xf]
    %v470 = vld [vmem:[#allocation5 + $0x4e8] sm:$0xf]
    %v471 = vld [vmem:[#allocation5 + $0x4ec] sm:$0xf]
    %v472 = vld [vmem:[#allocation5 + $0x4f0] sm:$0xf]
    %v473 = vld [vmem:[#allocation5 + $0x4f4] sm:$0xf]
    %v474 = vld [vmem:[#allocation5 + $0x4f8] sm:$0xf]
    %v475 = vld [vmem:[#allocation5 + $0x4fc] sm:$0xf]
    %v476 = vld [vmem:[#allocation5 + $0x500] sm:$0xf]
    %v477 = vld [vmem:[#allocation5 + $0x504] sm:$0xf]
    %v478 = vld [vmem:[#allocation5 + $0x508] sm:$0xf]
    %v479 = vld [vmem:[#allocation5 + $0x50c] sm:$0xf]
    %v480 = vld [vmem:[#allocation5 + $0x510] sm:$0xf]
    %v481 = vld [vmem:[#allocation5 + $0x514] sm:$0xf]
    %v482 = vld [vmem:[#allocation5 + $0x518] sm:$0xf]
    %v483 = vld [vmem:[#allocation5 + $0x51c] sm:$0xf]
    %v484 = vld [vmem:[#allocation5 + $0x520] sm:$0xf]
    %v485 = vld [vmem:[#allocation5 + $0x524] sm:$0xf]
    %v486 = vld [vmem:[#allocation5 + $0x528] sm:$0xf]
    %v487 = vld [vmem:[#allocation5 + $0x52c] sm:$0xf]
    %v488 = vld [vmem:[#allocation5 + $0x530] sm:$0xf]
    %v489 = vld [vmem:[#allocation5 + $0x534] sm:$0xf]
    %v490 = vld [vmem:[#allocation5 + $0x538] sm:$0xf]
    %v491 = vld [vmem:[#allocation5 + $0x53c] sm:$0xf]
    %v492 = vld [vmem:[#allocation5 + $0x540] sm:$0xf]
    %v493 = vld [vmem:[#allocation5 + $0x544] sm:$0xf]
    %v494 = vld [vmem:[#allocation5 + $0x548] sm:$0xf]
    %v495 = vld [vmem:[#allocation5 + $0x54c] sm:$0xf]
    %v496 = vld [vmem:[#allocation5 + $0x550] sm:$0xf]
    %v497 = vld [vmem:[#allocation5 + $0x554] sm:$0xf]
    %v498 = vld [vmem:[#allocation5 + $0x558] sm:$0xf]
    %v499 = vld [vmem:[#allocation5 + $0x55c] sm:$0xf]
    %v500 = vld [vmem:[#allocation5 + $0x560] sm:$0xf]
    %v501 = vld [vmem:[#allocation5 + $0x564] sm:$0xf]
    %v502 = vld [vmem:[#allocation5 + $0x568] sm:$0xf]
    %v503 = vld [vmem:[#allocation5 + $0x56c] sm:$0xf]
    %v504 = vld [vmem:[#allocation5 + $0x570] sm:$0xf]
    %v505 = vld [vmem:[#allocation5 + $0x574] sm:$0xf]
    %v506 = vld [vmem:[#allocation5 + $0x578] sm:$0xf]
    %v507 = vld [vmem:[#allocation5 + $0x57c] sm:$0xf]
    %v508 = vld [vmem:[#allocation5 + $0x580] sm:$0xf]
    %v509 = vld [vmem:[#allocation5 + $0x584] sm:$0xf]
    %v510 = vld [vmem:[#allocation5 + $0x588] sm:$0xf]
    %v511 = vld [vmem:[#allocation5 + $0x58c] sm:$0xf]
    %v512 = vld [vmem:[#allocation5 + $0x590] sm:$0xf]
    %v513 = vld [vmem:[#allocation5 + $0x594] sm:$0xf]
    %v514 = vld [vmem:[#allocation5 + $0x598] sm:$0xf]
    %v515 = vld [vmem:[#allocation5 + $0x59c] sm:$0xf]
    %v516 = vld [vmem:[#allocation5 + $0x5a0] sm:$0xf]
    %v517 = vld [vmem:[#allocation5 + $0x5a4] sm:$0xf]
    %v518 = vld [vmem:[#allocation5 + $0x5a8] sm:$0xf]
    %v519 = vld [vmem:[#allocation5 + $0x5ac] sm:$0xf]
    %v520 = vld [vmem:[#allocation5 + $0x5b0] sm:$0xf]
    %v521 = vld [vmem:[#allocation5 + $0x5b4] sm:$0xf]
    %v522 = vld [vmem:[#allocation5 + $0x5b8] sm:$0xf]
    %v523 = vld [vmem:[#allocation5 + $0x5bc] sm:$0xf]
    %v524 = vld [vmem:[#allocation5 + $0x5c0] sm:$0xf]
    %v525 = vld [vmem:[#allocation5 + $0x5c4] sm:$0xf]
    %v526 = vld [vmem:[#allocation5 + $0x5c8] sm:$0xf]
    %v527 = vld [vmem:[#allocation5 + $0x5cc] sm:$0xf]
    %v528 = vld [vmem:[#allocation5 + $0x5d0] sm:$0xf]
    %v529 = vld [vmem:[#allocation5 + $0x5d4] sm:$0xf]
    %v530 = vld [vmem:[#allocation5 + $0x5d8] sm:$0xf]
    %v531 = vld [vmem:[#allocation5 + $0x5dc] sm:$0xf]
    %v532 = vld [vmem:[#allocation5 + $0x5e0] sm:$0xf]
    %v533 = vld [vmem:[#allocation5 + $0x5e4] sm:$0xf]
    %v534 = vld [vmem:[#allocation5 + $0x5e8] sm:$0xf]
    %v535 = vld [vmem:[#allocation5 + $0x5ec] sm:$0xf]
    %v536 = vld [vmem:[#allocation5 + $0x5f0] sm:$0xf]
    %v537 = vld [vmem:[#allocation5 + $0x5f4] sm:$0xf]
    %v538 = vld [vmem:[#allocation5 + $0x5f8] sm:$0xf]
    %v539 = vld [vmem:[#allocation5 + $0x5fc] sm:$0xf]
    %v540 = vld [vmem:[#allocation5 + $0x600] sm:$0xf]
    %v541 = vld [vmem:[#allocation5 + $0x604] sm:$0xf]
    %v542 = vld [vmem:[#allocation5 + $0x608] sm:$0xf]
    %v543 = vld [vmem:[#allocation5 + $0x60c] sm:$0xf]
    %v544 = vld [vmem:[#allocation5 + $0x610] sm:$0xf]
    %v545 = vld [vmem:[#allocation5 + $0x614] sm:$0xf]
    %v546 = vld [vmem:[#allocation5 + $0x618] sm:$0xf]
    %v547 = vld [vmem:[#allocation5 + $0x61c] sm:$0xf]
    %v548 = vld [vmem:[#allocation5 + $0x620] sm:$0xf]
    %v549 = vld [vmem:[#allocation5 + $0x624] sm:$0xf]
    %v550 = vld [vmem:[#allocation5 + $0x628] sm:$0xf]
    %v551 = vld [vmem:[#allocation5 + $0x62c] sm:$0xf]
    %v552 = vld [vmem:[#allocation5 + $0x630] sm:$0xf]
    %v553 = vld [vmem:[#allocation5 + $0x634] sm:$0xf]
    %v554 = vld [vmem:[#allocation5 + $0x638] sm:$0xf]
    %v555 = vld [vmem:[#allocation5 + $0x63c] sm:$0xf]
    %v556 = vld [vmem:[#allocation5 + $0x640] sm:$0xf]
    %v557 = vld [vmem:[#allocation5 + $0x644] sm:$0xf]
    %v558 = vld [vmem:[#allocation5 + $0x648] sm:$0xf]
    %v559 = vld [vmem:[#allocation5 + $0x64c] sm:$0xf]
    %v560 = vld [vmem:[#allocation5 + $0x650] sm:$0xf]
    %v561 = vld [vmem:[#allocation5 + $0x654] sm:$0xf]
    %v562 = vld [vmem:[#allocation5 + $0x658] sm:$0xf]
    %v563 = vld [vmem:[#allocation5 + $0x65c] sm:$0xf]
    %v564 = vld [vmem:[#allocation5 + $0x660] sm:$0xf]
    %v565 = vld [vmem:[#allocation5 + $0x664] sm:$0xf]
    %v566 = vld [vmem:[#allocation5 + $0x668] sm:$0xf]
    %v567 = vld [vmem:[#allocation5 + $0x66c] sm:$0xf]
    %v568 = vld [vmem:[#allocation5 + $0x670] sm:$0xf]
    %v569 = vld [vmem:[#allocation5 + $0x674] sm:$0xf]
    %v570 = vld [vmem:[#allocation5 + $0x678] sm:$0xf]
    %v571 = vld [vmem:[#allocation5 + $0x67c] sm:$0xf]
    %v572 = vld [vmem:[#allocation5 + $0x680] sm:$0xf]
    %v573 = vld [vmem:[#allocation5 + $0x684] sm:$0xf]
    %v574 = vld [vmem:[#allocation5 + $0x688] sm:$0xf]
    %v575 = vld [vmem:[#allocation5 + $0x68c] sm:$0xf]
    %v576 = vld [vmem:[#allocation5 + $0x690] sm:$0xf]
    %v577 = vld [vmem:[#allocation5 + $0x694] sm:$0xf]
    %v578 = vld [vmem:[#allocation5 + $0x698] sm:$0xf]
    %v579 = vld [vmem:[#allocation5 + $0x69c] sm:$0xf]
    %v580 = vld [vmem:[#allocation5 + $0x6a0] sm:$0xf]
    %v581 = vld [vmem:[#allocation5 + $0x6a4] sm:$0xf]
    %v582 = vld [vmem:[#allocation5 + $0x6a8] sm:$0xf]
    %v583 = vld [vmem:[#allocation5 + $0x6ac] sm:$0xf]
    %v584 = vld [vmem:[#allocation5 + $0x6b0] sm:$0xf]
    %v585 = vld [vmem:[#allocation5 + $0x6b4] sm:$0xf]
    %v586 = vld [vmem:[#allocation5 + $0x6b8] sm:$0xf]
    %v587 = vld [vmem:[#allocation5 + $0x6bc] sm:$0xf]
    %v588 = vld [vmem:[#allocation5 + $0x6c0] sm:$0xf]
    %v589 = vld [vmem:[#allocation5 + $0x6c4] sm:$0xf]
    %v590 = vld [vmem:[#allocation5 + $0x6c8] sm:$0xf]
    %v591 = vld [vmem:[#allocation5 + $0x6cc] sm:$0xf]
    %v592 = vld [vmem:[#allocation5 + $0x6d0] sm:$0xf]
    %v593 = vld [vmem:[#allocation5 + $0x6d4] sm:$0xf]
    %v594 = vld [vmem:[#allocation5 + $0x6d8] sm:$0xf]
    %v595 = vld [vmem:[#allocation5 + $0x6dc] sm:$0xf]
    %v596 = vld [vmem:[#allocation5 + $0x6e0] sm:$0xf]
    %v597 = vld [vmem:[#allocation5 + $0x6e4] sm:$0xf]
    %v598 = vld [vmem:[#allocation5 + $0x6e8] sm:$0xf]
    %v599 = vld [vmem:[#allocation5 + $0x6ec] sm:$0xf]
    %v600 = vld [vmem:[#allocation5 + $0x6f0] sm:$0xf]
    %v601 = vld [vmem:[#allocation5 + $0x6f4] sm:$0xf]
    %v602 = vld [vmem:[#allocation5 + $0x6f8] sm:$0xf]
    %v603 = vld [vmem:[#allocation5 + $0x6fc] sm:$0xf]
    %v604 = vld [vmem:[#allocation5 + $0x700] sm:$0xf]
    %v605 = vld [vmem:[#allocation5 + $0x704] sm:$0xf]
    %v606 = vld [vmem:[#allocation5 + $0x708] sm:$0xf]
    %v607 = vld [vmem:[#allocation5 + $0x70c] sm:$0xf]
    %v608 = vld [vmem:[#allocation5 + $0x710] sm:$0xf]
    %v609 = vld [vmem:[#allocation5 + $0x714] sm:$0xf]
    %v610 = vld [vmem:[#allocation5 + $0x718] sm:$0xf]
    %v611 = vld [vmem:[#allocation5 + $0x71c] sm:$0xf]
    %v612 = vld [vmem:[#allocation5 + $0x720] sm:$0xf]
    %v613 = vld [vmem:[#allocation5 + $0x724] sm:$0xf]
    %v614 = vld [vmem:[#allocation5 + $0x728] sm:$0xf]
    %v615 = vld [vmem:[#allocation5 + $0x72c] sm:$0xf]
    %v616 = vld [vmem:[#allocation5 + $0x730] sm:$0xf]
    %v617 = vld [vmem:[#allocation5 + $0x734] sm:$0xf]
    %v618 = vld [vmem:[#allocation5 + $0x738] sm:$0xf]
    %v619 = vld [vmem:[#allocation5 + $0x73c] sm:$0xf]
    %v620 = vld [vmem:[#allocation5 + $0x740] sm:$0xf]
    %v621 = vld [vmem:[#allocation5 + $0x744] sm:$0xf]
    %v622 = vld [vmem:[#allocation5 + $0x748] sm:$0xf]
    %v623 = vld [vmem:[#allocation5 + $0x74c] sm:$0xf]
    %v624 = vld [vmem:[#allocation5 + $0x750] sm:$0xf]
    %v625 = vld [vmem:[#allocation5 + $0x754] sm:$0xf]
    %v626 = vld [vmem:[#allocation5 + $0x758] sm:$0xf]
    %v627 = vld [vmem:[#allocation5 + $0x75c] sm:$0xf]
    %v628 = vld [vmem:[#allocation5 + $0x760] sm:$0xf]
    %v629 = vld [vmem:[#allocation5 + $0x764] sm:$0xf]
    %v630 = vld [vmem:[#allocation5 + $0x768] sm:$0xf]
    %v631 = vld [vmem:[#allocation5 + $0x76c] sm:$0xf]
    %v632 = vld [vmem:[#allocation5 + $0x770] sm:$0xf]
    %v633 = vld [vmem:[#allocation5 + $0x774] sm:$0xf]
    %v634 = vld [vmem:[#allocation5 + $0x778] sm:$0xf]
    %v635 = vld [vmem:[#allocation5 + $0x77c] sm:$0xf]
    %v636 = vld [vmem:[#allocation5 + $0x780] sm:$0xf]
    %v637 = vld [vmem:[#allocation5 + $0x784] sm:$0xf]
    %v638 = vld [vmem:[#allocation5 + $0x788] sm:$0xf]
    %v639 = vld [vmem:[#allocation5 + $0x78c] sm:$0xf]
    %v640 = vld [vmem:[#allocation5 + $0x790] sm:$0xf]
    %v641 = vld [vmem:[#allocation5 + $0x794] sm:$0xf]
    %v642 = vld [vmem:[#allocation5 + $0x798] sm:$0xf]
    %v643 = vld [vmem:[#allocation5 + $0x79c] sm:$0xf]
    %v644 = vld [vmem:[#allocation5 + $0x7a0] sm:$0xf]
    %v645 = vld [vmem:[#allocation5 + $0x7a4] sm:$0xf]
    %v646 = vld [vmem:[#allocation5 + $0x7a8] sm:$0xf]
    %v647 = vld [vmem:[#allocation5 + $0x7ac] sm:$0xf]
    %v648 = vld [vmem:[#allocation5 + $0x7b0] sm:$0xf]
    %v649 = vld [vmem:[#allocation5 + $0x7b4] sm:$0xf]
    %v650 = vld [vmem:[#allocation5 + $0x7b8] sm:$0xf]
    %v651 = vld [vmem:[#allocation5 + $0x7bc] sm:$0xf]
    %v652 = vld [vmem:[#allocation5 + $0x7c0] sm:$0xf]
    %v653 = vld [vmem:[#allocation5 + $0x7c4] sm:$0xf]
    %v654 = vld [vmem:[#allocation5 + $0x7c8] sm:$0xf]
    %v655 = vld [vmem:[#allocation5 + $0x7cc] sm:$0xf]
    %v656 = vld [vmem:[#allocation5 + $0x7d0] sm:$0xf]
    %v657 = vld [vmem:[#allocation5 + $0x7d4] sm:$0xf]
    %v658 = vld [vmem:[#allocation5 + $0x7d8] sm:$0xf]
    %v659 = vld [vmem:[#allocation5 + $0x7dc] sm:$0xf]
    %v660 = vld [vmem:[#allocation5 + $0x7e0] sm:$0xf]
    %v661 = vld [vmem:[#allocation5 + $0x7e4] sm:$0xf]
    %v662 = vld [vmem:[#allocation5 + $0x7e8] sm:$0xf]
    %v663 = vld [vmem:[#allocation5 + $0x7ec] sm:$0xf]
    %v664 = vld [vmem:[#allocation5 + $0x7f0] sm:$0xf]
    %v665 = vld [vmem:[#allocation5 + $0x7f4] sm:$0xf]
    %v666 = vld [vmem:[#allocation5 + $0x7f8] sm:$0xf]
    %v667 = vld [vmem:[#allocation5 + $0x7fc] sm:$0xf]
    %v668 = vld [vmem:[#allocation5 + $0x800] sm:$0xf]
    %v669 = vld [vmem:[#allocation5 + $0x804] sm:$0xf]
    %v670 = vld [vmem:[#allocation5 + $0x808] sm:$0xf]
    %v671 = vld [vmem:[#allocation5 + $0x80c] sm:$0xf]
    %v672 = vld [vmem:[#allocation5 + $0x810] sm:$0xf]
    %v673 = vld [vmem:[#allocation5 + $0x814] sm:$0xf]
    %v674 = vld [vmem:[#allocation5 + $0x818] sm:$0xf]
    %v675 = vld [vmem:[#allocation5 + $0x81c] sm:$0xf]
    %v676 = vld [vmem:[#allocation5 + $0x820] sm:$0xf]
    %v677 = vld [vmem:[#allocation5 + $0x824] sm:$0xf]
    %v678 = vld [vmem:[#allocation5 + $0x828] sm:$0xf]
    %v679 = vld [vmem:[#allocation5 + $0x82c] sm:$0xf]
    %v680 = vld [vmem:[#allocation5 + $0x830] sm:$0xf]
    %v681 = vld [vmem:[#allocation5 + $0x834] sm:$0xf]
    %v682 = vld [vmem:[#allocation5 + $0x838] sm:$0xf]
    %v683 = vld [vmem:[#allocation5 + $0x83c] sm:$0xf]
    %v684 = vld [vmem:[#allocation5 + $0x840] sm:$0xf]
    %v685 = vld [vmem:[#allocation5 + $0x844] sm:$0xf]
    %v686 = vld [vmem:[#allocation5 + $0x848] sm:$0xf]
    %v687 = vld [vmem:[#allocation5 + $0x84c] sm:$0xf]
    %v688 = vld [vmem:[#allocation5 + $0x850] sm:$0xf]
    %v689 = vld [vmem:[#allocation5 + $0x854] sm:$0xf]
    %v690 = vld [vmem:[#allocation5 + $0x858] sm:$0xf]
    %v691 = vld [vmem:[#allocation5 + $0x85c] sm:$0xf]
    %v692 = vld [vmem:[#allocation5 + $0x860] sm:$0xf]
    %v693 = vld [vmem:[#allocation5 + $0x864] sm:$0xf]
    %v694 = vld [vmem:[#allocation5 + $0x868] sm:$0xf]
    %v695 = vld [vmem:[#allocation5 + $0x86c] sm:$0xf]
    %v696 = vld [vmem:[#allocation5 + $0x870] sm:$0xf]
    %v697 = vld [vmem:[#allocation5 + $0x874] sm:$0xf]
    %v698 = vld [vmem:[#allocation5 + $0x878] sm:$0xf]
    %v699 = vld [vmem:[#allocation5 + $0x87c] sm:$0xf]
    %v700 = vld [vmem:[#allocation5 + $0x880] sm:$0xf]
    %v701 = vld [vmem:[#allocation5 + $0x884] sm:$0xf]
    %v702 = vld [vmem:[#allocation5 + $0x888] sm:$0xf]
    %v703 = vld [vmem:[#allocation5 + $0x88c] sm:$0xf]
    %v704 = vld [vmem:[#allocation5 + $0x890] sm:$0xf]
    %v705 = vld [vmem:[#allocation5 + $0x894] sm:$0xf]
    %v706 = vld [vmem:[#allocation5 + $0x898] sm:$0xf]
    %v707 = vld [vmem:[#allocation5 + $0x89c] sm:$0xf]
    %v708 = vld [vmem:[#allocation5 + $0x8a0] sm:$0xf]
    %v709 = vld [vmem:[#allocation5 + $0x8a4] sm:$0xf]
    %v710 = vld [vmem:[#allocation5 + $0x8a8] sm:$0xf]
    %v711 = vld [vmem:[#allocation5 + $0x8ac] sm:$0xf]
    %v712 = vld [vmem:[#allocation5 + $0x8b0] sm:$0xf]
    %v713 = vld [vmem:[#allocation5 + $0x8b4] sm:$0xf]
    %v714 = vld [vmem:[#allocation5 + $0x8b8] sm:$0xf]
    %v715 = vld [vmem:[#allocation5 + $0x8bc] sm:$0xf]
    %v716 = vld [vmem:[#allocation5 + $0x8c0] sm:$0xf]
    %v717 = vld [vmem:[#allocation5 + $0x8c4] sm:$0xf]
    %v718 = vld [vmem:[#allocation5 + $0x8c8] sm:$0xf]
    %v719 = vld [vmem:[#allocation5 + $0x8cc] sm:$0xf]
    %v720 = vld [vmem:[#allocation5 + $0x8d0] sm:$0xf]
    %v721 = vld [vmem:[#allocation5 + $0x8d4] sm:$0xf]
    %v722 = vld [vmem:[#allocation5 + $0x8d8] sm:$0xf]
    %v723 = vld [vmem:[#allocation5 + $0x8dc] sm:$0xf]
    %v724 = vld [vmem:[#allocation5 + $0x8e0] sm:$0xf]
    %v725 = vld [vmem:[#allocation5 + $0x8e4] sm:$0xf]
    %v726 = vld [vmem:[#allocation5 + $0x8e8] sm:$0xf]
    %v727 = vld [vmem:[#allocation5 + $0x8ec] sm:$0xf]
    %v728 = vld [vmem:[#allocation5 + $0x8f0] sm:$0xf]
    %v729 = vld [vmem:[#allocation5 + $0x8f4] sm:$0xf]
    %v730 = vld [vmem:[#allocation5 + $0x8f8] sm:$0xf]
    %v731 = vld [vmem:[#allocation5 + $0x8fc] sm:$0xf]
    %v732 = vld [vmem:[#allocation5 + $0x900] sm:$0xf]
    %v733 = vld [vmem:[#allocation5 + $0x904] sm:$0xf]
    %v734 = vld [vmem:[#allocation5 + $0x908] sm:$0xf]
    %v735 = vld [vmem:[#allocation5 + $0x90c] sm:$0xf]
    %v736 = vld [vmem:[#allocation5 + $0x910] sm:$0xf]
    %v737 = vld [vmem:[#allocation5 + $0x914] sm:$0xf]
    %v738 = vld [vmem:[#allocation5 + $0x918] sm:$0xf]
    %v739 = vld [vmem:[#allocation5 + $0x91c] sm:$0xf]
    %v740 = vld [vmem:[#allocation5 + $0x920] sm:$0xf]
    %v741 = vld [vmem:[#allocation5 + $0x924] sm:$0xf]
    %v742 = vld [vmem:[#allocation5 + $0x928] sm:$0xf]
    %v743 = vld [vmem:[#allocation5 + $0x92c] sm:$0xf]
    %v744 = vld [vmem:[#allocation5 + $0x930] sm:$0xf]
    %v745 = vld [vmem:[#allocation5 + $0x934] sm:$0xf]
    %v746 = vld [vmem:[#allocation5 + $0x938] sm:$0xf]
    %v747 = vld [vmem:[#allocation5 + $0x93c] sm:$0xf]
    %v748 = vld [vmem:[#allocation5 + $0x940] sm:$0xf]
    %v749 = vld [vmem:[#allocation5 + $0x944] sm:$0xf]
    %v750 = vld [vmem:[#allocation5 + $0x948] sm:$0xf]
    %v751 = vld [vmem:[#allocation5 + $0x94c] sm:$0xf]
    %v752 = vld [vmem:[#allocation5 + $0x950] sm:$0xf]
    %v753 = vld [vmem:[#allocation5 + $0x954] sm:$0xf]
    %v754 = vld [vmem:[#allocation5 + $0x958] sm:$0xf]
    %v755 = vld [vmem:[#allocation5 + $0x95c] sm:$0xf]
    %v756 = vld [vmem:[#allocation5 + $0x960] sm:$0xf]
    %v757 = vld [vmem:[#allocation5 + $0x964] sm:$0xf]
    %v758 = vld [vmem:[#allocation5 + $0x968] sm:$0xf]
    %v759 = vld [vmem:[#allocation5 + $0x96c] sm:$0xf]
    %v760 = vld [vmem:[#allocation5 + $0x970] sm:$0xf]
    %v761 = vld [vmem:[#allocation5 + $0x974] sm:$0xf]
    %v762 = vld [vmem:[#allocation5 + $0x978] sm:$0xf]
    %v763 = vld [vmem:[#allocation5 + $0x97c] sm:$0xf]
    %v764 = vld [vmem:[#allocation5 + $0x980] sm:$0xf]
    %v765 = vld [vmem:[#allocation5 + $0x984] sm:$0xf]
    %v766 = vld [vmem:[#allocation5 + $0x988] sm:$0xf]
    %v767 = vld [vmem:[#allocation5 + $0x98c] sm:$0xf]
    %v768 = vld [vmem:[#allocation5 + $0x990] sm:$0xf]
    %v769 = vld [vmem:[#allocation5 + $0x994] sm:$0xf]
    %v770 = vld [vmem:[#allocation5 + $0x998] sm:$0xf]
    %v771 = vld [vmem:[#allocation5 + $0x99c] sm:$0xf]
    %v772 = vld [vmem:[#allocation5 + $0x9a0] sm:$0xf]
    %v773 = vld [vmem:[#allocation5 + $0x9a4] sm:$0xf]
    %v774 = vld [vmem:[#allocation5 + $0x9a8] sm:$0xf]
    %v775 = vld [vmem:[#allocation5 + $0x9ac] sm:$0xf]
    %v776 = vld [vmem:[#allocation5 + $0x9b0] sm:$0xf]
    %v777 = vld [vmem:[#allocation5 + $0x9b4] sm:$0xf]
    %v778 = vld [vmem:[#allocation5 + $0x9b8] sm:$0xf]
    %v779 = vld [vmem:[#allocation5 + $0x9bc] sm:$0xf]
    %v780 = vld [vmem:[#allocation5 + $0x9c0] sm:$0xf]
    %v781 = vld [vmem:[#allocation5 + $0x9c4] sm:$0xf]
    %v782 = vld [vmem:[#allocation5 + $0x9c8] sm:$0xf]
    %v783 = vld [vmem:[#allocation5 + $0x9cc] sm:$0xf]
    %v784 = vld [vmem:[#allocation5 + $0x9d0] sm:$0xf]
    %v785 = vld [vmem:[#allocation5 + $0x9d4] sm:$0xf]
    %v786 = vld [vmem:[#allocation5 + $0x9d8] sm:$0xf]
    %v787 = vld [vmem:[#allocation5 + $0x9dc] sm:$0xf]
    %v788 = vld [vmem:[#allocation5 + $0x9e0] sm:$0xf]
    %v789 = vld [vmem:[#allocation5 + $0x9e4] sm:$0xf]
    %v790 = vld [vmem:[#allocation5 + $0x9e8] sm:$0xf]
    %v791 = vld [vmem:[#allocation5 + $0x9ec] sm:$0xf]
    %v792 = vld [vmem:[#allocation5 + $0x9f0] sm:$0xf]
    %v793 = vld [vmem:[#allocation5 + $0x9f4] sm:$0xf]
    %v794 = vld [vmem:[#allocation5 + $0x9f8] sm:$0xf]
    %v795 = vld [vmem:[#allocation5 + $0x9fc] sm:$0xf]
    %v796 = vld [vmem:[#allocation5 + $0xa00] sm:$0xf]
    %v797 = vld [vmem:[#allocation5 + $0xa04] sm:$0xf]
    %v798 = vld [vmem:[#allocation5 + $0xa08] sm:$0xf]
    %v799 = vld [vmem:[#allocation5 + $0xa0c] sm:$0xf]
    %v800 = vld [vmem:[#allocation5 + $0xa10] sm:$0xf]
    %v801 = vld [vmem:[#allocation5 + $0xa14] sm:$0xf]
    %v802 = vld [vmem:[#allocation5 + $0xa18] sm:$0xf]
    %v803 = vld [vmem:[#allocation5 + $0xa1c] sm:$0xf]
    %v804 = vld [vmem:[#allocation5 + $0xa20] sm:$0xf]
    %v805 = vld [vmem:[#allocation5 + $0xa24] sm:$0xf]
    %v806 = vld [vmem:[#allocation5 + $0xa28] sm:$0xf]
    %v807 = vld [vmem:[#allocation5 + $0xa2c] sm:$0xf]
    %v808 = vld [vmem:[#allocation5 + $0xa30] sm:$0xf]
    %v809 = vld [vmem:[#allocation5 + $0xa34] sm:$0xf]
    %v810 = vld [vmem:[#allocation5 + $0xa38] sm:$0xf]
    %v811 = vld [vmem:[#allocation5 + $0xa3c] sm:$0xf]
    %v812 = vld [vmem:[#allocation5 + $0xa40] sm:$0xf]
    %v813 = vld [vmem:[#allocation5 + $0xa44] sm:$0xf]
    %v814 = vld [vmem:[#allocation5 + $0xa48] sm:$0xf]
    %v815 = vld [vmem:[#allocation5 + $0xa4c] sm:$0xf]
    %v816 = vld [vmem:[#allocation5 + $0xa50] sm:$0xf]
    %v817 = vld [vmem:[#allocation5 + $0xa54] sm:$0xf]
    %v818 = vld [vmem:[#allocation5 + $0xa58] sm:$0xf]
    %v819 = vld [vmem:[#allocation5 + $0xa5c] sm:$0xf]
    %v820 = vld [vmem:[#allocation5 + $0xa60] sm:$0xf]
    %v821 = vld [vmem:[#allocation5 + $0xa64] sm:$0xf]
    %v822 = vld [vmem:[#allocation5 + $0xa68] sm:$0xf]
    %v823 = vld [vmem:[#allocation5 + $0xa6c] sm:$0xf]
    %v824 = vld [vmem:[#allocation5 + $0xa70] sm:$0xf]
    %v825 = vld [vmem:[#allocation5 + $0xa74] sm:$0xf]
    %v826 = vld [vmem:[#allocation5 + $0xa78] sm:$0xf]
    %v827 = vld [vmem:[#allocation5 + $0xa7c] sm:$0xf]
    %v828 = vld [vmem:[#allocation5 + $0xa80] sm:$0xf]
    %v829 = vld [vmem:[#allocation5 + $0xa84] sm:$0xf]
    %v830 = vld [vmem:[#allocation5 + $0xa88] sm:$0xf]
    %v831 = vld [vmem:[#allocation5 + $0xa8c] sm:$0xf]
    %v832 = vld [vmem:[#allocation5 + $0xa90] sm:$0xf]
    %v833 = vld [vmem:[#allocation5 + $0xa94] sm:$0xf]
    %v834 = vld [vmem:[#allocation5 + $0xa98] sm:$0xf]
    %v835 = vld [vmem:[#allocation5 + $0xa9c] sm:$0xf]
    %v836 = vld [vmem:[#allocation5 + $0xaa0] sm:$0xf]
    %v837 = vld [vmem:[#allocation5 + $0xaa4] sm:$0xf]
    %v838 = vld [vmem:[#allocation5 + $0xaa8] sm:$0xf]
    %v839 = vld [vmem:[#allocation5 + $0xaac] sm:$0xf]
    %v840 = vld [vmem:[#allocation5 + $0xab0] sm:$0xf]
    %v841 = vld [vmem:[#allocation5 + $0xab4] sm:$0xf]
    %v842 = vld [vmem:[#allocation5 + $0xab8] sm:$0xf]
    %v843 = vld [vmem:[#allocation5 + $0xabc] sm:$0xf]
    %v844 = vld [vmem:[#allocation5 + $0xac0] sm:$0xf]
    %v845 = vld [vmem:[#allocation5 + $0xac4] sm:$0xf]
    %v846 = vld [vmem:[#allocation5 + $0xac8] sm:$0xf]
    %v847 = vld [vmem:[#allocation5 + $0xacc] sm:$0xf]
    %v848 = vld [vmem:[#allocation5 + $0xad0] sm:$0xf]
    %v849 = vld [vmem:[#allocation5 + $0xad4] sm:$0xf]
    %v850 = vld [vmem:[#allocation5 + $0xad8] sm:$0xf]
    %v851 = vld [vmem:[#allocation5 + $0xadc] sm:$0xf]
    %v852 = vld [vmem:[#allocation5 + $0xae0] sm:$0xf]
    %v853 = vld [vmem:[#allocation5 + $0xae4] sm:$0xf]
    %v854 = vld [vmem:[#allocation5 + $0xae8] sm:$0xf]
    %v855 = vld [vmem:[#allocation5 + $0xaec] sm:$0xf]
    %v856 = vld [vmem:[#allocation5 + $0xaf0] sm:$0xf]
    %v857 = vld [vmem:[#allocation5 + $0xaf4] sm:$0xf]
    %v858 = vld [vmem:[#allocation5 + $0xaf8] sm:$0xf]
    %v859 = vld [vmem:[#allocation5 + $0xafc] sm:$0xf]
    %v860 = vld [vmem:[#allocation5 + $0xb00] sm:$0xf]
    %v861 = vld [vmem:[#allocation5 + $0xb04] sm:$0xf]
    %v862 = vld [vmem:[#allocation5 + $0xb08] sm:$0xf]
    %v863 = vld [vmem:[#allocation5 + $0xb0c] sm:$0xf]
    %v864 = vld [vmem:[#allocation5 + $0xb10] sm:$0xf]
    %v865 = vld [vmem:[#allocation5 + $0xb14] sm:$0xf]
    %v866 = vld [vmem:[#allocation5 + $0xb18] sm:$0xf]
    %v867 = vld [vmem:[#allocation5 + $0xb1c] sm:$0xf]
    %v868 = vld [vmem:[#allocation5 + $0xb20] sm:$0xf]
    %v869 = vld [vmem:[#allocation5 + $0xb24] sm:$0xf]
    %v870 = vld [vmem:[#allocation5 + $0xb28] sm:$0xf]
    %v871 = vld [vmem:[#allocation5 + $0xb2c] sm:$0xf]
    %v872 = vld [vmem:[#allocation5 + $0xb30] sm:$0xf]
    %v873 = vld [vmem:[#allocation5 + $0xb34] sm:$0xf]
    %v874 = vld [vmem:[#allocation5 + $0xb38] sm:$0xf]
    %v875 = vld [vmem:[#allocation5 + $0xb3c] sm:$0xf]
    %v876 = vld [vmem:[#allocation5 + $0xb40] sm:$0xf]
    %v877 = vld [vmem:[#allocation5 + $0xb44] sm:$0xf]
    %v878 = vld [vmem:[#allocation5 + $0xb48] sm:$0xf]
    %v879 = vld [vmem:[#allocation5 + $0xb4c] sm:$0xf]
    %v880 = vld [vmem:[#allocation5 + $0xb50] sm:$0xf]
    %v881 = vld [vmem:[#allocation5 + $0xb54] sm:$0xf]
    %v882 = vld [vmem:[#allocation5 + $0xb58] sm:$0xf]
    %v883 = vld [vmem:[#allocation5 + $0xb5c] sm:$0xf]
    %v884 = vld [vmem:[#allocation5 + $0xb60] sm:$0xf]
    %v885 = vld [vmem:[#allocation5 + $0xb64] sm:$0xf]
    %v886 = vld [vmem:[#allocation5 + $0xb68] sm:$0xf]
    %v887 = vld [vmem:[#allocation5 + $0xb6c] sm:$0xf]
    %v888 = vld [vmem:[#allocation5 + $0xb70] sm:$0xf]
    %v889 = vld [vmem:[#allocation5 + $0xb74] sm:$0xf]
    %v890 = vld [vmem:[#allocation5 + $0xb78] sm:$0xf]
    %v891 = vld [vmem:[#allocation5 + $0xb7c] sm:$0xf]
    %v892 = vld [vmem:[#allocation5 + $0xb80] sm:$0xf]
    %v893 = vld [vmem:[#allocation5 + $0xb84] sm:$0xf]
    %v894 = vld [vmem:[#allocation5 + $0xb88] sm:$0xf]
    %v895 = vld [vmem:[#allocation5 + $0xb8c] sm:$0xf]
    %v896 = vld [vmem:[#allocation5 + $0xb90] sm:$0xf]
    %v897 = vld [vmem:[#allocation5 + $0xb94] sm:$0xf]
    %v898 = vld [vmem:[#allocation5 + $0xb98] sm:$0xf]
    %v899 = vld [vmem:[#allocation5 + $0xb9c] sm:$0xf]
    %v900 = vld [vmem:[#allocation5 + $0xba0] sm:$0xf]
    %v901 = vld [vmem:[#allocation5 + $0xba4] sm:$0xf]
    %v902 = vld [vmem:[#allocation5 + $0xba8] sm:$0xf]
    %v903 = vld [vmem:[#allocation5 + $0xbac] sm:$0xf]
    %v904 = vld [vmem:[#allocation5 + $0xbb0] sm:$0xf]
    %v905 = vld [vmem:[#allocation5 + $0xbb4] sm:$0xf]
    %v906 = vld [vmem:[#allocation5 + $0xbb8] sm:$0xf]
    %v907 = vld [vmem:[#allocation5 + $0xbbc] sm:$0xf]
    %v908 = vld [vmem:[#allocation5 + $0xbc0] sm:$0xf]
    %v909 = vld [vmem:[#allocation5 + $0xbc4] sm:$0xf]
    %v910 = vld [vmem:[#allocation5 + $0xbc8] sm:$0xf]
    %v911 = vld [vmem:[#allocation5 + $0xbcc] sm:$0xf]
    %v912 = vld [vmem:[#allocation5 + $0xbd0] sm:$0xf]
    %v913 = vld [vmem:[#allocation5 + $0xbd4] sm:$0xf]
    %v914 = vld [vmem:[#allocation5 + $0xbd8] sm:$0xf]
    %v915 = vld [vmem:[#allocation5 + $0xbdc] sm:$0xf]
    %v916 = vld [vmem:[#allocation5 + $0xbe0] sm:$0xf]
    %v917 = vld [vmem:[#allocation5 + $0xbe4] sm:$0xf]
    %v918 = vld [vmem:[#allocation5 + $0xbe8] sm:$0xf]
    %v919 = vld [vmem:[#allocation5 + $0xbec] sm:$0xf]
    %v920 = vld [vmem:[#allocation5 + $0xbf0] sm:$0xf]
    %v921 = vld [vmem:[#allocation5 + $0xbf4] sm:$0xf]
    %v922 = vld [vmem:[#allocation5 + $0xbf8] sm:$0xf]
    %v923 = vld [vmem:[#allocation5 + $0xbfc] sm:$0xf]
    %v924 = vld [vmem:[#allocation5 + $0xc00] sm:$0xf]
    %v925 = vld [vmem:[#allocation5 + $0xc04] sm:$0xf]
    %v926 = vld [vmem:[#allocation5 + $0xc08] sm:$0xf]
    %v927 = vld [vmem:[#allocation5 + $0xc0c] sm:$0xf]
    %v928 = vld [vmem:[#allocation5 + $0xc10] sm:$0xf]
    %v929 = vld [vmem:[#allocation5 + $0xc14] sm:$0xf]
    %v930 = vld [vmem:[#allocation5 + $0xc18] sm:$0xf]
    %v931 = vld [vmem:[#allocation5 + $0xc1c] sm:$0xf]
    %v932 = vld [vmem:[#allocation5 + $0xc20] sm:$0xf]
    %v933 = vld [vmem:[#allocation5 + $0xc24] sm:$0xf]
    %v934 = vld [vmem:[#allocation5 + $0xc28] sm:$0xf]
    %v935 = vld [vmem:[#allocation5 + $0xc2c] sm:$0xf]
    %v936 = vld [vmem:[#allocation5 + $0xc30] sm:$0xf]
    %v937 = vld [vmem:[#allocation5 + $0xc34] sm:$0xf]
    %v938 = vld [vmem:[#allocation5 + $0xc38] sm:$0xf]
    %v939 = vld [vmem:[#allocation5 + $0xc3c] sm:$0xf]
    %v940 = vld [vmem:[#allocation5 + $0xc40] sm:$0xf]
    %v941 = vld [vmem:[#allocation5 + $0xc44] sm:$0xf]
    %v942 = vld [vmem:[#allocation5 + $0xc48] sm:$0xf]
    %v943 = vld [vmem:[#allocation5 + $0xc4c] sm:$0xf]
    %v944 = vld [vmem:[#allocation5 + $0xc50] sm:$0xf]
    %v945 = vld [vmem:[#allocation5 + $0xc54] sm:$0xf]
    %v946 = vld [vmem:[#allocation5 + $0xc58] sm:$0xf]
    %v947 = vld [vmem:[#allocation5 + $0xc5c] sm:$0xf]
    %v948 = vld [vmem:[#allocation5 + $0xc60] sm:$0xf]
    %v949 = vld [vmem:[#allocation5 + $0xc64] sm:$0xf]
    %v950 = vld [vmem:[#allocation5 + $0xc68] sm:$0xf]
    %v951 = vld [vmem:[#allocation5 + $0xc6c] sm:$0xf]
    %v952 = vld [vmem:[#allocation5 + $0xc70] sm:$0xf]
    %v953 = vld [vmem:[#allocation5 + $0xc74] sm:$0xf]
    %v954 = vld [vmem:[#allocation5 + $0xc78] sm:$0xf]
    %v955 = vld [vmem:[#allocation5 + $0xc7c] sm:$0xf]
    %v956 = vld [vmem:[#allocation5 + $0xc80] sm:$0xf]
    %v957 = vld [vmem:[#allocation5 + $0xc84] sm:$0xf]
    %v958 = vld [vmem:[#allocation5 + $0xc88] sm:$0xf]
    %v959 = vld [vmem:[#allocation5 + $0xc8c] sm:$0xf]
    %v960 = vld [vmem:[#allocation5 + $0xc90] sm:$0xf]
    %v961 = vld [vmem:[#allocation5 + $0xc94] sm:$0xf]
    %v962 = vld [vmem:[#allocation5 + $0xc98] sm:$0xf]
    %v963 = vld [vmem:[#allocation5 + $0xc9c] sm:$0xf]
    %v964 = vld [vmem:[#allocation5 + $0xca0] sm:$0xf]
    %v965 = vld [vmem:[#allocation5 + $0xca4] sm:$0xf]
    %v966 = vld [vmem:[#allocation5 + $0xca8] sm:$0xf]
    %v967 = vld [vmem:[#allocation5 + $0xcac] sm:$0xf]
    %v968 = vld [vmem:[#allocation5 + $0xcb0] sm:$0xf]
    %v969 = vld [vmem:[#allocation5 + $0xcb4] sm:$0xf]
    %v970 = vld [vmem:[#allocation5 + $0xcb8] sm:$0xf]
    %v971 = vld [vmem:[#allocation5 + $0xcbc] sm:$0xf]
    %v972 = vld [vmem:[#allocation5 + $0xcc0] sm:$0xf]
    %v973 = vld [vmem:[#allocation5 + $0xcc4] sm:$0xf]
    %v974 = vld [vmem:[#allocation5 + $0xcc8] sm:$0xf]
    %v975 = vld [vmem:[#allocation5 + $0xccc] sm:$0xf]
    %v976 = vld [vmem:[#allocation5 + $0xcd0] sm:$0xf]
    %v977 = vld [vmem:[#allocation5 + $0xcd4] sm:$0xf]
    %v978 = vld [vmem:[#allocation5 + $0xcd8] sm:$0xf]
    %v979 = vld [vmem:[#allocation5 + $0xcdc] sm:$0xf]
    %v980 = vld [vmem:[#allocation5 + $0xce0] sm:$0xf]
    %v981 = vld [vmem:[#allocation5 + $0xce4] sm:$0xf]
    %v982 = vld [vmem:[#allocation5 + $0xce8] sm:$0xf]
    %v983 = vld [vmem:[#allocation5 + $0xcec] sm:$0xf]
    %v984 = vld [vmem:[#allocation5 + $0xcf0] sm:$0xf]
    %v985 = vld [vmem:[#allocation5 + $0xcf4] sm:$0xf]
    %v986 = vld [vmem:[#allocation5 + $0xcf8] sm:$0xf]
    %v987 = vld [vmem:[#allocation5 + $0xcfc] sm:$0xf]
    %v988 = vld [vmem:[#allocation5 + $0xd00] sm:$0xf]
    %v989 = vld [vmem:[#allocation5 + $0xd04] sm:$0xf]
    %v990 = vld [vmem:[#allocation5 + $0xd08] sm:$0xf]
    %v991 = vld [vmem:[#allocation5 + $0xd0c] sm:$0xf]
    %v992 = vld [vmem:[#allocation5 + $0xd10] sm:$0xf]
    %v993 = vld [vmem:[#allocation5 + $0xd14] sm:$0xf]
    %v994 = vld [vmem:[#allocation5 + $0xd18] sm:$0xf]
    %v995 = vld [vmem:[#allocation5 + $0xd1c] sm:$0xf]
    %v996 = vld [vmem:[#allocation5 + $0xd20] sm:$0xf]
    %v997 = vld [vmem:[#allocation5 + $0xd24] sm:$0xf]
    %v998 = vld [vmem:[#allocation5 + $0xd28] sm:$0xf]
    %v999 = vld [vmem:[#allocation5 + $0xd2c] sm:$0xf]
    %v1000 = vld [vmem:[#allocation5 + $0xd30] sm:$0xf]
    %v1001 = vld [vmem:[#allocation5 + $0xd34] sm:$0xf]
    %v1002 = vld [vmem:[#allocation5 + $0xd38] sm:$0xf]
    %v1003 = vld [vmem:[#allocation5 + $0xd3c] sm:$0xf]
    %v1004 = vld [vmem:[#allocation5 + $0xd40] sm:$0xf]
    %v1005 = vld [vmem:[#allocation5 + $0xd44] sm:$0xf]
    %v1006 = vld [vmem:[#allocation5 + $0xd48] sm:$0xf]
    %v1007 = vld [vmem:[#allocation5 + $0xd4c] sm:$0xf]
    %v1008 = vld [vmem:[#allocation5 + $0xd50] sm:$0xf]
    %v1009 = vld [vmem:[#allocation5 + $0xd54] sm:$0xf]
    %v1010 = vld [vmem:[#allocation5 + $0xd58] sm:$0xf]
    %v1011 = vld [vmem:[#allocation5 + $0xd5c] sm:$0xf]
    %v1012 = vld [vmem:[#allocation5 + $0xd60] sm:$0xf]
    %v1013 = vld [vmem:[#allocation5 + $0xd64] sm:$0xf]
    %v1014 = vld [vmem:[#allocation5 + $0xd68] sm:$0xf]
    %v1015 = vld [vmem:[#allocation5 + $0xd6c] sm:$0xf]
    %v1016 = vld [vmem:[#allocation5 + $0xd70] sm:$0xf]
    %v1017 = vld [vmem:[#allocation5 + $0xd74] sm:$0xf]
    %v1018 = vld [vmem:[#allocation5 + $0xd78] sm:$0xf]
    %v1019 = vld [vmem:[#allocation5 + $0xd7c] sm:$0xf]
    %v1020 = vld [vmem:[#allocation5 + $0xd80] sm:$0xf]
    %v1021 = vld [vmem:[#allocation5 + $0xd84] sm:$0xf]
    %v1022 = vld [vmem:[#allocation5 + $0xd88] sm:$0xf]
    %v1023 = vld [vmem:[#allocation5 + $0xd8c] sm:$0xf]
    %v1024 = vld [vmem:[#allocation5 + $0xd90] sm:$0xf]
    %v1025 = vld [vmem:[#allocation5 + $0xd94] sm:$0xf]
    %v1026 = vld [vmem:[#allocation5 + $0xd98] sm:$0xf]
    %v1027 = vld [vmem:[#allocation5 + $0xd9c] sm:$0xf]
    %v1028 = vld [vmem:[#allocation5 + $0xda0] sm:$0xf]
    %v1029 = vld [vmem:[#allocation5 + $0xda4] sm:$0xf]
    %v1030 = vld [vmem:[#allocation5 + $0xda8] sm:$0xf]
    %v1031 = vld [vmem:[#allocation5 + $0xdac] sm:$0xf]
    %v1032 = vld [vmem:[#allocation5 + $0xdb0] sm:$0xf]
    %v1033 = vld [vmem:[#allocation5 + $0xdb4] sm:$0xf]
    %v1034 = vld [vmem:[#allocation5 + $0xdb8] sm:$0xf]
    %v1035 = vld [vmem:[#allocation5 + $0xdbc] sm:$0xf]
    %v1036 = vld [vmem:[#allocation5 + $0xdc0] sm:$0xf]
    %v1037 = vld [vmem:[#allocation5 + $0xdc4] sm:$0xf]
    %v1038 = vld [vmem:[#allocation5 + $0xdc8] sm:$0xf]
    %v1039 = vld [vmem:[#allocation5 + $0xdcc] sm:$0xf]
    %v1040 = vld [vmem:[#allocation5 + $0xdd0] sm:$0xf]
    %v1041 = vld [vmem:[#allocation5 + $0xdd4] sm:$0xf]
    %v1042 = vld [vmem:[#allocation5 + $0xdd8] sm:$0xf]
    %v1043 = vld [vmem:[#allocation5 + $0xddc] sm:$0xf]
    %v1044 = vld [vmem:[#allocation5 + $0xde0] sm:$0xf]
    %v1045 = vld [vmem:[#allocation5 + $0xde4] sm:$0xf]
    %v1046 = vld [vmem:[#allocation5 + $0xde8] sm:$0xf]
    %v1047 = vld [vmem:[#allocation5 + $0xdec] sm:$0xf]
    %v1048 = vld [vmem:[#allocation5 + $0xdf0] sm:$0xf]
    %v1049 = vld [vmem:[#allocation5 + $0xdf4] sm:$0xf]
    %v1050 = vld [vmem:[#allocation5 + $0xdf8] sm:$0xf]
    %v1051 = vld [vmem:[#allocation5 + $0xdfc] sm:$0xf]
    %v1052 = vld [vmem:[#allocation5 + $0xe00] sm:$0xf]
    %v1053 = vld [vmem:[#allocation5 + $0xe04] sm:$0xf]
    %v1054 = vld [vmem:[#allocation5 + $0xe08] sm:$0xf]
    %v1055 = vld [vmem:[#allocation5 + $0xe0c] sm:$0xf]
    %v1056 = vld [vmem:[#allocation5 + $0xe10] sm:$0xf]
    %v1057 = vld [vmem:[#allocation5 + $0xe14] sm:$0xf]
    %v1058 = vld [vmem:[#allocation5 + $0xe18] sm:$0xf]
    %v1059 = vld [vmem:[#allocation5 + $0xe1c] sm:$0xf]
    %v1060 = vld [vmem:[#allocation5 + $0xe20] sm:$0xf]
    %v1061 = vld [vmem:[#allocation5 + $0xe24] sm:$0xf]
    %v1062 = vld [vmem:[#allocation5 + $0xe28] sm:$0xf]
    %v1063 = vld [vmem:[#allocation5 + $0xe2c] sm:$0xf]
    %v1064 = vld [vmem:[#allocation5 + $0xe30] sm:$0xf]
    %v1065 = vld [vmem:[#allocation5 + $0xe34] sm:$0xf]
    %v1066 = vld [vmem:[#allocation5 + $0xe38] sm:$0xf]
    %v1067 = vld [vmem:[#allocation5 + $0xe3c] sm:$0xf]
    %v1068 = vld [vmem:[#allocation5 + $0xe40] sm:$0xf]
    %v1069 = vld [vmem:[#allocation5 + $0xe44] sm:$0xf]
    %v1070 = vld [vmem:[#allocation5 + $0xe48] sm:$0xf]
    %v1071 = vld [vmem:[#allocation5 + $0xe4c] sm:$0xf]
    %v1072 = vld [vmem:[#allocation5 + $0xe50] sm:$0xf]
    %v1073 = vld [vmem:[#allocation5 + $0xe54] sm:$0xf]
    %v1074 = vld [vmem:[#allocation5 + $0xe58] sm:$0xf]
    %v1075 = vld [vmem:[#allocation5 + $0xe5c] sm:$0xf]
    %v1076 = vld [vmem:[#allocation5 + $0xe60] sm:$0xf]
    %v1077 = vld [vmem:[#allocation5 + $0xe64] sm:$0xf]
    %v1078 = vld [vmem:[#allocation5 + $0xe68] sm:$0xf]
    %v1079 = vld [vmem:[#allocation5 + $0xe6c] sm:$0xf]
    %v1080 = vld [vmem:[#allocation5 + $0xe70] sm:$0xf]
    %v1081 = vld [vmem:[#allocation5 + $0xe74] sm:$0xf]
    %v1082 = vld [vmem:[#allocation5 + $0xe78] sm:$0xf]
    %v1083 = vld [vmem:[#allocation5 + $0xe7c] sm:$0xf]
    %v1084 = vld [vmem:[#allocation5 + $0xe80] sm:$0xf]
    %v1085 = vld [vmem:[#allocation5 + $0xe84] sm:$0xf]
    %v1086 = vld [vmem:[#allocation5 + $0xe88] sm:$0xf]
    %v1087 = vld [vmem:[#allocation5 + $0xe8c] sm:$0xf]
    %v1088 = vld [vmem:[#allocation5 + $0xe90] sm:$0xf]
    %v1089 = vld [vmem:[#allocation5 + $0xe94] sm:$0xf]
    %v1090 = vld [vmem:[#allocation5 + $0xe98] sm:$0xf]
    %v1091 = vld [vmem:[#allocation5 + $0xe9c] sm:$0xf]
    %v1092 = vld [vmem:[#allocation5 + $0xea0] sm:$0xf]
    %v1093 = vld [vmem:[#allocation5 + $0xea4] sm:$0xf]
    %v1094 = vld [vmem:[#allocation5 + $0xea8] sm:$0xf]
    %v1095 = vld [vmem:[#allocation5 + $0xeac] sm:$0xf]
    %v1096 = vld [vmem:[#allocation5 + $0xeb0] sm:$0xf]
    %v1097 = vld [vmem:[#allocation5 + $0xeb4] sm:$0xf]
    %v1098 = vld [vmem:[#allocation5 + $0xeb8] sm:$0xf]
    %v1099 = vld [vmem:[#allocation5 + $0xebc] sm:$0xf]
    %v1100 = vld [vmem:[#allocation5 + $0xec0] sm:$0xf]
    %v1101 = vld [vmem:[#allocation5 + $0xec4] sm:$0xf]
    %v1102 = vld [vmem:[#allocation5 + $0xec8] sm:$0xf]
    %v1103 = vld [vmem:[#allocation5 + $0xecc] sm:$0xf]
    %v1104 = vld [vmem:[#allocation5 + $0xed0] sm:$0xf]
    %v1105 = vld [vmem:[#allocation5 + $0xed4] sm:$0xf]
    %v1106 = vld [vmem:[#allocation5 + $0xed8] sm:$0xf]
    %v1107 = vld [vmem:[#allocation5 + $0xedc] sm:$0xf]
    %v1108 = vld [vmem:[#allocation5 + $0xee0] sm:$0xf]
    %v1109 = vld [vmem:[#allocation5 + $0xee4] sm:$0xf]
    %v1110 = vld [vmem:[#allocation5 + $0xee8] sm:$0xf]
    %v1111 = vld [vmem:[#allocation5 + $0xeec] sm:$0xf]
    %v1112 = vld [vmem:[#allocation5 + $0xef0] sm:$0xf]
    %v1113 = vld [vmem:[#allocation5 + $0xef4] sm:$0xf]
    %v1114 = vld [vmem:[#allocation5 + $0xef8] sm:$0xf]
    %v1115 = vld [vmem:[#allocation5 + $0xefc] sm:$0xf]
    %v1116 = vld [vmem:[#allocation5 + $0xf00] sm:$0xf]
    %v1117 = vld [vmem:[#allocation5 + $0xf04] sm:$0xf]
    %v1118 = vld [vmem:[#allocation5 + $0xf08] sm:$0xf]
    %v1119 = vld [vmem:[#allocation5 + $0xf0c] sm:$0xf]
    %v1120 = vld [vmem:[#allocation5 + $0xf10] sm:$0xf]
    %v1121 = vld [vmem:[#allocation5 + $0xf14] sm:$0xf]
    %v1122 = vld [vmem:[#allocation5 + $0xf18] sm:$0xf]
    %v1123 = vld [vmem:[#allocation5 + $0xf1c] sm:$0xf]
    %v1124 = vld [vmem:[#allocation5 + $0xf20] sm:$0xf]
    %v1125 = vld [vmem:[#allocation5 + $0xf24] sm:$0xf]
    %v1126 = vld [vmem:[#allocation5 + $0xf28] sm:$0xf]
    %v1127 = vld [vmem:[#allocation5 + $0xf2c] sm:$0xf]
    %v1128 = vld [vmem:[#allocation5 + $0xf30] sm:$0xf]
    %v1129 = vld [vmem:[#allocation5 + $0xf34] sm:$0xf]
    %v1130 = vld [vmem:[#allocation5 + $0xf38] sm:$0xf]
    %v1131 = vld [vmem:[#allocation5 + $0xf3c] sm:$0xf]
    %v1132 = vld [vmem:[#allocation5 + $0xf40] sm:$0xf]
    %v1133 = vld [vmem:[#allocation5 + $0xf44] sm:$0xf]
    %v1134 = vld [vmem:[#allocation5 + $0xf48] sm:$0xf]
    %v1135 = vld [vmem:[#allocation5 + $0xf4c] sm:$0xf]
    %v1136 = vld [vmem:[#allocation5 + $0xf50] sm:$0xf]
    %v1137 = vld [vmem:[#allocation5 + $0xf54] sm:$0xf]
    %v1138 = vld [vmem:[#allocation5 + $0xf58] sm:$0xf]
    %v1139 = vld [vmem:[#allocation5 + $0xf5c] sm:$0xf]
    %v1140 = vld [vmem:[#allocation5 + $0xf60] sm:$0xf]
    %v1141 = vld [vmem:[#allocation5 + $0xf64] sm:$0xf]
    %v1142 = vld [vmem:[#allocation5 + $0xf68] sm:$0xf]
    %v1143 = vld [vmem:[#allocation5 + $0xf6c] sm:$0xf]
    %v1144 = vld [vmem:[#allocation5 + $0xf70] sm:$0xf]
    %v1145 = vld [vmem:[#allocation5 + $0xf74] sm:$0xf]
    %v1146 = vld [vmem:[#allocation5 + $0xf78] sm:$0xf]
    %v1147 = vld [vmem:[#allocation5 + $0xf7c] sm:$0xf]
    %v1148 = vld [vmem:[#allocation5 + $0xf80] sm:$0xf]
    %v1149 = vld [vmem:[#allocation5 + $0xf84] sm:$0xf]
    %v1150 = vld [vmem:[#allocation5 + $0xf88] sm:$0xf]
    %v1151 = vld [vmem:[#allocation5 + $0xf8c] sm:$0xf]
    %v1152 = vld [vmem:[#allocation5 + $0xf90] sm:$0xf]
    %v1153 = vld [vmem:[#allocation5 + $0xf94] sm:$0xf]
    %v1154 = vld [vmem:[#allocation5 + $0xf98] sm:$0xf]
    %v1155 = vld [vmem:[#allocation5 + $0xf9c] sm:$0xf]
    %v1156 = vld [vmem:[#allocation5 + $0xfa0] sm:$0xf]
    %v1157 = vld [vmem:[#allocation5 + $0xfa4] sm:$0xf]
    %v1158 = vld [vmem:[#allocation5 + $0xfa8] sm:$0xf]
    %v1159 = vld [vmem:[#allocation5 + $0xfac] sm:$0xf]
    %v1160 = vld [vmem:[#allocation5 + $0xfb0] sm:$0xf]
    %v1161 = vld [vmem:[#allocation5 + $0xfb4] sm:$0xf]
    %v1162 = vld [vmem:[#allocation5 + $0xfb8] sm:$0xf]
    %v1163 = vld [vmem:[#allocation5 + $0xfbc] sm:$0xf]
    %v1164 = vld [vmem:[#allocation5 + $0xfc0] sm:$0xf]
    %v1165 = vld [vmem:[#allocation5 + $0xfc4] sm:$0xf]
    %v1166 = vld [vmem:[#allocation5 + $0xfc8] sm:$0xf]
    %v1167 = vld [vmem:[#allocation5 + $0xfcc] sm:$0xf]
    %v1168 = vld [vmem:[#allocation5 + $0xfd0] sm:$0xf]
    %v1169 = vld [vmem:[#allocation5 + $0xfd4] sm:$0xf]
    %v1170 = vld [vmem:[#allocation5 + $0xfd8] sm:$0xf]
    %v1171 = vld [vmem:[#allocation5 + $0xfdc] sm:$0xf]
    %v1172 = vld [vmem:[#allocation5 + $0xfe0] sm:$0xf]
    %v1173 = vld [vmem:[#allocation5 + $0xfe4] sm:$0xf]
    %v1174 = vld [vmem:[#allocation5 + $0xfe8] sm:$0xf]
    %v1175 = vld [vmem:[#allocation5 + $0xfec] sm:$0xf]
    %v1176 = vld [vmem:[#allocation5 + $0xff0] sm:$0xf]
    %v1177 = vld [vmem:[#allocation5 + $0xff4] sm:$0xf]
    %v1178 = vld [vmem:[#allocation5 + $0xff8] sm:$0xf]
    %v1179 = vld [vmem:[#allocation5 + $0xffc] sm:$0xf]
    %v1180 = vld [vmem:[#allocation5 + $0x1000] sm:$0xf]
    %v1181 = vld [vmem:[#allocation5 + $0x1004] sm:$0xf]
    %v1182 = vld [vmem:[#allocation5 + $0x1008] sm:$0xf]
    %v1183 = vld [vmem:[#allocation5 + $0x100c] sm:$0xf]
    %v1184 = vld [vmem:[#allocation5 + $0x1010] sm:$0xf]
    %v1185 = vld [vmem:[#allocation5 + $0x1014] sm:$0xf]
    %v1186 = vld [vmem:[#allocation5 + $0x1018] sm:$0xf]
    %v1187 = vld [vmem:[#allocation5 + $0x101c] sm:$0xf]
    %v1188 = vld [vmem:[#allocation5 + $0x1020] sm:$0xf]
    %v1189 = vld [vmem:[#allocation5 + $0x1024] sm:$0xf]
    %v1190 = vld [vmem:[#allocation5 + $0x1028] sm:$0xf]
    %v1191 = vld [vmem:[#allocation5 + $0x102c] sm:$0xf]
    %v1192 = vld [vmem:[#allocation5 + $0x1030] sm:$0xf]
    %v1193 = vld [vmem:[#allocation5 + $0x1034] sm:$0xf]
    %v1194 = vld [vmem:[#allocation5 + $0x1038] sm:$0xf]
    %v1195 = vld [vmem:[#allocation5 + $0x103c] sm:$0xf]
    %v1196 = vld [vmem:[#allocation5 + $0x1040] sm:$0xf]
    %v1197 = vld [vmem:[#allocation5 + $0x1044] sm:$0xf]
    %v1198 = vld [vmem:[#allocation5 + $0x1048] sm:$0xf]
    %v1199 = vld [vmem:[#allocation5 + $0x104c] sm:$0xf]
    %v1200 = vld [vmem:[#allocation5 + $0x1050] sm:$0xf]
    %v1201 = vld [vmem:[#allocation5 + $0x1054] sm:$0xf]
    %v1202 = vld [vmem:[#allocation5 + $0x1058] sm:$0xf]
    %v1203 = vld [vmem:[#allocation5 + $0x105c] sm:$0xf]
    %v1204 = vld [vmem:[#allocation5 + $0x1060] sm:$0xf]
    %v1205 = vld [vmem:[#allocation5 + $0x1064] sm:$0xf]
    %v1206 = vld [vmem:[#allocation5 + $0x1068] sm:$0xf]
    %v1207 = vld [vmem:[#allocation5 + $0x106c] sm:$0xf]
    %v1208 = vld [vmem:[#allocation5 + $0x1070] sm:$0xf]
    %v1209 = vld [vmem:[#allocation5 + $0x1074] sm:$0xf]
    %v1210 = vld [vmem:[#allocation5 + $0x1078] sm:$0xf]
    %v1211 = vld [vmem:[#allocation5 + $0x107c] sm:$0xf]
    %v1212 = vld [vmem:[#allocation5 + $0x1080] sm:$0xf]
    %v1213 = vld [vmem:[#allocation5 + $0x1084] sm:$0xf]
    %v1214 = vld [vmem:[#allocation5 + $0x1088] sm:$0xf]
    %v1215 = vld [vmem:[#allocation5 + $0x108c] sm:$0xf]
    %v1216 = vld [vmem:[#allocation5 + $0x1090] sm:$0xf]
    %v1217 = vld [vmem:[#allocation5 + $0x1094] sm:$0xf]
    %v1218 = vld [vmem:[#allocation5 + $0x1098] sm:$0xf]
    %v1219 = vld [vmem:[#allocation5 + $0x109c] sm:$0xf]
    %v1220 = vld [vmem:[#allocation5 + $0x10a0] sm:$0xf]
    %v1221 = vld [vmem:[#allocation5 + $0x10a4] sm:$0xf]
    %v1222 = vld [vmem:[#allocation5 + $0x10a8] sm:$0xf]
    %v1223 = vld [vmem:[#allocation5 + $0x10ac] sm:$0xf]
    %v1224 = vld [vmem:[#allocation5 + $0x10b0] sm:$0xf]
    %v1225 = vld [vmem:[#allocation5 + $0x10b4] sm:$0xf]
    %v1226 = vld [vmem:[#allocation5 + $0x10b8] sm:$0xf]
    %v1227 = vld [vmem:[#allocation5 + $0x10bc] sm:$0xf]
    %v1228 = vld [vmem:[#allocation5 + $0x10c0] sm:$0xf]
    %v1229 = vld [vmem:[#allocation5 + $0x10c4] sm:$0xf]
    %v1230 = vld [vmem:[#allocation5 + $0x10c8] sm:$0xf]
    %v1231 = vld [vmem:[#allocation5 + $0x10cc] sm:$0xf]
    %v1232 = vld [vmem:[#allocation5 + $0x10d0] sm:$0xf]
    %v1233 = vld [vmem:[#allocation5 + $0x10d4] sm:$0xf]
    %v1234 = vld [vmem:[#allocation5 + $0x10d8] sm:$0xf]
    %v1235 = vld [vmem:[#allocation5 + $0x10dc] sm:$0xf]
    %v1236 = vld [vmem:[#allocation5 + $0x10e0] sm:$0xf]
    %v1237 = vld [vmem:[#allocation5 + $0x10e4] sm:$0xf]
    %v1238 = vld [vmem:[#allocation5 + $0x10e8] sm:$0xf]
    %v1239 = vld [vmem:[#allocation5 + $0x10ec] sm:$0xf]
    %v1240 = vld [vmem:[#allocation5 + $0x10f0] sm:$0xf]
    %v1241 = vld [vmem:[#allocation5 + $0x10f4] sm:$0xf]
    %v1242 = vld [vmem:[#allocation5 + $0x10f8] sm:$0xf]
    %v1243 = vld [vmem:[#allocation5 + $0x10fc] sm:$0xf]
    %v1244 = vld [vmem:[#allocation5 + $0x1100] sm:$0xf]
    %v1245 = vld [vmem:[#allocation5 + $0x1104] sm:$0xf]
    %v1246 = vld [vmem:[#allocation5 + $0x1108] sm:$0xf]
    %v1247 = vld [vmem:[#allocation5 + $0x110c] sm:$0xf]
    %v1248 = vld [vmem:[#allocation5 + $0x1110] sm:$0xf]
    %v1249 = vld [vmem:[#allocation5 + $0x1114] sm:$0xf]
    %v1250 = vld [vmem:[#allocation5 + $0x1118] sm:$0xf]
    %v1251 = vld [vmem:[#allocation5 + $0x111c] sm:$0xf]
    %v1252 = vld [vmem:[#allocation5 + $0x1120] sm:$0xf]
    %v1253 = vld [vmem:[#allocation5 + $0x1124] sm:$0xf]
    %v1254 = vld [vmem:[#allocation5 + $0x1128] sm:$0xf]
    %v1255 = vld [vmem:[#allocation5 + $0x112c] sm:$0xf]
    %v1256 = vld [vmem:[#allocation5 + $0x1130] sm:$0xf]
    %v1257 = vld [vmem:[#allocation5 + $0x1134] sm:$0xf]
    %v1258 = vld [vmem:[#allocation5 + $0x1138] sm:$0xf]
    %v1259 = vld [vmem:[#allocation5 + $0x113c] sm:$0xf]
    %v1260 = vld [vmem:[#allocation5 + $0x1140] sm:$0xf]
    %v1261 = vld [vmem:[#allocation5 + $0x1144] sm:$0xf]
    %v1262 = vld [vmem:[#allocation5 + $0x1148] sm:$0xf]
    %v1263 = vld [vmem:[#allocation5 + $0x114c] sm:$0xf]
    %v1264 = vld [vmem:[#allocation5 + $0x1150] sm:$0xf]
    %v1265 = vld [vmem:[#allocation5 + $0x1154] sm:$0xf]
    %v1266 = vld [vmem:[#allocation5 + $0x1158] sm:$0xf]
    %v1267 = vld [vmem:[#allocation5 + $0x115c] sm:$0xf]
    %v1268 = vld [vmem:[#allocation5 + $0x1160] sm:$0xf]
    %v1269 = vld [vmem:[#allocation5 + $0x1164] sm:$0xf]
    %v1270 = vld [vmem:[#allocation5 + $0x1168] sm:$0xf]
    %v1271 = vld [vmem:[#allocation5 + $0x116c] sm:$0xf]
    %v1272 = vld [vmem:[#allocation5 + $0x1170] sm:$0xf]
    %v1273 = vld [vmem:[#allocation5 + $0x1174] sm:$0xf]
    %v1274 = vld [vmem:[#allocation5 + $0x1178] sm:$0xf]
    %v1275 = vld [vmem:[#allocation5 + $0x117c] sm:$0xf]
    %v1276 = vld [vmem:[#allocation5 + $0x1180] sm:$0xf]
    %v1277 = vld [vmem:[#allocation5 + $0x1184] sm:$0xf]
    %v1278 = vld [vmem:[#allocation5 + $0x1188] sm:$0xf]
    %v1279 = vld [vmem:[#allocation5 + $0x118c] sm:$0xf]
    %v1280 = vld [vmem:[#allocation5 + $0x1190] sm:$0xf]
    %v1281 = vld [vmem:[#allocation5 + $0x1194] sm:$0xf]
    %v1282 = vld [vmem:[#allocation5 + $0x1198] sm:$0xf]
    %v1283 = vld [vmem:[#allocation5 + $0x119c] sm:$0xf]
    %v1284 = vld [vmem:[#allocation5 + $0x11a0] sm:$0xf]
    %v1285 = vld [vmem:[#allocation5 + $0x11a4] sm:$0xf]
    %v1286 = vld [vmem:[#allocation5 + $0x11a8] sm:$0xf]
    %v1287 = vld [vmem:[#allocation5 + $0x11ac] sm:$0xf]
    %v1288 = vld [vmem:[#allocation5 + $0x11b0] sm:$0xf]
    %v1289 = vld [vmem:[#allocation5 + $0x11b4] sm:$0xf]
    %v1290 = vld [vmem:[#allocation5 + $0x11b8] sm:$0xf]
    %v1291 = vld [vmem:[#allocation5 + $0x11bc] sm:$0xf]
    %v1292 = vld [vmem:[#allocation5 + $0x11c0] sm:$0xf]
    %v1293 = vld [vmem:[#allocation5 + $0x11c4] sm:$0xf]
    %v1294 = vld [vmem:[#allocation5 + $0x11c8] sm:$0xf]
    %v1295 = vld [vmem:[#allocation5 + $0x11cc] sm:$0xf]
    %v1296 = vld [vmem:[#allocation5 + $0x11d0] sm:$0xf]
    %v1297 = vld [vmem:[#allocation5 + $0x11d4] sm:$0xf]
    %v1298 = vld [vmem:[#allocation5 + $0x11d8] sm:$0xf]
    %v1299 = vld [vmem:[#allocation5 + $0x11dc] sm:$0xf]
    %v1300 = vld [vmem:[#allocation5 + $0x11e0] sm:$0xf]
    %v1301 = vld [vmem:[#allocation5 + $0x11e4] sm:$0xf]
    %v1302 = vld [vmem:[#allocation5 + $0x11e8] sm:$0xf]
    %v1303 = vld [vmem:[#allocation5 + $0x11ec] sm:$0xf]
    %v1304 = vld [vmem:[#allocation5 + $0x11f0] sm:$0xf]
    %v1305 = vld [vmem:[#allocation5 + $0x11f4] sm:$0xf]
    %v1306 = vld [vmem:[#allocation5 + $0x11f8] sm:$0xf]
    %v1307 = vld [vmem:[#allocation5 + $0x11fc] sm:$0xf]
    %v1308 = vld [vmem:[#allocation5 + $0x1200] sm:$0xf]
    %v1309 = vld [vmem:[#allocation5 + $0x1204] sm:$0xf]
    %v1310 = vld [vmem:[#allocation5 + $0x1208] sm:$0xf]
    %v1311 = vld [vmem:[#allocation5 + $0x120c] sm:$0xf]
    %v1312 = vld [vmem:[#allocation5 + $0x1210] sm:$0xf]
    %v1313 = vld [vmem:[#allocation5 + $0x1214] sm:$0xf]
    %v1314 = vld [vmem:[#allocation5 + $0x1218] sm:$0xf]
    %v1315 = vld [vmem:[#allocation5 + $0x121c] sm:$0xf]
    %v1316 = vld [vmem:[#allocation5 + $0x1220] sm:$0xf]
    %v1317 = vld [vmem:[#allocation5 + $0x1224] sm:$0xf]
    %v1318 = vld [vmem:[#allocation5 + $0x1228] sm:$0xf]
    %v1319 = vld [vmem:[#allocation5 + $0x122c] sm:$0xf]
    %v1320 = vld [vmem:[#allocation5 + $0x1230] sm:$0xf]
    %v1321 = vld [vmem:[#allocation5 + $0x1234] sm:$0xf]
    %v1322 = vld [vmem:[#allocation5 + $0x1238] sm:$0xf]
    %v1323 = vld [vmem:[#allocation5 + $0x123c] sm:$0xf]
    %v1324 = vld [vmem:[#allocation5 + $0x1240] sm:$0xf]
    %v1325 = vld [vmem:[#allocation5 + $0x1244] sm:$0xf]
    %v1326 = vld [vmem:[#allocation5 + $0x1248] sm:$0xf]
    %v1327 = vld [vmem:[#allocation5 + $0x124c] sm:$0xf]
    %v1328 = vld [vmem:[#allocation5 + $0x1250] sm:$0xf]
    %v1329 = vld [vmem:[#allocation5 + $0x1254] sm:$0xf]
    %v1330 = vld [vmem:[#allocation5 + $0x1258] sm:$0xf]
    %v1331 = vld [vmem:[#allocation5 + $0x125c] sm:$0xf]
    %v1332 = vld [vmem:[#allocation5 + $0x1260] sm:$0xf]
    %v1333 = vld [vmem:[#allocation5 + $0x1264] sm:$0xf]
    %v1334 = vld [vmem:[#allocation5 + $0x1268] sm:$0xf]
    %v1335 = vld [vmem:[#allocation5 + $0x126c] sm:$0xf]
    %v1336 = vld [vmem:[#allocation5 + $0x1270] sm:$0xf]
    %v1337 = vld [vmem:[#allocation5 + $0x1274] sm:$0xf]
    %v1338 = vld [vmem:[#allocation5 + $0x1278] sm:$0xf]
    %v1339 = vld [vmem:[#allocation5 + $0x127c] sm:$0xf]
    %v1340 = vld [vmem:[#allocation5 + $0x1280] sm:$0xf]
    %v1341 = vld [vmem:[#allocation5 + $0x1284] sm:$0xf]
    %v1342 = vld [vmem:[#allocation5 + $0x1288] sm:$0xf]
    %v1343 = vld [vmem:[#allocation5 + $0x128c] sm:$0xf]
    %v1344 = vld [vmem:[#allocation5 + $0x1290] sm:$0xf]
    %v1345 = vld [vmem:[#allocation5 + $0x1294] sm:$0xf]
    %v1346 = vld [vmem:[#allocation5 + $0x1298] sm:$0xf]
    %v1347 = vld [vmem:[#allocation5 + $0x129c] sm:$0xf]
    %v1348 = vld [vmem:[#allocation5 + $0x12a0] sm:$0xf]
    %v1349 = vld [vmem:[#allocation5 + $0x12a4] sm:$0xf]
    %v1350 = vld [vmem:[#allocation5 + $0x12a8] sm:$0xf]
    %v1351 = vld [vmem:[#allocation5 + $0x12ac] sm:$0xf]
    %v1352 = vld [vmem:[#allocation5 + $0x12b0] sm:$0xf]
    %v1353 = vld [vmem:[#allocation5 + $0x12b4] sm:$0xf]
    %v1354 = vld [vmem:[#allocation5 + $0x12b8] sm:$0xf]
    %v1355 = vld [vmem:[#allocation5 + $0x12bc] sm:$0xf]
    %v1356 = vld [vmem:[#allocation5 + $0x12c0] sm:$0xf]
    %v1357 = vld [vmem:[#allocation5 + $0x12c4] sm:$0xf]
    %v1358 = vld [vmem:[#allocation5 + $0x12c8] sm:$0xf]
    %v1359 = vld [vmem:[#allocation5 + $0x12cc] sm:$0xf]
    %v1360 = vld [vmem:[#allocation5 + $0x12d0] sm:$0xf]
    %v1361 = vld [vmem:[#allocation5 + $0x12d4] sm:$0xf]
    %v1362 = vld [vmem:[#allocation5 + $0x12d8] sm:$0xf]
    %v1363 = vld [vmem:[#allocation5 + $0x12dc] sm:$0xf]
    %v1364 = vld [vmem:[#allocation5 + $0x12e0] sm:$0xf]
    %v1365 = vld [vmem:[#allocation5 + $0x12e4] sm:$0xf]
    %v1366 = vld [vmem:[#allocation5 + $0x12e8] sm:$0xf]
    %v1367 = vld [vmem:[#allocation5 + $0x12ec] sm:$0xf]
    %v1368 = vld [vmem:[#allocation5 + $0x12f0] sm:$0xf]
    %v1369 = vld [vmem:[#allocation5 + $0x12f4] sm:$0xf]
    %v1370 = vld [vmem:[#allocation5 + $0x12f8] sm:$0xf]
    %v1371 = vld [vmem:[#allocation5 + $0x12fc] sm:$0xf]
    %v1372 = vld [vmem:[#allocation5 + $0x1300] sm:$0xf]
    %v1373 = vld [vmem:[#allocation5 + $0x1304] sm:$0xf]
    %v1374 = vld [vmem:[#allocation5 + $0x1308] sm:$0xf]
    %v1375 = vld [vmem:[#allocation5 + $0x130c] sm:$0xf]
    %v1376 = vld [vmem:[#allocation5 + $0x1310] sm:$0xf]
    %v1377 = vld [vmem:[#allocation5 + $0x1314] sm:$0xf]
    %v1378 = vld [vmem:[#allocation5 + $0x1318] sm:$0xf]
    %v1379 = vld [vmem:[#allocation5 + $0x131c] sm:$0xf]
    %v1380 = vld [vmem:[#allocation5 + $0x1320] sm:$0xf]
    %v1381 = vld [vmem:[#allocation5 + $0x1324] sm:$0xf]
    %v1382 = vld [vmem:[#allocation5 + $0x1328] sm:$0xf]
    %v1383 = vld [vmem:[#allocation5 + $0x132c] sm:$0xf]
    %v1384 = vld [vmem:[#allocation5 + $0x1330] sm:$0xf]
    %v1385 = vld [vmem:[#allocation5 + $0x1334] sm:$0xf]
    %v1386 = vld [vmem:[#allocation5 + $0x1338] sm:$0xf]
    %v1387 = vld [vmem:[#allocation5 + $0x133c] sm:$0xf]
    %v1388 = vld [vmem:[#allocation5 + $0x1340] sm:$0xf]
    %v1389 = vld [vmem:[#allocation5 + $0x1344] sm:$0xf]
    %v1390 = vld [vmem:[#allocation5 + $0x1348] sm:$0xf]
    %v1391 = vld [vmem:[#allocation5 + $0x134c] sm:$0xf]
    %v1392 = vld [vmem:[#allocation5 + $0x1350] sm:$0xf]
    %v1393 = vld [vmem:[#allocation5 + $0x1354] sm:$0xf]
    %v1394 = vld [vmem:[#allocation5 + $0x1358] sm:$0xf]
    %v1395 = vld [vmem:[#allocation5 + $0x135c] sm:$0xf]
    %v1396 = vld [vmem:[#allocation5 + $0x1360] sm:$0xf]
    %v1397 = vld [vmem:[#allocation5 + $0x1364] sm:$0xf]
    %v1398 = vld [vmem:[#allocation5 + $0x1368] sm:$0xf]
    %v1399 = vld [vmem:[#allocation5 + $0x136c] sm:$0xf]
    %v1400 = vld [vmem:[#allocation5 + $0x1370] sm:$0xf]
    %v1401 = vld [vmem:[#allocation5 + $0x1374] sm:$0xf]
    %v1402 = vld [vmem:[#allocation5 + $0x1378] sm:$0xf]
    %v1403 = vld [vmem:[#allocation5 + $0x137c] sm:$0xf]
    %v1404 = vld [vmem:[#allocation5 + $0x1380] sm:$0xf]
    %v1405 = vld [vmem:[#allocation5 + $0x1384] sm:$0xf]
    %v1406 = vld [vmem:[#allocation5 + $0x1388] sm:$0xf]
    %v1407 = vld [vmem:[#allocation5 + $0x138c] sm:$0xf]
    %v1408 = vld [vmem:[#allocation5 + $0x1390] sm:$0xf]
    %v1409 = vld [vmem:[#allocation5 + $0x1394] sm:$0xf]
    %v1410 = vld [vmem:[#allocation5 + $0x1398] sm:$0xf]
    %v1411 = vld [vmem:[#allocation5 + $0x139c] sm:$0xf]
    %v1412 = vld [vmem:[#allocation5 + $0x13a0] sm:$0xf]
    %v1413 = vld [vmem:[#allocation5 + $0x13a4] sm:$0xf]
    %v1414 = vld [vmem:[#allocation5 + $0x13a8] sm:$0xf]
    %v1415 = vld [vmem:[#allocation5 + $0x13ac] sm:$0xf]
    %v1416 = vld [vmem:[#allocation5 + $0x13b0] sm:$0xf]
    %v1417 = vld [vmem:[#allocation5 + $0x13b4] sm:$0xf]
    %v1418 = vld [vmem:[#allocation5 + $0x13b8] sm:$0xf]
    %v1419 = vld [vmem:[#allocation5 + $0x13bc] sm:$0xf]
    %v1420 = vld [vmem:[#allocation5 + $0x13c0] sm:$0xf]
    %v1421 = vld [vmem:[#allocation5 + $0x13c4] sm:$0xf]
    %v1422 = vld [vmem:[#allocation5 + $0x13c8] sm:$0xf]
    %v1423 = vld [vmem:[#allocation5 + $0x13cc] sm:$0xf]
    %v1424 = vld [vmem:[#allocation5 + $0x13d0] sm:$0xf]
    %v1425 = vld [vmem:[#allocation5 + $0x13d4] sm:$0xf]
    %v1426 = vld [vmem:[#allocation5 + $0x13d8] sm:$0xf]
    %v1427 = vld [vmem:[#allocation5 + $0x13dc] sm:$0xf]
    %v1428 = vld [vmem:[#allocation5 + $0x13e0] sm:$0xf]
    %v1429 = vld [vmem:[#allocation5 + $0x13e4] sm:$0xf]
    %v1430 = vld [vmem:[#allocation5 + $0x13e8] sm:$0xf]
    %v1431 = vld [vmem:[#allocation5 + $0x13ec] sm:$0xf]
    %v1432 = vld [vmem:[#allocation5 + $0x13f0] sm:$0xf]
    %v1433 = vld [vmem:[#allocation5 + $0x13f4] sm:$0xf]
    %v1434 = vld [vmem:[#allocation5 + $0x13f8] sm:$0xf]
    %v1435 = vld [vmem:[#allocation5 + $0x13fc] sm:$0xf]
    %v1436 = vld [vmem:[#allocation5 + $0x1400] sm:$0xf]
    %v1437 = vld [vmem:[#allocation5 + $0x1404] sm:$0xf]
    %v1438 = vld [vmem:[#allocation5 + $0x1408] sm:$0xf]
    %v1439 = vld [vmem:[#allocation5 + $0x140c] sm:$0xf]
    %v1440 = vld [vmem:[#allocation5 + $0x1410] sm:$0xf]
    %v1441 = vld [vmem:[#allocation5 + $0x1414] sm:$0xf]
    %v1442 = vld [vmem:[#allocation5 + $0x1418] sm:$0xf]
    %v1443 = vld [vmem:[#allocation5 + $0x141c] sm:$0xf]
    %v1444 = vld [vmem:[#allocation5 + $0x1420] sm:$0xf]
    %v1445 = vld [vmem:[#allocation5 + $0x1424] sm:$0xf]
    %v1446 = vld [vmem:[#allocation5 + $0x1428] sm:$0xf]
    %v1447 = vld [vmem:[#allocation5 + $0x142c] sm:$0xf]
    %v1448 = vld [vmem:[#allocation5 + $0x1430] sm:$0xf]
    %v1449 = vld [vmem:[#allocation5 + $0x1434] sm:$0xf]
    %v1450 = vld [vmem:[#allocation5 + $0x1438] sm:$0xf]
    %v1451 = vld [vmem:[#allocation5 + $0x143c] sm:$0xf]
    %v1452 = vld [vmem:[#allocation5 + $0x1440] sm:$0xf]
    %v1453 = vld [vmem:[#allocation5 + $0x1444] sm:$0xf]
    %v1454 = vld [vmem:[#allocation5 + $0x1448] sm:$0xf]
    %v1455 = vld [vmem:[#allocation5 + $0x144c] sm:$0xf]
    %v1456 = vld [vmem:[#allocation5 + $0x1450] sm:$0xf]
    %v1457 = vld [vmem:[#allocation5 + $0x1454] sm:$0xf]
    %v1458 = vld [vmem:[#allocation5 + $0x1458] sm:$0xf]
    %v1459 = vld [vmem:[#allocation5 + $0x145c] sm:$0xf]
    %v1460 = vld [vmem:[#allocation5 + $0x1460] sm:$0xf]
    %v1461 = vld [vmem:[#allocation5 + $0x1464] sm:$0xf]
    %v1462 = vld [vmem:[#allocation5 + $0x1468] sm:$0xf]
    %v1463 = vld [vmem:[#allocation5 + $0x146c] sm:$0xf]
    %v1464 = vld [vmem:[#allocation5 + $0x1470] sm:$0xf]
    %v1465 = vld [vmem:[#allocation5 + $0x1474] sm:$0xf]
    %v1466 = vld [vmem:[#allocation5 + $0x1478] sm:$0xf]
    %v1467 = vld [vmem:[#allocation5 + $0x147c] sm:$0xf]
    %v1468 = vld [vmem:[#allocation5 + $0x1480] sm:$0xf]
    %v1469 = vld [vmem:[#allocation5 + $0x1484] sm:$0xf]
    %v1470 = vld [vmem:[#allocation5 + $0x1488] sm:$0xf]
    %v1471 = vld [vmem:[#allocation5 + $0x148c] sm:$0xf]
    %v1472 = vld [vmem:[#allocation5 + $0x1490] sm:$0xf]
    %v1473 = vld [vmem:[#allocation5 + $0x1494] sm:$0xf]
    %v1474 = vld [vmem:[#allocation5 + $0x1498] sm:$0xf]
    %v1475 = vld [vmem:[#allocation5 + $0x149c] sm:$0xf]
    %v1476 = vld [vmem:[#allocation5 + $0x14a0] sm:$0xf]
    %v1477 = vld [vmem:[#allocation5 + $0x14a4] sm:$0xf]
    %v1478 = vld [vmem:[#allocation5 + $0x14a8] sm:$0xf]
    %v1479 = vld [vmem:[#allocation5 + $0x14ac] sm:$0xf]
    %v1480 = vld [vmem:[#allocation5 + $0x14b0] sm:$0xf]
    %v1481 = vld [vmem:[#allocation5 + $0x14b4] sm:$0xf]
    %v1482 = vld [vmem:[#allocation5 + $0x14b8] sm:$0xf]
    %v1483 = vld [vmem:[#allocation5 + $0x14bc] sm:$0xf]
    %v1484 = vld [vmem:[#allocation5 + $0x14c0] sm:$0xf]
    %v1485 = vld [vmem:[#allocation5 + $0x14c4] sm:$0xf]
    %v1486 = vld [vmem:[#allocation5 + $0x14c8] sm:$0xf]
    %v1487 = vld [vmem:[#allocation5 + $0x14cc] sm:$0xf]
    %v1488 = vld [vmem:[#allocation5 + $0x14d0] sm:$0xf]
    %v1489 = vld [vmem:[#allocation5 + $0x14d4] sm:$0xf]
    %v1490 = vld [vmem:[#allocation5 + $0x14d8] sm:$0xf]
    %v1491 = vld [vmem:[#allocation5 + $0x14dc] sm:$0xf]
    %v1492 = vld [vmem:[#allocation5 + $0x14e0] sm:$0xf]
    %v1493 = vld [vmem:[#allocation5 + $0x14e4] sm:$0xf]
    %v1494 = vld [vmem:[#allocation5 + $0x14e8] sm:$0xf]
    %v1495 = vld [vmem:[#allocation5 + $0x14ec] sm:$0xf]
    %v1496 = vld [vmem:[#allocation5 + $0x14f0] sm:$0xf]
    %v1497 = vld [vmem:[#allocation5 + $0x14f4] sm:$0xf]
    %v1498 = vld [vmem:[#allocation5 + $0x14f8] sm:$0xf]
    %v1499 = vld [vmem:[#allocation5 + $0x14fc] sm:$0xf]
    %v1500 = vld [vmem:[#allocation5 + $0x1500] sm:$0xf]
    %v1501 = vld [vmem:[#allocation5 + $0x1504] sm:$0xf]
    %v1502 = vld [vmem:[#allocation5 + $0x1508] sm:$0xf]
    %v1503 = vld [vmem:[#allocation5 + $0x150c] sm:$0xf]
    %v1504 = vld [vmem:[#allocation5 + $0x1510] sm:$0xf]
    %v1505 = vld [vmem:[#allocation5 + $0x1514] sm:$0xf]
    %v1506 = vld [vmem:[#allocation5 + $0x1518] sm:$0xf]
    %v1507 = vld [vmem:[#allocation5 + $0x151c] sm:$0xf]
    %v1508 = vld [vmem:[#allocation5 + $0x1520] sm:$0xf]
    %v1509 = vld [vmem:[#allocation5 + $0x1524] sm:$0xf]
    %v1510 = vld [vmem:[#allocation5 + $0x1528] sm:$0xf]
    %v1511 = vld [vmem:[#allocation5 + $0x152c] sm:$0xf]
    %v1512 = vld [vmem:[#allocation5 + $0x1530] sm:$0xf]
    %v1513 = vld [vmem:[#allocation5 + $0x1534] sm:$0xf]
    %v1514 = vld [vmem:[#allocation5 + $0x1538] sm:$0xf]
    %v1515 = vld [vmem:[#allocation5 + $0x153c] sm:$0xf]
    %v1516 = vld [vmem:[#allocation5 + $0x1540] sm:$0xf]
    %v1517 = vld [vmem:[#allocation5 + $0x1544] sm:$0xf]
    %v1518 = vld [vmem:[#allocation5 + $0x1548] sm:$0xf]
    %v1519 = vld [vmem:[#allocation5 + $0x154c] sm:$0xf]
    %v1520 = vld [vmem:[#allocation5 + $0x1550] sm:$0xf]
    %v1521 = vld [vmem:[#allocation5 + $0x1554] sm:$0xf]
    %v1522 = vld [vmem:[#allocation5 + $0x1558] sm:$0xf]
    %v1523 = vld [vmem:[#allocation5 + $0x155c] sm:$0xf]
    %v1524 = vld [vmem:[#allocation5 + $0x1560] sm:$0xf]
    %v1525 = vld [vmem:[#allocation5 + $0x1564] sm:$0xf]
    %v1526 = vld [vmem:[#allocation5 + $0x1568] sm:$0xf]
    %v1527 = vld [vmem:[#allocation5 + $0x156c] sm:$0xf]
    %v1528 = vld [vmem:[#allocation5 + $0x1570] sm:$0xf]
    %v1529 = vld [vmem:[#allocation5 + $0x1574] sm:$0xf]
    %v1530 = vld [vmem:[#allocation5 + $0x1578] sm:$0xf]
    %v1531 = vld [vmem:[#allocation5 + $0x157c] sm:$0xf]
    %v1532 = vld [vmem:[#allocation5 + $0x1580] sm:$0xf]
    %v1533 = vld [vmem:[#allocation5 + $0x1584] sm:$0xf]
    %v1534 = vld [vmem:[#allocation5 + $0x1588] sm:$0xf]
    %v1535 = vld [vmem:[#allocation5 + $0x158c] sm:$0xf]
    %v1536 = vld [vmem:[#allocation5 + $0x1590] sm:$0xf]
    %v1537 = vld [vmem:[#allocation5 + $0x1594] sm:$0xf]
    %v1538 = vld [vmem:[#allocation5 + $0x1598] sm:$0xf]
    %v1539 = vld [vmem:[#allocation5 + $0x159c] sm:$0xf]
    %v1540 = vld [vmem:[#allocation5 + $0x15a0] sm:$0xf]
    %v1541 = vld [vmem:[#allocation5 + $0x15a4] sm:$0xf]
    %v1542 = vld [vmem:[#allocation5 + $0x15a8] sm:$0xf]
    %v1543 = vld [vmem:[#allocation5 + $0x15ac] sm:$0xf]
    %v1544 = vld [vmem:[#allocation5 + $0x15b0] sm:$0xf]
    %v1545 = vld [vmem:[#allocation5 + $0x15b4] sm:$0xf]
    %v1546 = vld [vmem:[#allocation5 + $0x15b8] sm:$0xf]
    %v1547 = vld [vmem:[#allocation5 + $0x15bc] sm:$0xf]
    %v1548 = vld [vmem:[#allocation5 + $0x15c0] sm:$0xf]
    %v1549 = vld [vmem:[#allocation5 + $0x15c4] sm:$0xf]
    %v1550 = vld [vmem:[#allocation5 + $0x15c8] sm:$0xf]
    %v1551 = vld [vmem:[#allocation5 + $0x15cc] sm:$0xf]
    %v1552 = vld [vmem:[#allocation5 + $0x15d0] sm:$0xf]
    %v1553 = vld [vmem:[#allocation5 + $0x15d4] sm:$0xf]
    %v1554 = vld [vmem:[#allocation5 + $0x15d8] sm:$0xf]
    %v1555 = vld [vmem:[#allocation5 + $0x15dc] sm:$0xf]
    %v1556 = vld [vmem:[#allocation5 + $0x15e0] sm:$0xf]
    %v1557 = vld [vmem:[#allocation5 + $0x15e4] sm:$0xf]
    %v1558 = vld [vmem:[#allocation5 + $0x15e8] sm:$0xf]
    %v1559 = vld [vmem:[#allocation5 + $0x15ec] sm:$0xf]
    %v1560 = vld [vmem:[#allocation5 + $0x15f0] sm:$0xf]
    %v1561 = vld [vmem:[#allocation5 + $0x15f4] sm:$0xf]
    %v1562 = vld [vmem:[#allocation5 + $0x15f8] sm:$0xf]
    %v1563 = vld [vmem:[#allocation5 + $0x15fc] sm:$0xf]
    %v1564 = vld [vmem:[#allocation5 + $0x1600] sm:$0xf]
    %v1565 = vld [vmem:[#allocation5 + $0x1604] sm:$0xf]
    %v1566 = vld [vmem:[#allocation5 + $0x1608] sm:$0xf]
    %v1567 = vld [vmem:[#allocation5 + $0x160c] sm:$0xf]
    %v1568 = vld [vmem:[#allocation5 + $0x1610] sm:$0xf]
    %v1569 = vld [vmem:[#allocation5 + $0x1614] sm:$0xf]
    %v1570 = vld [vmem:[#allocation5 + $0x1618] sm:$0xf]
    %v1571 = vld [vmem:[#allocation5 + $0x161c] sm:$0xf]
    %v1572 = vld [vmem:[#allocation5 + $0x1620] sm:$0xf]
    %v1573 = vld [vmem:[#allocation5 + $0x1624] sm:$0xf]
    %v1574 = vld [vmem:[#allocation5 + $0x1628] sm:$0xf]
    %v1575 = vld [vmem:[#allocation5 + $0x162c] sm:$0xf]
    %v1576 = vld [vmem:[#allocation5 + $0x1630] sm:$0xf]
    %v1577 = vld [vmem:[#allocation5 + $0x1634] sm:$0xf]
    %v1578 = vld [vmem:[#allocation5 + $0x1638] sm:$0xf]
    %v1579 = vld [vmem:[#allocation5 + $0x163c] sm:$0xf]
    %v1580 = vld [vmem:[#allocation5 + $0x1640] sm:$0xf]
    %v1581 = vld [vmem:[#allocation5 + $0x1644] sm:$0xf]
    %v1582 = vld [vmem:[#allocation5 + $0x1648] sm:$0xf]
    %v1583 = vld [vmem:[#allocation5 + $0x164c] sm:$0xf]
    %v1584 = vld [vmem:[#allocation5 + $0x1650] sm:$0xf]
    %v1585 = vld [vmem:[#allocation5 + $0x1654] sm:$0xf]
    %v1586 = vld [vmem:[#allocation5 + $0x1658] sm:$0xf]
    %v1587 = vld [vmem:[#allocation5 + $0x165c] sm:$0xf]
    %v1588 = vld [vmem:[#allocation5 + $0x1660] sm:$0xf]
    %v1589 = vld [vmem:[#allocation5 + $0x1664] sm:$0xf]
    %v1590 = vld [vmem:[#allocation5 + $0x1668] sm:$0xf]
    %v1591 = vld [vmem:[#allocation5 + $0x166c] sm:$0xf]
    %v1592 = vld [vmem:[#allocation5 + $0x1670] sm:$0xf]
    %v1593 = vld [vmem:[#allocation5 + $0x1674] sm:$0xf]
    %v1594 = vld [vmem:[#allocation5 + $0x1678] sm:$0xf]
    %v1595 = vld [vmem:[#allocation5 + $0x167c] sm:$0xf]
    %v1596 = vld [vmem:[#allocation5 + $0x1680] sm:$0xf]
    %v1597 = vld [vmem:[#allocation5 + $0x1684] sm:$0xf]
    %v1598 = vld [vmem:[#allocation5 + $0x1688] sm:$0xf]
    %v1599 = vld [vmem:[#allocation5 + $0x168c] sm:$0xf]
    %v1600 = vld [vmem:[#allocation5 + $0x1690] sm:$0xf]
    %v1601 = vld [vmem:[#allocation5 + $0x1694] sm:$0xf]
    %v1602 = vld [vmem:[#allocation5 + $0x1698] sm:$0xf]
    %v1603 = vld [vmem:[#allocation5 + $0x169c] sm:$0xf]
    %v1604 = vld [vmem:[#allocation5 + $0x16a0] sm:$0xf]
    %v1605 = vld [vmem:[#allocation5 + $0x16a4] sm:$0xf]
    %v1606 = vld [vmem:[#allocation5 + $0x16a8] sm:$0xf]
    %v1607 = vld [vmem:[#allocation5 + $0x16ac] sm:$0xf]
    %v1608 = vld [vmem:[#allocation5 + $0x16b0] sm:$0xf]
    %v1609 = vld [vmem:[#allocation5 + $0x16b4] sm:$0xf]
    %v1610 = vld [vmem:[#allocation5 + $0x16b8] sm:$0xf]
    %v1611 = vld [vmem:[#allocation5 + $0x16bc] sm:$0xf]
    %v1612 = vld [vmem:[#allocation5 + $0x16c0] sm:$0xf]
    %v1613 = vld [vmem:[#allocation5 + $0x16c4] sm:$0xf]
    %v1614 = vld [vmem:[#allocation5 + $0x16c8] sm:$0xf]
    %v1615 = vld [vmem:[#allocation5 + $0x16cc] sm:$0xf]
    %v1616 = vld [vmem:[#allocation5 + $0x16d0] sm:$0xf]
    %v1617 = vld [vmem:[#allocation5 + $0x16d4] sm:$0xf]
    %v1618 = vld [vmem:[#allocation5 + $0x16d8] sm:$0xf]
    %v1619 = vld [vmem:[#allocation5 + $0x16dc] sm:$0xf]
    %v1620 = vld [vmem:[#allocation5 + $0x16e0] sm:$0xf]
    %v1621 = vld [vmem:[#allocation5 + $0x16e4] sm:$0xf]
    %v1622 = vld [vmem:[#allocation5 + $0x16e8] sm:$0xf]
    %v1623 = vld [vmem:[#allocation5 + $0x16ec] sm:$0xf]
    %v1624 = vld [vmem:[#allocation5 + $0x16f0] sm:$0xf]
    %v1625 = vld [vmem:[#allocation5 + $0x16f4] sm:$0xf]
    %v1626 = vld [vmem:[#allocation5 + $0x16f8] sm:$0xf]
    %v1627 = vld [vmem:[#allocation5 + $0x16fc] sm:$0xf]
    %v1628 = vld [vmem:[#allocation5 + $0x1700] sm:$0xf]
    %v1629 = vld [vmem:[#allocation5 + $0x1704] sm:$0xf]
    %v1630 = vld [vmem:[#allocation5 + $0x1708] sm:$0xf]
    %v1631 = vld [vmem:[#allocation5 + $0x170c] sm:$0xf]
    %v1632 = vld [vmem:[#allocation5 + $0x1710] sm:$0xf]
    %v1633 = vld [vmem:[#allocation5 + $0x1714] sm:$0xf]
    %v1634 = vld [vmem:[#allocation5 + $0x1718] sm:$0xf]
    %v1635 = vld [vmem:[#allocation5 + $0x171c] sm:$0xf]
    %v1636 = vld [vmem:[#allocation5 + $0x1720] sm:$0xf]
    %v1637 = vld [vmem:[#allocation5 + $0x1724] sm:$0xf]
    %v1638 = vld [vmem:[#allocation5 + $0x1728] sm:$0xf]
    %v1639 = vld [vmem:[#allocation5 + $0x172c] sm:$0xf]
    %v1640 = vld [vmem:[#allocation5 + $0x1730] sm:$0xf]
    %v1641 = vld [vmem:[#allocation5 + $0x1734] sm:$0xf]
    %v1642 = vld [vmem:[#allocation5 + $0x1738] sm:$0xf]
    %v1643 = vld [vmem:[#allocation5 + $0x173c] sm:$0xf]
    %v1644 = vld [vmem:[#allocation5 + $0x1740] sm:$0xf]
    %v1645 = vld [vmem:[#allocation5 + $0x1744] sm:$0xf]
    %v1646 = vld [vmem:[#allocation5 + $0x1748] sm:$0xf]
    %v1647 = vld [vmem:[#allocation5 + $0x174c] sm:$0xf]
    %v1648 = vld [vmem:[#allocation5 + $0x1750] sm:$0xf]
    %v1649 = vld [vmem:[#allocation5 + $0x1754] sm:$0xf]
    %v1650 = vld [vmem:[#allocation5 + $0x1758] sm:$0xf]
    %v1651 = vld [vmem:[#allocation5 + $0x175c] sm:$0xf]
    %v1652 = vld [vmem:[#allocation5 + $0x1760] sm:$0xf]
    %v1653 = vld [vmem:[#allocation5 + $0x1764] sm:$0xf]
    %v1654 = vld [vmem:[#allocation5 + $0x1768] sm:$0xf]
    %v1655 = vld [vmem:[#allocation5 + $0x176c] sm:$0xf]
    %v1656 = vld [vmem:[#allocation5 + $0x1770] sm:$0xf]
    %v1657 = vld [vmem:[#allocation5 + $0x1774] sm:$0xf]
    %v1658 = vld [vmem:[#allocation5 + $0x1778] sm:$0xf]
    %v1659 = vld [vmem:[#allocation5 + $0x177c] sm:$0xf]
    %v1660 = vld [vmem:[#allocation5 + $0x1780] sm:$0xf]
    %v1661 = vld [vmem:[#allocation5 + $0x1784] sm:$0xf]
    %v1662 = vld [vmem:[#allocation5 + $0x1788] sm:$0xf]
    %v1663 = vld [vmem:[#allocation5 + $0x178c] sm:$0xf]
    %v1664 = vld [vmem:[#allocation5 + $0x1790] sm:$0xf]
    %v1665 = vld [vmem:[#allocation5 + $0x1794] sm:$0xf]
    %v1666 = vld [vmem:[#allocation5 + $0x1798] sm:$0xf]
    %v1667 = vld [vmem:[#allocation5 + $0x179c] sm:$0xf]
    %v1668 = vld [vmem:[#allocation5 + $0x17a0] sm:$0xf]
    %v1669 = vld [vmem:[#allocation5 + $0x17a4] sm:$0xf]
    %v1670 = vld [vmem:[#allocation5 + $0x17a8] sm:$0xf]
    %v1671 = vld [vmem:[#allocation5 + $0x17ac] sm:$0xf]
    %v1672 = vld [vmem:[#allocation5 + $0x17b0] sm:$0xf]
    %v1673 = vld [vmem:[#allocation5 + $0x17b4] sm:$0xf]
    %v1674 = vld [vmem:[#allocation5 + $0x17b8] sm:$0xf]
    %v1675 = vld [vmem:[#allocation5 + $0x17bc] sm:$0xf]
    %v1676 = vld [vmem:[#allocation5 + $0x17c0] sm:$0xf]
    %v1677 = vld [vmem:[#allocation5 + $0x17c4] sm:$0xf]
    %v1678 = vld [vmem:[#allocation5 + $0x17c8] sm:$0xf]
    %v1679 = vld [vmem:[#allocation5 + $0x17cc] sm:$0xf]
    %v1680 = vld [vmem:[#allocation5 + $0x17d0] sm:$0xf]
    %v1681 = vld [vmem:[#allocation5 + $0x17d4] sm:$0xf]
    %v1682 = vld [vmem:[#allocation5 + $0x17d8] sm:$0xf]
    %v1683 = vld [vmem:[#allocation5 + $0x17dc] sm:$0xf]
    %v1684 = vld [vmem:[#allocation5 + $0x17e0] sm:$0xf]
    %v1685 = vld [vmem:[#allocation5 + $0x17e4] sm:$0xf]
    %v1686 = vld [vmem:[#allocation5 + $0x17e8] sm:$0xf]
    %v1687 = vld [vmem:[#allocation5 + $0x17ec] sm:$0xf]
    %v1688 = vld [vmem:[#allocation5 + $0x17f0] sm:$0xf]
    %v1689 = vld [vmem:[#allocation5 + $0x17f4] sm:$0xf]
    %v1690 = vld [vmem:[#allocation5 + $0x17f8] sm:$0xf]
    %v1691 = vld [vmem:[#allocation5 + $0x17fc] sm:$0xf]
    %v1692 = vld [vmem:[#allocation5 + $0x1800] sm:$0xf]
    %v1693 = vld [vmem:[#allocation5 + $0x1804] sm:$0xf]
    %v1694 = vld [vmem:[#allocation5 + $0x1808] sm:$0xf]
    %v1695 = vld [vmem:[#allocation5 + $0x180c] sm:$0xf]
    %v1696 = vld [vmem:[#allocation5 + $0x1810] sm:$0xf]
    %v1697 = vld [vmem:[#allocation5 + $0x1814] sm:$0xf]
    %v1698 = vld [vmem:[#allocation5 + $0x1818] sm:$0xf]
    %v1699 = vld [vmem:[#allocation5 + $0x181c] sm:$0xf]
    %v1700 = vld [vmem:[#allocation5 + $0x1820] sm:$0xf]
    %v1701 = vld [vmem:[#allocation5 + $0x1824] sm:$0xf]
    %v1702 = vld [vmem:[#allocation5 + $0x1828] sm:$0xf]
    %v1703 = vld [vmem:[#allocation5 + $0x182c] sm:$0xf]
    %v1704 = vld [vmem:[#allocation5 + $0x1830] sm:$0xf]
    %v1705 = vld [vmem:[#allocation5 + $0x1834] sm:$0xf]
    %v1706 = vld [vmem:[#allocation5 + $0x1838] sm:$0xf]
    %v1707 = vld [vmem:[#allocation5 + $0x183c] sm:$0xf]
    %v1708 = vld [vmem:[#allocation5 + $0x1840] sm:$0xf]
    %v1709 = vld [vmem:[#allocation5 + $0x1844] sm:$0xf]
    %v1710 = vld [vmem:[#allocation5 + $0x1848] sm:$0xf]
    %v1711 = vld [vmem:[#allocation5 + $0x184c] sm:$0xf]
    %v1712 = vld [vmem:[#allocation5 + $0x1850] sm:$0xf]
    %v1713 = vld [vmem:[#allocation5 + $0x1854] sm:$0xf]
    %v1714 = vld [vmem:[#allocation5 + $0x1858] sm:$0xf]
    %v1715 = vld [vmem:[#allocation5 + $0x185c] sm:$0xf]
    %v1716 = vld [vmem:[#allocation5 + $0x1860] sm:$0xf]
    %v1717 = vld [vmem:[#allocation5 + $0x1864] sm:$0xf]
    %v1718 = vld [vmem:[#allocation5 + $0x1868] sm:$0xf]
    %v1719 = vld [vmem:[#allocation5 + $0x186c] sm:$0xf]
    %v1720 = vld [vmem:[#allocation5 + $0x1870] sm:$0xf]
    %v1721 = vld [vmem:[#allocation5 + $0x1874] sm:$0xf]
    %v1722 = vld [vmem:[#allocation5 + $0x1878] sm:$0xf]
    %v1723 = vld [vmem:[#allocation5 + $0x187c] sm:$0xf]
    %v1724 = vld [vmem:[#allocation5 + $0x1880] sm:$0xf]
    %v1725 = vld [vmem:[#allocation5 + $0x1884] sm:$0xf]
    %v1726 = vld [vmem:[#allocation5 + $0x1888] sm:$0xf]
    %v1727 = vld [vmem:[#allocation5 + $0x188c] sm:$0xf]
    %v1728 = vld [vmem:[#allocation5 + $0x1890] sm:$0xf]
    %v1729 = vld [vmem:[#allocation5 + $0x1894] sm:$0xf]
    %v1730 = vld [vmem:[#allocation5 + $0x1898] sm:$0xf]
    %v1731 = vld [vmem:[#allocation5 + $0x189c] sm:$0xf]
    %v1732 = vld [vmem:[#allocation5 + $0x18a0] sm:$0xf]
    %v1733 = vld [vmem:[#allocation5 + $0x18a4] sm:$0xf]
    %v1734 = vld [vmem:[#allocation5 + $0x18a8] sm:$0xf]
    %v1735 = vld [vmem:[#allocation5 + $0x18ac] sm:$0xf]
    %v1736 = vld [vmem:[#allocation5 + $0x18b0] sm:$0xf]
    %v1737 = vld [vmem:[#allocation5 + $0x18b4] sm:$0xf]
    %v1738 = vld [vmem:[#allocation5 + $0x18b8] sm:$0xf]
    %v1739 = vld [vmem:[#allocation5 + $0x18bc] sm:$0xf]
    %v1740 = vld [vmem:[#allocation5 + $0x18c0] sm:$0xf]
    %v1741 = vld [vmem:[#allocation5 + $0x18c4] sm:$0xf]
    %v1742 = vld [vmem:[#allocation5 + $0x18c8] sm:$0xf]
    %v1743 = vld [vmem:[#allocation5 + $0x18cc] sm:$0xf]
    %v1744 = vld [vmem:[#allocation5 + $0x18d0] sm:$0xf]
    %v1745 = vld [vmem:[#allocation5 + $0x18d4] sm:$0xf]
    %v1746 = vld [vmem:[#allocation5 + $0x18d8] sm:$0xf]
    %v1747 = vld [vmem:[#allocation5 + $0x18dc] sm:$0xf]
    %v1748 = vld [vmem:[#allocation5 + $0x18e0] sm:$0xf]
    %v1749 = vld [vmem:[#allocation5 + $0x18e4] sm:$0xf]
    %v1750 = vld [vmem:[#allocation5 + $0x18e8] sm:$0xf]
    %v1751 = vld [vmem:[#allocation5 + $0x18ec] sm:$0xf]
    %v1752 = vld [vmem:[#allocation5 + $0x18f0] sm:$0xf]
    %v1753 = vld [vmem:[#allocation5 + $0x18f4] sm:$0xf]
    %v1754 = vld [vmem:[#allocation5 + $0x18f8] sm:$0xf]
    %v1755 = vld [vmem:[#allocation5 + $0x18fc] sm:$0xf]
    %v1756 = vld [vmem:[#allocation5 + $0x1900] sm:$0xf]
    %v1757 = vld [vmem:[#allocation5 + $0x1904] sm:$0xf]
    %v1758 = vld [vmem:[#allocation5 + $0x1908] sm:$0xf]
    %v1759 = vld [vmem:[#allocation5 + $0x190c] sm:$0xf]
    %v1760 = vld [vmem:[#allocation5 + $0x1910] sm:$0xf]
    %v1761 = vld [vmem:[#allocation5 + $0x1914] sm:$0xf]
    %v1762 = vld [vmem:[#allocation5 + $0x1918] sm:$0xf]
    %v1763 = vld [vmem:[#allocation5 + $0x191c] sm:$0xf]
    %v1764 = vld [vmem:[#allocation5 + $0x1920] sm:$0xf]
    %v1765 = vld [vmem:[#allocation5 + $0x1924] sm:$0xf]
    %v1766 = vld [vmem:[#allocation5 + $0x1928] sm:$0xf]
    %v1767 = vld [vmem:[#allocation5 + $0x192c] sm:$0xf]
    %v1768 = vld [vmem:[#allocation5 + $0x1930] sm:$0xf]
    %v1769 = vld [vmem:[#allocation5 + $0x1934] sm:$0xf]
    %v1770 = vld [vmem:[#allocation5 + $0x1938] sm:$0xf]
    %v1771 = vld [vmem:[#allocation5 + $0x193c] sm:$0xf]
    %v1772 = vld [vmem:[#allocation5 + $0x1940] sm:$0xf]
    %v1773 = vld [vmem:[#allocation5 + $0x1944] sm:$0xf]
    %v1774 = vld [vmem:[#allocation5 + $0x1948] sm:$0xf]
    %v1775 = vld [vmem:[#allocation5 + $0x194c] sm:$0xf]
    %v1776 = vld [vmem:[#allocation5 + $0x1950] sm:$0xf]
    %v1777 = vld [vmem:[#allocation5 + $0x1954] sm:$0xf]
    %v1778 = vld [vmem:[#allocation5 + $0x1958] sm:$0xf]
    %v1779 = vld [vmem:[#allocation5 + $0x195c] sm:$0xf]
    %v1780 = vld [vmem:[#allocation5 + $0x1960] sm:$0xf]
    %v1781 = vld [vmem:[#allocation5 + $0x1964] sm:$0xf]
    %v1782 = vld [vmem:[#allocation5 + $0x1968] sm:$0xf]
    %v1783 = vld [vmem:[#allocation5 + $0x196c] sm:$0xf]
    %v1784 = vld [vmem:[#allocation5 + $0x1970] sm:$0xf]
    %v1785 = vld [vmem:[#allocation5 + $0x1974] sm:$0xf]
    %v1786 = vld [vmem:[#allocation5 + $0x1978] sm:$0xf]
    %v1787 = vld [vmem:[#allocation5 + $0x197c] sm:$0xf]
    %v1788 = vld [vmem:[#allocation5 + $0x1980] sm:$0xf]
    %v1789 = vld [vmem:[#allocation5 + $0x1984] sm:$0xf]
    %v1790 = vld [vmem:[#allocation5 + $0x1988] sm:$0xf]
    %v1791 = vld [vmem:[#allocation5 + $0x198c] sm:$0xf]
    %v1792 = vld [vmem:[#allocation5 + $0x1990] sm:$0xf]
    %v1793 = vld [vmem:[#allocation5 + $0x1994] sm:$0xf]
    %v1794 = vld [vmem:[#allocation5 + $0x1998] sm:$0xf]
    %v1795 = vld [vmem:[#allocation5 + $0x199c] sm:$0xf]
    %v1796 = vld [vmem:[#allocation5 + $0x19a0] sm:$0xf]
    %v1797 = vld [vmem:[#allocation5 + $0x19a4] sm:$0xf]
    %v1798 = vld [vmem:[#allocation5 + $0x19a8] sm:$0xf]
    %v1799 = vld [vmem:[#allocation5 + $0x19ac] sm:$0xf]
    %v1800 = vld [vmem:[#allocation5 + $0x19b0] sm:$0xf]
    %v1801 = vld [vmem:[#allocation5 + $0x19b4] sm:$0xf]
    %v1802 = vld [vmem:[#allocation5 + $0x19b8] sm:$0xf]
    %v1803 = vld [vmem:[#allocation5 + $0x19bc] sm:$0xf]
    %v1804 = vld [vmem:[#allocation5 + $0x19c0] sm:$0xf]
    %v1805 = vld [vmem:[#allocation5 + $0x19c4] sm:$0xf]
    %v1806 = vld [vmem:[#allocation5 + $0x19c8] sm:$0xf]
    %v1807 = vld [vmem:[#allocation5 + $0x19cc] sm:$0xf]
    %v1808 = vld [vmem:[#allocation5 + $0x19d0] sm:$0xf]
    %v1809 = vld [vmem:[#allocation5 + $0x19d4] sm:$0xf]
    %v1810 = vld [vmem:[#allocation5 + $0x19d8] sm:$0xf]
    %v1811 = vld [vmem:[#allocation5 + $0x19dc] sm:$0xf]
    %v1812 = vld [vmem:[#allocation5 + $0x19e0] sm:$0xf]
    %v1813 = vld [vmem:[#allocation5 + $0x19e4] sm:$0xf]
    %v1814 = vld [vmem:[#allocation5 + $0x19e8] sm:$0xf]
    %v1815 = vld [vmem:[#allocation5 + $0x19ec] sm:$0xf]
    %v1816 = vld [vmem:[#allocation5 + $0x19f0] sm:$0xf]
    %v1817 = vld [vmem:[#allocation5 + $0x19f4] sm:$0xf]
    %v1818 = vld [vmem:[#allocation5 + $0x19f8] sm:$0xf]
    %v1819 = vld [vmem:[#allocation5 + $0x19fc] sm:$0xf]
    %v1820 = vld [vmem:[#allocation5 + $0x1a00] sm:$0xf]
    %v1821 = vld [vmem:[#allocation5 + $0x1a04] sm:$0xf]
    %v1822 = vld [vmem:[#allocation5 + $0x1a08] sm:$0xf]
    %v1823 = vld [vmem:[#allocation5 + $0x1a0c] sm:$0xf]
    %v1824 = vld [vmem:[#allocation5 + $0x1a10] sm:$0xf]
    %v1825 = vld [vmem:[#allocation5 + $0x1a14] sm:$0xf]
    %v1826 = vld [vmem:[#allocation5 + $0x1a18] sm:$0xf]
    %v1827 = vld [vmem:[#allocation5 + $0x1a1c] sm:$0xf]
    %v1828 = vld [vmem:[#allocation5 + $0x1a20] sm:$0xf]
    %v1829 = vld [vmem:[#allocation5 + $0x1a24] sm:$0xf]
    %v1830 = vld [vmem:[#allocation5 + $0x1a28] sm:$0xf]
    %v1831 = vld [vmem:[#allocation5 + $0x1a2c] sm:$0xf]
    %v1832 = vld [vmem:[#allocation5 + $0x1a30] sm:$0xf]
    %v1833 = vld [vmem:[#allocation5 + $0x1a34] sm:$0xf]
    %v1834 = vld [vmem:[#allocation5 + $0x1a38] sm:$0xf]
    %v1835 = vld [vmem:[#allocation5 + $0x1a3c] sm:$0xf]
    %v1836 = vld [vmem:[#allocation5 + $0x1a40] sm:$0xf]
    %v1837 = vld [vmem:[#allocation5 + $0x1a44] sm:$0xf]
    %v1838 = vld [vmem:[#allocation5 + $0x1a48] sm:$0xf]
    %v1839 = vld [vmem:[#allocation5 + $0x1a4c] sm:$0xf]
    %v1840 = vld [vmem:[#allocation5 + $0x1a50] sm:$0xf]
    %v1841 = vld [vmem:[#allocation5 + $0x1a54] sm:$0xf]
    %v1842 = vld [vmem:[#allocation5 + $0x1a58] sm:$0xf]
    %v1843 = vld [vmem:[#allocation5 + $0x1a5c] sm:$0xf]
    %v1844 = vld [vmem:[#allocation5 + $0x1a60] sm:$0xf]
    %v1845 = vld [vmem:[#allocation5 + $0x1a64] sm:$0xf]
    %v1846 = vld [vmem:[#allocation5 + $0x1a68] sm:$0xf]
    %v1847 = vld [vmem:[#allocation5 + $0x1a6c] sm:$0xf]
    %v1848 = vld [vmem:[#allocation5 + $0x1a70] sm:$0xf]
    %v1849 = vld [vmem:[#allocation5 + $0x1a74] sm:$0xf]
    %v1850 = vld [vmem:[#allocation5 + $0x1a78] sm:$0xf]
    %v1851 = vld [vmem:[#allocation5 + $0x1a7c] sm:$0xf]
    %v1852 = vld [vmem:[#allocation5 + $0x1a80] sm:$0xf]
    %v1853 = vld [vmem:[#allocation5 + $0x1a84] sm:$0xf]
    %v1854 = vld [vmem:[#allocation5 + $0x1a88] sm:$0xf]
    %v1855 = vld [vmem:[#allocation5 + $0x1a8c] sm:$0xf]
    %v1856 = vld [vmem:[#allocation5 + $0x1a90] sm:$0xf]
    %v1857 = vld [vmem:[#allocation5 + $0x1a94] sm:$0xf]
    %v1858 = vld [vmem:[#allocation5 + $0x1a98] sm:$0xf]
    %v1859 = vld [vmem:[#allocation5 + $0x1a9c] sm:$0xf]
    %v1860 = vld [vmem:[#allocation5 + $0x1aa0] sm:$0xf]
    %v1861 = vld [vmem:[#allocation5 + $0x1aa4] sm:$0xf]
    %v1862 = vld [vmem:[#allocation5 + $0x1aa8] sm:$0xf]
    %v1863 = vld [vmem:[#allocation5 + $0x1aac] sm:$0xf]
    %v1864 = vld [vmem:[#allocation5 + $0x1ab0] sm:$0xf]
    %v1865 = vld [vmem:[#allocation5 + $0x1ab4] sm:$0xf]
    %v1866 = vld [vmem:[#allocation5 + $0x1ab8] sm:$0xf]
    %v1867 = vld [vmem:[#allocation5 + $0x1abc] sm:$0xf]
    %v1868 = vld [vmem:[#allocation5 + $0x1ac0] sm:$0xf]
    %v1869 = vld [vmem:[#allocation5 + $0x1ac4] sm:$0xf]
    %v1870 = vld [vmem:[#allocation5 + $0x1ac8] sm:$0xf]
    %v1871 = vld [vmem:[#allocation5 + $0x1acc] sm:$0xf]
    %v1872 = vld [vmem:[#allocation5 + $0x1ad0] sm:$0xf]
    %v1873 = vld [vmem:[#allocation5 + $0x1ad4] sm:$0xf]
    %v1874 = vld [vmem:[#allocation5 + $0x1ad8] sm:$0xf]
    %v1875 = vld [vmem:[#allocation5 + $0x1adc] sm:$0xf]
    %v1876 = vld [vmem:[#allocation5 + $0x1ae0] sm:$0xf]
    %v1877 = vld [vmem:[#allocation5 + $0x1ae4] sm:$0xf]
    %v1878 = vld [vmem:[#allocation5 + $0x1ae8] sm:$0xf]
    %v1879 = vld [vmem:[#allocation5 + $0x1aec] sm:$0xf]
    %v1880 = vld [vmem:[#allocation5 + $0x1af0] sm:$0xf]
    %v1881 = vld [vmem:[#allocation5 + $0x1af4] sm:$0xf]
    %v1882 = vld [vmem:[#allocation5 + $0x1af8] sm:$0xf]
    %v1883 = vld [vmem:[#allocation5 + $0x1afc] sm:$0xf]
    %v1884 = vld [vmem:[#allocation5 + $0x1b00] sm:$0xf]
    %v1885 = vld [vmem:[#allocation5 + $0x1b04] sm:$0xf]
    %v1886 = vld [vmem:[#allocation5 + $0x1b08] sm:$0xf]
    %v1887 = vld [vmem:[#allocation5 + $0x1b0c] sm:$0xf]
    %v1888 = vld [vmem:[#allocation5 + $0x1b10] sm:$0xf]
    %v1889 = vld [vmem:[#allocation5 + $0x1b14] sm:$0xf]
    %v1890 = vld [vmem:[#allocation5 + $0x1b18] sm:$0xf]
    %v1891 = vld [vmem:[#allocation5 + $0x1b1c] sm:$0xf]
    %v1892 = vld [vmem:[#allocation5 + $0x1b20] sm:$0xf]
    %v1893 = vld [vmem:[#allocation5 + $0x1b24] sm:$0xf]
    %v1894 = vld [vmem:[#allocation5 + $0x1b28] sm:$0xf]
    %v1895 = vld [vmem:[#allocation5 + $0x1b2c] sm:$0xf]
    %v1896 = vld [vmem:[#allocation5 + $0x1b30] sm:$0xf]
    %v1897 = vld [vmem:[#allocation5 + $0x1b34] sm:$0xf]
    %v1898 = vld [vmem:[#allocation5 + $0x1b38] sm:$0xf]
    %v1899 = vld [vmem:[#allocation5 + $0x1b3c] sm:$0xf]
    %v1900 = vld [vmem:[#allocation5 + $0x1b40] sm:$0xf]
    %v1901 = vld [vmem:[#allocation5 + $0x1b44] sm:$0xf]
    %v1902 = vld [vmem:[#allocation5 + $0x1b48] sm:$0xf]
    %v1903 = vld [vmem:[#allocation5 + $0x1b4c] sm:$0xf]
    %v1904 = vld [vmem:[#allocation5 + $0x1b50] sm:$0xf]
    %v1905 = vld [vmem:[#allocation5 + $0x1b54] sm:$0xf]
    %v1906 = vld [vmem:[#allocation5 + $0x1b58] sm:$0xf]
    %v1907 = vld [vmem:[#allocation5 + $0x1b5c] sm:$0xf]
    %v1908 = vld [vmem:[#allocation5 + $0x1b60] sm:$0xf]
    %v1909 = vld [vmem:[#allocation5 + $0x1b64] sm:$0xf]
    %v1910 = vld [vmem:[#allocation5 + $0x1b68] sm:$0xf]
    %v1911 = vld [vmem:[#allocation5 + $0x1b6c] sm:$0xf]
    %v1912 = vld [vmem:[#allocation5 + $0x1b70] sm:$0xf]
    %v1913 = vld [vmem:[#allocation5 + $0x1b74] sm:$0xf]
    %v1914 = vld [vmem:[#allocation5 + $0x1b78] sm:$0xf]
    %v1915 = vld [vmem:[#allocation5 + $0x1b7c] sm:$0xf]
    %v1916 = vld [vmem:[#allocation5 + $0x1b80] sm:$0xf]
    %v1917 = vld [vmem:[#allocation5 + $0x1b84] sm:$0xf]
    %v1918 = vld [vmem:[#allocation5 + $0x1b88] sm:$0xf]
    %v1919 = vld [vmem:[#allocation5 + $0x1b8c] sm:$0xf]
    %v1920 = vld [vmem:[#allocation5 + $0x1b90] sm:$0xf]
    %v1921 = vld [vmem:[#allocation5 + $0x1b94] sm:$0xf]
    %v1922 = vld [vmem:[#allocation5 + $0x1b98] sm:$0xf]
    %v1923 = vld [vmem:[#allocation5 + $0x1b9c] sm:$0xf]
    %v1924 = vld [vmem:[#allocation5 + $0x1ba0] sm:$0xf]
    %v1925 = vld [vmem:[#allocation5 + $0x1ba4] sm:$0xf]
    %v1926 = vld [vmem:[#allocation5 + $0x1ba8] sm:$0xf]
    %v1927 = vld [vmem:[#allocation5 + $0x1bac] sm:$0xf]
    %v1928 = vld [vmem:[#allocation5 + $0x1bb0] sm:$0xf]
    %v1929 = vld [vmem:[#allocation5 + $0x1bb4] sm:$0xf]
    %v1930 = vld [vmem:[#allocation5 + $0x1bb8] sm:$0xf]
    %v1931 = vld [vmem:[#allocation5 + $0x1bbc] sm:$0xf]
    %v1932 = vld [vmem:[#allocation5 + $0x1bc0] sm:$0xf]
    %v1933 = vld [vmem:[#allocation5 + $0x1bc4] sm:$0xf]
    %v1934 = vld [vmem:[#allocation5 + $0x1bc8] sm:$0xf]
    %v1935 = vld [vmem:[#allocation5 + $0x1bcc] sm:$0xf]
    %v1936 = vld [vmem:[#allocation5 + $0x1bd0] sm:$0xf]
    %v1937 = vld [vmem:[#allocation5 + $0x1bd4] sm:$0xf]
    %v1938 = vld [vmem:[#allocation5 + $0x1bd8] sm:$0xf]
    %v1939 = vld [vmem:[#allocation5 + $0x1bdc] sm:$0xf]
    %v1940 = vld [vmem:[#allocation5 + $0x1be0] sm:$0xf]
    %v1941 = vld [vmem:[#allocation5 + $0x1be4] sm:$0xf]
    %v1942 = vld [vmem:[#allocation5 + $0x1be8] sm:$0xf]
    %v1943 = vld [vmem:[#allocation5 + $0x1bec] sm:$0xf]
    %v1944 = vld [vmem:[#allocation5 + $0x1bf0] sm:$0xf]
    %v1945 = vld [vmem:[#allocation5 + $0x1bf4] sm:$0xf]
    %v1946 = vld [vmem:[#allocation5 + $0x1bf8] sm:$0xf]
    %v1947 = vld [vmem:[#allocation5 + $0x1bfc] sm:$0xf]
    %v1948 = vld [vmem:[#allocation5 + $0x1c00] sm:$0xf]
    %v1949 = vld [vmem:[#allocation5 + $0x1c04] sm:$0xf]
    %v1950 = vld [vmem:[#allocation5 + $0x1c08] sm:$0xf]
    %v1951 = vld [vmem:[#allocation5 + $0x1c0c] sm:$0xf]
    %v1952 = vld [vmem:[#allocation5 + $0x1c10] sm:$0xf]
    %v1953 = vld [vmem:[#allocation5 + $0x1c14] sm:$0xf]
    %v1954 = vld [vmem:[#allocation5 + $0x1c18] sm:$0xf]
    %v1955 = vld [vmem:[#allocation5 + $0x1c1c] sm:$0xf]
    %v1956 = vld [vmem:[#allocation5 + $0x1c20] sm:$0xf]
    %v1957 = vld [vmem:[#allocation5 + $0x1c24] sm:$0xf]
    %v1958 = vld [vmem:[#allocation5 + $0x1c28] sm:$0xf]
    %v1959 = vld [vmem:[#allocation5 + $0x1c2c] sm:$0xf]
    %v1960 = vld [vmem:[#allocation5 + $0x1c30] sm:$0xf]
    %v1961 = vld [vmem:[#allocation5 + $0x1c34] sm:$0xf]
    %v1962 = vld [vmem:[#allocation5 + $0x1c38] sm:$0xf]
    %v1963 = vld [vmem:[#allocation5 + $0x1c3c] sm:$0xf]
    %v1964 = vld [vmem:[#allocation5 + $0x1c40] sm:$0xf]
    %v1965 = vld [vmem:[#allocation5 + $0x1c44] sm:$0xf]
    %v1966 = vld [vmem:[#allocation5 + $0x1c48] sm:$0xf]
    %v1967 = vld [vmem:[#allocation5 + $0x1c4c] sm:$0xf]
    %v1968 = vld [vmem:[#allocation5 + $0x1c50] sm:$0xf]
    %v1969 = vld [vmem:[#allocation5 + $0x1c54] sm:$0xf]
    %v1970 = vld [vmem:[#allocation5 + $0x1c58] sm:$0xf]
    %v1971 = vld [vmem:[#allocation5 + $0x1c5c] sm:$0xf]
    %v1972 = vld [vmem:[#allocation5 + $0x1c60] sm:$0xf]
    %v1973 = vld [vmem:[#allocation5 + $0x1c64] sm:$0xf]
    %v1974 = vld [vmem:[#allocation5 + $0x1c68] sm:$0xf]
    %v1975 = vld [vmem:[#allocation5 + $0x1c6c] sm:$0xf]
    %v1976 = vld [vmem:[#allocation5 + $0x1c70] sm:$0xf]
    %v1977 = vld [vmem:[#allocation5 + $0x1c74] sm:$0xf]
    %v1978 = vld [vmem:[#allocation5 + $0x1c78] sm:$0xf]
    %v1979 = vld [vmem:[#allocation5 + $0x1c7c] sm:$0xf]
    %v1980 = vld [vmem:[#allocation5 + $0x1c80] sm:$0xf]
    %v1981 = vld [vmem:[#allocation5 + $0x1c84] sm:$0xf]
    %v1982 = vld [vmem:[#allocation5 + $0x1c88] sm:$0xf]
    %v1983 = vld [vmem:[#allocation5 + $0x1c8c] sm:$0xf]
    %v1984 = vld [vmem:[#allocation5 + $0x1c90] sm:$0xf]
    %v1985 = vld [vmem:[#allocation5 + $0x1c94] sm:$0xf]
    %v1986 = vld [vmem:[#allocation5 + $0x1c98] sm:$0xf]
    %v1987 = vld [vmem:[#allocation5 + $0x1c9c] sm:$0xf]
    %v1988 = vld [vmem:[#allocation5 + $0x1ca0] sm:$0xf]
    %v1989 = vld [vmem:[#allocation5 + $0x1ca4] sm:$0xf]
    %v1990 = vld [vmem:[#allocation5 + $0x1ca8] sm:$0xf]
    %v1991 = vld [vmem:[#allocation5 + $0x1cac] sm:$0xf]
    %v1992 = vld [vmem:[#allocation5 + $0x1cb0] sm:$0xf]
    %v1993 = vld [vmem:[#allocation5 + $0x1cb4] sm:$0xf]
    %v1994 = vld [vmem:[#allocation5 + $0x1cb8] sm:$0xf]
    %v1995 = vld [vmem:[#allocation5 + $0x1cbc] sm:$0xf]
    %v1996 = vld [vmem:[#allocation5 + $0x1cc0] sm:$0xf]
    %v1997 = vld [vmem:[#allocation5 + $0x1cc4] sm:$0xf]
    %v1998 = vld [vmem:[#allocation5 + $0x1cc8] sm:$0xf]
    %v1999 = vld [vmem:[#allocation5 + $0x1ccc] sm:$0xf]
    %v2000 = vld [vmem:[#allocation5 + $0x1cd0] sm:$0xf]
    %v2001 = vld [vmem:[#allocation5 + $0x1cd4] sm:$0xf]
    %v2002 = vld [vmem:[#allocation5 + $0x1cd8] sm:$0xf]
    %v2003 = vld [vmem:[#allocation5 + $0x1cdc] sm:$0xf]
    %v2004 = vld [vmem:[#allocation5 + $0x1ce0] sm:$0xf]
    %v2005 = vld [vmem:[#allocation5 + $0x1ce4] sm:$0xf]
    %v2006 = vld [vmem:[#allocation5 + $0x1ce8] sm:$0xf]
    %v2007 = vld [vmem:[#allocation5 + $0x1cec] sm:$0xf]
    %v2008 = vld [vmem:[#allocation5 + $0x1cf0] sm:$0xf]
    %v2009 = vld [vmem:[#allocation5 + $0x1cf4] sm:$0xf]
    %v2010 = vld [vmem:[#allocation5 + $0x1cf8] sm:$0xf]
    %v2011 = vld [vmem:[#allocation5 + $0x1cfc] sm:$0xf]
    %v2012 = vld [vmem:[#allocation5 + $0x1d00] sm:$0xf]
    %v2013 = vld [vmem:[#allocation5 + $0x1d04] sm:$0xf]
    %v2014 = vld [vmem:[#allocation5 + $0x1d08] sm:$0xf]
    %v2015 = vld [vmem:[#allocation5 + $0x1d0c] sm:$0xf]
    %v2016 = vld [vmem:[#allocation5 + $0x1d10] sm:$0xf]
    %v2017 = vld [vmem:[#allocation5 + $0x1d14] sm:$0xf]
    %v2018 = vld [vmem:[#allocation5 + $0x1d18] sm:$0xf]
    %v2019 = vld [vmem:[#allocation5 + $0x1d1c] sm:$0xf]
    %v2020 = vld [vmem:[#allocation5 + $0x1d20] sm:$0xf]
    %v2021 = vld [vmem:[#allocation5 + $0x1d24] sm:$0xf]
    %v2022 = vld [vmem:[#allocation5 + $0x1d28] sm:$0xf]
    %v2023 = vld [vmem:[#allocation5 + $0x1d2c] sm:$0xf]
    %v2024 = vld [vmem:[#allocation5 + $0x1d30] sm:$0xf]
    %v2025 = vld [vmem:[#allocation5 + $0x1d34] sm:$0xf]
    %v2026 = vld [vmem:[#allocation5 + $0x1d38] sm:$0xf]
    %v2027 = vld [vmem:[#allocation5 + $0x1d3c] sm:$0xf]
    %v2028 = vld [vmem:[#allocation5 + $0x1d40] sm:$0xf]
    %v2029 = vld [vmem:[#allocation5 + $0x1d44] sm:$0xf]
    %v2030 = vld [vmem:[#allocation5 + $0x1d48] sm:$0xf]
    %v2031 = vld [vmem:[#allocation5 + $0x1d4c] sm:$0xf]
    %v2032 = vld [vmem:[#allocation5 + $0x1d50] sm:$0xf]
    %v2033 = vld [vmem:[#allocation5 + $0x1d54] sm:$0xf]
    %v2034 = vld [vmem:[#allocation5 + $0x1d58] sm:$0xf]
    %v2035 = vld [vmem:[#allocation5 + $0x1d5c] sm:$0xf]
    %v2036 = vld [vmem:[#allocation5 + $0x1d60] sm:$0xf]
    %v2037 = vld [vmem:[#allocation5 + $0x1d64] sm:$0xf]
    %v2038 = vld [vmem:[#allocation5 + $0x1d68] sm:$0xf]
    %v2039 = vld [vmem:[#allocation5 + $0x1d6c] sm:$0xf]
    %v2040 = vld [vmem:[#allocation5 + $0x1d70] sm:$0xf]
    %v2041 = vld [vmem:[#allocation5 + $0x1d74] sm:$0xf]
    %v2042 = vld [vmem:[#allocation5 + $0x1d78] sm:$0xf]
    %v2043 = vld [vmem:[#allocation5 + $0x1d7c] sm:$0xf]
    %v2044 = vld [vmem:[#allocation5 + $0x1d80] sm:$0xf]
    %v2045 = vld [vmem:[#allocation5 + $0x1d84] sm:$0xf]
    %v2046 = vld [vmem:[#allocation5 + $0x1d88] sm:$0xf]
    %v2047 = vld [vmem:[#allocation5 + $0x1d8c] sm:$0xf]
    %v2048 = vld [vmem:[#allocation5 + $0x1d90] sm:$0xf]
    %v2049 = vld [vmem:[#allocation5 + $0x1d94] sm:$0xf]
    %v2050 = vld [vmem:[#allocation5 + $0x1d98] sm:$0xf]
    %v2051 = vld [vmem:[#allocation5 + $0x1d9c] sm:$0xf]
    %v2052 = vld [vmem:[#allocation5 + $0x1da0] sm:$0xf]
    %v2053 = vld [vmem:[#allocation5 + $0x1da4] sm:$0xf]
    %v2054 = vld [vmem:[#allocation5 + $0x1da8] sm:$0xf]
    %v2055 = vld [vmem:[#allocation5 + $0x1dac] sm:$0xf]
    %v2056 = vld [vmem:[#allocation5 + $0x1db0] sm:$0xf]
    %v2057 = vld [vmem:[#allocation5 + $0x1db4] sm:$0xf]
    %v2058 = vld [vmem:[#allocation5 + $0x1db8] sm:$0xf]
    %v2059 = vld [vmem:[#allocation5 + $0x1dbc] sm:$0xf]
    %v2060 = vld [vmem:[#allocation5 + $0x1dc0] sm:$0xf]
    %v2061 = vld [vmem:[#allocation5 + $0x1dc4] sm:$0xf]
    %v2062 = vld [vmem:[#allocation5 + $0x1dc8] sm:$0xf]
    %v2063 = vld [vmem:[#allocation5 + $0x1dcc] sm:$0xf]
    %v2064 = vld [vmem:[#allocation5 + $0x1dd0] sm:$0xf]
    %v2065 = vld [vmem:[#allocation5 + $0x1dd4] sm:$0xf]
    %v2066 = vld [vmem:[#allocation5 + $0x1dd8] sm:$0xf]
    %v2067 = vld [vmem:[#allocation5 + $0x1ddc] sm:$0xf]
    %v2068 = vld [vmem:[#allocation5 + $0x1de0] sm:$0xf]
    %v2069 = vld [vmem:[#allocation5 + $0x1de4] sm:$0xf]
    %v2070 = vld [vmem:[#allocation5 + $0x1de8] sm:$0xf]
    %v2071 = vld [vmem:[#allocation5 + $0x1dec] sm:$0xf]
    %v2072 = vld [vmem:[#allocation5 + $0x1df0] sm:$0xf]
    %v2073 = vld [vmem:[#allocation5 + $0x1df4] sm:$0xf]
    %v2074 = vld [vmem:[#allocation5 + $0x1df8] sm:$0xf]
    %v2075 = vld [vmem:[#allocation5 + $0x1dfc] sm:$0xf]
    %v2076 = vld [vmem:[#allocation5 + $0x1e00] sm:$0xf]
    %v2077 = vld [vmem:[#allocation5 + $0x1e04] sm:$0xf]
    %v2078 = vld [vmem:[#allocation5 + $0x1e08] sm:$0xf]
    %v2079 = vld [vmem:[#allocation5 + $0x1e0c] sm:$0xf]
    %v2080 = vld [vmem:[#allocation5 + $0x1e10] sm:$0xf]
    %v2081 = vld [vmem:[#allocation5 + $0x1e14] sm:$0xf]
    %v2082 = vld [vmem:[#allocation5 + $0x1e18] sm:$0xf]
    %v2083 = vld [vmem:[#allocation5 + $0x1e1c] sm:$0xf]
    %v2084 = vld [vmem:[#allocation5 + $0x1e20] sm:$0xf]
    %v2085 = vld [vmem:[#allocation5 + $0x1e24] sm:$0xf]
    %v2086 = vld [vmem:[#allocation5 + $0x1e28] sm:$0xf]
    %v2087 = vld [vmem:[#allocation5 + $0x1e2c] sm:$0xf]
    %v2088 = vld [vmem:[#allocation5 + $0x1e30] sm:$0xf]
    %v2089 = vld [vmem:[#allocation5 + $0x1e34] sm:$0xf]
    %v2090 = vld [vmem:[#allocation5 + $0x1e38] sm:$0xf]
    %v2091 = vld [vmem:[#allocation5 + $0x1e3c] sm:$0xf]
    %v2092 = vld [vmem:[#allocation5 + $0x1e40] sm:$0xf]
    %v2093 = vld [vmem:[#allocation5 + $0x1e44] sm:$0xf]
    %v2094 = vld [vmem:[#allocation5 + $0x1e48] sm:$0xf]
    %v2095 = vld [vmem:[#allocation5 + $0x1e4c] sm:$0xf]
    %v2096 = vld [vmem:[#allocation5 + $0x1e50] sm:$0xf]
    %v2097 = vld [vmem:[#allocation5 + $0x1e54] sm:$0xf]
    %v2098 = vld [vmem:[#allocation5 + $0x1e58] sm:$0xf]
    %v2099 = vld [vmem:[#allocation5 + $0x1e5c] sm:$0xf]
    %v2100 = vld [vmem:[#allocation5 + $0x1e60] sm:$0xf]
    %v2101 = vld [vmem:[#allocation5 + $0x1e64] sm:$0xf]
    %v2102 = vld [vmem:[#allocation5 + $0x1e68] sm:$0xf]
    %v2103 = vld [vmem:[#allocation5 + $0x1e6c] sm:$0xf]
    %v2104 = vld [vmem:[#allocation5 + $0x1e70] sm:$0xf]
    %v2105 = vld [vmem:[#allocation5 + $0x1e74] sm:$0xf]
    %v2106 = vld [vmem:[#allocation5 + $0x1e78] sm:$0xf]
    %v2107 = vld [vmem:[#allocation5 + $0x1e7c] sm:$0xf]
    %v2108 = vld [vmem:[#allocation5 + $0x1e80] sm:$0xf]
    %v2109 = vld [vmem:[#allocation5 + $0x1e84] sm:$0xf]
    %v2110 = vld [vmem:[#allocation5 + $0x1e88] sm:$0xf]
    %v2111 = vld [vmem:[#allocation5 + $0x1e8c] sm:$0xf]
    %v2112 = vld [vmem:[#allocation5 + $0x1e90] sm:$0xf]
    %v2113 = vld [vmem:[#allocation5 + $0x1e94] sm:$0xf]
    %v2114 = vld [vmem:[#allocation5 + $0x1e98] sm:$0xf]
    %v2115 = vld [vmem:[#allocation5 + $0x1e9c] sm:$0xf]
    %v2116 = vld [vmem:[#allocation5 + $0x1ea0] sm:$0xf]
    %v2117 = vld [vmem:[#allocation5 + $0x1ea4] sm:$0xf]
    %v2118 = vld [vmem:[#allocation5 + $0x1ea8] sm:$0xf]
    %v2119 = vld [vmem:[#allocation5 + $0x1eac] sm:$0xf]
    %v2120 = vld [vmem:[#allocation5 + $0x1eb0] sm:$0xf]
    %v2121 = vld [vmem:[#allocation5 + $0x1eb4] sm:$0xf]
    %v2122 = vld [vmem:[#allocation5 + $0x1eb8] sm:$0xf]
    %v2123 = vld [vmem:[#allocation5 + $0x1ebc] sm:$0xf]
    %v2124 = vld [vmem:[#allocation5 + $0x1ec0] sm:$0xf]
    %v2125 = vld [vmem:[#allocation5 + $0x1ec4] sm:$0xf]
    %v2126 = vld [vmem:[#allocation5 + $0x1ec8] sm:$0xf]
    %v2127 = vld [vmem:[#allocation5 + $0x1ecc] sm:$0xf]
    %v2128 = vld [vmem:[#allocation5 + $0x1ed0] sm:$0xf]
    %v2129 = vld [vmem:[#allocation5 + $0x1ed4] sm:$0xf]
    %v2130 = vld [vmem:[#allocation5 + $0x1ed8] sm:$0xf]
    %v2131 = vld [vmem:[#allocation5 + $0x1edc] sm:$0xf]
    %v2132 = vld [vmem:[#allocation5 + $0x1ee0] sm:$0xf]
    %v2133 = vld [vmem:[#allocation5 + $0x1ee4] sm:$0xf]
    %v2134 = vld [vmem:[#allocation5 + $0x1ee8] sm:$0xf]
    %v2135 = vld [vmem:[#allocation5 + $0x1eec] sm:$0xf]
    %v2136 = vld [vmem:[#allocation5 + $0x1ef0] sm:$0xf]
    %v2137 = vld [vmem:[#allocation5 + $0x1ef4] sm:$0xf]
    %v2138 = vld [vmem:[#allocation5 + $0x1ef8] sm:$0xf]
    %v2139 = vld [vmem:[#allocation5 + $0x1efc] sm:$0xf]
    %v2140 = vld [vmem:[#allocation5 + $0x1f00] sm:$0xf]
    %v2141 = vld [vmem:[#allocation5 + $0x1f04] sm:$0xf]
    %v2142 = vld [vmem:[#allocation5 + $0x1f08] sm:$0xf]
    %v2143 = vld [vmem:[#allocation5 + $0x1f0c] sm:$0xf]
    %v2144 = vld [vmem:[#allocation5 + $0x1f10] sm:$0xf]
    %v2145 = vld [vmem:[#allocation5 + $0x1f14] sm:$0xf]
    %v2146 = vld [vmem:[#allocation5 + $0x1f18] sm:$0xf]
    %v2147 = vld [vmem:[#allocation5 + $0x1f1c] sm:$0xf]
    %v2148 = vld [vmem:[#allocation5 + $0x1f20] sm:$0xf]
    %v2149 = vld [vmem:[#allocation5 + $0x1f24] sm:$0xf]
    %v2150 = vld [vmem:[#allocation5 + $0x1f28] sm:$0xf]
    %v2151 = vld [vmem:[#allocation5 + $0x1f2c] sm:$0xf]
    %v2152 = vld [vmem:[#allocation5 + $0x1f30] sm:$0xf]
    %v2153 = vld [vmem:[#allocation5 + $0x1f34] sm:$0xf]
    %v2154 = vld [vmem:[#allocation5 + $0x1f38] sm:$0xf]
    %v2155 = vld [vmem:[#allocation5 + $0x1f3c] sm:$0xf]
    %v2156 = vld [vmem:[#allocation7] sm:$0x1]
    %v2158 = vperm.slane %v2156, 0
    %v2223 = vunpack.c.l.b16 %v93
    %v2224 = vunpack.c.h.b16 %v93
    %v2225 = vunpack.c.l.b16 %v94
    %v2226 = vunpack.c.h.b16 %v94
    %v2227 = vunpack.c.l.b16 %v95
    %v2228 = vunpack.c.h.b16 %v95
    %v2229 = vunpack.c.l.b16 %v96
    %v2230 = vunpack.c.h.b16 %v96
    %v2231 = vunpack.c.l.b16 %v97
    %v2232 = vunpack.c.h.b16 %v97
    %v2233 = vunpack.c.l.b16 %v98
    %v2234 = vunpack.c.h.b16 %v98
    %v2235 = vunpack.c.l.b16 %v99
    %v2236 = vunpack.c.h.b16 %v99
    %v2237 = vunpack.c.l.b16 %v100
    %v2238 = vunpack.c.h.b16 %v100
    %v2239 = vunpack.c.l.b16 %v101
    %v2240 = vunpack.c.h.b16 %v101
    %v2241 = vunpack.c.l.b16 %v102
    %v2242 = vunpack.c.h.b16 %v102
    %v2243 = vunpack.c.l.b16 %v103
    %v2244 = vunpack.c.h.b16 %v103
    %v2245 = vunpack.c.l.b16 %v104
    %v2246 = vunpack.c.h.b16 %v104
    %v2247 = vunpack.c.l.b16 %v105
    %v2248 = vunpack.c.h.b16 %v105
    %v2249 = vunpack.c.l.b16 %v106
    %v2250 = vunpack.c.h.b16 %v106
    %v2251 = vunpack.c.l.b16 %v107
    %v2252 = vunpack.c.h.b16 %v107
    %v2253 = vunpack.c.l.b16 %v108
    %v2254 = vunpack.c.h.b16 %v108
    %v2255 = vunpack.c.l.b16 %v109
    %v2256 = vunpack.c.h.b16 %v109
    %v2257 = vunpack.c.l.b16 %v110
    %v2258 = vunpack.c.h.b16 %v110
    %v2259 = vunpack.c.l.b16 %v111
    %v2260 = vunpack.c.h.b16 %v111
    %v2261 = vunpack.c.l.b16 %v112
    %v2262 = vunpack.c.h.b16 %v112
    %v2263 = vunpack.c.l.b16 %v113
    %v2264 = vunpack.c.h.b16 %v113
    %v2265 = vunpack.c.l.b16 %v114
    %v2266 = vunpack.c.h.b16 %v114
    %v2267 = vunpack.c.l.b16 %v115
    %v2268 = vunpack.c.h.b16 %v115
    %v2269 = vunpack.c.l.b16 %v116
    %v2270 = vunpack.c.h.b16 %v116
    %v2271 = vunpack.c.l.b16 %v117
    %v2272 = vunpack.c.h.b16 %v117
    %v2273 = vunpack.c.l.b16 %v118
    %v2274 = vunpack.c.h.b16 %v118
    %v2275 = vunpack.c.l.b16 %v119
    %v2276 = vunpack.c.h.b16 %v119
    %v2277 = vunpack.c.l.b16 %v120
    %v2278 = vunpack.c.h.b16 %v120
    %v2279 = vunpack.c.l.b16 %v121
    %v2280 = vunpack.c.h.b16 %v121
    %v2281 = vunpack.c.l.b16 %v122
    %v2282 = vunpack.c.h.b16 %v122
    %v2283 = vunpack.c.l.b16 %v123
    %v2284 = vunpack.c.h.b16 %v123
    %v2285 = vunpack.c.l.b16 %v124
    %v2286 = vunpack.c.h.b16 %v124
    %v2287 = vunpack.c.l.b16 %v125
    %v2288 = vunpack.c.h.b16 %v125
    %v2289 = vunpack.c.l.b16 %v126
    %v2290 = vunpack.c.h.b16 %v126
    %v2291 = vunpack.c.l.b16 %v127
    %v2292 = vunpack.c.h.b16 %v127
    %v2293 = vunpack.c.l.b16 %v128
    %v2294 = vunpack.c.h.b16 %v128
    %v2295 = vunpack.c.l.b16 %v129
    %v2296 = vunpack.c.h.b16 %v129
    %v2297 = vunpack.c.l.b16 %v130
    %v2298 = vunpack.c.h.b16 %v130
    %v2299 = vunpack.c.l.b16 %v131
    %v2300 = vunpack.c.h.b16 %v131
    %v2301 = vunpack.c.l.b16 %v132
    %v2302 = vunpack.c.h.b16 %v132
    %v2303 = vunpack.c.l.b16 %v133
    %v2304 = vunpack.c.h.b16 %v133
    %v2305 = vunpack.c.l.b16 %v134
    %v2306 = vunpack.c.h.b16 %v134
    %v2307 = vunpack.c.l.b16 %v135
    %v2308 = vunpack.c.h.b16 %v135
    %v2309 = vunpack.c.l.b16 %v136
    %v2310 = vunpack.c.h.b16 %v136
    %v2311 = vunpack.c.l.b16 %v137
    %v2312 = vunpack.c.h.b16 %v137
    %v2313 = vunpack.c.l.b16 %v138
    %v2314 = vunpack.c.h.b16 %v138
    %v2315 = vunpack.c.l.b16 %v139
    %v2316 = vunpack.c.h.b16 %v139
    %v2317 = vunpack.c.l.b16 %v140
    %v2318 = vunpack.c.h.b16 %v140
    %v2319 = vunpack.c.l.b16 %v141
    %v2320 = vunpack.c.h.b16 %v141
    %v2321 = vunpack.c.l.b16 %v142
    %v2322 = vunpack.c.h.b16 %v142
    %v2323 = vunpack.c.l.b16 %v143
    %v2324 = vunpack.c.h.b16 %v143
    %v2325 = vunpack.c.l.b16 %v144
    %v2326 = vunpack.c.h.b16 %v144
    %v2327 = vunpack.c.l.b16 %v145
    %v2328 = vunpack.c.h.b16 %v145
    %v2329 = vunpack.c.l.b16 %v146
    %v2330 = vunpack.c.h.b16 %v146
    %v2331 = vunpack.c.l.b16 %v147
    %v2332 = vunpack.c.h.b16 %v147
    %v2333 = vunpack.c.l.b16 %v148
    %v2334 = vunpack.c.h.b16 %v148
    %v2335 = vunpack.c.l.b16 %v149
    %v2336 = vunpack.c.h.b16 %v149
    %v2337 = vunpack.c.l.b16 %v150
    %v2338 = vunpack.c.h.b16 %v150
    %v2339 = vunpack.c.l.b16 %v151
    %v2340 = vunpack.c.h.b16 %v151
    %v2341 = vunpack.c.l.b16 %v152
    %v2342 = vunpack.c.h.b16 %v152
    %v2343 = vunpack.c.l.b16 %v153
    %v2344 = vunpack.c.h.b16 %v153
    %v2345 = vunpack.c.l.b16 %v154
    %v2346 = vunpack.c.h.b16 %v154
    %v2347 = vunpack.c.l.b16 %v155
    %v2348 = vpack.c.b16 %v2223, %v2223
    %v2349 = vpack.c.b16 %v2224, %v2224
    %v2350 = vpack.c.b16 %v2225, %v2225
    %v2351 = vpack.c.b16 %v2226, %v2226
    %v2352 = vpack.c.b16 %v2227, %v2227
    %v2353 = vpack.c.b16 %v2228, %v2228
    %v2354 = vpack.c.b16 %v2229, %v2229
    %v2355 = vpack.c.b16 %v2230, %v2230
    %v2356 = vpack.c.b16 %v2231, %v2231
    %v2357 = vpack.c.b16 %v2232, %v2232
    %v2358 = vpack.c.b16 %v2233, %v2233
    %v2359 = vpack.c.b16 %v2234, %v2234
    %v2360 = vpack.c.b16 %v2235, %v2235
    %v2361 = vpack.c.b16 %v2236, %v2236
    %v2362 = vpack.c.b16 %v2237, %v2237
    %v2363 = vpack.c.b16 %v2238, %v2238
    %v2364 = vpack.c.b16 %v2239, %v2239
    %v2365 = vpack.c.b16 %v2240, %v2240
    %v2366 = vpack.c.b16 %v2241, %v2241
    %v2367 = vpack.c.b16 %v2242, %v2242
    %v2368 = vpack.c.b16 %v2243, %v2243
    %v2369 = vpack.c.b16 %v2244, %v2244
    %v2370 = vpack.c.b16 %v2245, %v2245
    %v2371 = vpack.c.b16 %v2246, %v2246
    %v2372 = vpack.c.b16 %v2247, %v2247
    %v2373 = vpack.c.b16 %v2248, %v2248
    %v2374 = vpack.c.b16 %v2249, %v2249
    %v2375 = vpack.c.b16 %v2250, %v2250
    %v2376 = vpack.c.b16 %v2251, %v2251
    %v2377 = vpack.c.b16 %v2252, %v2252
    %v2378 = vpack.c.b16 %v2253, %v2253
    %v2379 = vpack.c.b16 %v2254, %v2254
    %v2380 = vpack.c.b16 %v2255, %v2255
    %v2381 = vpack.c.b16 %v2256, %v2256
    %v2382 = vpack.c.b16 %v2257, %v2257
    %v2383 = vpack.c.b16 %v2258, %v2258
    %v2384 = vpack.c.b16 %v2259, %v2259
    %v2385 = vpack.c.b16 %v2260, %v2260
    %v2386 = vpack.c.b16 %v2261, %v2261
    %v2387 = vpack.c.b16 %v2262, %v2262
    %v2388 = vpack.c.b16 %v2263, %v2263
    %v2389 = vpack.c.b16 %v2264, %v2264
    %v2390 = vpack.c.b16 %v2265, %v2265
    %v2391 = vpack.c.b16 %v2266, %v2266
    %v2392 = vpack.c.b16 %v2267, %v2267
    %v2393 = vpack.c.b16 %v2268, %v2268
    %v2394 = vpack.c.b16 %v2269, %v2269
    %v2395 = vpack.c.b16 %v2270, %v2270
    %v2396 = vpack.c.b16 %v2271, %v2271
    %v2397 = vpack.c.b16 %v2272, %v2272
    %v2398 = vpack.c.b16 %v2273, %v2273
    %v2399 = vpack.c.b16 %v2274, %v2274
    %v2400 = vpack.c.b16 %v2275, %v2275
    %v2401 = vpack.c.b16 %v2276, %v2276
    %v2402 = vpack.c.b16 %v2277, %v2277
    %v2403 = vpack.c.b16 %v2278, %v2278
    %v2404 = vpack.c.b16 %v2279, %v2279
    %v2405 = vpack.c.b16 %v2280, %v2280
    %v2406 = vpack.c.b16 %v2281, %v2281
    %v2407 = vpack.c.b16 %v2282, %v2282
    %v2408 = vpack.c.b16 %v2283, %v2283
    %v2409 = vpack.c.b16 %v2284, %v2284
    %v2410 = vpack.c.b16 %v2285, %v2285
    %v2411 = vpack.c.b16 %v2286, %v2286
    %v2412 = vpack.c.b16 %v2287, %v2287
    %v2413 = vpack.c.b16 %v2288, %v2288
    %v2414 = vpack.c.b16 %v2289, %v2289
    %v2415 = vpack.c.b16 %v2290, %v2290
    %v2416 = vpack.c.b16 %v2291, %v2291
    %v2417 = vpack.c.b16 %v2292, %v2292
    %v2418 = vpack.c.b16 %v2293, %v2293
    %v2419 = vpack.c.b16 %v2294, %v2294
    %v2420 = vpack.c.b16 %v2295, %v2295
    %v2421 = vpack.c.b16 %v2296, %v2296
    %v2422 = vpack.c.b16 %v2297, %v2297
    %v2423 = vpack.c.b16 %v2298, %v2298
    %v2424 = vpack.c.b16 %v2299, %v2299
    %v2425 = vpack.c.b16 %v2300, %v2300
    %v2426 = vpack.c.b16 %v2301, %v2301
    %v2427 = vpack.c.b16 %v2302, %v2302
    %v2428 = vpack.c.b16 %v2303, %v2303
    %v2429 = vpack.c.b16 %v2304, %v2304
    %v2430 = vpack.c.b16 %v2305, %v2305
    %v2431 = vpack.c.b16 %v2306, %v2306
    %v2432 = vpack.c.b16 %v2307, %v2307
    %v2433 = vpack.c.b16 %v2308, %v2308
    %v2434 = vpack.c.b16 %v2309, %v2309
    %v2435 = vpack.c.b16 %v2310, %v2310
    %v2436 = vpack.c.b16 %v2311, %v2311
    %v2437 = vpack.c.b16 %v2312, %v2312
    %v2438 = vpack.c.b16 %v2313, %v2313
    %v2439 = vpack.c.b16 %v2314, %v2314
    %v2440 = vpack.c.b16 %v2315, %v2315
    %v2441 = vpack.c.b16 %v2316, %v2316
    %v2442 = vpack.c.b16 %v2317, %v2317
    %v2443 = vpack.c.b16 %v2318, %v2318
    %v2444 = vpack.c.b16 %v2319, %v2319
    %v2445 = vpack.c.b16 %v2320, %v2320
    %v2446 = vpack.c.b16 %v2321, %v2321
    %v2447 = vpack.c.b16 %v2322, %v2322
    %v2448 = vpack.c.b16 %v2323, %v2323
    %v2449 = vpack.c.b16 %v2324, %v2324
    %v2450 = vpack.c.b16 %v2325, %v2325
    %v2451 = vpack.c.b16 %v2326, %v2326
    %v2452 = vpack.c.b16 %v2327, %v2327
    %v2453 = vpack.c.b16 %v2328, %v2328
    %v2454 = vpack.c.b16 %v2329, %v2329
    %v2455 = vpack.c.b16 %v2330, %v2330
    %v2456 = vpack.c.b16 %v2331, %v2331
    %v2457 = vpack.c.b16 %v2332, %v2332
    %v2458 = vpack.c.b16 %v2333, %v2333
    %v2459 = vpack.c.b16 %v2334, %v2334
    %v2460 = vpack.c.b16 %v2335, %v2335
    %v2461 = vpack.c.b16 %v2336, %v2336
    %v2462 = vpack.c.b16 %v2337, %v2337
    %v2463 = vpack.c.b16 %v2338, %v2338
    %v2464 = vpack.c.b16 %v2339, %v2339
    %v2465 = vpack.c.b16 %v2340, %v2340
    %v2466 = vpack.c.b16 %v2341, %v2341
    %v2467 = vpack.c.b16 %v2342, %v2342
    %v2468 = vpack.c.b16 %v2343, %v2343
    %v2469 = vpack.c.b16 %v2344, %v2344
    %v2470 = vpack.c.b16 %v2345, %v2345
    %v2471 = vpack.c.b16 %v2346, %v2346
    %v2472 = vpack.c.b16 %v2347, %v2347
    %v4598 = vunpack.c.l.b16 %v156
    %v4599 = vunpack.c.l.b16 %v157
    %v4600 = vunpack.c.l.b16 %v158
    %v4601 = vunpack.c.l.b16 %v159
    %v4602 = vunpack.c.l.b16 %v160
    %v4603 = vunpack.c.l.b16 %v161
    %v4604 = vunpack.c.l.b16 %v162
    %v4605 = vunpack.c.l.b16 %v163
    %v4606 = vunpack.c.l.b16 %v164
    %v4607 = vunpack.c.l.b16 %v165
    %v4608 = vunpack.c.l.b16 %v166
    %v4609 = vunpack.c.l.b16 %v167
    %v4610 = vunpack.c.l.b16 %v168
    %v4611 = vunpack.c.l.b16 %v169
    %v4612 = vunpack.c.l.b16 %v170
    %v4613 = vunpack.c.l.b16 %v171
    %v4614 = vunpack.c.l.b16 %v172
    %v4615 = vunpack.c.l.b16 %v173
    %v4616 = vunpack.c.l.b16 %v174
    %v4617 = vunpack.c.l.b16 %v175
    %v4618 = vunpack.c.l.b16 %v176
    %v4619 = vunpack.c.l.b16 %v177
    %v4620 = vunpack.c.l.b16 %v178
    %v4621 = vunpack.c.l.b16 %v179
    %v4622 = vunpack.c.l.b16 %v180
    %v4623 = vunpack.c.l.b16 %v181
    %v4624 = vunpack.c.l.b16 %v182
    %v4625 = vunpack.c.l.b16 %v183
    %v4626 = vunpack.c.l.b16 %v184
    %v4627 = vunpack.c.l.b16 %v185
    %v4628 = vunpack.c.l.b16 %v186
    %v4629 = vunpack.c.l.b16 %v187
    %v4630 = vunpack.c.l.b16 %v188
    %v4631 = vunpack.c.l.b16 %v189
    %v4632 = vunpack.c.l.b16 %v190
    %v4633 = vunpack.c.l.b16 %v191
    %v4634 = vunpack.c.l.b16 %v192
    %v4635 = vunpack.c.l.b16 %v193
    %v4636 = vunpack.c.l.b16 %v194
    %v4637 = vunpack.c.l.b16 %v195
    %v4638 = vunpack.c.l.b16 %v196
    %v4639 = vunpack.c.l.b16 %v197
    %v4640 = vunpack.c.l.b16 %v198
    %v4641 = vunpack.c.l.b16 %v199
    %v4642 = vunpack.c.l.b16 %v200
    %v4643 = vunpack.c.l.b16 %v201
    %v4644 = vunpack.c.l.b16 %v202
    %v4645 = vunpack.c.l.b16 %v203
    %v4646 = vunpack.c.l.b16 %v204
    %v4647 = vunpack.c.l.b16 %v205
    %v4648 = vunpack.c.l.b16 %v206
    %v4649 = vunpack.c.l.b16 %v207
    %v4650 = vunpack.c.l.b16 %v208
    %v4651 = vunpack.c.l.b16 %v209
    %v4652 = vunpack.c.l.b16 %v210
    %v4653 = vunpack.c.l.b16 %v211
    %v4654 = vunpack.c.l.b16 %v212
    %v4655 = vunpack.c.l.b16 %v213
    %v4656 = vunpack.c.l.b16 %v214
    %v4657 = vunpack.c.l.b16 %v215
    %v4658 = vunpack.c.l.b16 %v216
    %v4659 = vunpack.c.l.b16 %v217
    %v4660 = vunpack.c.l.b16 %v218
    %v4661 = vunpack.c.l.b16 %v219
    %v4662 = vunpack.c.l.b16 %v220
    %v4663 = vunpack.c.l.b16 %v221
    %v4664 = vunpack.c.l.b16 %v222
    %v4665 = vunpack.c.l.b16 %v223
    %v4666 = vunpack.c.l.b16 %v224
    %v4667 = vunpack.c.l.b16 %v225
    %v4668 = vunpack.c.l.b16 %v226
    %v4669 = vunpack.c.l.b16 %v227
    %v4670 = vunpack.c.l.b16 %v228
    %v4671 = vunpack.c.l.b16 %v229
    %v4672 = vunpack.c.l.b16 %v230
    %v4673 = vunpack.c.l.b16 %v231
    %v4674 = vunpack.c.l.b16 %v232
    %v4675 = vunpack.c.l.b16 %v233
    %v4676 = vunpack.c.l.b16 %v234
    %v4677 = vunpack.c.l.b16 %v235
    %v4678 = vunpack.c.l.b16 %v236
    %v4679 = vunpack.c.l.b16 %v237
    %v4680 = vunpack.c.l.b16 %v238
    %v4681 = vunpack.c.l.b16 %v239
    %v4682 = vunpack.c.l.b16 %v240
    %v4683 = vunpack.c.l.b16 %v241
    %v4684 = vunpack.c.l.b16 %v242
    %v4685 = vunpack.c.l.b16 %v243
    %v4686 = vunpack.c.l.b16 %v244
    %v4687 = vunpack.c.l.b16 %v245
    %v4688 = vunpack.c.l.b16 %v246
    %v4689 = vunpack.c.l.b16 %v247
    %v4690 = vunpack.c.l.b16 %v248
    %v4691 = vunpack.c.l.b16 %v249
    %v4692 = vunpack.c.l.b16 %v250
    %v4693 = vunpack.c.l.b16 %v251
    %v4694 = vunpack.c.l.b16 %v252
    %v4695 = vunpack.c.l.b16 %v253
    %v4696 = vunpack.c.l.b16 %v254
    %v4697 = vunpack.c.l.b16 %v255
    %v4698 = vunpack.c.l.b16 %v256
    %v4699 = vunpack.c.l.b16 %v257
    %v4700 = vunpack.c.l.b16 %v258
    %v4701 = vunpack.c.l.b16 %v259
    %v4702 = vunpack.c.l.b16 %v260
    %v4703 = vunpack.c.l.b16 %v261
    %v4704 = vunpack.c.l.b16 %v262
    %v4705 = vunpack.c.l.b16 %v263
    %v4706 = vunpack.c.l.b16 %v264
    %v4707 = vunpack.c.l.b16 %v265
    %v4708 = vunpack.c.l.b16 %v266
    %v4709 = vunpack.c.l.b16 %v267
    %v4710 = vunpack.c.l.b16 %v268
    %v4711 = vunpack.c.l.b16 %v269
    %v4712 = vunpack.c.l.b16 %v270
    %v4713 = vunpack.c.l.b16 %v271
    %v4714 = vunpack.c.l.b16 %v272
    %v4715 = vunpack.c.l.b16 %v273
    %v4716 = vunpack.c.l.b16 %v274
    %v4717 = vunpack.c.l.b16 %v275
    %v4718 = vunpack.c.l.b16 %v276
    %v4719 = vunpack.c.l.b16 %v277
    %v4720 = vunpack.c.l.b16 %v278
    %v4721 = vunpack.c.l.b16 %v279
    %v4722 = vunpack.c.l.b16 %v280
    %v4723 = vunpack.c.l.b16 %v281
    %v4724 = vunpack.c.l.b16 %v282
    %v4725 = vunpack.c.l.b16 %v283
    %v4726 = vunpack.c.l.b16 %v284
    %v4727 = vunpack.c.l.b16 %v285
    %v4728 = vunpack.c.l.b16 %v286
    %v4729 = vunpack.c.l.b16 %v287
    %v4730 = vunpack.c.l.b16 %v288
    %v4731 = vunpack.c.l.b16 %v289
    %v4732 = vunpack.c.l.b16 %v290
    %v4733 = vunpack.c.l.b16 %v291
    %v4734 = vunpack.c.l.b16 %v292
    %v4735 = vunpack.c.l.b16 %v293
    %v4736 = vunpack.c.l.b16 %v294
    %v4737 = vunpack.c.l.b16 %v295
    %v4738 = vunpack.c.l.b16 %v296
    %v4739 = vunpack.c.l.b16 %v297
    %v4740 = vunpack.c.l.b16 %v298
    %v4741 = vunpack.c.l.b16 %v299
    %v4742 = vunpack.c.l.b16 %v300
    %v4743 = vunpack.c.l.b16 %v301
    %v4744 = vunpack.c.l.b16 %v302
    %v4745 = vunpack.c.l.b16 %v303
    %v4746 = vunpack.c.l.b16 %v304
    %v4747 = vunpack.c.l.b16 %v305
    %v4748 = vunpack.c.l.b16 %v306
    %v4749 = vunpack.c.l.b16 %v307
    %v4750 = vunpack.c.l.b16 %v308
    %v4751 = vunpack.c.l.b16 %v309
    %v4752 = vunpack.c.l.b16 %v310
    %v4753 = vunpack.c.l.b16 %v311
    %v4754 = vunpack.c.l.b16 %v312
    %v4755 = vunpack.c.l.b16 %v313
    %v4756 = vunpack.c.l.b16 %v314
    %v4757 = vunpack.c.l.b16 %v315
    %v4758 = vunpack.c.l.b16 %v316
    %v4759 = vunpack.c.l.b16 %v317
    %v4760 = vunpack.c.l.b16 %v318
    %v4761 = vunpack.c.l.b16 %v319
    %v4762 = vunpack.c.l.b16 %v320
    %v4763 = vunpack.c.l.b16 %v321
    %v4764 = vunpack.c.l.b16 %v322
    %v4765 = vunpack.c.l.b16 %v323
    %v4766 = vunpack.c.l.b16 %v324
    %v4767 = vunpack.c.l.b16 %v325
    %v4768 = vunpack.c.l.b16 %v326
    %v4769 = vunpack.c.l.b16 %v327
    %v4770 = vunpack.c.l.b16 %v328
    %v4771 = vunpack.c.l.b16 %v329
    %v4772 = vunpack.c.l.b16 %v330
    %v4773 = vunpack.c.l.b16 %v331
    %v4774 = vunpack.c.l.b16 %v332
    %v4775 = vunpack.c.l.b16 %v333
    %v4776 = vunpack.c.l.b16 %v334
    %v4777 = vunpack.c.l.b16 %v335
    %v4778 = vunpack.c.l.b16 %v336
    %v4779 = vunpack.c.l.b16 %v337
    %v4780 = vunpack.c.l.b16 %v338
    %v4781 = vunpack.c.l.b16 %v339
    %v4782 = vunpack.c.l.b16 %v340
    %v4783 = vunpack.c.l.b16 %v341
    %v4784 = vunpack.c.l.b16 %v342
    %v4785 = vunpack.c.l.b16 %v343
    %v4786 = vunpack.c.l.b16 %v344
    %v4787 = vunpack.c.l.b16 %v345
    %v4788 = vunpack.c.l.b16 %v346
    %v4789 = vunpack.c.l.b16 %v347
    %v4790 = vunpack.c.l.b16 %v348
    %v4791 = vunpack.c.l.b16 %v349
    %v4792 = vunpack.c.l.b16 %v350
    %v4793 = vunpack.c.l.b16 %v351
    %v4794 = vunpack.c.l.b16 %v352
    %v4795 = vunpack.c.l.b16 %v353
    %v4796 = vunpack.c.l.b16 %v354
    %v4797 = vunpack.c.l.b16 %v355
    %v4798 = vunpack.c.l.b16 %v356
    %v4799 = vunpack.c.l.b16 %v357
    %v4800 = vunpack.c.l.b16 %v358
    %v4801 = vunpack.c.l.b16 %v359
    %v4802 = vunpack.c.l.b16 %v360
    %v4803 = vunpack.c.l.b16 %v361
    %v4804 = vunpack.c.l.b16 %v362
    %v4805 = vunpack.c.l.b16 %v363
    %v4806 = vunpack.c.l.b16 %v364
    %v4807 = vunpack.c.l.b16 %v365
    %v4808 = vunpack.c.l.b16 %v366
    %v4809 = vunpack.c.l.b16 %v367
    %v4810 = vunpack.c.l.b16 %v368
    %v4811 = vunpack.c.l.b16 %v369
    %v4812 = vunpack.c.l.b16 %v370
    %v4813 = vunpack.c.l.b16 %v371
    %v4814 = vunpack.c.l.b16 %v372
    %v4815 = vunpack.c.l.b16 %v373
    %v4816 = vunpack.c.l.b16 %v374
    %v4817 = vunpack.c.l.b16 %v375
    %v4818 = vunpack.c.l.b16 %v376
    %v4819 = vunpack.c.l.b16 %v377
    %v4820 = vunpack.c.l.b16 %v378
    %v4821 = vunpack.c.l.b16 %v379
    %v4822 = vunpack.c.l.b16 %v380
    %v4823 = vunpack.c.l.b16 %v381
    %v4824 = vunpack.c.l.b16 %v382
    %v4825 = vunpack.c.l.b16 %v383
    %v4826 = vunpack.c.l.b16 %v384
    %v4827 = vunpack.c.l.b16 %v385
    %v4828 = vunpack.c.l.b16 %v386
    %v4829 = vunpack.c.l.b16 %v387
    %v4830 = vunpack.c.l.b16 %v388
    %v4831 = vunpack.c.l.b16 %v389
    %v4832 = vunpack.c.l.b16 %v390
    %v4833 = vunpack.c.l.b16 %v391
    %v4834 = vunpack.c.l.b16 %v392
    %v4835 = vunpack.c.l.b16 %v393
    %v4836 = vunpack.c.l.b16 %v394
    %v4837 = vunpack.c.l.b16 %v395
    %v4838 = vunpack.c.l.b16 %v396
    %v4839 = vunpack.c.l.b16 %v397
    %v4840 = vunpack.c.l.b16 %v398
    %v4841 = vunpack.c.l.b16 %v399
    %v4842 = vunpack.c.l.b16 %v400
    %v4843 = vunpack.c.l.b16 %v401
    %v4844 = vunpack.c.l.b16 %v402
    %v4845 = vunpack.c.l.b16 %v403
    %v4846 = vunpack.c.l.b16 %v404
    %v4847 = vunpack.c.l.b16 %v405
    %v4848 = vunpack.c.l.b16 %v406
    %v4849 = vunpack.c.l.b16 %v407
    %v4850 = vunpack.c.l.b16 %v408
    %v4851 = vunpack.c.l.b16 %v409
    %v4852 = vunpack.c.l.b16 %v410
    %v4853 = vunpack.c.l.b16 %v411
    %v4854 = vunpack.c.l.b16 %v412
    %v4855 = vunpack.c.l.b16 %v413
    %v4856 = vunpack.c.l.b16 %v414
    %v4857 = vunpack.c.l.b16 %v415
    %v4858 = vunpack.c.l.b16 %v416
    %v4859 = vunpack.c.l.b16 %v417
    %v4860 = vunpack.c.l.b16 %v418
    %v4861 = vunpack.c.l.b16 %v419
    %v4862 = vunpack.c.l.b16 %v420
    %v4863 = vunpack.c.l.b16 %v421
    %v4864 = vunpack.c.l.b16 %v422
    %v4865 = vunpack.c.l.b16 %v423
    %v4866 = vunpack.c.l.b16 %v424
    %v4867 = vunpack.c.l.b16 %v425
    %v4868 = vunpack.c.l.b16 %v426
    %v4869 = vunpack.c.l.b16 %v427
    %v4870 = vunpack.c.l.b16 %v428
    %v4871 = vunpack.c.l.b16 %v429
    %v4872 = vunpack.c.l.b16 %v430
    %v4873 = vunpack.c.l.b16 %v431
    %v4874 = vunpack.c.l.b16 %v432
    %v4875 = vunpack.c.l.b16 %v433
    %v4876 = vunpack.c.l.b16 %v434
    %v4877 = vunpack.c.l.b16 %v435
    %v4878 = vunpack.c.l.b16 %v436
    %v4879 = vunpack.c.l.b16 %v437
    %v4880 = vunpack.c.l.b16 %v438
    %v4881 = vunpack.c.l.b16 %v439
    %v4882 = vunpack.c.l.b16 %v440
    %v4883 = vunpack.c.l.b16 %v441
    %v4884 = vunpack.c.l.b16 %v442
    %v4885 = vunpack.c.l.b16 %v443
    %v4886 = vunpack.c.l.b16 %v444
    %v4887 = vunpack.c.l.b16 %v445
    %v4888 = vunpack.c.l.b16 %v446
    %v4889 = vunpack.c.l.b16 %v447
    %v4890 = vunpack.c.l.b16 %v448
    %v4891 = vunpack.c.l.b16 %v449
    %v4892 = vunpack.c.l.b16 %v450
    %v4893 = vunpack.c.l.b16 %v451
    %v4894 = vunpack.c.l.b16 %v452
    %v4895 = vunpack.c.l.b16 %v453
    %v4896 = vunpack.c.l.b16 %v454
    %v4897 = vunpack.c.l.b16 %v455
    %v4898 = vunpack.c.l.b16 %v456
    %v4899 = vunpack.c.l.b16 %v457
    %v4900 = vunpack.c.l.b16 %v458
    %v4901 = vunpack.c.l.b16 %v459
    %v4902 = vunpack.c.l.b16 %v460
    %v4903 = vunpack.c.l.b16 %v461
    %v4904 = vunpack.c.l.b16 %v462
    %v4905 = vunpack.c.l.b16 %v463
    %v4906 = vunpack.c.l.b16 %v464
    %v4907 = vunpack.c.l.b16 %v465
    %v4908 = vunpack.c.l.b16 %v466
    %v4909 = vunpack.c.l.b16 %v467
    %v4910 = vunpack.c.l.b16 %v468
    %v4911 = vunpack.c.l.b16 %v469
    %v4912 = vunpack.c.l.b16 %v470
    %v4913 = vunpack.c.l.b16 %v471
    %v4914 = vunpack.c.l.b16 %v472
    %v4915 = vunpack.c.l.b16 %v473
    %v4916 = vunpack.c.l.b16 %v474
    %v4917 = vunpack.c.l.b16 %v475
    %v4918 = vunpack.c.l.b16 %v476
    %v4919 = vunpack.c.l.b16 %v477
    %v4920 = vunpack.c.l.b16 %v478
    %v4921 = vunpack.c.l.b16 %v479
    %v4922 = vunpack.c.l.b16 %v480
    %v4923 = vunpack.c.l.b16 %v481
    %v4924 = vunpack.c.l.b16 %v482
    %v4925 = vunpack.c.l.b16 %v483
    %v4926 = vunpack.c.l.b16 %v484
    %v4927 = vunpack.c.l.b16 %v485
    %v4928 = vunpack.c.l.b16 %v486
    %v4929 = vunpack.c.l.b16 %v487
    %v4930 = vunpack.c.l.b16 %v488
    %v4931 = vunpack.c.l.b16 %v489
    %v4932 = vunpack.c.l.b16 %v490
    %v4933 = vunpack.c.l.b16 %v491
    %v4934 = vunpack.c.l.b16 %v492
    %v4935 = vunpack.c.l.b16 %v493
    %v4936 = vunpack.c.l.b16 %v494
    %v4937 = vunpack.c.l.b16 %v495
    %v4938 = vunpack.c.l.b16 %v496
    %v4939 = vunpack.c.l.b16 %v497
    %v4940 = vunpack.c.l.b16 %v498
    %v4941 = vunpack.c.l.b16 %v499
    %v4942 = vunpack.c.l.b16 %v500
    %v4943 = vunpack.c.l.b16 %v501
    %v4944 = vunpack.c.l.b16 %v502
    %v4945 = vunpack.c.l.b16 %v503
    %v4946 = vunpack.c.l.b16 %v504
    %v4947 = vunpack.c.l.b16 %v505
    %v4948 = vunpack.c.l.b16 %v506
    %v4949 = vunpack.c.l.b16 %v507
    %v4950 = vunpack.c.l.b16 %v508
    %v4951 = vunpack.c.l.b16 %v509
    %v4952 = vunpack.c.l.b16 %v510
    %v4953 = vunpack.c.l.b16 %v511
    %v4954 = vunpack.c.l.b16 %v512
    %v4955 = vunpack.c.l.b16 %v513
    %v4956 = vunpack.c.l.b16 %v514
    %v4957 = vunpack.c.l.b16 %v515
    %v4958 = vunpack.c.l.b16 %v516
    %v4959 = vunpack.c.l.b16 %v517
    %v4960 = vunpack.c.l.b16 %v518
    %v4961 = vunpack.c.l.b16 %v519
    %v4962 = vunpack.c.l.b16 %v520
    %v4963 = vunpack.c.l.b16 %v521
    %v4964 = vunpack.c.l.b16 %v522
    %v4965 = vunpack.c.l.b16 %v523
    %v4966 = vunpack.c.l.b16 %v524
    %v4967 = vunpack.c.l.b16 %v525
    %v4968 = vunpack.c.l.b16 %v526
    %v4969 = vunpack.c.l.b16 %v527
    %v4970 = vunpack.c.l.b16 %v528
    %v4971 = vunpack.c.l.b16 %v529
    %v4972 = vunpack.c.l.b16 %v530
    %v4973 = vunpack.c.l.b16 %v531
    %v4974 = vunpack.c.l.b16 %v532
    %v4975 = vunpack.c.l.b16 %v533
    %v4976 = vunpack.c.l.b16 %v534
    %v4977 = vunpack.c.l.b16 %v535
    %v4978 = vunpack.c.l.b16 %v536
    %v4979 = vunpack.c.l.b16 %v537
    %v4980 = vunpack.c.l.b16 %v538
    %v4981 = vunpack.c.l.b16 %v539
    %v4982 = vunpack.c.l.b16 %v540
    %v4983 = vunpack.c.l.b16 %v541
    %v4984 = vunpack.c.l.b16 %v542
    %v4985 = vunpack.c.l.b16 %v543
    %v4986 = vunpack.c.l.b16 %v544
    %v4987 = vunpack.c.l.b16 %v545
    %v4988 = vunpack.c.l.b16 %v546
    %v4989 = vunpack.c.l.b16 %v547
    %v4990 = vunpack.c.l.b16 %v548
    %v4991 = vunpack.c.l.b16 %v549
    %v4992 = vunpack.c.l.b16 %v550
    %v4993 = vunpack.c.l.b16 %v551
    %v4994 = vunpack.c.l.b16 %v552
    %v4995 = vunpack.c.l.b16 %v553
    %v4996 = vunpack.c.l.b16 %v554
    %v4997 = vunpack.c.l.b16 %v555
    %v4998 = vunpack.c.l.b16 %v556
    %v4999 = vunpack.c.l.b16 %v557
    %v5000 = vunpack.c.l.b16 %v558
    %v5001 = vunpack.c.l.b16 %v559
    %v5002 = vunpack.c.l.b16 %v560
    %v5003 = vunpack.c.l.b16 %v561
    %v5004 = vunpack.c.l.b16 %v562
    %v5005 = vunpack.c.l.b16 %v563
    %v5006 = vunpack.c.l.b16 %v564
    %v5007 = vunpack.c.l.b16 %v565
    %v5008 = vunpack.c.l.b16 %v566
    %v5009 = vunpack.c.l.b16 %v567
    %v5010 = vunpack.c.l.b16 %v568
    %v5011 = vunpack.c.l.b16 %v569
    %v5012 = vunpack.c.l.b16 %v570
    %v5013 = vunpack.c.l.b16 %v571
    %v5014 = vunpack.c.l.b16 %v572
    %v5015 = vunpack.c.l.b16 %v573
    %v5016 = vunpack.c.l.b16 %v574
    %v5017 = vunpack.c.l.b16 %v575
    %v5018 = vunpack.c.l.b16 %v576
    %v5019 = vunpack.c.l.b16 %v577
    %v5020 = vunpack.c.l.b16 %v578
    %v5021 = vunpack.c.l.b16 %v579
    %v5022 = vunpack.c.l.b16 %v580
    %v5023 = vunpack.c.l.b16 %v581
    %v5024 = vunpack.c.l.b16 %v582
    %v5025 = vunpack.c.l.b16 %v583
    %v5026 = vunpack.c.l.b16 %v584
    %v5027 = vunpack.c.l.b16 %v585
    %v5028 = vunpack.c.l.b16 %v586
    %v5029 = vunpack.c.l.b16 %v587
    %v5030 = vunpack.c.l.b16 %v588
    %v5031 = vunpack.c.l.b16 %v589
    %v5032 = vunpack.c.l.b16 %v590
    %v5033 = vunpack.c.l.b16 %v591
    %v5034 = vunpack.c.l.b16 %v592
    %v5035 = vunpack.c.l.b16 %v593
    %v5036 = vunpack.c.l.b16 %v594
    %v5037 = vunpack.c.l.b16 %v595
    %v5038 = vunpack.c.l.b16 %v596
    %v5039 = vunpack.c.l.b16 %v597
    %v5040 = vunpack.c.l.b16 %v598
    %v5041 = vunpack.c.l.b16 %v599
    %v5042 = vunpack.c.l.b16 %v600
    %v5043 = vunpack.c.l.b16 %v601
    %v5044 = vunpack.c.l.b16 %v602
    %v5045 = vunpack.c.l.b16 %v603
    %v5046 = vunpack.c.l.b16 %v604
    %v5047 = vunpack.c.l.b16 %v605
    %v5048 = vunpack.c.l.b16 %v606
    %v5049 = vunpack.c.l.b16 %v607
    %v5050 = vunpack.c.l.b16 %v608
    %v5051 = vunpack.c.l.b16 %v609
    %v5052 = vunpack.c.l.b16 %v610
    %v5053 = vunpack.c.l.b16 %v611
    %v5054 = vunpack.c.l.b16 %v612
    %v5055 = vunpack.c.l.b16 %v613
    %v5056 = vunpack.c.l.b16 %v614
    %v5057 = vunpack.c.l.b16 %v615
    %v5058 = vunpack.c.l.b16 %v616
    %v5059 = vunpack.c.l.b16 %v617
    %v5060 = vunpack.c.l.b16 %v618
    %v5061 = vunpack.c.l.b16 %v619
    %v5062 = vunpack.c.l.b16 %v620
    %v5063 = vunpack.c.l.b16 %v621
    %v5064 = vunpack.c.l.b16 %v622
    %v5065 = vunpack.c.l.b16 %v623
    %v5066 = vunpack.c.l.b16 %v624
    %v5067 = vunpack.c.l.b16 %v625
    %v5068 = vunpack.c.l.b16 %v626
    %v5069 = vunpack.c.l.b16 %v627
    %v5070 = vunpack.c.l.b16 %v628
    %v5071 = vunpack.c.l.b16 %v629
    %v5072 = vunpack.c.l.b16 %v630
    %v5073 = vunpack.c.l.b16 %v631
    %v5074 = vunpack.c.l.b16 %v632
    %v5075 = vunpack.c.l.b16 %v633
    %v5076 = vunpack.c.l.b16 %v634
    %v5077 = vunpack.c.l.b16 %v635
    %v5078 = vunpack.c.l.b16 %v636
    %v5079 = vunpack.c.l.b16 %v637
    %v5080 = vunpack.c.l.b16 %v638
    %v5081 = vunpack.c.l.b16 %v639
    %v5082 = vunpack.c.l.b16 %v640
    %v5083 = vunpack.c.l.b16 %v641
    %v5084 = vunpack.c.l.b16 %v642
    %v5085 = vunpack.c.l.b16 %v643
    %v5086 = vunpack.c.l.b16 %v644
    %v5087 = vunpack.c.l.b16 %v645
    %v5088 = vunpack.c.l.b16 %v646
    %v5089 = vunpack.c.l.b16 %v647
    %v5090 = vunpack.c.l.b16 %v648
    %v5091 = vunpack.c.l.b16 %v649
    %v5092 = vunpack.c.l.b16 %v650
    %v5093 = vunpack.c.l.b16 %v651
    %v5094 = vunpack.c.l.b16 %v652
    %v5095 = vunpack.c.l.b16 %v653
    %v5096 = vunpack.c.l.b16 %v654
    %v5097 = vunpack.c.l.b16 %v655
    %v5098 = vunpack.c.l.b16 %v656
    %v5099 = vunpack.c.l.b16 %v657
    %v5100 = vunpack.c.l.b16 %v658
    %v5101 = vunpack.c.l.b16 %v659
    %v5102 = vunpack.c.l.b16 %v660
    %v5103 = vunpack.c.l.b16 %v661
    %v5104 = vunpack.c.l.b16 %v662
    %v5105 = vunpack.c.l.b16 %v663
    %v5106 = vunpack.c.l.b16 %v664
    %v5107 = vunpack.c.l.b16 %v665
    %v5108 = vunpack.c.l.b16 %v666
    %v5109 = vunpack.c.l.b16 %v667
    %v5110 = vunpack.c.l.b16 %v668
    %v5111 = vunpack.c.l.b16 %v669
    %v5112 = vunpack.c.l.b16 %v670
    %v5113 = vunpack.c.l.b16 %v671
    %v5114 = vunpack.c.l.b16 %v672
    %v5115 = vunpack.c.l.b16 %v673
    %v5116 = vunpack.c.l.b16 %v674
    %v5117 = vunpack.c.l.b16 %v675
    %v5118 = vunpack.c.l.b16 %v676
    %v5119 = vunpack.c.l.b16 %v677
    %v5120 = vunpack.c.l.b16 %v678
    %v5121 = vunpack.c.l.b16 %v679
    %v5122 = vunpack.c.l.b16 %v680
    %v5123 = vunpack.c.l.b16 %v681
    %v5124 = vunpack.c.l.b16 %v682
    %v5125 = vunpack.c.l.b16 %v683
    %v5126 = vunpack.c.l.b16 %v684
    %v5127 = vunpack.c.l.b16 %v685
    %v5128 = vunpack.c.l.b16 %v686
    %v5129 = vunpack.c.l.b16 %v687
    %v5130 = vunpack.c.l.b16 %v688
    %v5131 = vunpack.c.l.b16 %v689
    %v5132 = vunpack.c.l.b16 %v690
    %v5133 = vunpack.c.l.b16 %v691
    %v5134 = vunpack.c.l.b16 %v692
    %v5135 = vunpack.c.l.b16 %v693
    %v5136 = vunpack.c.l.b16 %v694
    %v5137 = vunpack.c.l.b16 %v695
    %v5138 = vunpack.c.l.b16 %v696
    %v5139 = vunpack.c.l.b16 %v697
    %v5140 = vunpack.c.l.b16 %v698
    %v5141 = vunpack.c.l.b16 %v699
    %v5142 = vunpack.c.l.b16 %v700
    %v5143 = vunpack.c.l.b16 %v701
    %v5144 = vunpack.c.l.b16 %v702
    %v5145 = vunpack.c.l.b16 %v703
    %v5146 = vunpack.c.l.b16 %v704
    %v5147 = vunpack.c.l.b16 %v705
    %v5148 = vunpack.c.l.b16 %v706
    %v5149 = vunpack.c.l.b16 %v707
    %v5150 = vunpack.c.l.b16 %v708
    %v5151 = vunpack.c.l.b16 %v709
    %v5152 = vunpack.c.l.b16 %v710
    %v5153 = vunpack.c.l.b16 %v711
    %v5154 = vunpack.c.l.b16 %v712
    %v5155 = vunpack.c.l.b16 %v713
    %v5156 = vunpack.c.l.b16 %v714
    %v5157 = vunpack.c.l.b16 %v715
    %v5158 = vunpack.c.l.b16 %v716
    %v5159 = vunpack.c.l.b16 %v717
    %v5160 = vunpack.c.l.b16 %v718
    %v5161 = vunpack.c.l.b16 %v719
    %v5162 = vunpack.c.l.b16 %v720
    %v5163 = vunpack.c.l.b16 %v721
    %v5164 = vunpack.c.l.b16 %v722
    %v5165 = vunpack.c.l.b16 %v723
    %v5166 = vunpack.c.l.b16 %v724
    %v5167 = vunpack.c.l.b16 %v725
    %v5168 = vunpack.c.l.b16 %v726
    %v5169 = vunpack.c.l.b16 %v727
    %v5170 = vunpack.c.l.b16 %v728
    %v5171 = vunpack.c.l.b16 %v729
    %v5172 = vunpack.c.l.b16 %v730
    %v5173 = vunpack.c.l.b16 %v731
    %v5174 = vunpack.c.l.b16 %v732
    %v5175 = vunpack.c.l.b16 %v733
    %v5176 = vunpack.c.l.b16 %v734
    %v5177 = vunpack.c.l.b16 %v735
    %v5178 = vunpack.c.l.b16 %v736
    %v5179 = vunpack.c.l.b16 %v737
    %v5180 = vunpack.c.l.b16 %v738
    %v5181 = vunpack.c.l.b16 %v739
    %v5182 = vunpack.c.l.b16 %v740
    %v5183 = vunpack.c.l.b16 %v741
    %v5184 = vunpack.c.l.b16 %v742
    %v5185 = vunpack.c.l.b16 %v743
    %v5186 = vunpack.c.l.b16 %v744
    %v5187 = vunpack.c.l.b16 %v745
    %v5188 = vunpack.c.l.b16 %v746
    %v5189 = vunpack.c.l.b16 %v747
    %v5190 = vunpack.c.l.b16 %v748
    %v5191 = vunpack.c.l.b16 %v749
    %v5192 = vunpack.c.l.b16 %v750
    %v5193 = vunpack.c.l.b16 %v751
    %v5194 = vunpack.c.l.b16 %v752
    %v5195 = vunpack.c.l.b16 %v753
    %v5196 = vunpack.c.l.b16 %v754
    %v5197 = vunpack.c.l.b16 %v755
    %v5198 = vunpack.c.l.b16 %v756
    %v5199 = vunpack.c.l.b16 %v757
    %v5200 = vunpack.c.l.b16 %v758
    %v5201 = vunpack.c.l.b16 %v759
    %v5202 = vunpack.c.l.b16 %v760
    %v5203 = vunpack.c.l.b16 %v761
    %v5204 = vunpack.c.l.b16 %v762
    %v5205 = vunpack.c.l.b16 %v763
    %v5206 = vunpack.c.l.b16 %v764
    %v5207 = vunpack.c.l.b16 %v765
    %v5208 = vunpack.c.l.b16 %v766
    %v5209 = vunpack.c.l.b16 %v767
    %v5210 = vunpack.c.l.b16 %v768
    %v5211 = vunpack.c.l.b16 %v769
    %v5212 = vunpack.c.l.b16 %v770
    %v5213 = vunpack.c.l.b16 %v771
    %v5214 = vunpack.c.l.b16 %v772
    %v5215 = vunpack.c.l.b16 %v773
    %v5216 = vunpack.c.l.b16 %v774
    %v5217 = vunpack.c.l.b16 %v775
    %v5218 = vunpack.c.l.b16 %v776
    %v5219 = vunpack.c.l.b16 %v777
    %v5220 = vunpack.c.l.b16 %v778
    %v5221 = vunpack.c.l.b16 %v779
    %v5222 = vunpack.c.l.b16 %v780
    %v5223 = vunpack.c.l.b16 %v781
    %v5224 = vunpack.c.l.b16 %v782
    %v5225 = vunpack.c.l.b16 %v783
    %v5226 = vunpack.c.l.b16 %v784
    %v5227 = vunpack.c.l.b16 %v785
    %v5228 = vunpack.c.l.b16 %v786
    %v5229 = vunpack.c.l.b16 %v787
    %v5230 = vunpack.c.l.b16 %v788
    %v5231 = vunpack.c.l.b16 %v789
    %v5232 = vunpack.c.l.b16 %v790
    %v5233 = vunpack.c.l.b16 %v791
    %v5234 = vunpack.c.l.b16 %v792
    %v5235 = vunpack.c.l.b16 %v793
    %v5236 = vunpack.c.l.b16 %v794
    %v5237 = vunpack.c.l.b16 %v795
    %v5238 = vunpack.c.l.b16 %v796
    %v5239 = vunpack.c.l.b16 %v797
    %v5240 = vunpack.c.l.b16 %v798
    %v5241 = vunpack.c.l.b16 %v799
    %v5242 = vunpack.c.l.b16 %v800
    %v5243 = vunpack.c.l.b16 %v801
    %v5244 = vunpack.c.l.b16 %v802
    %v5245 = vunpack.c.l.b16 %v803
    %v5246 = vunpack.c.l.b16 %v804
    %v5247 = vunpack.c.l.b16 %v805
    %v5248 = vunpack.c.l.b16 %v806
    %v5249 = vunpack.c.l.b16 %v807
    %v5250 = vunpack.c.l.b16 %v808
    %v5251 = vunpack.c.l.b16 %v809
    %v5252 = vunpack.c.l.b16 %v810
    %v5253 = vunpack.c.l.b16 %v811
    %v5254 = vunpack.c.l.b16 %v812
    %v5255 = vunpack.c.l.b16 %v813
    %v5256 = vunpack.c.l.b16 %v814
    %v5257 = vunpack.c.l.b16 %v815
    %v5258 = vunpack.c.l.b16 %v816
    %v5259 = vunpack.c.l.b16 %v817
    %v5260 = vunpack.c.l.b16 %v818
    %v5261 = vunpack.c.l.b16 %v819
    %v5262 = vunpack.c.l.b16 %v820
    %v5263 = vunpack.c.l.b16 %v821
    %v5264 = vunpack.c.l.b16 %v822
    %v5265 = vunpack.c.l.b16 %v823
    %v5266 = vunpack.c.l.b16 %v824
    %v5267 = vunpack.c.l.b16 %v825
    %v5268 = vunpack.c.l.b16 %v826
    %v5269 = vunpack.c.l.b16 %v827
    %v5270 = vunpack.c.l.b16 %v828
    %v5271 = vunpack.c.l.b16 %v829
    %v5272 = vunpack.c.l.b16 %v830
    %v5273 = vunpack.c.l.b16 %v831
    %v5274 = vunpack.c.l.b16 %v832
    %v5275 = vunpack.c.l.b16 %v833
    %v5276 = vunpack.c.l.b16 %v834
    %v5277 = vunpack.c.l.b16 %v835
    %v5278 = vunpack.c.l.b16 %v836
    %v5279 = vunpack.c.l.b16 %v837
    %v5280 = vunpack.c.l.b16 %v838
    %v5281 = vunpack.c.l.b16 %v839
    %v5282 = vunpack.c.l.b16 %v840
    %v5283 = vunpack.c.l.b16 %v841
    %v5284 = vunpack.c.l.b16 %v842
    %v5285 = vunpack.c.l.b16 %v843
    %v5286 = vunpack.c.l.b16 %v844
    %v5287 = vunpack.c.l.b16 %v845
    %v5288 = vunpack.c.l.b16 %v846
    %v5289 = vunpack.c.l.b16 %v847
    %v5290 = vunpack.c.l.b16 %v848
    %v5291 = vunpack.c.l.b16 %v849
    %v5292 = vunpack.c.l.b16 %v850
    %v5293 = vunpack.c.l.b16 %v851
    %v5294 = vunpack.c.l.b16 %v852
    %v5295 = vunpack.c.l.b16 %v853
    %v5296 = vunpack.c.l.b16 %v854
    %v5297 = vunpack.c.l.b16 %v855
    %v5298 = vunpack.c.l.b16 %v856
    %v5299 = vunpack.c.l.b16 %v857
    %v5300 = vunpack.c.l.b16 %v858
    %v5301 = vunpack.c.l.b16 %v859
    %v5302 = vunpack.c.l.b16 %v860
    %v5303 = vunpack.c.l.b16 %v861
    %v5304 = vunpack.c.l.b16 %v862
    %v5305 = vunpack.c.l.b16 %v863
    %v5306 = vunpack.c.l.b16 %v864
    %v5307 = vunpack.c.l.b16 %v865
    %v5308 = vunpack.c.l.b16 %v866
    %v5309 = vunpack.c.l.b16 %v867
    %v5310 = vunpack.c.l.b16 %v868
    %v5311 = vunpack.c.l.b16 %v869
    %v5312 = vunpack.c.l.b16 %v870
    %v5313 = vunpack.c.l.b16 %v871
    %v5314 = vunpack.c.l.b16 %v872
    %v5315 = vunpack.c.l.b16 %v873
    %v5316 = vunpack.c.l.b16 %v874
    %v5317 = vunpack.c.l.b16 %v875
    %v5318 = vunpack.c.l.b16 %v876
    %v5319 = vunpack.c.l.b16 %v877
    %v5320 = vunpack.c.l.b16 %v878
    %v5321 = vunpack.c.l.b16 %v879
    %v5322 = vunpack.c.l.b16 %v880
    %v5323 = vunpack.c.l.b16 %v881
    %v5324 = vunpack.c.l.b16 %v882
    %v5325 = vunpack.c.l.b16 %v883
    %v5326 = vunpack.c.l.b16 %v884
    %v5327 = vunpack.c.l.b16 %v885
    %v5328 = vunpack.c.l.b16 %v886
    %v5329 = vunpack.c.l.b16 %v887
    %v5330 = vunpack.c.l.b16 %v888
    %v5331 = vunpack.c.l.b16 %v889
    %v5332 = vunpack.c.l.b16 %v890
    %v5333 = vunpack.c.l.b16 %v891
    %v5334 = vunpack.c.l.b16 %v892
    %v5335 = vunpack.c.l.b16 %v893
    %v5336 = vunpack.c.l.b16 %v894
    %v5337 = vunpack.c.l.b16 %v895
    %v5338 = vunpack.c.l.b16 %v896
    %v5339 = vunpack.c.l.b16 %v897
    %v5340 = vunpack.c.l.b16 %v898
    %v5341 = vunpack.c.l.b16 %v899
    %v5342 = vunpack.c.l.b16 %v900
    %v5343 = vunpack.c.l.b16 %v901
    %v5344 = vunpack.c.l.b16 %v902
    %v5345 = vunpack.c.l.b16 %v903
    %v5346 = vunpack.c.l.b16 %v904
    %v5347 = vunpack.c.l.b16 %v905
    %v5348 = vunpack.c.l.b16 %v906
    %v5349 = vunpack.c.l.b16 %v907
    %v5350 = vunpack.c.l.b16 %v908
    %v5351 = vunpack.c.l.b16 %v909
    %v5352 = vunpack.c.l.b16 %v910
    %v5353 = vunpack.c.l.b16 %v911
    %v5354 = vunpack.c.l.b16 %v912
    %v5355 = vunpack.c.l.b16 %v913
    %v5356 = vunpack.c.l.b16 %v914
    %v5357 = vunpack.c.l.b16 %v915
    %v5358 = vunpack.c.l.b16 %v916
    %v5359 = vunpack.c.l.b16 %v917
    %v5360 = vunpack.c.l.b16 %v918
    %v5361 = vunpack.c.l.b16 %v919
    %v5362 = vunpack.c.l.b16 %v920
    %v5363 = vunpack.c.l.b16 %v921
    %v5364 = vunpack.c.l.b16 %v922
    %v5365 = vunpack.c.l.b16 %v923
    %v5366 = vunpack.c.l.b16 %v924
    %v5367 = vunpack.c.l.b16 %v925
    %v5368 = vunpack.c.l.b16 %v926
    %v5369 = vunpack.c.l.b16 %v927
    %v5370 = vunpack.c.l.b16 %v928
    %v5371 = vunpack.c.l.b16 %v929
    %v5372 = vunpack.c.l.b16 %v930
    %v5373 = vunpack.c.l.b16 %v931
    %v5374 = vunpack.c.l.b16 %v932
    %v5375 = vunpack.c.l.b16 %v933
    %v5376 = vunpack.c.l.b16 %v934
    %v5377 = vunpack.c.l.b16 %v935
    %v5378 = vunpack.c.l.b16 %v936
    %v5379 = vunpack.c.l.b16 %v937
    %v5380 = vunpack.c.l.b16 %v938
    %v5381 = vunpack.c.l.b16 %v939
    %v5382 = vunpack.c.l.b16 %v940
    %v5383 = vunpack.c.l.b16 %v941
    %v5384 = vunpack.c.l.b16 %v942
    %v5385 = vunpack.c.l.b16 %v943
    %v5386 = vunpack.c.l.b16 %v944
    %v5387 = vunpack.c.l.b16 %v945
    %v5388 = vunpack.c.l.b16 %v946
    %v5389 = vunpack.c.l.b16 %v947
    %v5390 = vunpack.c.l.b16 %v948
    %v5391 = vunpack.c.l.b16 %v949
    %v5392 = vunpack.c.l.b16 %v950
    %v5393 = vunpack.c.l.b16 %v951
    %v5394 = vunpack.c.l.b16 %v952
    %v5395 = vunpack.c.l.b16 %v953
    %v5396 = vunpack.c.l.b16 %v954
    %v5397 = vunpack.c.l.b16 %v955
    %v5398 = vunpack.c.l.b16 %v956
    %v5399 = vunpack.c.l.b16 %v957
    %v5400 = vunpack.c.l.b16 %v958
    %v5401 = vunpack.c.l.b16 %v959
    %v5402 = vunpack.c.l.b16 %v960
    %v5403 = vunpack.c.l.b16 %v961
    %v5404 = vunpack.c.l.b16 %v962
    %v5405 = vunpack.c.l.b16 %v963
    %v5406 = vunpack.c.l.b16 %v964
    %v5407 = vunpack.c.l.b16 %v965
    %v5408 = vunpack.c.l.b16 %v966
    %v5409 = vunpack.c.l.b16 %v967
    %v5410 = vunpack.c.l.b16 %v968
    %v5411 = vunpack.c.l.b16 %v969
    %v5412 = vunpack.c.l.b16 %v970
    %v5413 = vunpack.c.l.b16 %v971
    %v5414 = vunpack.c.l.b16 %v972
    %v5415 = vunpack.c.l.b16 %v973
    %v5416 = vunpack.c.l.b16 %v974
    %v5417 = vunpack.c.l.b16 %v975
    %v5418 = vunpack.c.l.b16 %v976
    %v5419 = vunpack.c.l.b16 %v977
    %v5420 = vunpack.c.l.b16 %v978
    %v5421 = vunpack.c.l.b16 %v979
    %v5422 = vunpack.c.l.b16 %v980
    %v5423 = vunpack.c.l.b16 %v981
    %v5424 = vunpack.c.l.b16 %v982
    %v5425 = vunpack.c.l.b16 %v983
    %v5426 = vunpack.c.l.b16 %v984
    %v5427 = vunpack.c.l.b16 %v985
    %v5428 = vunpack.c.l.b16 %v986
    %v5429 = vunpack.c.l.b16 %v987
    %v5430 = vunpack.c.l.b16 %v988
    %v5431 = vunpack.c.l.b16 %v989
    %v5432 = vunpack.c.l.b16 %v990
    %v5433 = vunpack.c.l.b16 %v991
    %v5434 = vunpack.c.l.b16 %v992
    %v5435 = vunpack.c.l.b16 %v993
    %v5436 = vunpack.c.l.b16 %v994
    %v5437 = vunpack.c.l.b16 %v995
    %v5438 = vunpack.c.l.b16 %v996
    %v5439 = vunpack.c.l.b16 %v997
    %v5440 = vunpack.c.l.b16 %v998
    %v5441 = vunpack.c.l.b16 %v999
    %v5442 = vunpack.c.l.b16 %v1000
    %v5443 = vunpack.c.l.b16 %v1001
    %v5444 = vunpack.c.l.b16 %v1002
    %v5445 = vunpack.c.l.b16 %v1003
    %v5446 = vunpack.c.l.b16 %v1004
    %v5447 = vunpack.c.l.b16 %v1005
    %v5448 = vunpack.c.l.b16 %v1006
    %v5449 = vunpack.c.l.b16 %v1007
    %v5450 = vunpack.c.l.b16 %v1008
    %v5451 = vunpack.c.l.b16 %v1009
    %v5452 = vunpack.c.l.b16 %v1010
    %v5453 = vunpack.c.l.b16 %v1011
    %v5454 = vunpack.c.l.b16 %v1012
    %v5455 = vunpack.c.l.b16 %v1013
    %v5456 = vunpack.c.l.b16 %v1014
    %v5457 = vunpack.c.l.b16 %v1015
    %v5458 = vunpack.c.l.b16 %v1016
    %v5459 = vunpack.c.l.b16 %v1017
    %v5460 = vunpack.c.l.b16 %v1018
    %v5461 = vunpack.c.l.b16 %v1019
    %v5462 = vunpack.c.l.b16 %v1020
    %v5463 = vunpack.c.l.b16 %v1021
    %v5464 = vunpack.c.l.b16 %v1022
    %v5465 = vunpack.c.l.b16 %v1023
    %v5466 = vunpack.c.l.b16 %v1024
    %v5467 = vunpack.c.l.b16 %v1025
    %v5468 = vunpack.c.l.b16 %v1026
    %v5469 = vunpack.c.l.b16 %v1027
    %v5470 = vunpack.c.l.b16 %v1028
    %v5471 = vunpack.c.l.b16 %v1029
    %v5472 = vunpack.c.l.b16 %v1030
    %v5473 = vunpack.c.l.b16 %v1031
    %v5474 = vunpack.c.l.b16 %v1032
    %v5475 = vunpack.c.l.b16 %v1033
    %v5476 = vunpack.c.l.b16 %v1034
    %v5477 = vunpack.c.l.b16 %v1035
    %v5478 = vunpack.c.l.b16 %v1036
    %v5479 = vunpack.c.l.b16 %v1037
    %v5480 = vunpack.c.l.b16 %v1038
    %v5481 = vunpack.c.l.b16 %v1039
    %v5482 = vunpack.c.l.b16 %v1040
    %v5483 = vunpack.c.l.b16 %v1041
    %v5484 = vunpack.c.l.b16 %v1042
    %v5485 = vunpack.c.l.b16 %v1043
    %v5486 = vunpack.c.l.b16 %v1044
    %v5487 = vunpack.c.l.b16 %v1045
    %v5488 = vunpack.c.l.b16 %v1046
    %v5489 = vunpack.c.l.b16 %v1047
    %v5490 = vunpack.c.l.b16 %v1048
    %v5491 = vunpack.c.l.b16 %v1049
    %v5492 = vunpack.c.l.b16 %v1050
    %v5493 = vunpack.c.l.b16 %v1051
    %v5494 = vunpack.c.l.b16 %v1052
    %v5495 = vunpack.c.l.b16 %v1053
    %v5496 = vunpack.c.l.b16 %v1054
    %v5497 = vunpack.c.l.b16 %v1055
    %v5498 = vunpack.c.l.b16 %v1056
    %v5499 = vunpack.c.l.b16 %v1057
    %v5500 = vunpack.c.l.b16 %v1058
    %v5501 = vunpack.c.l.b16 %v1059
    %v5502 = vunpack.c.l.b16 %v1060
    %v5503 = vunpack.c.l.b16 %v1061
    %v5504 = vunpack.c.l.b16 %v1062
    %v5505 = vunpack.c.l.b16 %v1063
    %v5506 = vunpack.c.l.b16 %v1064
    %v5507 = vunpack.c.l.b16 %v1065
    %v5508 = vunpack.c.l.b16 %v1066
    %v5509 = vunpack.c.l.b16 %v1067
    %v5510 = vunpack.c.l.b16 %v1068
    %v5511 = vunpack.c.l.b16 %v1069
    %v5512 = vunpack.c.l.b16 %v1070
    %v5513 = vunpack.c.l.b16 %v1071
    %v5514 = vunpack.c.l.b16 %v1072
    %v5515 = vunpack.c.l.b16 %v1073
    %v5516 = vunpack.c.l.b16 %v1074
    %v5517 = vunpack.c.l.b16 %v1075
    %v5518 = vunpack.c.l.b16 %v1076
    %v5519 = vunpack.c.l.b16 %v1077
    %v5520 = vunpack.c.l.b16 %v1078
    %v5521 = vunpack.c.l.b16 %v1079
    %v5522 = vunpack.c.l.b16 %v1080
    %v5523 = vunpack.c.l.b16 %v1081
    %v5524 = vunpack.c.l.b16 %v1082
    %v5525 = vunpack.c.l.b16 %v1083
    %v5526 = vunpack.c.l.b16 %v1084
    %v5527 = vunpack.c.l.b16 %v1085
    %v5528 = vunpack.c.l.b16 %v1086
    %v5529 = vunpack.c.l.b16 %v1087
    %v5530 = vunpack.c.l.b16 %v1088
    %v5531 = vunpack.c.l.b16 %v1089
    %v5532 = vunpack.c.l.b16 %v1090
    %v5533 = vunpack.c.l.b16 %v1091
    %v5534 = vunpack.c.l.b16 %v1092
    %v5535 = vunpack.c.l.b16 %v1093
    %v5536 = vunpack.c.l.b16 %v1094
    %v5537 = vunpack.c.l.b16 %v1095
    %v5538 = vunpack.c.l.b16 %v1096
    %v5539 = vunpack.c.l.b16 %v1097
    %v5540 = vunpack.c.l.b16 %v1098
    %v5541 = vunpack.c.l.b16 %v1099
    %v5542 = vunpack.c.l.b16 %v1100
    %v5543 = vunpack.c.l.b16 %v1101
    %v5544 = vunpack.c.l.b16 %v1102
    %v5545 = vunpack.c.l.b16 %v1103
    %v5546 = vunpack.c.l.b16 %v1104
    %v5547 = vunpack.c.l.b16 %v1105
    %v5548 = vunpack.c.l.b16 %v1106
    %v5549 = vunpack.c.l.b16 %v1107
    %v5550 = vunpack.c.l.b16 %v1108
    %v5551 = vunpack.c.l.b16 %v1109
    %v5552 = vunpack.c.l.b16 %v1110
    %v5553 = vunpack.c.l.b16 %v1111
    %v5554 = vunpack.c.l.b16 %v1112
    %v5555 = vunpack.c.l.b16 %v1113
    %v5556 = vunpack.c.l.b16 %v1114
    %v5557 = vunpack.c.l.b16 %v1115
    %v5558 = vunpack.c.l.b16 %v1116
    %v5559 = vunpack.c.l.b16 %v1117
    %v5560 = vunpack.c.l.b16 %v1118
    %v5561 = vunpack.c.l.b16 %v1119
    %v5562 = vunpack.c.l.b16 %v1120
    %v5563 = vunpack.c.l.b16 %v1121
    %v5564 = vunpack.c.l.b16 %v1122
    %v5565 = vunpack.c.l.b16 %v1123
    %v5566 = vunpack.c.l.b16 %v1124
    %v5567 = vunpack.c.l.b16 %v1125
    %v5568 = vunpack.c.l.b16 %v1126
    %v5569 = vunpack.c.l.b16 %v1127
    %v5570 = vunpack.c.l.b16 %v1128
    %v5571 = vunpack.c.l.b16 %v1129
    %v5572 = vunpack.c.l.b16 %v1130
    %v5573 = vunpack.c.l.b16 %v1131
    %v5574 = vunpack.c.l.b16 %v1132
    %v5575 = vunpack.c.l.b16 %v1133
    %v5576 = vunpack.c.l.b16 %v1134
    %v5577 = vunpack.c.l.b16 %v1135
    %v5578 = vunpack.c.l.b16 %v1136
    %v5579 = vunpack.c.l.b16 %v1137
    %v5580 = vunpack.c.l.b16 %v1138
    %v5581 = vunpack.c.l.b16 %v1139
    %v5582 = vunpack.c.l.b16 %v1140
    %v5583 = vunpack.c.l.b16 %v1141
    %v5584 = vunpack.c.l.b16 %v1142
    %v5585 = vunpack.c.l.b16 %v1143
    %v5586 = vunpack.c.l.b16 %v1144
    %v5587 = vunpack.c.l.b16 %v1145
    %v5588 = vunpack.c.l.b16 %v1146
    %v5589 = vunpack.c.l.b16 %v1147
    %v5590 = vunpack.c.l.b16 %v1148
    %v5591 = vunpack.c.l.b16 %v1149
    %v5592 = vunpack.c.l.b16 %v1150
    %v5593 = vunpack.c.l.b16 %v1151
    %v5594 = vunpack.c.l.b16 %v1152
    %v5595 = vunpack.c.l.b16 %v1153
    %v5596 = vunpack.c.l.b16 %v1154
    %v5597 = vunpack.c.l.b16 %v1155
    %v5598 = vunpack.c.l.b16 %v1156
    %v5599 = vunpack.c.l.b16 %v1157
    %v5600 = vunpack.c.l.b16 %v1158
    %v5601 = vunpack.c.l.b16 %v1159
    %v5602 = vunpack.c.l.b16 %v1160
    %v5603 = vunpack.c.l.b16 %v1161
    %v5604 = vunpack.c.l.b16 %v1162
    %v5605 = vunpack.c.l.b16 %v1163
    %v5606 = vunpack.c.l.b16 %v1164
    %v5607 = vunpack.c.l.b16 %v1165
    %v5608 = vunpack.c.l.b16 %v1166
    %v5609 = vunpack.c.l.b16 %v1167
    %v5610 = vunpack.c.l.b16 %v1168
    %v5611 = vunpack.c.l.b16 %v1169
    %v5612 = vunpack.c.l.b16 %v1170
    %v5613 = vunpack.c.l.b16 %v1171
    %v5614 = vunpack.c.l.b16 %v1172
    %v5615 = vunpack.c.l.b16 %v1173
    %v5616 = vunpack.c.l.b16 %v1174
    %v5617 = vunpack.c.l.b16 %v1175
    %v5618 = vunpack.c.l.b16 %v1176
    %v5619 = vunpack.c.l.b16 %v1177
    %v5620 = vunpack.c.l.b16 %v1178
    %v5621 = vunpack.c.l.b16 %v1179
    %v5622 = vunpack.c.l.b16 %v1180
    %v5623 = vunpack.c.l.b16 %v1181
    %v5624 = vunpack.c.l.b16 %v1182
    %v5625 = vunpack.c.l.b16 %v1183
    %v5626 = vunpack.c.l.b16 %v1184
    %v5627 = vunpack.c.l.b16 %v1185
    %v5628 = vunpack.c.l.b16 %v1186
    %v5629 = vunpack.c.l.b16 %v1187
    %v5630 = vunpack.c.l.b16 %v1188
    %v5631 = vunpack.c.l.b16 %v1189
    %v5632 = vunpack.c.l.b16 %v1190
    %v5633 = vunpack.c.l.b16 %v1191
    %v5634 = vunpack.c.l.b16 %v1192
    %v5635 = vunpack.c.l.b16 %v1193
    %v5636 = vunpack.c.l.b16 %v1194
    %v5637 = vunpack.c.l.b16 %v1195
    %v5638 = vunpack.c.l.b16 %v1196
    %v5639 = vunpack.c.l.b16 %v1197
    %v5640 = vunpack.c.l.b16 %v1198
    %v5641 = vunpack.c.l.b16 %v1199
    %v5642 = vunpack.c.l.b16 %v1200
    %v5643 = vunpack.c.l.b16 %v1201
    %v5644 = vunpack.c.l.b16 %v1202
    %v5645 = vunpack.c.l.b16 %v1203
    %v5646 = vunpack.c.l.b16 %v1204
    %v5647 = vunpack.c.l.b16 %v1205
    %v5648 = vunpack.c.l.b16 %v1206
    %v5649 = vunpack.c.l.b16 %v1207
    %v5650 = vunpack.c.l.b16 %v1208
    %v5651 = vunpack.c.l.b16 %v1209
    %v5652 = vunpack.c.l.b16 %v1210
    %v5653 = vunpack.c.l.b16 %v1211
    %v5654 = vunpack.c.l.b16 %v1212
    %v5655 = vunpack.c.l.b16 %v1213
    %v5656 = vunpack.c.l.b16 %v1214
    %v5657 = vunpack.c.l.b16 %v1215
    %v5658 = vunpack.c.l.b16 %v1216
    %v5659 = vunpack.c.l.b16 %v1217
    %v5660 = vunpack.c.l.b16 %v1218
    %v5661 = vunpack.c.l.b16 %v1219
    %v5662 = vunpack.c.l.b16 %v1220
    %v5663 = vunpack.c.l.b16 %v1221
    %v5664 = vunpack.c.l.b16 %v1222
    %v5665 = vunpack.c.l.b16 %v1223
    %v5666 = vunpack.c.l.b16 %v1224
    %v5667 = vunpack.c.l.b16 %v1225
    %v5668 = vunpack.c.l.b16 %v1226
    %v5669 = vunpack.c.l.b16 %v1227
    %v5670 = vunpack.c.l.b16 %v1228
    %v5671 = vunpack.c.l.b16 %v1229
    %v5672 = vunpack.c.l.b16 %v1230
    %v5673 = vunpack.c.l.b16 %v1231
    %v5674 = vunpack.c.l.b16 %v1232
    %v5675 = vunpack.c.l.b16 %v1233
    %v5676 = vunpack.c.l.b16 %v1234
    %v5677 = vunpack.c.l.b16 %v1235
    %v5678 = vunpack.c.l.b16 %v1236
    %v5679 = vunpack.c.l.b16 %v1237
    %v5680 = vunpack.c.l.b16 %v1238
    %v5681 = vunpack.c.l.b16 %v1239
    %v5682 = vunpack.c.l.b16 %v1240
    %v5683 = vunpack.c.l.b16 %v1241
    %v5684 = vunpack.c.l.b16 %v1242
    %v5685 = vunpack.c.l.b16 %v1243
    %v5686 = vunpack.c.l.b16 %v1244
    %v5687 = vunpack.c.l.b16 %v1245
    %v5688 = vunpack.c.l.b16 %v1246
    %v5689 = vunpack.c.l.b16 %v1247
    %v5690 = vunpack.c.l.b16 %v1248
    %v5691 = vunpack.c.l.b16 %v1249
    %v5692 = vunpack.c.l.b16 %v1250
    %v5693 = vunpack.c.l.b16 %v1251
    %v5694 = vunpack.c.l.b16 %v1252
    %v5695 = vunpack.c.l.b16 %v1253
    %v5696 = vunpack.c.l.b16 %v1254
    %v5697 = vunpack.c.l.b16 %v1255
    %v5698 = vunpack.c.l.b16 %v1256
    %v5699 = vunpack.c.l.b16 %v1257
    %v5700 = vunpack.c.l.b16 %v1258
    %v5701 = vunpack.c.l.b16 %v1259
    %v5702 = vunpack.c.l.b16 %v1260
    %v5703 = vunpack.c.l.b16 %v1261
    %v5704 = vunpack.c.l.b16 %v1262
    %v5705 = vunpack.c.l.b16 %v1263
    %v5706 = vunpack.c.l.b16 %v1264
    %v5707 = vunpack.c.l.b16 %v1265
    %v5708 = vunpack.c.l.b16 %v1266
    %v5709 = vunpack.c.l.b16 %v1267
    %v5710 = vunpack.c.l.b16 %v1268
    %v5711 = vunpack.c.l.b16 %v1269
    %v5712 = vunpack.c.l.b16 %v1270
    %v5713 = vunpack.c.l.b16 %v1271
    %v5714 = vunpack.c.l.b16 %v1272
    %v5715 = vunpack.c.l.b16 %v1273
    %v5716 = vunpack.c.l.b16 %v1274
    %v5717 = vunpack.c.l.b16 %v1275
    %v5718 = vunpack.c.l.b16 %v1276
    %v5719 = vunpack.c.l.b16 %v1277
    %v5720 = vunpack.c.l.b16 %v1278
    %v5721 = vunpack.c.l.b16 %v1279
    %v5722 = vunpack.c.l.b16 %v1280
    %v5723 = vunpack.c.l.b16 %v1281
    %v5724 = vunpack.c.l.b16 %v1282
    %v5725 = vunpack.c.l.b16 %v1283
    %v5726 = vunpack.c.l.b16 %v1284
    %v5727 = vunpack.c.l.b16 %v1285
    %v5728 = vunpack.c.l.b16 %v1286
    %v5729 = vunpack.c.l.b16 %v1287
    %v5730 = vunpack.c.l.b16 %v1288
    %v5731 = vunpack.c.l.b16 %v1289
    %v5732 = vunpack.c.l.b16 %v1290
    %v5733 = vunpack.c.l.b16 %v1291
    %v5734 = vunpack.c.l.b16 %v1292
    %v5735 = vunpack.c.l.b16 %v1293
    %v5736 = vunpack.c.l.b16 %v1294
    %v5737 = vunpack.c.l.b16 %v1295
    %v5738 = vunpack.c.l.b16 %v1296
    %v5739 = vunpack.c.l.b16 %v1297
    %v5740 = vunpack.c.l.b16 %v1298
    %v5741 = vunpack.c.l.b16 %v1299
    %v5742 = vunpack.c.l.b16 %v1300
    %v5743 = vunpack.c.l.b16 %v1301
    %v5744 = vunpack.c.l.b16 %v1302
    %v5745 = vunpack.c.l.b16 %v1303
    %v5746 = vunpack.c.l.b16 %v1304
    %v5747 = vunpack.c.l.b16 %v1305
    %v5748 = vunpack.c.l.b16 %v1306
    %v5749 = vunpack.c.l.b16 %v1307
    %v5750 = vunpack.c.l.b16 %v1308
    %v5751 = vunpack.c.l.b16 %v1309
    %v5752 = vunpack.c.l.b16 %v1310
    %v5753 = vunpack.c.l.b16 %v1311
    %v5754 = vunpack.c.l.b16 %v1312
    %v5755 = vunpack.c.l.b16 %v1313
    %v5756 = vunpack.c.l.b16 %v1314
    %v5757 = vunpack.c.l.b16 %v1315
    %v5758 = vunpack.c.l.b16 %v1316
    %v5759 = vunpack.c.l.b16 %v1317
    %v5760 = vunpack.c.l.b16 %v1318
    %v5761 = vunpack.c.l.b16 %v1319
    %v5762 = vunpack.c.l.b16 %v1320
    %v5763 = vunpack.c.l.b16 %v1321
    %v5764 = vunpack.c.l.b16 %v1322
    %v5765 = vunpack.c.l.b16 %v1323
    %v5766 = vunpack.c.l.b16 %v1324
    %v5767 = vunpack.c.l.b16 %v1325
    %v5768 = vunpack.c.l.b16 %v1326
    %v5769 = vunpack.c.l.b16 %v1327
    %v5770 = vunpack.c.l.b16 %v1328
    %v5771 = vunpack.c.l.b16 %v1329
    %v5772 = vunpack.c.l.b16 %v1330
    %v5773 = vunpack.c.l.b16 %v1331
    %v5774 = vunpack.c.l.b16 %v1332
    %v5775 = vunpack.c.l.b16 %v1333
    %v5776 = vunpack.c.l.b16 %v1334
    %v5777 = vunpack.c.l.b16 %v1335
    %v5778 = vunpack.c.l.b16 %v1336
    %v5779 = vunpack.c.l.b16 %v1337
    %v5780 = vunpack.c.l.b16 %v1338
    %v5781 = vunpack.c.l.b16 %v1339
    %v5782 = vunpack.c.l.b16 %v1340
    %v5783 = vunpack.c.l.b16 %v1341
    %v5784 = vunpack.c.l.b16 %v1342
    %v5785 = vunpack.c.l.b16 %v1343
    %v5786 = vunpack.c.l.b16 %v1344
    %v5787 = vunpack.c.l.b16 %v1345
    %v5788 = vunpack.c.l.b16 %v1346
    %v5789 = vunpack.c.l.b16 %v1347
    %v5790 = vunpack.c.l.b16 %v1348
    %v5791 = vunpack.c.l.b16 %v1349
    %v5792 = vunpack.c.l.b16 %v1350
    %v5793 = vunpack.c.l.b16 %v1351
    %v5794 = vunpack.c.l.b16 %v1352
    %v5795 = vunpack.c.l.b16 %v1353
    %v5796 = vunpack.c.l.b16 %v1354
    %v5797 = vunpack.c.l.b16 %v1355
    %v5798 = vunpack.c.l.b16 %v1356
    %v5799 = vunpack.c.l.b16 %v1357
    %v5800 = vunpack.c.l.b16 %v1358
    %v5801 = vunpack.c.l.b16 %v1359
    %v5802 = vunpack.c.l.b16 %v1360
    %v5803 = vunpack.c.l.b16 %v1361
    %v5804 = vunpack.c.l.b16 %v1362
    %v5805 = vunpack.c.l.b16 %v1363
    %v5806 = vunpack.c.l.b16 %v1364
    %v5807 = vunpack.c.l.b16 %v1365
    %v5808 = vunpack.c.l.b16 %v1366
    %v5809 = vunpack.c.l.b16 %v1367
    %v5810 = vunpack.c.l.b16 %v1368
    %v5811 = vunpack.c.l.b16 %v1369
    %v5812 = vunpack.c.l.b16 %v1370
    %v5813 = vunpack.c.l.b16 %v1371
    %v5814 = vunpack.c.l.b16 %v1372
    %v5815 = vunpack.c.l.b16 %v1373
    %v5816 = vunpack.c.l.b16 %v1374
    %v5817 = vunpack.c.l.b16 %v1375
    %v5818 = vunpack.c.l.b16 %v1376
    %v5819 = vunpack.c.l.b16 %v1377
    %v5820 = vunpack.c.l.b16 %v1378
    %v5821 = vunpack.c.l.b16 %v1379
    %v5822 = vunpack.c.l.b16 %v1380
    %v5823 = vunpack.c.l.b16 %v1381
    %v5824 = vunpack.c.l.b16 %v1382
    %v5825 = vunpack.c.l.b16 %v1383
    %v5826 = vunpack.c.l.b16 %v1384
    %v5827 = vunpack.c.l.b16 %v1385
    %v5828 = vunpack.c.l.b16 %v1386
    %v5829 = vunpack.c.l.b16 %v1387
    %v5830 = vunpack.c.l.b16 %v1388
    %v5831 = vunpack.c.l.b16 %v1389
    %v5832 = vunpack.c.l.b16 %v1390
    %v5833 = vunpack.c.l.b16 %v1391
    %v5834 = vunpack.c.l.b16 %v1392
    %v5835 = vunpack.c.l.b16 %v1393
    %v5836 = vunpack.c.l.b16 %v1394
    %v5837 = vunpack.c.l.b16 %v1395
    %v5838 = vunpack.c.l.b16 %v1396
    %v5839 = vunpack.c.l.b16 %v1397
    %v5840 = vunpack.c.l.b16 %v1398
    %v5841 = vunpack.c.l.b16 %v1399
    %v5842 = vunpack.c.l.b16 %v1400
    %v5843 = vunpack.c.l.b16 %v1401
    %v5844 = vunpack.c.l.b16 %v1402
    %v5845 = vunpack.c.l.b16 %v1403
    %v5846 = vunpack.c.l.b16 %v1404
    %v5847 = vunpack.c.l.b16 %v1405
    %v5848 = vunpack.c.l.b16 %v1406
    %v5849 = vunpack.c.l.b16 %v1407
    %v5850 = vunpack.c.l.b16 %v1408
    %v5851 = vunpack.c.l.b16 %v1409
    %v5852 = vunpack.c.l.b16 %v1410
    %v5853 = vunpack.c.l.b16 %v1411
    %v5854 = vunpack.c.l.b16 %v1412
    %v5855 = vunpack.c.l.b16 %v1413
    %v5856 = vunpack.c.l.b16 %v1414
    %v5857 = vunpack.c.l.b16 %v1415
    %v5858 = vunpack.c.l.b16 %v1416
    %v5859 = vunpack.c.l.b16 %v1417
    %v5860 = vunpack.c.l.b16 %v1418
    %v5861 = vunpack.c.l.b16 %v1419
    %v5862 = vunpack.c.l.b16 %v1420
    %v5863 = vunpack.c.l.b16 %v1421
    %v5864 = vunpack.c.l.b16 %v1422
    %v5865 = vunpack.c.l.b16 %v1423
    %v5866 = vunpack.c.l.b16 %v1424
    %v5867 = vunpack.c.l.b16 %v1425
    %v5868 = vunpack.c.l.b16 %v1426
    %v5869 = vunpack.c.l.b16 %v1427
    %v5870 = vunpack.c.l.b16 %v1428
    %v5871 = vunpack.c.l.b16 %v1429
    %v5872 = vunpack.c.l.b16 %v1430
    %v5873 = vunpack.c.l.b16 %v1431
    %v5874 = vunpack.c.l.b16 %v1432
    %v5875 = vunpack.c.l.b16 %v1433
    %v5876 = vunpack.c.l.b16 %v1434
    %v5877 = vunpack.c.l.b16 %v1435
    %v5878 = vunpack.c.l.b16 %v1436
    %v5879 = vunpack.c.l.b16 %v1437
    %v5880 = vunpack.c.l.b16 %v1438
    %v5881 = vunpack.c.l.b16 %v1439
    %v5882 = vunpack.c.l.b16 %v1440
    %v5883 = vunpack.c.l.b16 %v1441
    %v5884 = vunpack.c.l.b16 %v1442
    %v5885 = vunpack.c.l.b16 %v1443
    %v5886 = vunpack.c.l.b16 %v1444
    %v5887 = vunpack.c.l.b16 %v1445
    %v5888 = vunpack.c.l.b16 %v1446
    %v5889 = vunpack.c.l.b16 %v1447
    %v5890 = vunpack.c.l.b16 %v1448
    %v5891 = vunpack.c.l.b16 %v1449
    %v5892 = vunpack.c.l.b16 %v1450
    %v5893 = vunpack.c.l.b16 %v1451
    %v5894 = vunpack.c.l.b16 %v1452
    %v5895 = vunpack.c.l.b16 %v1453
    %v5896 = vunpack.c.l.b16 %v1454
    %v5897 = vunpack.c.l.b16 %v1455
    %v5898 = vunpack.c.l.b16 %v1456
    %v5899 = vunpack.c.l.b16 %v1457
    %v5900 = vunpack.c.l.b16 %v1458
    %v5901 = vunpack.c.l.b16 %v1459
    %v5902 = vunpack.c.l.b16 %v1460
    %v5903 = vunpack.c.l.b16 %v1461
    %v5904 = vunpack.c.l.b16 %v1462
    %v5905 = vunpack.c.l.b16 %v1463
    %v5906 = vunpack.c.l.b16 %v1464
    %v5907 = vunpack.c.l.b16 %v1465
    %v5908 = vunpack.c.l.b16 %v1466
    %v5909 = vunpack.c.l.b16 %v1467
    %v5910 = vunpack.c.l.b16 %v1468
    %v5911 = vunpack.c.l.b16 %v1469
    %v5912 = vunpack.c.l.b16 %v1470
    %v5913 = vunpack.c.l.b16 %v1471
    %v5914 = vunpack.c.l.b16 %v1472
    %v5915 = vunpack.c.l.b16 %v1473
    %v5916 = vunpack.c.l.b16 %v1474
    %v5917 = vunpack.c.l.b16 %v1475
    %v5918 = vunpack.c.l.b16 %v1476
    %v5919 = vunpack.c.l.b16 %v1477
    %v5920 = vunpack.c.l.b16 %v1478
    %v5921 = vunpack.c.l.b16 %v1479
    %v5922 = vunpack.c.l.b16 %v1480
    %v5923 = vunpack.c.l.b16 %v1481
    %v5924 = vunpack.c.l.b16 %v1482
    %v5925 = vunpack.c.l.b16 %v1483
    %v5926 = vunpack.c.l.b16 %v1484
    %v5927 = vunpack.c.l.b16 %v1485
    %v5928 = vunpack.c.l.b16 %v1486
    %v5929 = vunpack.c.l.b16 %v1487
    %v5930 = vunpack.c.l.b16 %v1488
    %v5931 = vunpack.c.l.b16 %v1489
    %v5932 = vunpack.c.l.b16 %v1490
    %v5933 = vunpack.c.l.b16 %v1491
    %v5934 = vunpack.c.l.b16 %v1492
    %v5935 = vunpack.c.l.b16 %v1493
    %v5936 = vunpack.c.l.b16 %v1494
    %v5937 = vunpack.c.l.b16 %v1495
    %v5938 = vunpack.c.l.b16 %v1496
    %v5939 = vunpack.c.l.b16 %v1497
    %v5940 = vunpack.c.l.b16 %v1498
    %v5941 = vunpack.c.l.b16 %v1499
    %v5942 = vunpack.c.l.b16 %v1500
    %v5943 = vunpack.c.l.b16 %v1501
    %v5944 = vunpack.c.l.b16 %v1502
    %v5945 = vunpack.c.l.b16 %v1503
    %v5946 = vunpack.c.l.b16 %v1504
    %v5947 = vunpack.c.l.b16 %v1505
    %v5948 = vunpack.c.l.b16 %v1506
    %v5949 = vunpack.c.l.b16 %v1507
    %v5950 = vunpack.c.l.b16 %v1508
    %v5951 = vunpack.c.l.b16 %v1509
    %v5952 = vunpack.c.l.b16 %v1510
    %v5953 = vunpack.c.l.b16 %v1511
    %v5954 = vunpack.c.l.b16 %v1512
    %v5955 = vunpack.c.l.b16 %v1513
    %v5956 = vunpack.c.l.b16 %v1514
    %v5957 = vunpack.c.l.b16 %v1515
    %v5958 = vunpack.c.l.b16 %v1516
    %v5959 = vunpack.c.l.b16 %v1517
    %v5960 = vunpack.c.l.b16 %v1518
    %v5961 = vunpack.c.l.b16 %v1519
    %v5962 = vunpack.c.l.b16 %v1520
    %v5963 = vunpack.c.l.b16 %v1521
    %v5964 = vunpack.c.l.b16 %v1522
    %v5965 = vunpack.c.l.b16 %v1523
    %v5966 = vunpack.c.l.b16 %v1524
    %v5967 = vunpack.c.l.b16 %v1525
    %v5968 = vunpack.c.l.b16 %v1526
    %v5969 = vunpack.c.l.b16 %v1527
    %v5970 = vunpack.c.l.b16 %v1528
    %v5971 = vunpack.c.l.b16 %v1529
    %v5972 = vunpack.c.l.b16 %v1530
    %v5973 = vunpack.c.l.b16 %v1531
    %v5974 = vunpack.c.l.b16 %v1532
    %v5975 = vunpack.c.l.b16 %v1533
    %v5976 = vunpack.c.l.b16 %v1534
    %v5977 = vunpack.c.l.b16 %v1535
    %v5978 = vunpack.c.l.b16 %v1536
    %v5979 = vunpack.c.l.b16 %v1537
    %v5980 = vunpack.c.l.b16 %v1538
    %v5981 = vunpack.c.l.b16 %v1539
    %v5982 = vunpack.c.l.b16 %v1540
    %v5983 = vunpack.c.l.b16 %v1541
    %v5984 = vunpack.c.l.b16 %v1542
    %v5985 = vunpack.c.l.b16 %v1543
    %v5986 = vunpack.c.l.b16 %v1544
    %v5987 = vunpack.c.l.b16 %v1545
    %v5988 = vunpack.c.l.b16 %v1546
    %v5989 = vunpack.c.l.b16 %v1547
    %v5990 = vunpack.c.l.b16 %v1548
    %v5991 = vunpack.c.l.b16 %v1549
    %v5992 = vunpack.c.l.b16 %v1550
    %v5993 = vunpack.c.l.b16 %v1551
    %v5994 = vunpack.c.l.b16 %v1552
    %v5995 = vunpack.c.l.b16 %v1553
    %v5996 = vunpack.c.l.b16 %v1554
    %v5997 = vunpack.c.l.b16 %v1555
    %v5998 = vunpack.c.l.b16 %v1556
    %v5999 = vunpack.c.l.b16 %v1557
    %v6000 = vunpack.c.l.b16 %v1558
    %v6001 = vunpack.c.l.b16 %v1559
    %v6002 = vunpack.c.l.b16 %v1560
    %v6003 = vunpack.c.l.b16 %v1561
    %v6004 = vunpack.c.l.b16 %v1562
    %v6005 = vunpack.c.l.b16 %v1563
    %v6006 = vunpack.c.l.b16 %v1564
    %v6007 = vunpack.c.l.b16 %v1565
    %v6008 = vunpack.c.l.b16 %v1566
    %v6009 = vunpack.c.l.b16 %v1567
    %v6010 = vunpack.c.l.b16 %v1568
    %v6011 = vunpack.c.l.b16 %v1569
    %v6012 = vunpack.c.l.b16 %v1570
    %v6013 = vunpack.c.l.b16 %v1571
    %v6014 = vunpack.c.l.b16 %v1572
    %v6015 = vunpack.c.l.b16 %v1573
    %v6016 = vunpack.c.l.b16 %v1574
    %v6017 = vunpack.c.l.b16 %v1575
    %v6018 = vunpack.c.l.b16 %v1576
    %v6019 = vunpack.c.l.b16 %v1577
    %v6020 = vunpack.c.l.b16 %v1578
    %v6021 = vunpack.c.l.b16 %v1579
    %v6022 = vunpack.c.l.b16 %v1580
    %v6023 = vunpack.c.l.b16 %v1581
    %v6024 = vunpack.c.l.b16 %v1582
    %v6025 = vunpack.c.l.b16 %v1583
    %v6026 = vunpack.c.l.b16 %v1584
    %v6027 = vunpack.c.l.b16 %v1585
    %v6028 = vunpack.c.l.b16 %v1586
    %v6029 = vunpack.c.l.b16 %v1587
    %v6030 = vunpack.c.l.b16 %v1588
    %v6031 = vunpack.c.l.b16 %v1589
    %v6032 = vunpack.c.l.b16 %v1590
    %v6033 = vunpack.c.l.b16 %v1591
    %v6034 = vunpack.c.l.b16 %v1592
    %v6035 = vunpack.c.l.b16 %v1593
    %v6036 = vunpack.c.l.b16 %v1594
    %v6037 = vunpack.c.l.b16 %v1595
    %v6038 = vunpack.c.l.b16 %v1596
    %v6039 = vunpack.c.l.b16 %v1597
    %v6040 = vunpack.c.l.b16 %v1598
    %v6041 = vunpack.c.l.b16 %v1599
    %v6042 = vunpack.c.l.b16 %v1600
    %v6043 = vunpack.c.l.b16 %v1601
    %v6044 = vunpack.c.l.b16 %v1602
    %v6045 = vunpack.c.l.b16 %v1603
    %v6046 = vunpack.c.l.b16 %v1604
    %v6047 = vunpack.c.l.b16 %v1605
    %v6048 = vunpack.c.l.b16 %v1606
    %v6049 = vunpack.c.l.b16 %v1607
    %v6050 = vunpack.c.l.b16 %v1608
    %v6051 = vunpack.c.l.b16 %v1609
    %v6052 = vunpack.c.l.b16 %v1610
    %v6053 = vunpack.c.l.b16 %v1611
    %v6054 = vunpack.c.l.b16 %v1612
    %v6055 = vunpack.c.l.b16 %v1613
    %v6056 = vunpack.c.l.b16 %v1614
    %v6057 = vunpack.c.l.b16 %v1615
    %v6058 = vunpack.c.l.b16 %v1616
    %v6059 = vunpack.c.l.b16 %v1617
    %v6060 = vunpack.c.l.b16 %v1618
    %v6061 = vunpack.c.l.b16 %v1619
    %v6062 = vunpack.c.l.b16 %v1620
    %v6063 = vunpack.c.l.b16 %v1621
    %v6064 = vunpack.c.l.b16 %v1622
    %v6065 = vunpack.c.l.b16 %v1623
    %v6066 = vunpack.c.l.b16 %v1624
    %v6067 = vunpack.c.l.b16 %v1625
    %v6068 = vunpack.c.l.b16 %v1626
    %v6069 = vunpack.c.l.b16 %v1627
    %v6070 = vunpack.c.l.b16 %v1628
    %v6071 = vunpack.c.l.b16 %v1629
    %v6072 = vunpack.c.l.b16 %v1630
    %v6073 = vunpack.c.l.b16 %v1631
    %v6074 = vunpack.c.l.b16 %v1632
    %v6075 = vunpack.c.l.b16 %v1633
    %v6076 = vunpack.c.l.b16 %v1634
    %v6077 = vunpack.c.l.b16 %v1635
    %v6078 = vunpack.c.l.b16 %v1636
    %v6079 = vunpack.c.l.b16 %v1637
    %v6080 = vunpack.c.l.b16 %v1638
    %v6081 = vunpack.c.l.b16 %v1639
    %v6082 = vunpack.c.l.b16 %v1640
    %v6083 = vunpack.c.l.b16 %v1641
    %v6084 = vunpack.c.l.b16 %v1642
    %v6085 = vunpack.c.l.b16 %v1643
    %v6086 = vunpack.c.l.b16 %v1644
    %v6087 = vunpack.c.l.b16 %v1645
    %v6088 = vunpack.c.l.b16 %v1646
    %v6089 = vunpack.c.l.b16 %v1647
    %v6090 = vunpack.c.l.b16 %v1648
    %v6091 = vunpack.c.l.b16 %v1649
    %v6092 = vunpack.c.l.b16 %v1650
    %v6093 = vunpack.c.l.b16 %v1651
    %v6094 = vunpack.c.l.b16 %v1652
    %v6095 = vunpack.c.l.b16 %v1653
    %v6096 = vunpack.c.l.b16 %v1654
    %v6097 = vunpack.c.l.b16 %v1655
    %v6098 = vunpack.c.l.b16 %v1656
    %v6099 = vunpack.c.l.b16 %v1657
    %v6100 = vunpack.c.l.b16 %v1658
    %v6101 = vunpack.c.l.b16 %v1659
    %v6102 = vunpack.c.l.b16 %v1660
    %v6103 = vunpack.c.l.b16 %v1661
    %v6104 = vunpack.c.l.b16 %v1662
    %v6105 = vunpack.c.l.b16 %v1663
    %v6106 = vunpack.c.l.b16 %v1664
    %v6107 = vunpack.c.l.b16 %v1665
    %v6108 = vunpack.c.l.b16 %v1666
    %v6109 = vunpack.c.l.b16 %v1667
    %v6110 = vunpack.c.l.b16 %v1668
    %v6111 = vunpack.c.l.b16 %v1669
    %v6112 = vunpack.c.l.b16 %v1670
    %v6113 = vunpack.c.l.b16 %v1671
    %v6114 = vunpack.c.l.b16 %v1672
    %v6115 = vunpack.c.l.b16 %v1673
    %v6116 = vunpack.c.l.b16 %v1674
    %v6117 = vunpack.c.l.b16 %v1675
    %v6118 = vunpack.c.l.b16 %v1676
    %v6119 = vunpack.c.l.b16 %v1677
    %v6120 = vunpack.c.l.b16 %v1678
    %v6121 = vunpack.c.l.b16 %v1679
    %v6122 = vunpack.c.l.b16 %v1680
    %v6123 = vunpack.c.l.b16 %v1681
    %v6124 = vunpack.c.l.b16 %v1682
    %v6125 = vunpack.c.l.b16 %v1683
    %v6126 = vunpack.c.l.b16 %v1684
    %v6127 = vunpack.c.l.b16 %v1685
    %v6128 = vunpack.c.l.b16 %v1686
    %v6129 = vunpack.c.l.b16 %v1687
    %v6130 = vunpack.c.l.b16 %v1688
    %v6131 = vunpack.c.l.b16 %v1689
    %v6132 = vunpack.c.l.b16 %v1690
    %v6133 = vunpack.c.l.b16 %v1691
    %v6134 = vunpack.c.l.b16 %v1692
    %v6135 = vunpack.c.l.b16 %v1693
    %v6136 = vunpack.c.l.b16 %v1694
    %v6137 = vunpack.c.l.b16 %v1695
    %v6138 = vunpack.c.l.b16 %v1696
    %v6139 = vunpack.c.l.b16 %v1697
    %v6140 = vunpack.c.l.b16 %v1698
    %v6141 = vunpack.c.l.b16 %v1699
    %v6142 = vunpack.c.l.b16 %v1700
    %v6143 = vunpack.c.l.b16 %v1701
    %v6144 = vunpack.c.l.b16 %v1702
    %v6145 = vunpack.c.l.b16 %v1703
    %v6146 = vunpack.c.l.b16 %v1704
    %v6147 = vunpack.c.l.b16 %v1705
    %v6148 = vunpack.c.l.b16 %v1706
    %v6149 = vunpack.c.l.b16 %v1707
    %v6150 = vunpack.c.l.b16 %v1708
    %v6151 = vunpack.c.l.b16 %v1709
    %v6152 = vunpack.c.l.b16 %v1710
    %v6153 = vunpack.c.l.b16 %v1711
    %v6154 = vunpack.c.l.b16 %v1712
    %v6155 = vunpack.c.l.b16 %v1713
    %v6156 = vunpack.c.l.b16 %v1714
    %v6157 = vunpack.c.l.b16 %v1715
    %v6158 = vunpack.c.l.b16 %v1716
    %v6159 = vunpack.c.l.b16 %v1717
    %v6160 = vunpack.c.l.b16 %v1718
    %v6161 = vunpack.c.l.b16 %v1719
    %v6162 = vunpack.c.l.b16 %v1720
    %v6163 = vunpack.c.l.b16 %v1721
    %v6164 = vunpack.c.l.b16 %v1722
    %v6165 = vunpack.c.l.b16 %v1723
    %v6166 = vunpack.c.l.b16 %v1724
    %v6167 = vunpack.c.l.b16 %v1725
    %v6168 = vunpack.c.l.b16 %v1726
    %v6169 = vunpack.c.l.b16 %v1727
    %v6170 = vunpack.c.l.b16 %v1728
    %v6171 = vunpack.c.l.b16 %v1729
    %v6172 = vunpack.c.l.b16 %v1730
    %v6173 = vunpack.c.l.b16 %v1731
    %v6174 = vunpack.c.l.b16 %v1732
    %v6175 = vunpack.c.l.b16 %v1733
    %v6176 = vunpack.c.l.b16 %v1734
    %v6177 = vunpack.c.l.b16 %v1735
    %v6178 = vunpack.c.l.b16 %v1736
    %v6179 = vunpack.c.l.b16 %v1737
    %v6180 = vunpack.c.l.b16 %v1738
    %v6181 = vunpack.c.l.b16 %v1739
    %v6182 = vunpack.c.l.b16 %v1740
    %v6183 = vunpack.c.l.b16 %v1741
    %v6184 = vunpack.c.l.b16 %v1742
    %v6185 = vunpack.c.l.b16 %v1743
    %v6186 = vunpack.c.l.b16 %v1744
    %v6187 = vunpack.c.l.b16 %v1745
    %v6188 = vunpack.c.l.b16 %v1746
    %v6189 = vunpack.c.l.b16 %v1747
    %v6190 = vunpack.c.l.b16 %v1748
    %v6191 = vunpack.c.l.b16 %v1749
    %v6192 = vunpack.c.l.b16 %v1750
    %v6193 = vunpack.c.l.b16 %v1751
    %v6194 = vunpack.c.l.b16 %v1752
    %v6195 = vunpack.c.l.b16 %v1753
    %v6196 = vunpack.c.l.b16 %v1754
    %v6197 = vunpack.c.l.b16 %v1755
    %v6198 = vunpack.c.l.b16 %v1756
    %v6199 = vunpack.c.l.b16 %v1757
    %v6200 = vunpack.c.l.b16 %v1758
    %v6201 = vunpack.c.l.b16 %v1759
    %v6202 = vunpack.c.l.b16 %v1760
    %v6203 = vunpack.c.l.b16 %v1761
    %v6204 = vunpack.c.l.b16 %v1762
    %v6205 = vunpack.c.l.b16 %v1763
    %v6206 = vunpack.c.l.b16 %v1764
    %v6207 = vunpack.c.l.b16 %v1765
    %v6208 = vunpack.c.l.b16 %v1766
    %v6209 = vunpack.c.l.b16 %v1767
    %v6210 = vunpack.c.l.b16 %v1768
    %v6211 = vunpack.c.l.b16 %v1769
    %v6212 = vunpack.c.l.b16 %v1770
    %v6213 = vunpack.c.l.b16 %v1771
    %v6214 = vunpack.c.l.b16 %v1772
    %v6215 = vunpack.c.l.b16 %v1773
    %v6216 = vunpack.c.l.b16 %v1774
    %v6217 = vunpack.c.l.b16 %v1775
    %v6218 = vunpack.c.l.b16 %v1776
    %v6219 = vunpack.c.l.b16 %v1777
    %v6220 = vunpack.c.l.b16 %v1778
    %v6221 = vunpack.c.l.b16 %v1779
    %v6222 = vunpack.c.l.b16 %v1780
    %v6223 = vunpack.c.l.b16 %v1781
    %v6224 = vunpack.c.l.b16 %v1782
    %v6225 = vunpack.c.l.b16 %v1783
    %v6226 = vunpack.c.l.b16 %v1784
    %v6227 = vunpack.c.l.b16 %v1785
    %v6228 = vunpack.c.l.b16 %v1786
    %v6229 = vunpack.c.l.b16 %v1787
    %v6230 = vunpack.c.l.b16 %v1788
    %v6231 = vunpack.c.l.b16 %v1789
    %v6232 = vunpack.c.l.b16 %v1790
    %v6233 = vunpack.c.l.b16 %v1791
    %v6234 = vunpack.c.l.b16 %v1792
    %v6235 = vunpack.c.l.b16 %v1793
    %v6236 = vunpack.c.l.b16 %v1794
    %v6237 = vunpack.c.l.b16 %v1795
    %v6238 = vunpack.c.l.b16 %v1796
    %v6239 = vunpack.c.l.b16 %v1797
    %v6240 = vunpack.c.l.b16 %v1798
    %v6241 = vunpack.c.l.b16 %v1799
    %v6242 = vunpack.c.l.b16 %v1800
    %v6243 = vunpack.c.l.b16 %v1801
    %v6244 = vunpack.c.l.b16 %v1802
    %v6245 = vunpack.c.l.b16 %v1803
    %v6246 = vunpack.c.l.b16 %v1804
    %v6247 = vunpack.c.l.b16 %v1805
    %v6248 = vunpack.c.l.b16 %v1806
    %v6249 = vunpack.c.l.b16 %v1807
    %v6250 = vunpack.c.l.b16 %v1808
    %v6251 = vunpack.c.l.b16 %v1809
    %v6252 = vunpack.c.l.b16 %v1810
    %v6253 = vunpack.c.l.b16 %v1811
    %v6254 = vunpack.c.l.b16 %v1812
    %v6255 = vunpack.c.l.b16 %v1813
    %v6256 = vunpack.c.l.b16 %v1814
    %v6257 = vunpack.c.l.b16 %v1815
    %v6258 = vunpack.c.l.b16 %v1816
    %v6259 = vunpack.c.l.b16 %v1817
    %v6260 = vunpack.c.l.b16 %v1818
    %v6261 = vunpack.c.l.b16 %v1819
    %v6262 = vunpack.c.l.b16 %v1820
    %v6263 = vunpack.c.l.b16 %v1821
    %v6264 = vunpack.c.l.b16 %v1822
    %v6265 = vunpack.c.l.b16 %v1823
    %v6266 = vunpack.c.l.b16 %v1824
    %v6267 = vunpack.c.l.b16 %v1825
    %v6268 = vunpack.c.l.b16 %v1826
    %v6269 = vunpack.c.l.b16 %v1827
    %v6270 = vunpack.c.l.b16 %v1828
    %v6271 = vunpack.c.l.b16 %v1829
    %v6272 = vunpack.c.l.b16 %v1830
    %v6273 = vunpack.c.l.b16 %v1831
    %v6274 = vunpack.c.l.b16 %v1832
    %v6275 = vunpack.c.l.b16 %v1833
    %v6276 = vunpack.c.l.b16 %v1834
    %v6277 = vunpack.c.l.b16 %v1835
    %v6278 = vunpack.c.l.b16 %v1836
    %v6279 = vunpack.c.l.b16 %v1837
    %v6280 = vunpack.c.l.b16 %v1838
    %v6281 = vunpack.c.l.b16 %v1839
    %v6282 = vunpack.c.l.b16 %v1840
    %v6283 = vunpack.c.l.b16 %v1841
    %v6284 = vunpack.c.l.b16 %v1842
    %v6285 = vunpack.c.l.b16 %v1843
    %v6286 = vunpack.c.l.b16 %v1844
    %v6287 = vunpack.c.l.b16 %v1845
    %v6288 = vunpack.c.l.b16 %v1846
    %v6289 = vunpack.c.l.b16 %v1847
    %v6290 = vunpack.c.l.b16 %v1848
    %v6291 = vunpack.c.l.b16 %v1849
    %v6292 = vunpack.c.l.b16 %v1850
    %v6293 = vunpack.c.l.b16 %v1851
    %v6294 = vunpack.c.l.b16 %v1852
    %v6295 = vunpack.c.l.b16 %v1853
    %v6296 = vunpack.c.l.b16 %v1854
    %v6297 = vunpack.c.l.b16 %v1855
    %v6298 = vunpack.c.l.b16 %v1856
    %v6299 = vunpack.c.l.b16 %v1857
    %v6300 = vunpack.c.l.b16 %v1858
    %v6301 = vunpack.c.l.b16 %v1859
    %v6302 = vunpack.c.l.b16 %v1860
    %v6303 = vunpack.c.l.b16 %v1861
    %v6304 = vunpack.c.l.b16 %v1862
    %v6305 = vunpack.c.l.b16 %v1863
    %v6306 = vunpack.c.l.b16 %v1864
    %v6307 = vunpack.c.l.b16 %v1865
    %v6308 = vunpack.c.l.b16 %v1866
    %v6309 = vunpack.c.l.b16 %v1867
    %v6310 = vunpack.c.l.b16 %v1868
    %v6311 = vunpack.c.l.b16 %v1869
    %v6312 = vunpack.c.l.b16 %v1870
    %v6313 = vunpack.c.l.b16 %v1871
    %v6314 = vunpack.c.l.b16 %v1872
    %v6315 = vunpack.c.l.b16 %v1873
    %v6316 = vunpack.c.l.b16 %v1874
    %v6317 = vunpack.c.l.b16 %v1875
    %v6318 = vunpack.c.l.b16 %v1876
    %v6319 = vunpack.c.l.b16 %v1877
    %v6320 = vunpack.c.l.b16 %v1878
    %v6321 = vunpack.c.l.b16 %v1879
    %v6322 = vunpack.c.l.b16 %v1880
    %v6323 = vunpack.c.l.b16 %v1881
    %v6324 = vunpack.c.l.b16 %v1882
    %v6325 = vunpack.c.l.b16 %v1883
    %v6326 = vunpack.c.l.b16 %v1884
    %v6327 = vunpack.c.l.b16 %v1885
    %v6328 = vunpack.c.l.b16 %v1886
    %v6329 = vunpack.c.l.b16 %v1887
    %v6330 = vunpack.c.l.b16 %v1888
    %v6331 = vunpack.c.l.b16 %v1889
    %v6332 = vunpack.c.l.b16 %v1890
    %v6333 = vunpack.c.l.b16 %v1891
    %v6334 = vunpack.c.l.b16 %v1892
    %v6335 = vunpack.c.l.b16 %v1893
    %v6336 = vunpack.c.l.b16 %v1894
    %v6337 = vunpack.c.l.b16 %v1895
    %v6338 = vunpack.c.l.b16 %v1896
    %v6339 = vunpack.c.l.b16 %v1897
    %v6340 = vunpack.c.l.b16 %v1898
    %v6341 = vunpack.c.l.b16 %v1899
    %v6342 = vunpack.c.l.b16 %v1900
    %v6343 = vunpack.c.l.b16 %v1901
    %v6344 = vunpack.c.l.b16 %v1902
    %v6345 = vunpack.c.l.b16 %v1903
    %v6346 = vunpack.c.l.b16 %v1904
    %v6347 = vunpack.c.l.b16 %v1905
    %v6348 = vunpack.c.l.b16 %v1906
    %v6349 = vunpack.c.l.b16 %v1907
    %v6350 = vunpack.c.l.b16 %v1908
    %v6351 = vunpack.c.l.b16 %v1909
    %v6352 = vunpack.c.l.b16 %v1910
    %v6353 = vunpack.c.l.b16 %v1911
    %v6354 = vunpack.c.l.b16 %v1912
    %v6355 = vunpack.c.l.b16 %v1913
    %v6356 = vunpack.c.l.b16 %v1914
    %v6357 = vunpack.c.l.b16 %v1915
    %v6358 = vunpack.c.l.b16 %v1916
    %v6359 = vunpack.c.l.b16 %v1917
    %v6360 = vunpack.c.l.b16 %v1918
    %v6361 = vunpack.c.l.b16 %v1919
    %v6362 = vunpack.c.l.b16 %v1920
    %v6363 = vunpack.c.l.b16 %v1921
    %v6364 = vunpack.c.l.b16 %v1922
    %v6365 = vunpack.c.l.b16 %v1923
    %v6366 = vunpack.c.l.b16 %v1924
    %v6367 = vunpack.c.l.b16 %v1925
    %v6368 = vunpack.c.l.b16 %v1926
    %v6369 = vunpack.c.l.b16 %v1927
    %v6370 = vunpack.c.l.b16 %v1928
    %v6371 = vunpack.c.l.b16 %v1929
    %v6372 = vunpack.c.l.b16 %v1930
    %v6373 = vunpack.c.l.b16 %v1931
    %v6374 = vunpack.c.l.b16 %v1932
    %v6375 = vunpack.c.l.b16 %v1933
    %v6376 = vunpack.c.l.b16 %v1934
    %v6377 = vunpack.c.l.b16 %v1935
    %v6378 = vunpack.c.l.b16 %v1936
    %v6379 = vunpack.c.l.b16 %v1937
    %v6380 = vunpack.c.l.b16 %v1938
    %v6381 = vunpack.c.l.b16 %v1939
    %v6382 = vunpack.c.l.b16 %v1940
    %v6383 = vunpack.c.l.b16 %v1941
    %v6384 = vunpack.c.l.b16 %v1942
    %v6385 = vunpack.c.l.b16 %v1943
    %v6386 = vunpack.c.l.b16 %v1944
    %v6387 = vunpack.c.l.b16 %v1945
    %v6388 = vunpack.c.l.b16 %v1946
    %v6389 = vunpack.c.l.b16 %v1947
    %v6390 = vunpack.c.l.b16 %v1948
    %v6391 = vunpack.c.l.b16 %v1949
    %v6392 = vunpack.c.l.b16 %v1950
    %v6393 = vunpack.c.l.b16 %v1951
    %v6394 = vunpack.c.l.b16 %v1952
    %v6395 = vunpack.c.l.b16 %v1953
    %v6396 = vunpack.c.l.b16 %v1954
    %v6397 = vunpack.c.l.b16 %v1955
    %v6398 = vunpack.c.l.b16 %v1956
    %v6399 = vunpack.c.l.b16 %v1957
    %v6400 = vunpack.c.l.b16 %v1958
    %v6401 = vunpack.c.l.b16 %v1959
    %v6402 = vunpack.c.l.b16 %v1960
    %v6403 = vunpack.c.l.b16 %v1961
    %v6404 = vunpack.c.l.b16 %v1962
    %v6405 = vunpack.c.l.b16 %v1963
    %v6406 = vunpack.c.l.b16 %v1964
    %v6407 = vunpack.c.l.b16 %v1965
    %v6408 = vunpack.c.l.b16 %v1966
    %v6409 = vunpack.c.l.b16 %v1967
    %v6410 = vunpack.c.l.b16 %v1968
    %v6411 = vunpack.c.l.b16 %v1969
    %v6412 = vunpack.c.l.b16 %v1970
    %v6413 = vunpack.c.l.b16 %v1971
    %v6414 = vunpack.c.l.b16 %v1972
    %v6415 = vunpack.c.l.b16 %v1973
    %v6416 = vunpack.c.l.b16 %v1974
    %v6417 = vunpack.c.l.b16 %v1975
    %v6418 = vunpack.c.l.b16 %v1976
    %v6419 = vunpack.c.l.b16 %v1977
    %v6420 = vunpack.c.l.b16 %v1978
    %v6421 = vunpack.c.l.b16 %v1979
    %v6422 = vunpack.c.l.b16 %v1980
    %v6423 = vunpack.c.l.b16 %v1981
    %v6424 = vunpack.c.l.b16 %v1982
    %v6425 = vunpack.c.l.b16 %v1983
    %v6426 = vunpack.c.l.b16 %v1984
    %v6427 = vunpack.c.l.b16 %v1985
    %v6428 = vunpack.c.l.b16 %v1986
    %v6429 = vunpack.c.l.b16 %v1987
    %v6430 = vunpack.c.l.b16 %v1988
    %v6431 = vunpack.c.l.b16 %v1989
    %v6432 = vunpack.c.l.b16 %v1990
    %v6433 = vunpack.c.l.b16 %v1991
    %v6434 = vunpack.c.l.b16 %v1992
    %v6435 = vunpack.c.l.b16 %v1993
    %v6436 = vunpack.c.l.b16 %v1994
    %v6437 = vunpack.c.l.b16 %v1995
    %v6438 = vunpack.c.l.b16 %v1996
    %v6439 = vunpack.c.l.b16 %v1997
    %v6440 = vunpack.c.l.b16 %v1998
    %v6441 = vunpack.c.l.b16 %v1999
    %v6442 = vunpack.c.l.b16 %v2000
    %v6443 = vunpack.c.l.b16 %v2001
    %v6444 = vunpack.c.l.b16 %v2002
    %v6445 = vunpack.c.l.b16 %v2003
    %v6446 = vunpack.c.l.b16 %v2004
    %v6447 = vunpack.c.l.b16 %v2005
    %v6448 = vunpack.c.l.b16 %v2006
    %v6449 = vunpack.c.l.b16 %v2007
    %v6450 = vunpack.c.l.b16 %v2008
    %v6451 = vunpack.c.l.b16 %v2009
    %v6452 = vunpack.c.l.b16 %v2010
    %v6453 = vunpack.c.l.b16 %v2011
    %v6454 = vunpack.c.l.b16 %v2012
    %v6455 = vunpack.c.l.b16 %v2013
    %v6456 = vunpack.c.l.b16 %v2014
    %v6457 = vunpack.c.l.b16 %v2015
    %v6458 = vunpack.c.l.b16 %v2016
    %v6459 = vunpack.c.l.b16 %v2017
    %v6460 = vunpack.c.l.b16 %v2018
    %v6461 = vunpack.c.l.b16 %v2019
    %v6462 = vunpack.c.l.b16 %v2020
    %v6463 = vunpack.c.l.b16 %v2021
    %v6464 = vunpack.c.l.b16 %v2022
    %v6465 = vunpack.c.l.b16 %v2023
    %v6466 = vunpack.c.l.b16 %v2024
    %v6467 = vunpack.c.l.b16 %v2025
    %v6468 = vunpack.c.l.b16 %v2026
    %v6469 = vunpack.c.l.b16 %v2027
    %v6470 = vunpack.c.l.b16 %v2028
    %v6471 = vunpack.c.l.b16 %v2029
    %v6472 = vunpack.c.l.b16 %v2030
    %v6473 = vunpack.c.l.b16 %v2031
    %v6474 = vunpack.c.l.b16 %v2032
    %v6475 = vunpack.c.l.b16 %v2033
    %v6476 = vunpack.c.l.b16 %v2034
    %v6477 = vunpack.c.l.b16 %v2035
    %v6478 = vunpack.c.l.b16 %v2036
    %v6479 = vunpack.c.l.b16 %v2037
    %v6480 = vunpack.c.l.b16 %v2038
    %v6481 = vunpack.c.l.b16 %v2039
    %v6482 = vunpack.c.l.b16 %v2040
    %v6483 = vunpack.c.l.b16 %v2041
    %v6484 = vunpack.c.l.b16 %v2042
    %v6485 = vunpack.c.l.b16 %v2043
    %v6486 = vunpack.c.l.b16 %v2044
    %v6487 = vunpack.c.l.b16 %v2045
    %v6488 = vunpack.c.l.b16 %v2046
    %v6489 = vunpack.c.l.b16 %v2047
    %v6490 = vunpack.c.l.b16 %v2048
    %v6491 = vunpack.c.l.b16 %v2049
    %v6492 = vunpack.c.l.b16 %v2050
    %v6493 = vunpack.c.l.b16 %v2051
    %v6494 = vunpack.c.l.b16 %v2052
    %v6495 = vunpack.c.l.b16 %v2053
    %v6496 = vunpack.c.l.b16 %v2054
    %v6497 = vunpack.c.l.b16 %v2055
    %v6498 = vunpack.c.l.b16 %v2056
    %v6499 = vunpack.c.l.b16 %v2057
    %v6500 = vunpack.c.l.b16 %v2058
    %v6501 = vunpack.c.l.b16 %v2059
    %v6502 = vunpack.c.l.b16 %v2060
    %v6503 = vunpack.c.l.b16 %v2061
    %v6504 = vunpack.c.l.b16 %v2062
    %v6505 = vunpack.c.l.b16 %v2063
    %v6506 = vunpack.c.l.b16 %v2064
    %v6507 = vunpack.c.l.b16 %v2065
    %v6508 = vunpack.c.l.b16 %v2066
    %v6509 = vunpack.c.l.b16 %v2067
    %v6510 = vunpack.c.l.b16 %v2068
    %v6511 = vunpack.c.l.b16 %v2069
    %v6512 = vunpack.c.l.b16 %v2070
    %v6513 = vunpack.c.l.b16 %v2071
    %v6514 = vunpack.c.l.b16 %v2072
    %v6515 = vunpack.c.l.b16 %v2073
    %v6516 = vunpack.c.l.b16 %v2074
    %v6517 = vunpack.c.l.b16 %v2075
    %v6518 = vunpack.c.l.b16 %v2076
    %v6519 = vunpack.c.l.b16 %v2077
    %v6520 = vunpack.c.l.b16 %v2078
    %v6521 = vunpack.c.l.b16 %v2079
    %v6522 = vunpack.c.l.b16 %v2080
    %v6523 = vunpack.c.l.b16 %v2081
    %v6524 = vunpack.c.l.b16 %v2082
    %v6525 = vunpack.c.l.b16 %v2083
    %v6526 = vunpack.c.l.b16 %v2084
    %v6527 = vunpack.c.l.b16 %v2085
    %v6528 = vunpack.c.l.b16 %v2086
    %v6529 = vunpack.c.l.b16 %v2087
    %v6530 = vunpack.c.l.b16 %v2088
    %v6531 = vunpack.c.l.b16 %v2089
    %v6532 = vunpack.c.l.b16 %v2090
    %v6533 = vunpack.c.l.b16 %v2091
    %v6534 = vunpack.c.l.b16 %v2092
    %v6535 = vunpack.c.l.b16 %v2093
    %v6536 = vunpack.c.l.b16 %v2094
    %v6537 = vunpack.c.l.b16 %v2095
    %v6538 = vunpack.c.l.b16 %v2096
    %v6539 = vunpack.c.l.b16 %v2097
    %v6540 = vunpack.c.l.b16 %v2098
    %v6541 = vunpack.c.l.b16 %v2099
    %v6542 = vunpack.c.l.b16 %v2100
    %v6543 = vunpack.c.l.b16 %v2101
    %v6544 = vunpack.c.l.b16 %v2102
    %v6545 = vunpack.c.l.b16 %v2103
    %v6546 = vunpack.c.l.b16 %v2104
    %v6547 = vunpack.c.l.b16 %v2105
    %v6548 = vunpack.c.l.b16 %v2106
    %v6549 = vunpack.c.l.b16 %v2107
    %v6550 = vunpack.c.l.b16 %v2108
    %v6551 = vunpack.c.l.b16 %v2109
    %v6552 = vunpack.c.l.b16 %v2110
    %v6553 = vunpack.c.l.b16 %v2111
    %v6554 = vunpack.c.l.b16 %v2112
    %v6555 = vunpack.c.l.b16 %v2113
    %v6556 = vunpack.c.l.b16 %v2114
    %v6557 = vunpack.c.l.b16 %v2115
    %v6558 = vunpack.c.l.b16 %v2116
    %v6559 = vunpack.c.l.b16 %v2117
    %v6560 = vunpack.c.l.b16 %v2118
    %v6561 = vunpack.c.l.b16 %v2119
    %v6562 = vunpack.c.l.b16 %v2120
    %v6563 = vunpack.c.l.b16 %v2121
    %v6564 = vunpack.c.l.b16 %v2122
    %v6565 = vunpack.c.l.b16 %v2123
    %v6566 = vunpack.c.l.b16 %v2124
    %v6567 = vunpack.c.l.b16 %v2125
    %v6568 = vunpack.c.l.b16 %v2126
    %v6569 = vunpack.c.l.b16 %v2127
    %v6570 = vunpack.c.l.b16 %v2128
    %v6571 = vunpack.c.l.b16 %v2129
    %v6572 = vunpack.c.l.b16 %v2130
    %v6573 = vunpack.c.l.b16 %v2131
    %v6574 = vunpack.c.l.b16 %v2132
    %v6575 = vunpack.c.l.b16 %v2133
    %v6576 = vunpack.c.l.b16 %v2134
    %v6577 = vunpack.c.l.b16 %v2135
    %v6578 = vunpack.c.l.b16 %v2136
    %v6579 = vunpack.c.l.b16 %v2137
    %v6580 = vunpack.c.l.b16 %v2138
    %v6581 = vunpack.c.l.b16 %v2139
    %v6582 = vunpack.c.l.b16 %v2140
    %v6583 = vunpack.c.l.b16 %v2141
    %v6584 = vunpack.c.l.b16 %v2142
    %v6585 = vunpack.c.l.b16 %v2143
    %v6586 = vunpack.c.l.b16 %v2144
    %v6587 = vunpack.c.l.b16 %v2145
    %v6588 = vunpack.c.l.b16 %v2146
    %v6589 = vunpack.c.l.b16 %v2147
    %v6590 = vunpack.c.l.b16 %v2148
    %v6591 = vunpack.c.l.b16 %v2149
    %v6592 = vunpack.c.l.b16 %v2150
    %v6593 = vunpack.c.l.b16 %v2151
    %v6594 = vunpack.c.l.b16 %v2152
    %v6595 = vunpack.c.l.b16 %v2153
    %v6596 = vunpack.c.l.b16 %v2154
    %v6597 = vunpack.c.l.b16 %v2155
    %v6598 = vpack.c.b16 %v4599, %v4598
    %v6599 = vpack.c.b16 %v4601, %v4600
    %v6600 = vpack.c.b16 %v4603, %v4602
    %v6601 = vpack.c.b16 %v4605, %v4604
    %v6602 = vpack.c.b16 %v4607, %v4606
    %v6603 = vpack.c.b16 %v4609, %v4608
    %v6604 = vpack.c.b16 %v4611, %v4610
    %v6605 = vpack.c.b16 %v4613, %v4612
    %v6606 = vpack.c.b16 %v4615, %v4614
    %v6607 = vpack.c.b16 %v4617, %v4616
    %v6608 = vpack.c.b16 %v4619, %v4618
    %v6609 = vpack.c.b16 %v4621, %v4620
    %v6610 = vpack.c.b16 %v4623, %v4622
    %v6611 = vpack.c.b16 %v4625, %v4624
    %v6612 = vpack.c.b16 %v4627, %v4626
    %v6613 = vpack.c.b16 %v4629, %v4628
    %v6614 = vpack.c.b16 %v4631, %v4630
    %v6615 = vpack.c.b16 %v4633, %v4632
    %v6616 = vpack.c.b16 %v4635, %v4634
    %v6617 = vpack.c.b16 %v4637, %v4636
    %v6618 = vpack.c.b16 %v4639, %v4638
    %v6619 = vpack.c.b16 %v4641, %v4640
    %v6620 = vpack.c.b16 %v4643, %v4642
    %v6621 = vpack.c.b16 %v4645, %v4644
    %v6622 = vpack.c.b16 %v4647, %v4646
    %v6623 = vpack.c.b16 %v4649, %v4648
    %v6624 = vpack.c.b16 %v4651, %v4650
    %v6625 = vpack.c.b16 %v4653, %v4652
    %v6626 = vpack.c.b16 %v4655, %v4654
    %v6627 = vpack.c.b16 %v4657, %v4656
    %v6628 = vpack.c.b16 %v4659, %v4658
    %v6629 = vpack.c.b16 %v4661, %v4660
    %v6630 = vpack.c.b16 %v4663, %v4662
    %v6631 = vpack.c.b16 %v4665, %v4664
    %v6632 = vpack.c.b16 %v4667, %v4666
    %v6633 = vpack.c.b16 %v4669, %v4668
    %v6634 = vpack.c.b16 %v4671, %v4670
    %v6635 = vpack.c.b16 %v4673, %v4672
    %v6636 = vpack.c.b16 %v4675, %v4674
    %v6637 = vpack.c.b16 %v4677, %v4676
    %v6638 = vpack.c.b16 %v4679, %v4678
    %v6639 = vpack.c.b16 %v4681, %v4680
    %v6640 = vpack.c.b16 %v4683, %v4682
    %v6641 = vpack.c.b16 %v4685, %v4684
    %v6642 = vpack.c.b16 %v4687, %v4686
    %v6643 = vpack.c.b16 %v4689, %v4688
    %v6644 = vpack.c.b16 %v4691, %v4690
    %v6645 = vpack.c.b16 %v4693, %v4692
    %v6646 = vpack.c.b16 %v4695, %v4694
    %v6647 = vpack.c.b16 %v4697, %v4696
    %v6648 = vpack.c.b16 %v4699, %v4698
    %v6649 = vpack.c.b16 %v4701, %v4700
    %v6650 = vpack.c.b16 %v4703, %v4702
    %v6651 = vpack.c.b16 %v4705, %v4704
    %v6652 = vpack.c.b16 %v4707, %v4706
    %v6653 = vpack.c.b16 %v4709, %v4708
    %v6654 = vpack.c.b16 %v4711, %v4710
    %v6655 = vpack.c.b16 %v4713, %v4712
    %v6656 = vpack.c.b16 %v4715, %v4714
    %v6657 = vpack.c.b16 %v4717, %v4716
    %v6658 = vpack.c.b16 %v4719, %v4718
    %v6659 = vpack.c.b16 %v4721, %v4720
    %v6660 = vpack.c.b16 %v4723, %v4722
    %v6661 = vpack.c.b16 %v4725, %v4724
    %v6662 = vpack.c.b16 %v4727, %v4726
    %v6663 = vpack.c.b16 %v4729, %v4728
    %v6664 = vpack.c.b16 %v4731, %v4730
    %v6665 = vpack.c.b16 %v4733, %v4732
    %v6666 = vpack.c.b16 %v4735, %v4734
    %v6667 = vpack.c.b16 %v4737, %v4736
    %v6668 = vpack.c.b16 %v4739, %v4738
    %v6669 = vpack.c.b16 %v4741, %v4740
    %v6670 = vpack.c.b16 %v4743, %v4742
    %v6671 = vpack.c.b16 %v4745, %v4744
    %v6672 = vpack.c.b16 %v4747, %v4746
    %v6673 = vpack.c.b16 %v4749, %v4748
    %v6674 = vpack.c.b16 %v4751, %v4750
    %v6675 = vpack.c.b16 %v4753, %v4752
    %v6676 = vpack.c.b16 %v4755, %v4754
    %v6677 = vpack.c.b16 %v4757, %v4756
    %v6678 = vpack.c.b16 %v4759, %v4758
    %v6679 = vpack.c.b16 %v4761, %v4760
    %v6680 = vpack.c.b16 %v4763, %v4762
    %v6681 = vpack.c.b16 %v4765, %v4764
    %v6682 = vpack.c.b16 %v4767, %v4766
    %v6683 = vpack.c.b16 %v4769, %v4768
    %v6684 = vpack.c.b16 %v4771, %v4770
    %v6685 = vpack.c.b16 %v4773, %v4772
    %v6686 = vpack.c.b16 %v4775, %v4774
    %v6687 = vpack.c.b16 %v4777, %v4776
    %v6688 = vpack.c.b16 %v4779, %v4778
    %v6689 = vpack.c.b16 %v4781, %v4780
    %v6690 = vpack.c.b16 %v4783, %v4782
    %v6691 = vpack.c.b16 %v4785, %v4784
    %v6692 = vpack.c.b16 %v4787, %v4786
    %v6693 = vpack.c.b16 %v4789, %v4788
    %v6694 = vpack.c.b16 %v4791, %v4790
    %v6695 = vpack.c.b16 %v4793, %v4792
    %v6696 = vpack.c.b16 %v4795, %v4794
    %v6697 = vpack.c.b16 %v4797, %v4796
    %v6698 = vpack.c.b16 %v4799, %v4798
    %v6699 = vpack.c.b16 %v4801, %v4800
    %v6700 = vpack.c.b16 %v4803, %v4802
    %v6701 = vpack.c.b16 %v4805, %v4804
    %v6702 = vpack.c.b16 %v4807, %v4806
    %v6703 = vpack.c.b16 %v4809, %v4808
    %v6704 = vpack.c.b16 %v4811, %v4810
    %v6705 = vpack.c.b16 %v4813, %v4812
    %v6706 = vpack.c.b16 %v4815, %v4814
    %v6707 = vpack.c.b16 %v4817, %v4816
    %v6708 = vpack.c.b16 %v4819, %v4818
    %v6709 = vpack.c.b16 %v4821, %v4820
    %v6710 = vpack.c.b16 %v4823, %v4822
    %v6711 = vpack.c.b16 %v4825, %v4824
    %v6712 = vpack.c.b16 %v4827, %v4826
    %v6713 = vpack.c.b16 %v4829, %v4828
    %v6714 = vpack.c.b16 %v4831, %v4830
    %v6715 = vpack.c.b16 %v4833, %v4832
    %v6716 = vpack.c.b16 %v4835, %v4834
    %v6717 = vpack.c.b16 %v4837, %v4836
    %v6718 = vpack.c.b16 %v4839, %v4838
    %v6719 = vpack.c.b16 %v4841, %v4840
    %v6720 = vpack.c.b16 %v4843, %v4842
    %v6721 = vpack.c.b16 %v4845, %v4844
    %v6722 = vpack.c.b16 %v4847, %v4846
    %v6723 = vpack.c.b16 %v4849, %v4848
    %v6724 = vpack.c.b16 %v4851, %v4850
    %v6725 = vpack.c.b16 %v4853, %v4852
    %v6726 = vpack.c.b16 %v4855, %v4854
    %v6727 = vpack.c.b16 %v4857, %v4856
    %v6728 = vpack.c.b16 %v4859, %v4858
    %v6729 = vpack.c.b16 %v4861, %v4860
    %v6730 = vpack.c.b16 %v4863, %v4862
    %v6731 = vpack.c.b16 %v4865, %v4864
    %v6732 = vpack.c.b16 %v4867, %v4866
    %v6733 = vpack.c.b16 %v4869, %v4868
    %v6734 = vpack.c.b16 %v4871, %v4870
    %v6735 = vpack.c.b16 %v4873, %v4872
    %v6736 = vpack.c.b16 %v4875, %v4874
    %v6737 = vpack.c.b16 %v4877, %v4876
    %v6738 = vpack.c.b16 %v4879, %v4878
    %v6739 = vpack.c.b16 %v4881, %v4880
    %v6740 = vpack.c.b16 %v4883, %v4882
    %v6741 = vpack.c.b16 %v4885, %v4884
    %v6742 = vpack.c.b16 %v4887, %v4886
    %v6743 = vpack.c.b16 %v4889, %v4888
    %v6744 = vpack.c.b16 %v4891, %v4890
    %v6745 = vpack.c.b16 %v4893, %v4892
    %v6746 = vpack.c.b16 %v4895, %v4894
    %v6747 = vpack.c.b16 %v4897, %v4896
    %v6748 = vpack.c.b16 %v4899, %v4898
    %v6749 = vpack.c.b16 %v4901, %v4900
    %v6750 = vpack.c.b16 %v4903, %v4902
    %v6751 = vpack.c.b16 %v4905, %v4904
    %v6752 = vpack.c.b16 %v4907, %v4906
    %v6753 = vpack.c.b16 %v4909, %v4908
    %v6754 = vpack.c.b16 %v4911, %v4910
    %v6755 = vpack.c.b16 %v4913, %v4912
    %v6756 = vpack.c.b16 %v4915, %v4914
    %v6757 = vpack.c.b16 %v4917, %v4916
    %v6758 = vpack.c.b16 %v4919, %v4918
    %v6759 = vpack.c.b16 %v4921, %v4920
    %v6760 = vpack.c.b16 %v4923, %v4922
    %v6761 = vpack.c.b16 %v4925, %v4924
    %v6762 = vpack.c.b16 %v4927, %v4926
    %v6763 = vpack.c.b16 %v4929, %v4928
    %v6764 = vpack.c.b16 %v4931, %v4930
    %v6765 = vpack.c.b16 %v4933, %v4932
    %v6766 = vpack.c.b16 %v4935, %v4934
    %v6767 = vpack.c.b16 %v4937, %v4936
    %v6768 = vpack.c.b16 %v4939, %v4938
    %v6769 = vpack.c.b16 %v4941, %v4940
    %v6770 = vpack.c.b16 %v4943, %v4942
    %v6771 = vpack.c.b16 %v4945, %v4944
    %v6772 = vpack.c.b16 %v4947, %v4946
    %v6773 = vpack.c.b16 %v4949, %v4948
    %v6774 = vpack.c.b16 %v4951, %v4950
    %v6775 = vpack.c.b16 %v4953, %v4952
    %v6776 = vpack.c.b16 %v4955, %v4954
    %v6777 = vpack.c.b16 %v4957, %v4956
    %v6778 = vpack.c.b16 %v4959, %v4958
    %v6779 = vpack.c.b16 %v4961, %v4960
    %v6780 = vpack.c.b16 %v4963, %v4962
    %v6781 = vpack.c.b16 %v4965, %v4964
    %v6782 = vpack.c.b16 %v4967, %v4966
    %v6783 = vpack.c.b16 %v4969, %v4968
    %v6784 = vpack.c.b16 %v4971, %v4970
    %v6785 = vpack.c.b16 %v4973, %v4972
    %v6786 = vpack.c.b16 %v4975, %v4974
    %v6787 = vpack.c.b16 %v4977, %v4976
    %v6788 = vpack.c.b16 %v4979, %v4978
    %v6789 = vpack.c.b16 %v4981, %v4980
    %v6790 = vpack.c.b16 %v4983, %v4982
    %v6791 = vpack.c.b16 %v4985, %v4984
    %v6792 = vpack.c.b16 %v4987, %v4986
    %v6793 = vpack.c.b16 %v4989, %v4988
    %v6794 = vpack.c.b16 %v4991, %v4990
    %v6795 = vpack.c.b16 %v4993, %v4992
    %v6796 = vpack.c.b16 %v4995, %v4994
    %v6797 = vpack.c.b16 %v4997, %v4996
    %v6798 = vpack.c.b16 %v4999, %v4998
    %v6799 = vpack.c.b16 %v5001, %v5000
    %v6800 = vpack.c.b16 %v5003, %v5002
    %v6801 = vpack.c.b16 %v5005, %v5004
    %v6802 = vpack.c.b16 %v5007, %v5006
    %v6803 = vpack.c.b16 %v5009, %v5008
    %v6804 = vpack.c.b16 %v5011, %v5010
    %v6805 = vpack.c.b16 %v5013, %v5012
    %v6806 = vpack.c.b16 %v5015, %v5014
    %v6807 = vpack.c.b16 %v5017, %v5016
    %v6808 = vpack.c.b16 %v5019, %v5018
    %v6809 = vpack.c.b16 %v5021, %v5020
    %v6810 = vpack.c.b16 %v5023, %v5022
    %v6811 = vpack.c.b16 %v5025, %v5024
    %v6812 = vpack.c.b16 %v5027, %v5026
    %v6813 = vpack.c.b16 %v5029, %v5028
    %v6814 = vpack.c.b16 %v5031, %v5030
    %v6815 = vpack.c.b16 %v5033, %v5032
    %v6816 = vpack.c.b16 %v5035, %v5034
    %v6817 = vpack.c.b16 %v5037, %v5036
    %v6818 = vpack.c.b16 %v5039, %v5038
    %v6819 = vpack.c.b16 %v5041, %v5040
    %v6820 = vpack.c.b16 %v5043, %v5042
    %v6821 = vpack.c.b16 %v5045, %v5044
    %v6822 = vpack.c.b16 %v5047, %v5046
    %v6823 = vpack.c.b16 %v5049, %v5048
    %v6824 = vpack.c.b16 %v5051, %v5050
    %v6825 = vpack.c.b16 %v5053, %v5052
    %v6826 = vpack.c.b16 %v5055, %v5054
    %v6827 = vpack.c.b16 %v5057, %v5056
    %v6828 = vpack.c.b16 %v5059, %v5058
    %v6829 = vpack.c.b16 %v5061, %v5060
    %v6830 = vpack.c.b16 %v5063, %v5062
    %v6831 = vpack.c.b16 %v5065, %v5064
    %v6832 = vpack.c.b16 %v5067, %v5066
    %v6833 = vpack.c.b16 %v5069, %v5068
    %v6834 = vpack.c.b16 %v5071, %v5070
    %v6835 = vpack.c.b16 %v5073, %v5072
    %v6836 = vpack.c.b16 %v5075, %v5074
    %v6837 = vpack.c.b16 %v5077, %v5076
    %v6838 = vpack.c.b16 %v5079, %v5078
    %v6839 = vpack.c.b16 %v5081, %v5080
    %v6840 = vpack.c.b16 %v5083, %v5082
    %v6841 = vpack.c.b16 %v5085, %v5084
    %v6842 = vpack.c.b16 %v5087, %v5086
    %v6843 = vpack.c.b16 %v5089, %v5088
    %v6844 = vpack.c.b16 %v5091, %v5090
    %v6845 = vpack.c.b16 %v5093, %v5092
    %v6846 = vpack.c.b16 %v5095, %v5094
    %v6847 = vpack.c.b16 %v5097, %v5096
    %v6848 = vpack.c.b16 %v5099, %v5098
    %v6849 = vpack.c.b16 %v5101, %v5100
    %v6850 = vpack.c.b16 %v5103, %v5102
    %v6851 = vpack.c.b16 %v5105, %v5104
    %v6852 = vpack.c.b16 %v5107, %v5106
    %v6853 = vpack.c.b16 %v5109, %v5108
    %v6854 = vpack.c.b16 %v5111, %v5110
    %v6855 = vpack.c.b16 %v5113, %v5112
    %v6856 = vpack.c.b16 %v5115, %v5114
    %v6857 = vpack.c.b16 %v5117, %v5116
    %v6858 = vpack.c.b16 %v5119, %v5118
    %v6859 = vpack.c.b16 %v5121, %v5120
    %v6860 = vpack.c.b16 %v5123, %v5122
    %v6861 = vpack.c.b16 %v5125, %v5124
    %v6862 = vpack.c.b16 %v5127, %v5126
    %v6863 = vpack.c.b16 %v5129, %v5128
    %v6864 = vpack.c.b16 %v5131, %v5130
    %v6865 = vpack.c.b16 %v5133, %v5132
    %v6866 = vpack.c.b16 %v5135, %v5134
    %v6867 = vpack.c.b16 %v5137, %v5136
    %v6868 = vpack.c.b16 %v5139, %v5138
    %v6869 = vpack.c.b16 %v5141, %v5140
    %v6870 = vpack.c.b16 %v5143, %v5142
    %v6871 = vpack.c.b16 %v5145, %v5144
    %v6872 = vpack.c.b16 %v5147, %v5146
    %v6873 = vpack.c.b16 %v5149, %v5148
    %v6874 = vpack.c.b16 %v5151, %v5150
    %v6875 = vpack.c.b16 %v5153, %v5152
    %v6876 = vpack.c.b16 %v5155, %v5154
    %v6877 = vpack.c.b16 %v5157, %v5156
    %v6878 = vpack.c.b16 %v5159, %v5158
    %v6879 = vpack.c.b16 %v5161, %v5160
    %v6880 = vpack.c.b16 %v5163, %v5162
    %v6881 = vpack.c.b16 %v5165, %v5164
    %v6882 = vpack.c.b16 %v5167, %v5166
    %v6883 = vpack.c.b16 %v5169, %v5168
    %v6884 = vpack.c.b16 %v5171, %v5170
    %v6885 = vpack.c.b16 %v5173, %v5172
    %v6886 = vpack.c.b16 %v5175, %v5174
    %v6887 = vpack.c.b16 %v5177, %v5176
    %v6888 = vpack.c.b16 %v5179, %v5178
    %v6889 = vpack.c.b16 %v5181, %v5180
    %v6890 = vpack.c.b16 %v5183, %v5182
    %v6891 = vpack.c.b16 %v5185, %v5184
    %v6892 = vpack.c.b16 %v5187, %v5186
    %v6893 = vpack.c.b16 %v5189, %v5188
    %v6894 = vpack.c.b16 %v5191, %v5190
    %v6895 = vpack.c.b16 %v5193, %v5192
    %v6896 = vpack.c.b16 %v5195, %v5194
    %v6897 = vpack.c.b16 %v5197, %v5196
    %v6898 = vpack.c.b16 %v5199, %v5198
    %v6899 = vpack.c.b16 %v5201, %v5200
    %v6900 = vpack.c.b16 %v5203, %v5202
    %v6901 = vpack.c.b16 %v5205, %v5204
    %v6902 = vpack.c.b16 %v5207, %v5206
    %v6903 = vpack.c.b16 %v5209, %v5208
    %v6904 = vpack.c.b16 %v5211, %v5210
    %v6905 = vpack.c.b16 %v5213, %v5212
    %v6906 = vpack.c.b16 %v5215, %v5214
    %v6907 = vpack.c.b16 %v5217, %v5216
    %v6908 = vpack.c.b16 %v5219, %v5218
    %v6909 = vpack.c.b16 %v5221, %v5220
    %v6910 = vpack.c.b16 %v5223, %v5222
    %v6911 = vpack.c.b16 %v5225, %v5224
    %v6912 = vpack.c.b16 %v5227, %v5226
    %v6913 = vpack.c.b16 %v5229, %v5228
    %v6914 = vpack.c.b16 %v5231, %v5230
    %v6915 = vpack.c.b16 %v5233, %v5232
    %v6916 = vpack.c.b16 %v5235, %v5234
    %v6917 = vpack.c.b16 %v5237, %v5236
    %v6918 = vpack.c.b16 %v5239, %v5238
    %v6919 = vpack.c.b16 %v5241, %v5240
    %v6920 = vpack.c.b16 %v5243, %v5242
    %v6921 = vpack.c.b16 %v5245, %v5244
    %v6922 = vpack.c.b16 %v5247, %v5246
    %v6923 = vpack.c.b16 %v5249, %v5248
    %v6924 = vpack.c.b16 %v5251, %v5250
    %v6925 = vpack.c.b16 %v5253, %v5252
    %v6926 = vpack.c.b16 %v5255, %v5254
    %v6927 = vpack.c.b16 %v5257, %v5256
    %v6928 = vpack.c.b16 %v5259, %v5258
    %v6929 = vpack.c.b16 %v5261, %v5260
    %v6930 = vpack.c.b16 %v5263, %v5262
    %v6931 = vpack.c.b16 %v5265, %v5264
    %v6932 = vpack.c.b16 %v5267, %v5266
    %v6933 = vpack.c.b16 %v5269, %v5268
    %v6934 = vpack.c.b16 %v5271, %v5270
    %v6935 = vpack.c.b16 %v5273, %v5272
    %v6936 = vpack.c.b16 %v5275, %v5274
    %v6937 = vpack.c.b16 %v5277, %v5276
    %v6938 = vpack.c.b16 %v5279, %v5278
    %v6939 = vpack.c.b16 %v5281, %v5280
    %v6940 = vpack.c.b16 %v5283, %v5282
    %v6941 = vpack.c.b16 %v5285, %v5284
    %v6942 = vpack.c.b16 %v5287, %v5286
    %v6943 = vpack.c.b16 %v5289, %v5288
    %v6944 = vpack.c.b16 %v5291, %v5290
    %v6945 = vpack.c.b16 %v5293, %v5292
    %v6946 = vpack.c.b16 %v5295, %v5294
    %v6947 = vpack.c.b16 %v5297, %v5296
    %v6948 = vpack.c.b16 %v5299, %v5298
    %v6949 = vpack.c.b16 %v5301, %v5300
    %v6950 = vpack.c.b16 %v5303, %v5302
    %v6951 = vpack.c.b16 %v5305, %v5304
    %v6952 = vpack.c.b16 %v5307, %v5306
    %v6953 = vpack.c.b16 %v5309, %v5308
    %v6954 = vpack.c.b16 %v5311, %v5310
    %v6955 = vpack.c.b16 %v5313, %v5312
    %v6956 = vpack.c.b16 %v5315, %v5314
    %v6957 = vpack.c.b16 %v5317, %v5316
    %v6958 = vpack.c.b16 %v5319, %v5318
    %v6959 = vpack.c.b16 %v5321, %v5320
    %v6960 = vpack.c.b16 %v5323, %v5322
    %v6961 = vpack.c.b16 %v5325, %v5324
    %v6962 = vpack.c.b16 %v5327, %v5326
    %v6963 = vpack.c.b16 %v5329, %v5328
    %v6964 = vpack.c.b16 %v5331, %v5330
    %v6965 = vpack.c.b16 %v5333, %v5332
    %v6966 = vpack.c.b16 %v5335, %v5334
    %v6967 = vpack.c.b16 %v5337, %v5336
    %v6968 = vpack.c.b16 %v5339, %v5338
    %v6969 = vpack.c.b16 %v5341, %v5340
    %v6970 = vpack.c.b16 %v5343, %v5342
    %v6971 = vpack.c.b16 %v5345, %v5344
    %v6972 = vpack.c.b16 %v5347, %v5346
    %v6973 = vpack.c.b16 %v5349, %v5348
    %v6974 = vpack.c.b16 %v5351, %v5350
    %v6975 = vpack.c.b16 %v5353, %v5352
    %v6976 = vpack.c.b16 %v5355, %v5354
    %v6977 = vpack.c.b16 %v5357, %v5356
    %v6978 = vpack.c.b16 %v5359, %v5358
    %v6979 = vpack.c.b16 %v5361, %v5360
    %v6980 = vpack.c.b16 %v5363, %v5362
    %v6981 = vpack.c.b16 %v5365, %v5364
    %v6982 = vpack.c.b16 %v5367, %v5366
    %v6983 = vpack.c.b16 %v5369, %v5368
    %v6984 = vpack.c.b16 %v5371, %v5370
    %v6985 = vpack.c.b16 %v5373, %v5372
    %v6986 = vpack.c.b16 %v5375, %v5374
    %v6987 = vpack.c.b16 %v5377, %v5376
    %v6988 = vpack.c.b16 %v5379, %v5378
    %v6989 = vpack.c.b16 %v5381, %v5380
    %v6990 = vpack.c.b16 %v5383, %v5382
    %v6991 = vpack.c.b16 %v5385, %v5384
    %v6992 = vpack.c.b16 %v5387, %v5386
    %v6993 = vpack.c.b16 %v5389, %v5388
    %v6994 = vpack.c.b16 %v5391, %v5390
    %v6995 = vpack.c.b16 %v5393, %v5392
    %v6996 = vpack.c.b16 %v5395, %v5394
    %v6997 = vpack.c.b16 %v5397, %v5396
    %v6998 = vpack.c.b16 %v5399, %v5398
    %v6999 = vpack.c.b16 %v5401, %v5400
    %v7000 = vpack.c.b16 %v5403, %v5402
    %v7001 = vpack.c.b16 %v5405, %v5404
    %v7002 = vpack.c.b16 %v5407, %v5406
    %v7003 = vpack.c.b16 %v5409, %v5408
    %v7004 = vpack.c.b16 %v5411, %v5410
    %v7005 = vpack.c.b16 %v5413, %v5412
    %v7006 = vpack.c.b16 %v5415, %v5414
    %v7007 = vpack.c.b16 %v5417, %v5416
    %v7008 = vpack.c.b16 %v5419, %v5418
    %v7009 = vpack.c.b16 %v5421, %v5420
    %v7010 = vpack.c.b16 %v5423, %v5422
    %v7011 = vpack.c.b16 %v5425, %v5424
    %v7012 = vpack.c.b16 %v5427, %v5426
    %v7013 = vpack.c.b16 %v5429, %v5428
    %v7014 = vpack.c.b16 %v5431, %v5430
    %v7015 = vpack.c.b16 %v5433, %v5432
    %v7016 = vpack.c.b16 %v5435, %v5434
    %v7017 = vpack.c.b16 %v5437, %v5436
    %v7018 = vpack.c.b16 %v5439, %v5438
    %v7019 = vpack.c.b16 %v5441, %v5440
    %v7020 = vpack.c.b16 %v5443, %v5442
    %v7021 = vpack.c.b16 %v5445, %v5444
    %v7022 = vpack.c.b16 %v5447, %v5446
    %v7023 = vpack.c.b16 %v5449, %v5448
    %v7024 = vpack.c.b16 %v5451, %v5450
    %v7025 = vpack.c.b16 %v5453, %v5452
    %v7026 = vpack.c.b16 %v5455, %v5454
    %v7027 = vpack.c.b16 %v5457, %v5456
    %v7028 = vpack.c.b16 %v5459, %v5458
    %v7029 = vpack.c.b16 %v5461, %v5460
    %v7030 = vpack.c.b16 %v5463, %v5462
    %v7031 = vpack.c.b16 %v5465, %v5464
    %v7032 = vpack.c.b16 %v5467, %v5466
    %v7033 = vpack.c.b16 %v5469, %v5468
    %v7034 = vpack.c.b16 %v5471, %v5470
    %v7035 = vpack.c.b16 %v5473, %v5472
    %v7036 = vpack.c.b16 %v5475, %v5474
    %v7037 = vpack.c.b16 %v5477, %v5476
    %v7038 = vpack.c.b16 %v5479, %v5478
    %v7039 = vpack.c.b16 %v5481, %v5480
    %v7040 = vpack.c.b16 %v5483, %v5482
    %v7041 = vpack.c.b16 %v5485, %v5484
    %v7042 = vpack.c.b16 %v5487, %v5486
    %v7043 = vpack.c.b16 %v5489, %v5488
    %v7044 = vpack.c.b16 %v5491, %v5490
    %v7045 = vpack.c.b16 %v5493, %v5492
    %v7046 = vpack.c.b16 %v5495, %v5494
    %v7047 = vpack.c.b16 %v5497, %v5496
    %v7048 = vpack.c.b16 %v5499, %v5498
    %v7049 = vpack.c.b16 %v5501, %v5500
    %v7050 = vpack.c.b16 %v5503, %v5502
    %v7051 = vpack.c.b16 %v5505, %v5504
    %v7052 = vpack.c.b16 %v5507, %v5506
    %v7053 = vpack.c.b16 %v5509, %v5508
    %v7054 = vpack.c.b16 %v5511, %v5510
    %v7055 = vpack.c.b16 %v5513, %v5512
    %v7056 = vpack.c.b16 %v5515, %v5514
    %v7057 = vpack.c.b16 %v5517, %v5516
    %v7058 = vpack.c.b16 %v5519, %v5518
    %v7059 = vpack.c.b16 %v5521, %v5520
    %v7060 = vpack.c.b16 %v5523, %v5522
    %v7061 = vpack.c.b16 %v5525, %v5524
    %v7062 = vpack.c.b16 %v5527, %v5526
    %v7063 = vpack.c.b16 %v5529, %v5528
    %v7064 = vpack.c.b16 %v5531, %v5530
    %v7065 = vpack.c.b16 %v5533, %v5532
    %v7066 = vpack.c.b16 %v5535, %v5534
    %v7067 = vpack.c.b16 %v5537, %v5536
    %v7068 = vpack.c.b16 %v5539, %v5538
    %v7069 = vpack.c.b16 %v5541, %v5540
    %v7070 = vpack.c.b16 %v5543, %v5542
    %v7071 = vpack.c.b16 %v5545, %v5544
    %v7072 = vpack.c.b16 %v5547, %v5546
    %v7073 = vpack.c.b16 %v5549, %v5548
    %v7074 = vpack.c.b16 %v5551, %v5550
    %v7075 = vpack.c.b16 %v5553, %v5552
    %v7076 = vpack.c.b16 %v5555, %v5554
    %v7077 = vpack.c.b16 %v5557, %v5556
    %v7078 = vpack.c.b16 %v5559, %v5558
    %v7079 = vpack.c.b16 %v5561, %v5560
    %v7080 = vpack.c.b16 %v5563, %v5562
    %v7081 = vpack.c.b16 %v5565, %v5564
    %v7082 = vpack.c.b16 %v5567, %v5566
    %v7083 = vpack.c.b16 %v5569, %v5568
    %v7084 = vpack.c.b16 %v5571, %v5570
    %v7085 = vpack.c.b16 %v5573, %v5572
    %v7086 = vpack.c.b16 %v5575, %v5574
    %v7087 = vpack.c.b16 %v5577, %v5576
    %v7088 = vpack.c.b16 %v5579, %v5578
    %v7089 = vpack.c.b16 %v5581, %v5580
    %v7090 = vpack.c.b16 %v5583, %v5582
    %v7091 = vpack.c.b16 %v5585, %v5584
    %v7092 = vpack.c.b16 %v5587, %v5586
    %v7093 = vpack.c.b16 %v5589, %v5588
    %v7094 = vpack.c.b16 %v5591, %v5590
    %v7095 = vpack.c.b16 %v5593, %v5592
    %v7096 = vpack.c.b16 %v5595, %v5594
    %v7097 = vpack.c.b16 %v5597, %v5596
    %v7098 = vpack.c.b16 %v5599, %v5598
    %v7099 = vpack.c.b16 %v5601, %v5600
    %v7100 = vpack.c.b16 %v5603, %v5602
    %v7101 = vpack.c.b16 %v5605, %v5604
    %v7102 = vpack.c.b16 %v5607, %v5606
    %v7103 = vpack.c.b16 %v5609, %v5608
    %v7104 = vpack.c.b16 %v5611, %v5610
    %v7105 = vpack.c.b16 %v5613, %v5612
    %v7106 = vpack.c.b16 %v5615, %v5614
    %v7107 = vpack.c.b16 %v5617, %v5616
    %v7108 = vpack.c.b16 %v5619, %v5618
    %v7109 = vpack.c.b16 %v5621, %v5620
    %v7110 = vpack.c.b16 %v5623, %v5622
    %v7111 = vpack.c.b16 %v5625, %v5624
    %v7112 = vpack.c.b16 %v5627, %v5626
    %v7113 = vpack.c.b16 %v5629, %v5628
    %v7114 = vpack.c.b16 %v5631, %v5630
    %v7115 = vpack.c.b16 %v5633, %v5632
    %v7116 = vpack.c.b16 %v5635, %v5634
    %v7117 = vpack.c.b16 %v5637, %v5636
    %v7118 = vpack.c.b16 %v5639, %v5638
    %v7119 = vpack.c.b16 %v5641, %v5640
    %v7120 = vpack.c.b16 %v5643, %v5642
    %v7121 = vpack.c.b16 %v5645, %v5644
    %v7122 = vpack.c.b16 %v5647, %v5646
    %v7123 = vpack.c.b16 %v5649, %v5648
    %v7124 = vpack.c.b16 %v5651, %v5650
    %v7125 = vpack.c.b16 %v5653, %v5652
    %v7126 = vpack.c.b16 %v5655, %v5654
    %v7127 = vpack.c.b16 %v5657, %v5656
    %v7128 = vpack.c.b16 %v5659, %v5658
    %v7129 = vpack.c.b16 %v5661, %v5660
    %v7130 = vpack.c.b16 %v5663, %v5662
    %v7131 = vpack.c.b16 %v5665, %v5664
    %v7132 = vpack.c.b16 %v5667, %v5666
    %v7133 = vpack.c.b16 %v5669, %v5668
    %v7134 = vpack.c.b16 %v5671, %v5670
    %v7135 = vpack.c.b16 %v5673, %v5672
    %v7136 = vpack.c.b16 %v5675, %v5674
    %v7137 = vpack.c.b16 %v5677, %v5676
    %v7138 = vpack.c.b16 %v5679, %v5678
    %v7139 = vpack.c.b16 %v5681, %v5680
    %v7140 = vpack.c.b16 %v5683, %v5682
    %v7141 = vpack.c.b16 %v5685, %v5684
    %v7142 = vpack.c.b16 %v5687, %v5686
    %v7143 = vpack.c.b16 %v5689, %v5688
    %v7144 = vpack.c.b16 %v5691, %v5690
    %v7145 = vpack.c.b16 %v5693, %v5692
    %v7146 = vpack.c.b16 %v5695, %v5694
    %v7147 = vpack.c.b16 %v5697, %v5696
    %v7148 = vpack.c.b16 %v5699, %v5698
    %v7149 = vpack.c.b16 %v5701, %v5700
    %v7150 = vpack.c.b16 %v5703, %v5702
    %v7151 = vpack.c.b16 %v5705, %v5704
    %v7152 = vpack.c.b16 %v5707, %v5706
    %v7153 = vpack.c.b16 %v5709, %v5708
    %v7154 = vpack.c.b16 %v5711, %v5710
    %v7155 = vpack.c.b16 %v5713, %v5712
    %v7156 = vpack.c.b16 %v5715, %v5714
    %v7157 = vpack.c.b16 %v5717, %v5716
    %v7158 = vpack.c.b16 %v5719, %v5718
    %v7159 = vpack.c.b16 %v5721, %v5720
    %v7160 = vpack.c.b16 %v5723, %v5722
    %v7161 = vpack.c.b16 %v5725, %v5724
    %v7162 = vpack.c.b16 %v5727, %v5726
    %v7163 = vpack.c.b16 %v5729, %v5728
    %v7164 = vpack.c.b16 %v5731, %v5730
    %v7165 = vpack.c.b16 %v5733, %v5732
    %v7166 = vpack.c.b16 %v5735, %v5734
    %v7167 = vpack.c.b16 %v5737, %v5736
    %v7168 = vpack.c.b16 %v5739, %v5738
    %v7169 = vpack.c.b16 %v5741, %v5740
    %v7170 = vpack.c.b16 %v5743, %v5742
    %v7171 = vpack.c.b16 %v5745, %v5744
    %v7172 = vpack.c.b16 %v5747, %v5746
    %v7173 = vpack.c.b16 %v5749, %v5748
    %v7174 = vpack.c.b16 %v5751, %v5750
    %v7175 = vpack.c.b16 %v5753, %v5752
    %v7176 = vpack.c.b16 %v5755, %v5754
    %v7177 = vpack.c.b16 %v5757, %v5756
    %v7178 = vpack.c.b16 %v5759, %v5758
    %v7179 = vpack.c.b16 %v5761, %v5760
    %v7180 = vpack.c.b16 %v5763, %v5762
    %v7181 = vpack.c.b16 %v5765, %v5764
    %v7182 = vpack.c.b16 %v5767, %v5766
    %v7183 = vpack.c.b16 %v5769, %v5768
    %v7184 = vpack.c.b16 %v5771, %v5770
    %v7185 = vpack.c.b16 %v5773, %v5772
    %v7186 = vpack.c.b16 %v5775, %v5774
    %v7187 = vpack.c.b16 %v5777, %v5776
    %v7188 = vpack.c.b16 %v5779, %v5778
    %v7189 = vpack.c.b16 %v5781, %v5780
    %v7190 = vpack.c.b16 %v5783, %v5782
    %v7191 = vpack.c.b16 %v5785, %v5784
    %v7192 = vpack.c.b16 %v5787, %v5786
    %v7193 = vpack.c.b16 %v5789, %v5788
    %v7194 = vpack.c.b16 %v5791, %v5790
    %v7195 = vpack.c.b16 %v5793, %v5792
    %v7196 = vpack.c.b16 %v5795, %v5794
    %v7197 = vpack.c.b16 %v5797, %v5796
    %v7198 = vpack.c.b16 %v5799, %v5798
    %v7199 = vpack.c.b16 %v5801, %v5800
    %v7200 = vpack.c.b16 %v5803, %v5802
    %v7201 = vpack.c.b16 %v5805, %v5804
    %v7202 = vpack.c.b16 %v5807, %v5806
    %v7203 = vpack.c.b16 %v5809, %v5808
    %v7204 = vpack.c.b16 %v5811, %v5810
    %v7205 = vpack.c.b16 %v5813, %v5812
    %v7206 = vpack.c.b16 %v5815, %v5814
    %v7207 = vpack.c.b16 %v5817, %v5816
    %v7208 = vpack.c.b16 %v5819, %v5818
    %v7209 = vpack.c.b16 %v5821, %v5820
    %v7210 = vpack.c.b16 %v5823, %v5822
    %v7211 = vpack.c.b16 %v5825, %v5824
    %v7212 = vpack.c.b16 %v5827, %v5826
    %v7213 = vpack.c.b16 %v5829, %v5828
    %v7214 = vpack.c.b16 %v5831, %v5830
    %v7215 = vpack.c.b16 %v5833, %v5832
    %v7216 = vpack.c.b16 %v5835, %v5834
    %v7217 = vpack.c.b16 %v5837, %v5836
    %v7218 = vpack.c.b16 %v5839, %v5838
    %v7219 = vpack.c.b16 %v5841, %v5840
    %v7220 = vpack.c.b16 %v5843, %v5842
    %v7221 = vpack.c.b16 %v5845, %v5844
    %v7222 = vpack.c.b16 %v5847, %v5846
    %v7223 = vpack.c.b16 %v5849, %v5848
    %v7224 = vpack.c.b16 %v5851, %v5850
    %v7225 = vpack.c.b16 %v5853, %v5852
    %v7226 = vpack.c.b16 %v5855, %v5854
    %v7227 = vpack.c.b16 %v5857, %v5856
    %v7228 = vpack.c.b16 %v5859, %v5858
    %v7229 = vpack.c.b16 %v5861, %v5860
    %v7230 = vpack.c.b16 %v5863, %v5862
    %v7231 = vpack.c.b16 %v5865, %v5864
    %v7232 = vpack.c.b16 %v5867, %v5866
    %v7233 = vpack.c.b16 %v5869, %v5868
    %v7234 = vpack.c.b16 %v5871, %v5870
    %v7235 = vpack.c.b16 %v5873, %v5872
    %v7236 = vpack.c.b16 %v5875, %v5874
    %v7237 = vpack.c.b16 %v5877, %v5876
    %v7238 = vpack.c.b16 %v5879, %v5878
    %v7239 = vpack.c.b16 %v5881, %v5880
    %v7240 = vpack.c.b16 %v5883, %v5882
    %v7241 = vpack.c.b16 %v5885, %v5884
    %v7242 = vpack.c.b16 %v5887, %v5886
    %v7243 = vpack.c.b16 %v5889, %v5888
    %v7244 = vpack.c.b16 %v5891, %v5890
    %v7245 = vpack.c.b16 %v5893, %v5892
    %v7246 = vpack.c.b16 %v5895, %v5894
    %v7247 = vpack.c.b16 %v5897, %v5896
    %v7248 = vpack.c.b16 %v5899, %v5898
    %v7249 = vpack.c.b16 %v5901, %v5900
    %v7250 = vpack.c.b16 %v5903, %v5902
    %v7251 = vpack.c.b16 %v5905, %v5904
    %v7252 = vpack.c.b16 %v5907, %v5906
    %v7253 = vpack.c.b16 %v5909, %v5908
    %v7254 = vpack.c.b16 %v5911, %v5910
    %v7255 = vpack.c.b16 %v5913, %v5912
    %v7256 = vpack.c.b16 %v5915, %v5914
    %v7257 = vpack.c.b16 %v5917, %v5916
    %v7258 = vpack.c.b16 %v5919, %v5918
    %v7259 = vpack.c.b16 %v5921, %v5920
    %v7260 = vpack.c.b16 %v5923, %v5922
    %v7261 = vpack.c.b16 %v5925, %v5924
    %v7262 = vpack.c.b16 %v5927, %v5926
    %v7263 = vpack.c.b16 %v5929, %v5928
    %v7264 = vpack.c.b16 %v5931, %v5930
    %v7265 = vpack.c.b16 %v5933, %v5932
    %v7266 = vpack.c.b16 %v5935, %v5934
    %v7267 = vpack.c.b16 %v5937, %v5936
    %v7268 = vpack.c.b16 %v5939, %v5938
    %v7269 = vpack.c.b16 %v5941, %v5940
    %v7270 = vpack.c.b16 %v5943, %v5942
    %v7271 = vpack.c.b16 %v5945, %v5944
    %v7272 = vpack.c.b16 %v5947, %v5946
    %v7273 = vpack.c.b16 %v5949, %v5948
    %v7274 = vpack.c.b16 %v5951, %v5950
    %v7275 = vpack.c.b16 %v5953, %v5952
    %v7276 = vpack.c.b16 %v5955, %v5954
    %v7277 = vpack.c.b16 %v5957, %v5956
    %v7278 = vpack.c.b16 %v5959, %v5958
    %v7279 = vpack.c.b16 %v5961, %v5960
    %v7280 = vpack.c.b16 %v5963, %v5962
    %v7281 = vpack.c.b16 %v5965, %v5964
    %v7282 = vpack.c.b16 %v5967, %v5966
    %v7283 = vpack.c.b16 %v5969, %v5968
    %v7284 = vpack.c.b16 %v5971, %v5970
    %v7285 = vpack.c.b16 %v5973, %v5972
    %v7286 = vpack.c.b16 %v5975, %v5974
    %v7287 = vpack.c.b16 %v5977, %v5976
    %v7288 = vpack.c.b16 %v5979, %v5978
    %v7289 = vpack.c.b16 %v5981, %v5980
    %v7290 = vpack.c.b16 %v5983, %v5982
    %v7291 = vpack.c.b16 %v5985, %v5984
    %v7292 = vpack.c.b16 %v5987, %v5986
    %v7293 = vpack.c.b16 %v5989, %v5988
    %v7294 = vpack.c.b16 %v5991, %v5990
    %v7295 = vpack.c.b16 %v5993, %v5992
    %v7296 = vpack.c.b16 %v5995, %v5994
    %v7297 = vpack.c.b16 %v5997, %v5996
    %v7298 = vpack.c.b16 %v5999, %v5998
    %v7299 = vpack.c.b16 %v6001, %v6000
    %v7300 = vpack.c.b16 %v6003, %v6002
    %v7301 = vpack.c.b16 %v6005, %v6004
    %v7302 = vpack.c.b16 %v6007, %v6006
    %v7303 = vpack.c.b16 %v6009, %v6008
    %v7304 = vpack.c.b16 %v6011, %v6010
    %v7305 = vpack.c.b16 %v6013, %v6012
    %v7306 = vpack.c.b16 %v6015, %v6014
    %v7307 = vpack.c.b16 %v6017, %v6016
    %v7308 = vpack.c.b16 %v6019, %v6018
    %v7309 = vpack.c.b16 %v6021, %v6020
    %v7310 = vpack.c.b16 %v6023, %v6022
    %v7311 = vpack.c.b16 %v6025, %v6024
    %v7312 = vpack.c.b16 %v6027, %v6026
    %v7313 = vpack.c.b16 %v6029, %v6028
    %v7314 = vpack.c.b16 %v6031, %v6030
    %v7315 = vpack.c.b16 %v6033, %v6032
    %v7316 = vpack.c.b16 %v6035, %v6034
    %v7317 = vpack.c.b16 %v6037, %v6036
    %v7318 = vpack.c.b16 %v6039, %v6038
    %v7319 = vpack.c.b16 %v6041, %v6040
    %v7320 = vpack.c.b16 %v6043, %v6042
    %v7321 = vpack.c.b16 %v6045, %v6044
    %v7322 = vpack.c.b16 %v6047, %v6046
    %v7323 = vpack.c.b16 %v6049, %v6048
    %v7324 = vpack.c.b16 %v6051, %v6050
    %v7325 = vpack.c.b16 %v6053, %v6052
    %v7326 = vpack.c.b16 %v6055, %v6054
    %v7327 = vpack.c.b16 %v6057, %v6056
    %v7328 = vpack.c.b16 %v6059, %v6058
    %v7329 = vpack.c.b16 %v6061, %v6060
    %v7330 = vpack.c.b16 %v6063, %v6062
    %v7331 = vpack.c.b16 %v6065, %v6064
    %v7332 = vpack.c.b16 %v6067, %v6066
    %v7333 = vpack.c.b16 %v6069, %v6068
    %v7334 = vpack.c.b16 %v6071, %v6070
    %v7335 = vpack.c.b16 %v6073, %v6072
    %v7336 = vpack.c.b16 %v6075, %v6074
    %v7337 = vpack.c.b16 %v6077, %v6076
    %v7338 = vpack.c.b16 %v6079, %v6078
    %v7339 = vpack.c.b16 %v6081, %v6080
    %v7340 = vpack.c.b16 %v6083, %v6082
    %v7341 = vpack.c.b16 %v6085, %v6084
    %v7342 = vpack.c.b16 %v6087, %v6086
    %v7343 = vpack.c.b16 %v6089, %v6088
    %v7344 = vpack.c.b16 %v6091, %v6090
    %v7345 = vpack.c.b16 %v6093, %v6092
    %v7346 = vpack.c.b16 %v6095, %v6094
    %v7347 = vpack.c.b16 %v6097, %v6096
    %v7348 = vpack.c.b16 %v6099, %v6098
    %v7349 = vpack.c.b16 %v6101, %v6100
    %v7350 = vpack.c.b16 %v6103, %v6102
    %v7351 = vpack.c.b16 %v6105, %v6104
    %v7352 = vpack.c.b16 %v6107, %v6106
    %v7353 = vpack.c.b16 %v6109, %v6108
    %v7354 = vpack.c.b16 %v6111, %v6110
    %v7355 = vpack.c.b16 %v6113, %v6112
    %v7356 = vpack.c.b16 %v6115, %v6114
    %v7357 = vpack.c.b16 %v6117, %v6116
    %v7358 = vpack.c.b16 %v6119, %v6118
    %v7359 = vpack.c.b16 %v6121, %v6120
    %v7360 = vpack.c.b16 %v6123, %v6122
    %v7361 = vpack.c.b16 %v6125, %v6124
    %v7362 = vpack.c.b16 %v6127, %v6126
    %v7363 = vpack.c.b16 %v6129, %v6128
    %v7364 = vpack.c.b16 %v6131, %v6130
    %v7365 = vpack.c.b16 %v6133, %v6132
    %v7366 = vpack.c.b16 %v6135, %v6134
    %v7367 = vpack.c.b16 %v6137, %v6136
    %v7368 = vpack.c.b16 %v6139, %v6138
    %v7369 = vpack.c.b16 %v6141, %v6140
    %v7370 = vpack.c.b16 %v6143, %v6142
    %v7371 = vpack.c.b16 %v6145, %v6144
    %v7372 = vpack.c.b16 %v6147, %v6146
    %v7373 = vpack.c.b16 %v6149, %v6148
    %v7374 = vpack.c.b16 %v6151, %v6150
    %v7375 = vpack.c.b16 %v6153, %v6152
    %v7376 = vpack.c.b16 %v6155, %v6154
    %v7377 = vpack.c.b16 %v6157, %v6156
    %v7378 = vpack.c.b16 %v6159, %v6158
    %v7379 = vpack.c.b16 %v6161, %v6160
    %v7380 = vpack.c.b16 %v6163, %v6162
    %v7381 = vpack.c.b16 %v6165, %v6164
    %v7382 = vpack.c.b16 %v6167, %v6166
    %v7383 = vpack.c.b16 %v6169, %v6168
    %v7384 = vpack.c.b16 %v6171, %v6170
    %v7385 = vpack.c.b16 %v6173, %v6172
    %v7386 = vpack.c.b16 %v6175, %v6174
    %v7387 = vpack.c.b16 %v6177, %v6176
    %v7388 = vpack.c.b16 %v6179, %v6178
    %v7389 = vpack.c.b16 %v6181, %v6180
    %v7390 = vpack.c.b16 %v6183, %v6182
    %v7391 = vpack.c.b16 %v6185, %v6184
    %v7392 = vpack.c.b16 %v6187, %v6186
    %v7393 = vpack.c.b16 %v6189, %v6188
    %v7394 = vpack.c.b16 %v6191, %v6190
    %v7395 = vpack.c.b16 %v6193, %v6192
    %v7396 = vpack.c.b16 %v6195, %v6194
    %v7397 = vpack.c.b16 %v6197, %v6196
    %v7398 = vpack.c.b16 %v6199, %v6198
    %v7399 = vpack.c.b16 %v6201, %v6200
    %v7400 = vpack.c.b16 %v6203, %v6202
    %v7401 = vpack.c.b16 %v6205, %v6204
    %v7402 = vpack.c.b16 %v6207, %v6206
    %v7403 = vpack.c.b16 %v6209, %v6208
    %v7404 = vpack.c.b16 %v6211, %v6210
    %v7405 = vpack.c.b16 %v6213, %v6212
    %v7406 = vpack.c.b16 %v6215, %v6214
    %v7407 = vpack.c.b16 %v6217, %v6216
    %v7408 = vpack.c.b16 %v6219, %v6218
    %v7409 = vpack.c.b16 %v6221, %v6220
    %v7410 = vpack.c.b16 %v6223, %v6222
    %v7411 = vpack.c.b16 %v6225, %v6224
    %v7412 = vpack.c.b16 %v6227, %v6226
    %v7413 = vpack.c.b16 %v6229, %v6228
    %v7414 = vpack.c.b16 %v6231, %v6230
    %v7415 = vpack.c.b16 %v6233, %v6232
    %v7416 = vpack.c.b16 %v6235, %v6234
    %v7417 = vpack.c.b16 %v6237, %v6236
    %v7418 = vpack.c.b16 %v6239, %v6238
    %v7419 = vpack.c.b16 %v6241, %v6240
    %v7420 = vpack.c.b16 %v6243, %v6242
    %v7421 = vpack.c.b16 %v6245, %v6244
    %v7422 = vpack.c.b16 %v6247, %v6246
    %v7423 = vpack.c.b16 %v6249, %v6248
    %v7424 = vpack.c.b16 %v6251, %v6250
    %v7425 = vpack.c.b16 %v6253, %v6252
    %v7426 = vpack.c.b16 %v6255, %v6254
    %v7427 = vpack.c.b16 %v6257, %v6256
    %v7428 = vpack.c.b16 %v6259, %v6258
    %v7429 = vpack.c.b16 %v6261, %v6260
    %v7430 = vpack.c.b16 %v6263, %v6262
    %v7431 = vpack.c.b16 %v6265, %v6264
    %v7432 = vpack.c.b16 %v6267, %v6266
    %v7433 = vpack.c.b16 %v6269, %v6268
    %v7434 = vpack.c.b16 %v6271, %v6270
    %v7435 = vpack.c.b16 %v6273, %v6272
    %v7436 = vpack.c.b16 %v6275, %v6274
    %v7437 = vpack.c.b16 %v6277, %v6276
    %v7438 = vpack.c.b16 %v6279, %v6278
    %v7439 = vpack.c.b16 %v6281, %v6280
    %v7440 = vpack.c.b16 %v6283, %v6282
    %v7441 = vpack.c.b16 %v6285, %v6284
    %v7442 = vpack.c.b16 %v6287, %v6286
    %v7443 = vpack.c.b16 %v6289, %v6288
    %v7444 = vpack.c.b16 %v6291, %v6290
    %v7445 = vpack.c.b16 %v6293, %v6292
    %v7446 = vpack.c.b16 %v6295, %v6294
    %v7447 = vpack.c.b16 %v6297, %v6296
    %v7448 = vpack.c.b16 %v6299, %v6298
    %v7449 = vpack.c.b16 %v6301, %v6300
    %v7450 = vpack.c.b16 %v6303, %v6302
    %v7451 = vpack.c.b16 %v6305, %v6304
    %v7452 = vpack.c.b16 %v6307, %v6306
    %v7453 = vpack.c.b16 %v6309, %v6308
    %v7454 = vpack.c.b16 %v6311, %v6310
    %v7455 = vpack.c.b16 %v6313, %v6312
    %v7456 = vpack.c.b16 %v6315, %v6314
    %v7457 = vpack.c.b16 %v6317, %v6316
    %v7458 = vpack.c.b16 %v6319, %v6318
    %v7459 = vpack.c.b16 %v6321, %v6320
    %v7460 = vpack.c.b16 %v6323, %v6322
    %v7461 = vpack.c.b16 %v6325, %v6324
    %v7462 = vpack.c.b16 %v6327, %v6326
    %v7463 = vpack.c.b16 %v6329, %v6328
    %v7464 = vpack.c.b16 %v6331, %v6330
    %v7465 = vpack.c.b16 %v6333, %v6332
    %v7466 = vpack.c.b16 %v6335, %v6334
    %v7467 = vpack.c.b16 %v6337, %v6336
    %v7468 = vpack.c.b16 %v6339, %v6338
    %v7469 = vpack.c.b16 %v6341, %v6340
    %v7470 = vpack.c.b16 %v6343, %v6342
    %v7471 = vpack.c.b16 %v6345, %v6344
    %v7472 = vpack.c.b16 %v6347, %v6346
    %v7473 = vpack.c.b16 %v6349, %v6348
    %v7474 = vpack.c.b16 %v6351, %v6350
    %v7475 = vpack.c.b16 %v6353, %v6352
    %v7476 = vpack.c.b16 %v6355, %v6354
    %v7477 = vpack.c.b16 %v6357, %v6356
    %v7478 = vpack.c.b16 %v6359, %v6358
    %v7479 = vpack.c.b16 %v6361, %v6360
    %v7480 = vpack.c.b16 %v6363, %v6362
    %v7481 = vpack.c.b16 %v6365, %v6364
    %v7482 = vpack.c.b16 %v6367, %v6366
    %v7483 = vpack.c.b16 %v6369, %v6368
    %v7484 = vpack.c.b16 %v6371, %v6370
    %v7485 = vpack.c.b16 %v6373, %v6372
    %v7486 = vpack.c.b16 %v6375, %v6374
    %v7487 = vpack.c.b16 %v6377, %v6376
    %v7488 = vpack.c.b16 %v6379, %v6378
    %v7489 = vpack.c.b16 %v6381, %v6380
    %v7490 = vpack.c.b16 %v6383, %v6382
    %v7491 = vpack.c.b16 %v6385, %v6384
    %v7492 = vpack.c.b16 %v6387, %v6386
    %v7493 = vpack.c.b16 %v6389, %v6388
    %v7494 = vpack.c.b16 %v6391, %v6390
    %v7495 = vpack.c.b16 %v6393, %v6392
    %v7496 = vpack.c.b16 %v6395, %v6394
    %v7497 = vpack.c.b16 %v6397, %v6396
    %v7498 = vpack.c.b16 %v6399, %v6398
    %v7499 = vpack.c.b16 %v6401, %v6400
    %v7500 = vpack.c.b16 %v6403, %v6402
    %v7501 = vpack.c.b16 %v6405, %v6404
    %v7502 = vpack.c.b16 %v6407, %v6406
    %v7503 = vpack.c.b16 %v6409, %v6408
    %v7504 = vpack.c.b16 %v6411, %v6410
    %v7505 = vpack.c.b16 %v6413, %v6412
    %v7506 = vpack.c.b16 %v6415, %v6414
    %v7507 = vpack.c.b16 %v6417, %v6416
    %v7508 = vpack.c.b16 %v6419, %v6418
    %v7509 = vpack.c.b16 %v6421, %v6420
    %v7510 = vpack.c.b16 %v6423, %v6422
    %v7511 = vpack.c.b16 %v6425, %v6424
    %v7512 = vpack.c.b16 %v6427, %v6426
    %v7513 = vpack.c.b16 %v6429, %v6428
    %v7514 = vpack.c.b16 %v6431, %v6430
    %v7515 = vpack.c.b16 %v6433, %v6432
    %v7516 = vpack.c.b16 %v6435, %v6434
    %v7517 = vpack.c.b16 %v6437, %v6436
    %v7518 = vpack.c.b16 %v6439, %v6438
    %v7519 = vpack.c.b16 %v6441, %v6440
    %v7520 = vpack.c.b16 %v6443, %v6442
    %v7521 = vpack.c.b16 %v6445, %v6444
    %v7522 = vpack.c.b16 %v6447, %v6446
    %v7523 = vpack.c.b16 %v6449, %v6448
    %v7524 = vpack.c.b16 %v6451, %v6450
    %v7525 = vpack.c.b16 %v6453, %v6452
    %v7526 = vpack.c.b16 %v6455, %v6454
    %v7527 = vpack.c.b16 %v6457, %v6456
    %v7528 = vpack.c.b16 %v6459, %v6458
    %v7529 = vpack.c.b16 %v6461, %v6460
    %v7530 = vpack.c.b16 %v6463, %v6462
    %v7531 = vpack.c.b16 %v6465, %v6464
    %v7532 = vpack.c.b16 %v6467, %v6466
    %v7533 = vpack.c.b16 %v6469, %v6468
    %v7534 = vpack.c.b16 %v6471, %v6470
    %v7535 = vpack.c.b16 %v6473, %v6472
    %v7536 = vpack.c.b16 %v6475, %v6474
    %v7537 = vpack.c.b16 %v6477, %v6476
    %v7538 = vpack.c.b16 %v6479, %v6478
    %v7539 = vpack.c.b16 %v6481, %v6480
    %v7540 = vpack.c.b16 %v6483, %v6482
    %v7541 = vpack.c.b16 %v6485, %v6484
    %v7542 = vpack.c.b16 %v6487, %v6486
    %v7543 = vpack.c.b16 %v6489, %v6488
    %v7544 = vpack.c.b16 %v6491, %v6490
    %v7545 = vpack.c.b16 %v6493, %v6492
    %v7546 = vpack.c.b16 %v6495, %v6494
    %v7547 = vpack.c.b16 %v6497, %v6496
    %v7548 = vpack.c.b16 %v6499, %v6498
    %v7549 = vpack.c.b16 %v6501, %v6500
    %v7550 = vpack.c.b16 %v6503, %v6502
    %v7551 = vpack.c.b16 %v6505, %v6504
    %v7552 = vpack.c.b16 %v6507, %v6506
    %v7553 = vpack.c.b16 %v6509, %v6508
    %v7554 = vpack.c.b16 %v6511, %v6510
    %v7555 = vpack.c.b16 %v6513, %v6512
    %v7556 = vpack.c.b16 %v6515, %v6514
    %v7557 = vpack.c.b16 %v6517, %v6516
    %v7558 = vpack.c.b16 %v6519, %v6518
    %v7559 = vpack.c.b16 %v6521, %v6520
    %v7560 = vpack.c.b16 %v6523, %v6522
    %v7561 = vpack.c.b16 %v6525, %v6524
    %v7562 = vpack.c.b16 %v6527, %v6526
    %v7563 = vpack.c.b16 %v6529, %v6528
    %v7564 = vpack.c.b16 %v6531, %v6530
    %v7565 = vpack.c.b16 %v6533, %v6532
    %v7566 = vpack.c.b16 %v6535, %v6534
    %v7567 = vpack.c.b16 %v6537, %v6536
    %v7568 = vpack.c.b16 %v6539, %v6538
    %v7569 = vpack.c.b16 %v6541, %v6540
    %v7570 = vpack.c.b16 %v6543, %v6542
    %v7571 = vpack.c.b16 %v6545, %v6544
    %v7572 = vpack.c.b16 %v6547, %v6546
    %v7573 = vpack.c.b16 %v6549, %v6548
    %v7574 = vpack.c.b16 %v6551, %v6550
    %v7575 = vpack.c.b16 %v6553, %v6552
    %v7576 = vpack.c.b16 %v6555, %v6554
    %v7577 = vpack.c.b16 %v6557, %v6556
    %v7578 = vpack.c.b16 %v6559, %v6558
    %v7579 = vpack.c.b16 %v6561, %v6560
    %v7580 = vpack.c.b16 %v6563, %v6562
    %v7581 = vpack.c.b16 %v6565, %v6564
    %v7582 = vpack.c.b16 %v6567, %v6566
    %v7583 = vpack.c.b16 %v6569, %v6568
    %v7584 = vpack.c.b16 %v6571, %v6570
    %v7585 = vpack.c.b16 %v6573, %v6572
    %v7586 = vpack.c.b16 %v6575, %v6574
    %v7587 = vpack.c.b16 %v6577, %v6576
    %v7588 = vpack.c.b16 %v6579, %v6578
    %v7589 = vpack.c.b16 %v6581, %v6580
    %v7590 = vpack.c.b16 %v6583, %v6582
    %v7591 = vpack.c.b16 %v6585, %v6584
    %v7592 = vpack.c.b16 %v6587, %v6586
    %v7593 = vpack.c.b16 %v6589, %v6588
    %v7594 = vpack.c.b16 %v6591, %v6590
    %v7595 = vpack.c.b16 %v6593, %v6592
    %v7596 = vpack.c.b16 %v6595, %v6594
    %v7597 = vpack.c.b16 %v6597, %v6596
    %8598 = vmatpush.bf16.msra.mxu0 %v6605
    %8599 = vmatpush.bf16.msra.mxu0 %v6604
    %8600 = vmatpush.bf16.msra.mxu0 %v6603
    %8601 = vmatpush.bf16.msra.mxu0 %v6602
    %8602 = vmatpush.bf16.msra.mxu0 %v6601
    %8603 = vmatpush.bf16.msra.mxu0 %v6600
    %8604 = vmatpush.bf16.msra.mxu0 %v6599
    %8605 = vmatpush.bf16.msra.mxu0 %v6598
    %8606 = vmatmul.bf16.gmra.mxu0 %v2348
    %v8607 = vpop.f32.mrf.mxu0
    %v8608 = vadd.f32 %v2158, %v8607
    %v8609 = vpop.f32.mrf.mxu0
    %8610 = vdwg.mxu0
    %8611 = vmatpush.bf16.msra.mxu0 %v6613
    %8612 = vmatpush.bf16.msra.mxu0 %v6612
    %8613 = vmatpush.bf16.msra.mxu0 %v6611
    %8614 = vmatpush.bf16.msra.mxu0 %v6610
    %8615 = vmatpush.bf16.msra.mxu0 %v6609
    %8616 = vmatpush.bf16.msra.mxu0 %v6608
    %8617 = vmatpush.bf16.msra.mxu0 %v6607
    %8618 = vmatpush.bf16.msra.mxu0 %v6606
    %8619 = vmatmul.bf16.gmra.mxu0 %v2349
    %v8620 = vpop.f32.mrf.mxu0
    %v8621 = vadd.f32 %v8608, %v8620
    %v8622 = vpop.f32.mrf.mxu0
    %8623 = vdwg.mxu0
    %8624 = vmatpush.bf16.msra.mxu0 %v6621
    %8625 = vmatpush.bf16.msra.mxu0 %v6620
    %8626 = vmatpush.bf16.msra.mxu0 %v6619
    %8627 = vmatpush.bf16.msra.mxu0 %v6618
    %8628 = vmatpush.bf16.msra.mxu0 %v6617
    %8629 = vmatpush.bf16.msra.mxu0 %v6616
    %8630 = vmatpush.bf16.msra.mxu0 %v6615
    %8631 = vmatpush.bf16.msra.mxu0 %v6614
    %8632 = vmatmul.bf16.gmra.mxu0 %v2350
    %v8633 = vpop.f32.mrf.mxu0
    %v8634 = vadd.f32 %v8621, %v8633
    %v8635 = vpop.f32.mrf.mxu0
    %8636 = vdwg.mxu0
    %8637 = vmatpush.bf16.msra.mxu0 %v6629
    %8638 = vmatpush.bf16.msra.mxu0 %v6628
    %8639 = vmatpush.bf16.msra.mxu0 %v6627
    %8640 = vmatpush.bf16.msra.mxu0 %v6626
    %8641 = vmatpush.bf16.msra.mxu0 %v6625
    %8642 = vmatpush.bf16.msra.mxu0 %v6624
    %8643 = vmatpush.bf16.msra.mxu0 %v6623
    %8644 = vmatpush.bf16.msra.mxu0 %v6622
    %8645 = vmatmul.bf16.gmra.mxu0 %v2351
    %v8646 = vpop.f32.mrf.mxu0
    %v8647 = vadd.f32 %v8634, %v8646
    %v8648 = vpop.f32.mrf.mxu0
    %8649 = vdwg.mxu0
    %8650 = vmatpush.bf16.msra.mxu0 %v6637
    %8651 = vmatpush.bf16.msra.mxu0 %v6636
    %8652 = vmatpush.bf16.msra.mxu0 %v6635
    %8653 = vmatpush.bf16.msra.mxu0 %v6634
    %8654 = vmatpush.bf16.msra.mxu0 %v6633
    %8655 = vmatpush.bf16.msra.mxu0 %v6632
    %8656 = vmatpush.bf16.msra.mxu0 %v6631
    %8657 = vmatpush.bf16.msra.mxu0 %v6630
    %8658 = vmatmul.bf16.gmra.mxu0 %v2352
    %v8659 = vpop.f32.mrf.mxu0
    %v8660 = vadd.f32 %v8647, %v8659
    %v8661 = vpop.f32.mrf.mxu0
    %8662 = vdwg.mxu0
    %8663 = vmatpush.bf16.msra.mxu0 %v6645
    %8664 = vmatpush.bf16.msra.mxu0 %v6644
    %8665 = vmatpush.bf16.msra.mxu0 %v6643
    %8666 = vmatpush.bf16.msra.mxu0 %v6642
    %8667 = vmatpush.bf16.msra.mxu0 %v6641
    %8668 = vmatpush.bf16.msra.mxu0 %v6640
    %8669 = vmatpush.bf16.msra.mxu0 %v6639
    %8670 = vmatpush.bf16.msra.mxu0 %v6638
    %8671 = vmatmul.bf16.gmra.mxu0 %v2353
    %v8672 = vpop.f32.mrf.mxu0
    %v8673 = vadd.f32 %v8660, %v8672
    %v8674 = vpop.f32.mrf.mxu0
    %8675 = vdwg.mxu0
    %8676 = vmatpush.bf16.msra.mxu0 %v6653
    %8677 = vmatpush.bf16.msra.mxu0 %v6652
    %8678 = vmatpush.bf16.msra.mxu0 %v6651
    %8679 = vmatpush.bf16.msra.mxu0 %v6650
    %8680 = vmatpush.bf16.msra.mxu0 %v6649
    %8681 = vmatpush.bf16.msra.mxu0 %v6648
    %8682 = vmatpush.bf16.msra.mxu0 %v6647
    %8683 = vmatpush.bf16.msra.mxu0 %v6646
    %8684 = vmatmul.bf16.gmra.mxu0 %v2354
    %v8685 = vpop.f32.mrf.mxu0
    %v8686 = vadd.f32 %v8673, %v8685
    %v8687 = vpop.f32.mrf.mxu0
    %8688 = vdwg.mxu0
    %8689 = vmatpush.bf16.msra.mxu0 %v6661
    %8690 = vmatpush.bf16.msra.mxu0 %v6660
    %8691 = vmatpush.bf16.msra.mxu0 %v6659
    %8692 = vmatpush.bf16.msra.mxu0 %v6658
    %8693 = vmatpush.bf16.msra.mxu0 %v6657
    %8694 = vmatpush.bf16.msra.mxu0 %v6656
    %8695 = vmatpush.bf16.msra.mxu0 %v6655
    %8696 = vmatpush.bf16.msra.mxu0 %v6654
    %8697 = vmatmul.bf16.gmra.mxu0 %v2355
    %v8698 = vpop.f32.mrf.mxu0
    %v8699 = vadd.f32 %v8686, %v8698
    %v8700 = vpop.f32.mrf.mxu0
    %8701 = vdwg.mxu0
    %8702 = vmatpush.bf16.msra.mxu0 %v6669
    %8703 = vmatpush.bf16.msra.mxu0 %v6668
    %8704 = vmatpush.bf16.msra.mxu0 %v6667
    %8705 = vmatpush.bf16.msra.mxu0 %v6666
    %8706 = vmatpush.bf16.msra.mxu0 %v6665
    %8707 = vmatpush.bf16.msra.mxu0 %v6664
    %8708 = vmatpush.bf16.msra.mxu0 %v6663
    %8709 = vmatpush.bf16.msra.mxu0 %v6662
    %8710 = vmatmul.bf16.gmra.mxu0 %v2356
    %v8711 = vpop.f32.mrf.mxu0
    %v8712 = vadd.f32 %v8699, %v8711
    %v8713 = vpop.f32.mrf.mxu0
    %8714 = vdwg.mxu0
    %8715 = vmatpush.bf16.msra.mxu0 %v6677
    %8716 = vmatpush.bf16.msra.mxu0 %v6676
    %8717 = vmatpush.bf16.msra.mxu0 %v6675
    %8718 = vmatpush.bf16.msra.mxu0 %v6674
    %8719 = vmatpush.bf16.msra.mxu0 %v6673
    %8720 = vmatpush.bf16.msra.mxu0 %v6672
    %8721 = vmatpush.bf16.msra.mxu0 %v6671
    %8722 = vmatpush.bf16.msra.mxu0 %v6670
    %8723 = vmatmul.bf16.gmra.mxu0 %v2357
    %v8724 = vpop.f32.mrf.mxu0
    %v8725 = vadd.f32 %v8712, %v8724
    %v8726 = vpop.f32.mrf.mxu0
    %8727 = vdwg.mxu0
    %8728 = vmatpush.bf16.msra.mxu0 %v6685
    %8729 = vmatpush.bf16.msra.mxu0 %v6684
    %8730 = vmatpush.bf16.msra.mxu0 %v6683
    %8731 = vmatpush.bf16.msra.mxu0 %v6682
    %8732 = vmatpush.bf16.msra.mxu0 %v6681
    %8733 = vmatpush.bf16.msra.mxu0 %v6680
    %8734 = vmatpush.bf16.msra.mxu0 %v6679
    %8735 = vmatpush.bf16.msra.mxu0 %v6678
    %8736 = vmatmul.bf16.gmra.mxu0 %v2358
    %v8737 = vpop.f32.mrf.mxu0
    %v8738 = vadd.f32 %v8725, %v8737
    %v8739 = vpop.f32.mrf.mxu0
    %8740 = vdwg.mxu0
    %8741 = vmatpush.bf16.msra.mxu0 %v6693
    %8742 = vmatpush.bf16.msra.mxu0 %v6692
    %8743 = vmatpush.bf16.msra.mxu0 %v6691
    %8744 = vmatpush.bf16.msra.mxu0 %v6690
    %8745 = vmatpush.bf16.msra.mxu0 %v6689
    %8746 = vmatpush.bf16.msra.mxu0 %v6688
    %8747 = vmatpush.bf16.msra.mxu0 %v6687
    %8748 = vmatpush.bf16.msra.mxu0 %v6686
    %8749 = vmatmul.bf16.gmra.mxu0 %v2359
    %v8750 = vpop.f32.mrf.mxu0
    %v8751 = vadd.f32 %v8738, %v8750
    %v8752 = vpop.f32.mrf.mxu0
    %8753 = vdwg.mxu0
    %8754 = vmatpush.bf16.msra.mxu0 %v6701
    %8755 = vmatpush.bf16.msra.mxu0 %v6700
    %8756 = vmatpush.bf16.msra.mxu0 %v6699
    %8757 = vmatpush.bf16.msra.mxu0 %v6698
    %8758 = vmatpush.bf16.msra.mxu0 %v6697
    %8759 = vmatpush.bf16.msra.mxu0 %v6696
    %8760 = vmatpush.bf16.msra.mxu0 %v6695
    %8761 = vmatpush.bf16.msra.mxu0 %v6694
    %8762 = vmatmul.bf16.gmra.mxu0 %v2360
    %v8763 = vpop.f32.mrf.mxu0
    %v8764 = vadd.f32 %v8751, %v8763
    %v8765 = vpop.f32.mrf.mxu0
    %8766 = vdwg.mxu0
    %8767 = vmatpush.bf16.msra.mxu0 %v6709
    %8768 = vmatpush.bf16.msra.mxu0 %v6708
    %8769 = vmatpush.bf16.msra.mxu0 %v6707
    %8770 = vmatpush.bf16.msra.mxu0 %v6706
    %8771 = vmatpush.bf16.msra.mxu0 %v6705
    %8772 = vmatpush.bf16.msra.mxu0 %v6704
    %8773 = vmatpush.bf16.msra.mxu0 %v6703
    %8774 = vmatpush.bf16.msra.mxu0 %v6702
    %8775 = vmatmul.bf16.gmra.mxu0 %v2361
    %v8776 = vpop.f32.mrf.mxu0
    %v8777 = vadd.f32 %v8764, %v8776
    %v8778 = vpop.f32.mrf.mxu0
    %8779 = vdwg.mxu0
    %8780 = vmatpush.bf16.msra.mxu0 %v6717
    %8781 = vmatpush.bf16.msra.mxu0 %v6716
    %8782 = vmatpush.bf16.msra.mxu0 %v6715
    %8783 = vmatpush.bf16.msra.mxu0 %v6714
    %8784 = vmatpush.bf16.msra.mxu0 %v6713
    %8785 = vmatpush.bf16.msra.mxu0 %v6712
    %8786 = vmatpush.bf16.msra.mxu0 %v6711
    %8787 = vmatpush.bf16.msra.mxu0 %v6710
    %8788 = vmatmul.bf16.gmra.mxu0 %v2362
    %v8789 = vpop.f32.mrf.mxu0
    %v8790 = vadd.f32 %v8777, %v8789
    %v8791 = vpop.f32.mrf.mxu0
    %8792 = vdwg.mxu0
    %8793 = vmatpush.bf16.msra.mxu0 %v6725
    %8794 = vmatpush.bf16.msra.mxu0 %v6724
    %8795 = vmatpush.bf16.msra.mxu0 %v6723
    %8796 = vmatpush.bf16.msra.mxu0 %v6722
    %8797 = vmatpush.bf16.msra.mxu0 %v6721
    %8798 = vmatpush.bf16.msra.mxu0 %v6720
    %8799 = vmatpush.bf16.msra.mxu0 %v6719
    %8800 = vmatpush.bf16.msra.mxu0 %v6718
    %8801 = vmatmul.bf16.gmra.mxu0 %v2363
    %v8802 = vpop.f32.mrf.mxu0
    %v8803 = vadd.f32 %v8790, %v8802
    %v8804 = vpop.f32.mrf.mxu0
    %8805 = vdwg.mxu0
    %8806 = vmatpush.bf16.msra.mxu0 %v6733
    %8807 = vmatpush.bf16.msra.mxu0 %v6732
    %8808 = vmatpush.bf16.msra.mxu0 %v6731
    %8809 = vmatpush.bf16.msra.mxu0 %v6730
    %8810 = vmatpush.bf16.msra.mxu0 %v6729
    %8811 = vmatpush.bf16.msra.mxu0 %v6728
    %8812 = vmatpush.bf16.msra.mxu0 %v6727
    %8813 = vmatpush.bf16.msra.mxu0 %v6726
    %8814 = vmatmul.bf16.gmra.mxu0 %v2364
    %v8815 = vpop.f32.mrf.mxu0
    %v8816 = vadd.f32 %v8803, %v8815
    %v8817 = vpop.f32.mrf.mxu0
    %8818 = vdwg.mxu0
    %8819 = vmatpush.bf16.msra.mxu0 %v6741
    %8820 = vmatpush.bf16.msra.mxu0 %v6740
    %8821 = vmatpush.bf16.msra.mxu0 %v6739
    %8822 = vmatpush.bf16.msra.mxu0 %v6738
    %8823 = vmatpush.bf16.msra.mxu0 %v6737
    %8824 = vmatpush.bf16.msra.mxu0 %v6736
    %8825 = vmatpush.bf16.msra.mxu0 %v6735
    %8826 = vmatpush.bf16.msra.mxu0 %v6734
    %8827 = vmatmul.bf16.gmra.mxu0 %v2365
    %v8828 = vpop.f32.mrf.mxu0
    %v8829 = vadd.f32 %v8816, %v8828
    %v8830 = vpop.f32.mrf.mxu0
    %8831 = vdwg.mxu0
    %8832 = vmatpush.bf16.msra.mxu0 %v6749
    %8833 = vmatpush.bf16.msra.mxu0 %v6748
    %8834 = vmatpush.bf16.msra.mxu0 %v6747
    %8835 = vmatpush.bf16.msra.mxu0 %v6746
    %8836 = vmatpush.bf16.msra.mxu0 %v6745
    %8837 = vmatpush.bf16.msra.mxu0 %v6744
    %8838 = vmatpush.bf16.msra.mxu0 %v6743
    %8839 = vmatpush.bf16.msra.mxu0 %v6742
    %8840 = vmatmul.bf16.gmra.mxu0 %v2366
    %v8841 = vpop.f32.mrf.mxu0
    %v8842 = vadd.f32 %v8829, %v8841
    %v8843 = vpop.f32.mrf.mxu0
    %8844 = vdwg.mxu0
    %8845 = vmatpush.bf16.msra.mxu0 %v6757
    %8846 = vmatpush.bf16.msra.mxu0 %v6756
    %8847 = vmatpush.bf16.msra.mxu0 %v6755
    %8848 = vmatpush.bf16.msra.mxu0 %v6754
    %8849 = vmatpush.bf16.msra.mxu0 %v6753
    %8850 = vmatpush.bf16.msra.mxu0 %v6752
    %8851 = vmatpush.bf16.msra.mxu0 %v6751
    %8852 = vmatpush.bf16.msra.mxu0 %v6750
    %8853 = vmatmul.bf16.gmra.mxu0 %v2367
    %v8854 = vpop.f32.mrf.mxu0
    %v8855 = vadd.f32 %v8842, %v8854
    %v8856 = vpop.f32.mrf.mxu0
    %8857 = vdwg.mxu0
    %8858 = vmatpush.bf16.msra.mxu0 %v6765
    %8859 = vmatpush.bf16.msra.mxu0 %v6764
    %8860 = vmatpush.bf16.msra.mxu0 %v6763
    %8861 = vmatpush.bf16.msra.mxu0 %v6762
    %8862 = vmatpush.bf16.msra.mxu0 %v6761
    %8863 = vmatpush.bf16.msra.mxu0 %v6760
    %8864 = vmatpush.bf16.msra.mxu0 %v6759
    %8865 = vmatpush.bf16.msra.mxu0 %v6758
    %8866 = vmatmul.bf16.gmra.mxu0 %v2368
    %v8867 = vpop.f32.mrf.mxu0
    %v8868 = vadd.f32 %v8855, %v8867
    %v8869 = vpop.f32.mrf.mxu0
    %8870 = vdwg.mxu0
    %8871 = vmatpush.bf16.msra.mxu0 %v6773
    %8872 = vmatpush.bf16.msra.mxu0 %v6772
    %8873 = vmatpush.bf16.msra.mxu0 %v6771
    %8874 = vmatpush.bf16.msra.mxu0 %v6770
    %8875 = vmatpush.bf16.msra.mxu0 %v6769
    %8876 = vmatpush.bf16.msra.mxu0 %v6768
    %8877 = vmatpush.bf16.msra.mxu0 %v6767
    %8878 = vmatpush.bf16.msra.mxu0 %v6766
    %8879 = vmatmul.bf16.gmra.mxu0 %v2369
    %v8880 = vpop.f32.mrf.mxu0
    %v8881 = vadd.f32 %v8868, %v8880
    %v8882 = vpop.f32.mrf.mxu0
    %8883 = vdwg.mxu0
    %8884 = vmatpush.bf16.msra.mxu0 %v6781
    %8885 = vmatpush.bf16.msra.mxu0 %v6780
    %8886 = vmatpush.bf16.msra.mxu0 %v6779
    %8887 = vmatpush.bf16.msra.mxu0 %v6778
    %8888 = vmatpush.bf16.msra.mxu0 %v6777
    %8889 = vmatpush.bf16.msra.mxu0 %v6776
    %8890 = vmatpush.bf16.msra.mxu0 %v6775
    %8891 = vmatpush.bf16.msra.mxu0 %v6774
    %8892 = vmatmul.bf16.gmra.mxu0 %v2370
    %v8893 = vpop.f32.mrf.mxu0
    %v8894 = vadd.f32 %v8881, %v8893
    %v8895 = vpop.f32.mrf.mxu0
    %8896 = vdwg.mxu0
    %8897 = vmatpush.bf16.msra.mxu0 %v6789
    %8898 = vmatpush.bf16.msra.mxu0 %v6788
    %8899 = vmatpush.bf16.msra.mxu0 %v6787
    %8900 = vmatpush.bf16.msra.mxu0 %v6786
    %8901 = vmatpush.bf16.msra.mxu0 %v6785
    %8902 = vmatpush.bf16.msra.mxu0 %v6784
    %8903 = vmatpush.bf16.msra.mxu0 %v6783
    %8904 = vmatpush.bf16.msra.mxu0 %v6782
    %8905 = vmatmul.bf16.gmra.mxu0 %v2371
    %v8906 = vpop.f32.mrf.mxu0
    %v8907 = vadd.f32 %v8894, %v8906
    %v8908 = vpop.f32.mrf.mxu0
    %8909 = vdwg.mxu0
    %8910 = vmatpush.bf16.msra.mxu0 %v6797
    %8911 = vmatpush.bf16.msra.mxu0 %v6796
    %8912 = vmatpush.bf16.msra.mxu0 %v6795
    %8913 = vmatpush.bf16.msra.mxu0 %v6794
    %8914 = vmatpush.bf16.msra.mxu0 %v6793
    %8915 = vmatpush.bf16.msra.mxu0 %v6792
    %8916 = vmatpush.bf16.msra.mxu0 %v6791
    %8917 = vmatpush.bf16.msra.mxu0 %v6790
    %8918 = vmatmul.bf16.gmra.mxu0 %v2372
    %v8919 = vpop.f32.mrf.mxu0
    %v8920 = vadd.f32 %v8907, %v8919
    %v8921 = vpop.f32.mrf.mxu0
    %8922 = vdwg.mxu0
    %8923 = vmatpush.bf16.msra.mxu0 %v6805
    %8924 = vmatpush.bf16.msra.mxu0 %v6804
    %8925 = vmatpush.bf16.msra.mxu0 %v6803
    %8926 = vmatpush.bf16.msra.mxu0 %v6802
    %8927 = vmatpush.bf16.msra.mxu0 %v6801
    %8928 = vmatpush.bf16.msra.mxu0 %v6800
    %8929 = vmatpush.bf16.msra.mxu0 %v6799
    %8930 = vmatpush.bf16.msra.mxu0 %v6798
    %8931 = vmatmul.bf16.gmra.mxu0 %v2373
    %v8932 = vpop.f32.mrf.mxu0
    %v8933 = vadd.f32 %v8920, %v8932
    %v8934 = vpop.f32.mrf.mxu0
    %8935 = vdwg.mxu0
    %8936 = vmatpush.bf16.msra.mxu0 %v6813
    %8937 = vmatpush.bf16.msra.mxu0 %v6812
    %8938 = vmatpush.bf16.msra.mxu0 %v6811
    %8939 = vmatpush.bf16.msra.mxu0 %v6810
    %8940 = vmatpush.bf16.msra.mxu0 %v6809
    %8941 = vmatpush.bf16.msra.mxu0 %v6808
    %8942 = vmatpush.bf16.msra.mxu0 %v6807
    %8943 = vmatpush.bf16.msra.mxu0 %v6806
    %8944 = vmatmul.bf16.gmra.mxu0 %v2374
    %v8945 = vpop.f32.mrf.mxu0
    %v8946 = vadd.f32 %v8933, %v8945
    %v8947 = vpop.f32.mrf.mxu0
    %8948 = vdwg.mxu0
    %8949 = vmatpush.bf16.msra.mxu0 %v6821
    %8950 = vmatpush.bf16.msra.mxu0 %v6820
    %8951 = vmatpush.bf16.msra.mxu0 %v6819
    %8952 = vmatpush.bf16.msra.mxu0 %v6818
    %8953 = vmatpush.bf16.msra.mxu0 %v6817
    %8954 = vmatpush.bf16.msra.mxu0 %v6816
    %8955 = vmatpush.bf16.msra.mxu0 %v6815
    %8956 = vmatpush.bf16.msra.mxu0 %v6814
    %8957 = vmatmul.bf16.gmra.mxu0 %v2375
    %v8958 = vpop.f32.mrf.mxu0
    %v8959 = vadd.f32 %v8946, %v8958
    %v8960 = vpop.f32.mrf.mxu0
    %8961 = vdwg.mxu0
    %8962 = vmatpush.bf16.msra.mxu0 %v6829
    %8963 = vmatpush.bf16.msra.mxu0 %v6828
    %8964 = vmatpush.bf16.msra.mxu0 %v6827
    %8965 = vmatpush.bf16.msra.mxu0 %v6826
    %8966 = vmatpush.bf16.msra.mxu0 %v6825
    %8967 = vmatpush.bf16.msra.mxu0 %v6824
    %8968 = vmatpush.bf16.msra.mxu0 %v6823
    %8969 = vmatpush.bf16.msra.mxu0 %v6822
    %8970 = vmatmul.bf16.gmra.mxu0 %v2376
    %v8971 = vpop.f32.mrf.mxu0
    %v8972 = vadd.f32 %v8959, %v8971
    %v8973 = vpop.f32.mrf.mxu0
    %8974 = vdwg.mxu0
    %8975 = vmatpush.bf16.msra.mxu0 %v6837
    %8976 = vmatpush.bf16.msra.mxu0 %v6836
    %8977 = vmatpush.bf16.msra.mxu0 %v6835
    %8978 = vmatpush.bf16.msra.mxu0 %v6834
    %8979 = vmatpush.bf16.msra.mxu0 %v6833
    %8980 = vmatpush.bf16.msra.mxu0 %v6832
    %8981 = vmatpush.bf16.msra.mxu0 %v6831
    %8982 = vmatpush.bf16.msra.mxu0 %v6830
    %8983 = vmatmul.bf16.gmra.mxu0 %v2377
    %v8984 = vpop.f32.mrf.mxu0
    %v8985 = vadd.f32 %v8972, %v8984
    %v8986 = vpop.f32.mrf.mxu0
    %8987 = vdwg.mxu0
    %8988 = vmatpush.bf16.msra.mxu0 %v6845
    %8989 = vmatpush.bf16.msra.mxu0 %v6844
    %8990 = vmatpush.bf16.msra.mxu0 %v6843
    %8991 = vmatpush.bf16.msra.mxu0 %v6842
    %8992 = vmatpush.bf16.msra.mxu0 %v6841
    %8993 = vmatpush.bf16.msra.mxu0 %v6840
    %8994 = vmatpush.bf16.msra.mxu0 %v6839
    %8995 = vmatpush.bf16.msra.mxu0 %v6838
    %8996 = vmatmul.bf16.gmra.mxu0 %v2378
    %v8997 = vpop.f32.mrf.mxu0
    %v8998 = vadd.f32 %v8985, %v8997
    %v8999 = vpop.f32.mrf.mxu0
    %9000 = vdwg.mxu0
    %9001 = vmatpush.bf16.msra.mxu0 %v6853
    %9002 = vmatpush.bf16.msra.mxu0 %v6852
    %9003 = vmatpush.bf16.msra.mxu0 %v6851
    %9004 = vmatpush.bf16.msra.mxu0 %v6850
    %9005 = vmatpush.bf16.msra.mxu0 %v6849
    %9006 = vmatpush.bf16.msra.mxu0 %v6848
    %9007 = vmatpush.bf16.msra.mxu0 %v6847
    %9008 = vmatpush.bf16.msra.mxu0 %v6846
    %9009 = vmatmul.bf16.gmra.mxu0 %v2379
    %v9010 = vpop.f32.mrf.mxu0
    %v9011 = vadd.f32 %v8998, %v9010
    %v9012 = vpop.f32.mrf.mxu0
    %9013 = vdwg.mxu0
    %9014 = vmatpush.bf16.msra.mxu0 %v6861
    %9015 = vmatpush.bf16.msra.mxu0 %v6860
    %9016 = vmatpush.bf16.msra.mxu0 %v6859
    %9017 = vmatpush.bf16.msra.mxu0 %v6858
    %9018 = vmatpush.bf16.msra.mxu0 %v6857
    %9019 = vmatpush.bf16.msra.mxu0 %v6856
    %9020 = vmatpush.bf16.msra.mxu0 %v6855
    %9021 = vmatpush.bf16.msra.mxu0 %v6854
    %9022 = vmatmul.bf16.gmra.mxu0 %v2380
    %v9023 = vpop.f32.mrf.mxu0
    %v9024 = vadd.f32 %v9011, %v9023
    %v9025 = vpop.f32.mrf.mxu0
    %9026 = vdwg.mxu0
    %9027 = vmatpush.bf16.msra.mxu0 %v6869
    %9028 = vmatpush.bf16.msra.mxu0 %v6868
    %9029 = vmatpush.bf16.msra.mxu0 %v6867
    %9030 = vmatpush.bf16.msra.mxu0 %v6866
    %9031 = vmatpush.bf16.msra.mxu0 %v6865
    %9032 = vmatpush.bf16.msra.mxu0 %v6864
    %9033 = vmatpush.bf16.msra.mxu0 %v6863
    %9034 = vmatpush.bf16.msra.mxu0 %v6862
    %9035 = vmatmul.bf16.gmra.mxu0 %v2381
    %v9036 = vpop.f32.mrf.mxu0
    %v9037 = vadd.f32 %v9024, %v9036
    %v9038 = vpop.f32.mrf.mxu0
    %9039 = vdwg.mxu0
    %9040 = vmatpush.bf16.msra.mxu0 %v6877
    %9041 = vmatpush.bf16.msra.mxu0 %v6876
    %9042 = vmatpush.bf16.msra.mxu0 %v6875
    %9043 = vmatpush.bf16.msra.mxu0 %v6874
    %9044 = vmatpush.bf16.msra.mxu0 %v6873
    %9045 = vmatpush.bf16.msra.mxu0 %v6872
    %9046 = vmatpush.bf16.msra.mxu0 %v6871
    %9047 = vmatpush.bf16.msra.mxu0 %v6870
    %9048 = vmatmul.bf16.gmra.mxu0 %v2382
    %v9049 = vpop.f32.mrf.mxu0
    %v9050 = vadd.f32 %v9037, %v9049
    %v9051 = vpop.f32.mrf.mxu0
    %9052 = vdwg.mxu0
    %9053 = vmatpush.bf16.msra.mxu0 %v6885
    %9054 = vmatpush.bf16.msra.mxu0 %v6884
    %9055 = vmatpush.bf16.msra.mxu0 %v6883
    %9056 = vmatpush.bf16.msra.mxu0 %v6882
    %9057 = vmatpush.bf16.msra.mxu0 %v6881
    %9058 = vmatpush.bf16.msra.mxu0 %v6880
    %9059 = vmatpush.bf16.msra.mxu0 %v6879
    %9060 = vmatpush.bf16.msra.mxu0 %v6878
    %9061 = vmatmul.bf16.gmra.mxu0 %v2383
    %v9062 = vpop.f32.mrf.mxu0
    %v9063 = vadd.f32 %v9050, %v9062
    %v9064 = vpop.f32.mrf.mxu0
    %9065 = vdwg.mxu0
    %9066 = vmatpush.bf16.msra.mxu0 %v6893
    %9067 = vmatpush.bf16.msra.mxu0 %v6892
    %9068 = vmatpush.bf16.msra.mxu0 %v6891
    %9069 = vmatpush.bf16.msra.mxu0 %v6890
    %9070 = vmatpush.bf16.msra.mxu0 %v6889
    %9071 = vmatpush.bf16.msra.mxu0 %v6888
    %9072 = vmatpush.bf16.msra.mxu0 %v6887
    %9073 = vmatpush.bf16.msra.mxu0 %v6886
    %9074 = vmatmul.bf16.gmra.mxu0 %v2384
    %v9075 = vpop.f32.mrf.mxu0
    %v9076 = vadd.f32 %v9063, %v9075
    %v9077 = vpop.f32.mrf.mxu0
    %9078 = vdwg.mxu0
    %9079 = vmatpush.bf16.msra.mxu0 %v6901
    %9080 = vmatpush.bf16.msra.mxu0 %v6900
    %9081 = vmatpush.bf16.msra.mxu0 %v6899
    %9082 = vmatpush.bf16.msra.mxu0 %v6898
    %9083 = vmatpush.bf16.msra.mxu0 %v6897
    %9084 = vmatpush.bf16.msra.mxu0 %v6896
    %9085 = vmatpush.bf16.msra.mxu0 %v6895
    %9086 = vmatpush.bf16.msra.mxu0 %v6894
    %9087 = vmatmul.bf16.gmra.mxu0 %v2385
    %v9088 = vpop.f32.mrf.mxu0
    %v9089 = vadd.f32 %v9076, %v9088
    %v9090 = vpop.f32.mrf.mxu0
    %9091 = vdwg.mxu0
    %9092 = vmatpush.bf16.msra.mxu0 %v6909
    %9093 = vmatpush.bf16.msra.mxu0 %v6908
    %9094 = vmatpush.bf16.msra.mxu0 %v6907
    %9095 = vmatpush.bf16.msra.mxu0 %v6906
    %9096 = vmatpush.bf16.msra.mxu0 %v6905
    %9097 = vmatpush.bf16.msra.mxu0 %v6904
    %9098 = vmatpush.bf16.msra.mxu0 %v6903
    %9099 = vmatpush.bf16.msra.mxu0 %v6902
    %9100 = vmatmul.bf16.gmra.mxu0 %v2386
    %v9101 = vpop.f32.mrf.mxu0
    %v9102 = vadd.f32 %v9089, %v9101
    %v9103 = vpop.f32.mrf.mxu0
    %9104 = vdwg.mxu0
    %9105 = vmatpush.bf16.msra.mxu0 %v6917
    %9106 = vmatpush.bf16.msra.mxu0 %v6916
    %9107 = vmatpush.bf16.msra.mxu0 %v6915
    %9108 = vmatpush.bf16.msra.mxu0 %v6914
    %9109 = vmatpush.bf16.msra.mxu0 %v6913
    %9110 = vmatpush.bf16.msra.mxu0 %v6912
    %9111 = vmatpush.bf16.msra.mxu0 %v6911
    %9112 = vmatpush.bf16.msra.mxu0 %v6910
    %9113 = vmatmul.bf16.gmra.mxu0 %v2387
    %v9114 = vpop.f32.mrf.mxu0
    %v9115 = vadd.f32 %v9102, %v9114
    %v9116 = vpop.f32.mrf.mxu0
    %9117 = vdwg.mxu0
    %9118 = vmatpush.bf16.msra.mxu0 %v6925
    %9119 = vmatpush.bf16.msra.mxu0 %v6924
    %9120 = vmatpush.bf16.msra.mxu0 %v6923
    %9121 = vmatpush.bf16.msra.mxu0 %v6922
    %9122 = vmatpush.bf16.msra.mxu0 %v6921
    %9123 = vmatpush.bf16.msra.mxu0 %v6920
    %9124 = vmatpush.bf16.msra.mxu0 %v6919
    %9125 = vmatpush.bf16.msra.mxu0 %v6918
    %9126 = vmatmul.bf16.gmra.mxu0 %v2388
    %v9127 = vpop.f32.mrf.mxu0
    %v9128 = vadd.f32 %v9115, %v9127
    %v9129 = vpop.f32.mrf.mxu0
    %9130 = vdwg.mxu0
    %9131 = vmatpush.bf16.msra.mxu0 %v6933
    %9132 = vmatpush.bf16.msra.mxu0 %v6932
    %9133 = vmatpush.bf16.msra.mxu0 %v6931
    %9134 = vmatpush.bf16.msra.mxu0 %v6930
    %9135 = vmatpush.bf16.msra.mxu0 %v6929
    %9136 = vmatpush.bf16.msra.mxu0 %v6928
    %9137 = vmatpush.bf16.msra.mxu0 %v6927
    %9138 = vmatpush.bf16.msra.mxu0 %v6926
    %9139 = vmatmul.bf16.gmra.mxu0 %v2389
    %v9140 = vpop.f32.mrf.mxu0
    %v9141 = vadd.f32 %v9128, %v9140
    %v9142 = vpop.f32.mrf.mxu0
    %9143 = vdwg.mxu0
    %9144 = vmatpush.bf16.msra.mxu0 %v6941
    %9145 = vmatpush.bf16.msra.mxu0 %v6940
    %9146 = vmatpush.bf16.msra.mxu0 %v6939
    %9147 = vmatpush.bf16.msra.mxu0 %v6938
    %9148 = vmatpush.bf16.msra.mxu0 %v6937
    %9149 = vmatpush.bf16.msra.mxu0 %v6936
    %9150 = vmatpush.bf16.msra.mxu0 %v6935
    %9151 = vmatpush.bf16.msra.mxu0 %v6934
    %9152 = vmatmul.bf16.gmra.mxu0 %v2390
    %v9153 = vpop.f32.mrf.mxu0
    %v9154 = vadd.f32 %v9141, %v9153
    %v9155 = vpop.f32.mrf.mxu0
    %9156 = vdwg.mxu0
    %9157 = vmatpush.bf16.msra.mxu0 %v6949
    %9158 = vmatpush.bf16.msra.mxu0 %v6948
    %9159 = vmatpush.bf16.msra.mxu0 %v6947
    %9160 = vmatpush.bf16.msra.mxu0 %v6946
    %9161 = vmatpush.bf16.msra.mxu0 %v6945
    %9162 = vmatpush.bf16.msra.mxu0 %v6944
    %9163 = vmatpush.bf16.msra.mxu0 %v6943
    %9164 = vmatpush.bf16.msra.mxu0 %v6942
    %9165 = vmatmul.bf16.gmra.mxu0 %v2391
    %v9166 = vpop.f32.mrf.mxu0
    %v9167 = vadd.f32 %v9154, %v9166
    %v9168 = vpop.f32.mrf.mxu0
    %9169 = vdwg.mxu0
    %9170 = vmatpush.bf16.msra.mxu0 %v6957
    %9171 = vmatpush.bf16.msra.mxu0 %v6956
    %9172 = vmatpush.bf16.msra.mxu0 %v6955
    %9173 = vmatpush.bf16.msra.mxu0 %v6954
    %9174 = vmatpush.bf16.msra.mxu0 %v6953
    %9175 = vmatpush.bf16.msra.mxu0 %v6952
    %9176 = vmatpush.bf16.msra.mxu0 %v6951
    %9177 = vmatpush.bf16.msra.mxu0 %v6950
    %9178 = vmatmul.bf16.gmra.mxu0 %v2392
    %v9179 = vpop.f32.mrf.mxu0
    %v9180 = vadd.f32 %v9167, %v9179
    %v9181 = vpop.f32.mrf.mxu0
    %9182 = vdwg.mxu0
    %9183 = vmatpush.bf16.msra.mxu0 %v6965
    %9184 = vmatpush.bf16.msra.mxu0 %v6964
    %9185 = vmatpush.bf16.msra.mxu0 %v6963
    %9186 = vmatpush.bf16.msra.mxu0 %v6962
    %9187 = vmatpush.bf16.msra.mxu0 %v6961
    %9188 = vmatpush.bf16.msra.mxu0 %v6960
    %9189 = vmatpush.bf16.msra.mxu0 %v6959
    %9190 = vmatpush.bf16.msra.mxu0 %v6958
    %9191 = vmatmul.bf16.gmra.mxu0 %v2393
    %v9192 = vpop.f32.mrf.mxu0
    %v9193 = vadd.f32 %v9180, %v9192
    %v9194 = vpop.f32.mrf.mxu0
    %9195 = vdwg.mxu0
    %9196 = vmatpush.bf16.msra.mxu0 %v6973
    %9197 = vmatpush.bf16.msra.mxu0 %v6972
    %9198 = vmatpush.bf16.msra.mxu0 %v6971
    %9199 = vmatpush.bf16.msra.mxu0 %v6970
    %9200 = vmatpush.bf16.msra.mxu0 %v6969
    %9201 = vmatpush.bf16.msra.mxu0 %v6968
    %9202 = vmatpush.bf16.msra.mxu0 %v6967
    %9203 = vmatpush.bf16.msra.mxu0 %v6966
    %9204 = vmatmul.bf16.gmra.mxu0 %v2394
    %v9205 = vpop.f32.mrf.mxu0
    %v9206 = vadd.f32 %v9193, %v9205
    %v9207 = vpop.f32.mrf.mxu0
    %9208 = vdwg.mxu0
    %9209 = vmatpush.bf16.msra.mxu0 %v6981
    %9210 = vmatpush.bf16.msra.mxu0 %v6980
    %9211 = vmatpush.bf16.msra.mxu0 %v6979
    %9212 = vmatpush.bf16.msra.mxu0 %v6978
    %9213 = vmatpush.bf16.msra.mxu0 %v6977
    %9214 = vmatpush.bf16.msra.mxu0 %v6976
    %9215 = vmatpush.bf16.msra.mxu0 %v6975
    %9216 = vmatpush.bf16.msra.mxu0 %v6974
    %9217 = vmatmul.bf16.gmra.mxu0 %v2395
    %v9218 = vpop.f32.mrf.mxu0
    %v9219 = vadd.f32 %v9206, %v9218
    %v9220 = vpop.f32.mrf.mxu0
    %9221 = vdwg.mxu0
    %9222 = vmatpush.bf16.msra.mxu0 %v6989
    %9223 = vmatpush.bf16.msra.mxu0 %v6988
    %9224 = vmatpush.bf16.msra.mxu0 %v6987
    %9225 = vmatpush.bf16.msra.mxu0 %v6986
    %9226 = vmatpush.bf16.msra.mxu0 %v6985
    %9227 = vmatpush.bf16.msra.mxu0 %v6984
    %9228 = vmatpush.bf16.msra.mxu0 %v6983
    %9229 = vmatpush.bf16.msra.mxu0 %v6982
    %9230 = vmatmul.bf16.gmra.mxu0 %v2396
    %v9231 = vpop.f32.mrf.mxu0
    %v9232 = vadd.f32 %v9219, %v9231
    %v9233 = vpop.f32.mrf.mxu0
    %9234 = vdwg.mxu0
    %9235 = vmatpush.bf16.msra.mxu0 %v6997
    %9236 = vmatpush.bf16.msra.mxu0 %v6996
    %9237 = vmatpush.bf16.msra.mxu0 %v6995
    %9238 = vmatpush.bf16.msra.mxu0 %v6994
    %9239 = vmatpush.bf16.msra.mxu0 %v6993
    %9240 = vmatpush.bf16.msra.mxu0 %v6992
    %9241 = vmatpush.bf16.msra.mxu0 %v6991
    %9242 = vmatpush.bf16.msra.mxu0 %v6990
    %9243 = vmatmul.bf16.gmra.mxu0 %v2397
    %v9244 = vpop.f32.mrf.mxu0
    %v9245 = vadd.f32 %v9232, %v9244
    %v9246 = vpop.f32.mrf.mxu0
    %9247 = vdwg.mxu0
    %9248 = vmatpush.bf16.msra.mxu0 %v7005
    %9249 = vmatpush.bf16.msra.mxu0 %v7004
    %9250 = vmatpush.bf16.msra.mxu0 %v7003
    %9251 = vmatpush.bf16.msra.mxu0 %v7002
    %9252 = vmatpush.bf16.msra.mxu0 %v7001
    %9253 = vmatpush.bf16.msra.mxu0 %v7000
    %9254 = vmatpush.bf16.msra.mxu0 %v6999
    %9255 = vmatpush.bf16.msra.mxu0 %v6998
    %9256 = vmatmul.bf16.gmra.mxu0 %v2398
    %v9257 = vpop.f32.mrf.mxu0
    %v9258 = vadd.f32 %v9245, %v9257
    %v9259 = vpop.f32.mrf.mxu0
    %9260 = vdwg.mxu0
    %9261 = vmatpush.bf16.msra.mxu0 %v7013
    %9262 = vmatpush.bf16.msra.mxu0 %v7012
    %9263 = vmatpush.bf16.msra.mxu0 %v7011
    %9264 = vmatpush.bf16.msra.mxu0 %v7010
    %9265 = vmatpush.bf16.msra.mxu0 %v7009
    %9266 = vmatpush.bf16.msra.mxu0 %v7008
    %9267 = vmatpush.bf16.msra.mxu0 %v7007
    %9268 = vmatpush.bf16.msra.mxu0 %v7006
    %9269 = vmatmul.bf16.gmra.mxu0 %v2399
    %v9270 = vpop.f32.mrf.mxu0
    %v9271 = vadd.f32 %v9258, %v9270
    %v9272 = vpop.f32.mrf.mxu0
    %9273 = vdwg.mxu0
    %9274 = vmatpush.bf16.msra.mxu0 %v7021
    %9275 = vmatpush.bf16.msra.mxu0 %v7020
    %9276 = vmatpush.bf16.msra.mxu0 %v7019
    %9277 = vmatpush.bf16.msra.mxu0 %v7018
    %9278 = vmatpush.bf16.msra.mxu0 %v7017
    %9279 = vmatpush.bf16.msra.mxu0 %v7016
    %9280 = vmatpush.bf16.msra.mxu0 %v7015
    %9281 = vmatpush.bf16.msra.mxu0 %v7014
    %9282 = vmatmul.bf16.gmra.mxu0 %v2400
    %v9283 = vpop.f32.mrf.mxu0
    %v9284 = vadd.f32 %v9271, %v9283
    %v9285 = vpop.f32.mrf.mxu0
    %9286 = vdwg.mxu0
    %9287 = vmatpush.bf16.msra.mxu0 %v7029
    %9288 = vmatpush.bf16.msra.mxu0 %v7028
    %9289 = vmatpush.bf16.msra.mxu0 %v7027
    %9290 = vmatpush.bf16.msra.mxu0 %v7026
    %9291 = vmatpush.bf16.msra.mxu0 %v7025
    %9292 = vmatpush.bf16.msra.mxu0 %v7024
    %9293 = vmatpush.bf16.msra.mxu0 %v7023
    %9294 = vmatpush.bf16.msra.mxu0 %v7022
    %9295 = vmatmul.bf16.gmra.mxu0 %v2401
    %v9296 = vpop.f32.mrf.mxu0
    %v9297 = vadd.f32 %v9284, %v9296
    %v9298 = vpop.f32.mrf.mxu0
    %9299 = vdwg.mxu0
    %9300 = vmatpush.bf16.msra.mxu0 %v7037
    %9301 = vmatpush.bf16.msra.mxu0 %v7036
    %9302 = vmatpush.bf16.msra.mxu0 %v7035
    %9303 = vmatpush.bf16.msra.mxu0 %v7034
    %9304 = vmatpush.bf16.msra.mxu0 %v7033
    %9305 = vmatpush.bf16.msra.mxu0 %v7032
    %9306 = vmatpush.bf16.msra.mxu0 %v7031
    %9307 = vmatpush.bf16.msra.mxu0 %v7030
    %9308 = vmatmul.bf16.gmra.mxu0 %v2402
    %v9309 = vpop.f32.mrf.mxu0
    %v9310 = vadd.f32 %v9297, %v9309
    %v9311 = vpop.f32.mrf.mxu0
    %9312 = vdwg.mxu0
    %9313 = vmatpush.bf16.msra.mxu0 %v7045
    %9314 = vmatpush.bf16.msra.mxu0 %v7044
    %9315 = vmatpush.bf16.msra.mxu0 %v7043
    %9316 = vmatpush.bf16.msra.mxu0 %v7042
    %9317 = vmatpush.bf16.msra.mxu0 %v7041
    %9318 = vmatpush.bf16.msra.mxu0 %v7040
    %9319 = vmatpush.bf16.msra.mxu0 %v7039
    %9320 = vmatpush.bf16.msra.mxu0 %v7038
    %9321 = vmatmul.bf16.gmra.mxu0 %v2403
    %v9322 = vpop.f32.mrf.mxu0
    %v9323 = vadd.f32 %v9310, %v9322
    %v9324 = vpop.f32.mrf.mxu0
    %9325 = vdwg.mxu0
    %9326 = vmatpush.bf16.msra.mxu0 %v7053
    %9327 = vmatpush.bf16.msra.mxu0 %v7052
    %9328 = vmatpush.bf16.msra.mxu0 %v7051
    %9329 = vmatpush.bf16.msra.mxu0 %v7050
    %9330 = vmatpush.bf16.msra.mxu0 %v7049
    %9331 = vmatpush.bf16.msra.mxu0 %v7048
    %9332 = vmatpush.bf16.msra.mxu0 %v7047
    %9333 = vmatpush.bf16.msra.mxu0 %v7046
    %9334 = vmatmul.bf16.gmra.mxu0 %v2404
    %v9335 = vpop.f32.mrf.mxu0
    %v9336 = vadd.f32 %v9323, %v9335
    %v9337 = vpop.f32.mrf.mxu0
    %9338 = vdwg.mxu0
    %9339 = vmatpush.bf16.msra.mxu0 %v7061
    %9340 = vmatpush.bf16.msra.mxu0 %v7060
    %9341 = vmatpush.bf16.msra.mxu0 %v7059
    %9342 = vmatpush.bf16.msra.mxu0 %v7058
    %9343 = vmatpush.bf16.msra.mxu0 %v7057
    %9344 = vmatpush.bf16.msra.mxu0 %v7056
    %9345 = vmatpush.bf16.msra.mxu0 %v7055
    %9346 = vmatpush.bf16.msra.mxu0 %v7054
    %9347 = vmatmul.bf16.gmra.mxu0 %v2405
    %v9348 = vpop.f32.mrf.mxu0
    %v9349 = vadd.f32 %v9336, %v9348
    %v9350 = vpop.f32.mrf.mxu0
    %9351 = vdwg.mxu0
    %9352 = vmatpush.bf16.msra.mxu0 %v7069
    %9353 = vmatpush.bf16.msra.mxu0 %v7068
    %9354 = vmatpush.bf16.msra.mxu0 %v7067
    %9355 = vmatpush.bf16.msra.mxu0 %v7066
    %9356 = vmatpush.bf16.msra.mxu0 %v7065
    %9357 = vmatpush.bf16.msra.mxu0 %v7064
    %9358 = vmatpush.bf16.msra.mxu0 %v7063
    %9359 = vmatpush.bf16.msra.mxu0 %v7062
    %9360 = vmatmul.bf16.gmra.mxu0 %v2406
    %v9361 = vpop.f32.mrf.mxu0
    %v9362 = vadd.f32 %v9349, %v9361
    %v9363 = vpop.f32.mrf.mxu0
    %9364 = vdwg.mxu0
    %9365 = vmatpush.bf16.msra.mxu0 %v7077
    %9366 = vmatpush.bf16.msra.mxu0 %v7076
    %9367 = vmatpush.bf16.msra.mxu0 %v7075
    %9368 = vmatpush.bf16.msra.mxu0 %v7074
    %9369 = vmatpush.bf16.msra.mxu0 %v7073
    %9370 = vmatpush.bf16.msra.mxu0 %v7072
    %9371 = vmatpush.bf16.msra.mxu0 %v7071
    %9372 = vmatpush.bf16.msra.mxu0 %v7070
    %9373 = vmatmul.bf16.gmra.mxu0 %v2407
    %v9374 = vpop.f32.mrf.mxu0
    %v9375 = vadd.f32 %v9362, %v9374
    %v9376 = vpop.f32.mrf.mxu0
    %9377 = vdwg.mxu0
    %9378 = vmatpush.bf16.msra.mxu0 %v7085
    %9379 = vmatpush.bf16.msra.mxu0 %v7084
    %9380 = vmatpush.bf16.msra.mxu0 %v7083
    %9381 = vmatpush.bf16.msra.mxu0 %v7082
    %9382 = vmatpush.bf16.msra.mxu0 %v7081
    %9383 = vmatpush.bf16.msra.mxu0 %v7080
    %9384 = vmatpush.bf16.msra.mxu0 %v7079
    %9385 = vmatpush.bf16.msra.mxu0 %v7078
    %9386 = vmatmul.bf16.gmra.mxu0 %v2408
    %v9387 = vpop.f32.mrf.mxu0
    %v9388 = vadd.f32 %v9375, %v9387
    %v9389 = vpop.f32.mrf.mxu0
    %9390 = vdwg.mxu0
    %9391 = vmatpush.bf16.msra.mxu0 %v7093
    %9392 = vmatpush.bf16.msra.mxu0 %v7092
    %9393 = vmatpush.bf16.msra.mxu0 %v7091
    %9394 = vmatpush.bf16.msra.mxu0 %v7090
    %9395 = vmatpush.bf16.msra.mxu0 %v7089
    %9396 = vmatpush.bf16.msra.mxu0 %v7088
    %9397 = vmatpush.bf16.msra.mxu0 %v7087
    %9398 = vmatpush.bf16.msra.mxu0 %v7086
    %9399 = vmatmul.bf16.gmra.mxu0 %v2409
    %v9400 = vpop.f32.mrf.mxu0
    %v9401 = vadd.f32 %v9388, %v9400
    %v9402 = vpop.f32.mrf.mxu0
    %9403 = vdwg.mxu0
    %9404 = vmatpush.bf16.msra.mxu0 %v7101
    %9405 = vmatpush.bf16.msra.mxu0 %v7100
    %9406 = vmatpush.bf16.msra.mxu0 %v7099
    %9407 = vmatpush.bf16.msra.mxu0 %v7098
    %9408 = vmatpush.bf16.msra.mxu0 %v7097
    %9409 = vmatpush.bf16.msra.mxu0 %v7096
    %9410 = vmatpush.bf16.msra.mxu0 %v7095
    %9411 = vmatpush.bf16.msra.mxu0 %v7094
    %9412 = vmatmul.bf16.gmra.mxu0 %v2410
    %v9413 = vpop.f32.mrf.mxu0
    %v9414 = vadd.f32 %v9401, %v9413
    %v9415 = vpop.f32.mrf.mxu0
    %9416 = vdwg.mxu0
    %9417 = vmatpush.bf16.msra.mxu0 %v7109
    %9418 = vmatpush.bf16.msra.mxu0 %v7108
    %9419 = vmatpush.bf16.msra.mxu0 %v7107
    %9420 = vmatpush.bf16.msra.mxu0 %v7106
    %9421 = vmatpush.bf16.msra.mxu0 %v7105
    %9422 = vmatpush.bf16.msra.mxu0 %v7104
    %9423 = vmatpush.bf16.msra.mxu0 %v7103
    %9424 = vmatpush.bf16.msra.mxu0 %v7102
    %9425 = vmatmul.bf16.gmra.mxu0 %v2411
    %v9426 = vpop.f32.mrf.mxu0
    %v9427 = vadd.f32 %v9414, %v9426
    %v9428 = vpop.f32.mrf.mxu0
    %9429 = vdwg.mxu0
    %9430 = vmatpush.bf16.msra.mxu0 %v7117
    %9431 = vmatpush.bf16.msra.mxu0 %v7116
    %9432 = vmatpush.bf16.msra.mxu0 %v7115
    %9433 = vmatpush.bf16.msra.mxu0 %v7114
    %9434 = vmatpush.bf16.msra.mxu0 %v7113
    %9435 = vmatpush.bf16.msra.mxu0 %v7112
    %9436 = vmatpush.bf16.msra.mxu0 %v7111
    %9437 = vmatpush.bf16.msra.mxu0 %v7110
    %9438 = vmatmul.bf16.gmra.mxu0 %v2412
    %v9439 = vpop.f32.mrf.mxu0
    %v9440 = vadd.f32 %v9427, %v9439
    %v9441 = vpop.f32.mrf.mxu0
    %9442 = vdwg.mxu0
    %9443 = vmatpush.bf16.msra.mxu0 %v7125
    %9444 = vmatpush.bf16.msra.mxu0 %v7124
    %9445 = vmatpush.bf16.msra.mxu0 %v7123
    %9446 = vmatpush.bf16.msra.mxu0 %v7122
    %9447 = vmatpush.bf16.msra.mxu0 %v7121
    %9448 = vmatpush.bf16.msra.mxu0 %v7120
    %9449 = vmatpush.bf16.msra.mxu0 %v7119
    %9450 = vmatpush.bf16.msra.mxu0 %v7118
    %9451 = vmatmul.bf16.gmra.mxu0 %v2413
    %v9452 = vpop.f32.mrf.mxu0
    %v9453 = vadd.f32 %v9440, %v9452
    %v9454 = vpop.f32.mrf.mxu0
    %9455 = vdwg.mxu0
    %9456 = vmatpush.bf16.msra.mxu0 %v7133
    %9457 = vmatpush.bf16.msra.mxu0 %v7132
    %9458 = vmatpush.bf16.msra.mxu0 %v7131
    %9459 = vmatpush.bf16.msra.mxu0 %v7130
    %9460 = vmatpush.bf16.msra.mxu0 %v7129
    %9461 = vmatpush.bf16.msra.mxu0 %v7128
    %9462 = vmatpush.bf16.msra.mxu0 %v7127
    %9463 = vmatpush.bf16.msra.mxu0 %v7126
    %9464 = vmatmul.bf16.gmra.mxu0 %v2414
    %v9465 = vpop.f32.mrf.mxu0
    %v9466 = vadd.f32 %v9453, %v9465
    %v9467 = vpop.f32.mrf.mxu0
    %9468 = vdwg.mxu0
    %9469 = vmatpush.bf16.msra.mxu0 %v7141
    %9470 = vmatpush.bf16.msra.mxu0 %v7140
    %9471 = vmatpush.bf16.msra.mxu0 %v7139
    %9472 = vmatpush.bf16.msra.mxu0 %v7138
    %9473 = vmatpush.bf16.msra.mxu0 %v7137
    %9474 = vmatpush.bf16.msra.mxu0 %v7136
    %9475 = vmatpush.bf16.msra.mxu0 %v7135
    %9476 = vmatpush.bf16.msra.mxu0 %v7134
    %9477 = vmatmul.bf16.gmra.mxu0 %v2415
    %v9478 = vpop.f32.mrf.mxu0
    %v9479 = vadd.f32 %v9466, %v9478
    %v9480 = vpop.f32.mrf.mxu0
    %9481 = vdwg.mxu0
    %9482 = vmatpush.bf16.msra.mxu0 %v7149
    %9483 = vmatpush.bf16.msra.mxu0 %v7148
    %9484 = vmatpush.bf16.msra.mxu0 %v7147
    %9485 = vmatpush.bf16.msra.mxu0 %v7146
    %9486 = vmatpush.bf16.msra.mxu0 %v7145
    %9487 = vmatpush.bf16.msra.mxu0 %v7144
    %9488 = vmatpush.bf16.msra.mxu0 %v7143
    %9489 = vmatpush.bf16.msra.mxu0 %v7142
    %9490 = vmatmul.bf16.gmra.mxu0 %v2416
    %v9491 = vpop.f32.mrf.mxu0
    %v9492 = vadd.f32 %v9479, %v9491
    %v9493 = vpop.f32.mrf.mxu0
    %9494 = vdwg.mxu0
    %9495 = vmatpush.bf16.msra.mxu0 %v7157
    %9496 = vmatpush.bf16.msra.mxu0 %v7156
    %9497 = vmatpush.bf16.msra.mxu0 %v7155
    %9498 = vmatpush.bf16.msra.mxu0 %v7154
    %9499 = vmatpush.bf16.msra.mxu0 %v7153
    %9500 = vmatpush.bf16.msra.mxu0 %v7152
    %9501 = vmatpush.bf16.msra.mxu0 %v7151
    %9502 = vmatpush.bf16.msra.mxu0 %v7150
    %9503 = vmatmul.bf16.gmra.mxu0 %v2417
    %v9504 = vpop.f32.mrf.mxu0
    %v9505 = vadd.f32 %v9492, %v9504
    %v9506 = vpop.f32.mrf.mxu0
    %9507 = vdwg.mxu0
    %9508 = vmatpush.bf16.msra.mxu0 %v7165
    %9509 = vmatpush.bf16.msra.mxu0 %v7164
    %9510 = vmatpush.bf16.msra.mxu0 %v7163
    %9511 = vmatpush.bf16.msra.mxu0 %v7162
    %9512 = vmatpush.bf16.msra.mxu0 %v7161
    %9513 = vmatpush.bf16.msra.mxu0 %v7160
    %9514 = vmatpush.bf16.msra.mxu0 %v7159
    %9515 = vmatpush.bf16.msra.mxu0 %v7158
    %9516 = vmatmul.bf16.gmra.mxu0 %v2418
    %v9517 = vpop.f32.mrf.mxu0
    %v9518 = vadd.f32 %v9505, %v9517
    %v9519 = vpop.f32.mrf.mxu0
    %9520 = vdwg.mxu0
    %9521 = vmatpush.bf16.msra.mxu0 %v7173
    %9522 = vmatpush.bf16.msra.mxu0 %v7172
    %9523 = vmatpush.bf16.msra.mxu0 %v7171
    %9524 = vmatpush.bf16.msra.mxu0 %v7170
    %9525 = vmatpush.bf16.msra.mxu0 %v7169
    %9526 = vmatpush.bf16.msra.mxu0 %v7168
    %9527 = vmatpush.bf16.msra.mxu0 %v7167
    %9528 = vmatpush.bf16.msra.mxu0 %v7166
    %9529 = vmatmul.bf16.gmra.mxu0 %v2419
    %v9530 = vpop.f32.mrf.mxu0
    %v9531 = vadd.f32 %v9518, %v9530
    %v9532 = vpop.f32.mrf.mxu0
    %9533 = vdwg.mxu0
    %9534 = vmatpush.bf16.msra.mxu0 %v7181
    %9535 = vmatpush.bf16.msra.mxu0 %v7180
    %9536 = vmatpush.bf16.msra.mxu0 %v7179
    %9537 = vmatpush.bf16.msra.mxu0 %v7178
    %9538 = vmatpush.bf16.msra.mxu0 %v7177
    %9539 = vmatpush.bf16.msra.mxu0 %v7176
    %9540 = vmatpush.bf16.msra.mxu0 %v7175
    %9541 = vmatpush.bf16.msra.mxu0 %v7174
    %9542 = vmatmul.bf16.gmra.mxu0 %v2420
    %v9543 = vpop.f32.mrf.mxu0
    %v9544 = vadd.f32 %v9531, %v9543
    %v9545 = vpop.f32.mrf.mxu0
    %9546 = vdwg.mxu0
    %9547 = vmatpush.bf16.msra.mxu0 %v7189
    %9548 = vmatpush.bf16.msra.mxu0 %v7188
    %9549 = vmatpush.bf16.msra.mxu0 %v7187
    %9550 = vmatpush.bf16.msra.mxu0 %v7186
    %9551 = vmatpush.bf16.msra.mxu0 %v7185
    %9552 = vmatpush.bf16.msra.mxu0 %v7184
    %9553 = vmatpush.bf16.msra.mxu0 %v7183
    %9554 = vmatpush.bf16.msra.mxu0 %v7182
    %9555 = vmatmul.bf16.gmra.mxu0 %v2421
    %v9556 = vpop.f32.mrf.mxu0
    %v9557 = vadd.f32 %v9544, %v9556
    %v9558 = vpop.f32.mrf.mxu0
    %9559 = vdwg.mxu0
    %9560 = vmatpush.bf16.msra.mxu0 %v7197
    %9561 = vmatpush.bf16.msra.mxu0 %v7196
    %9562 = vmatpush.bf16.msra.mxu0 %v7195
    %9563 = vmatpush.bf16.msra.mxu0 %v7194
    %9564 = vmatpush.bf16.msra.mxu0 %v7193
    %9565 = vmatpush.bf16.msra.mxu0 %v7192
    %9566 = vmatpush.bf16.msra.mxu0 %v7191
    %9567 = vmatpush.bf16.msra.mxu0 %v7190
    %9568 = vmatmul.bf16.gmra.mxu0 %v2422
    %v9569 = vpop.f32.mrf.mxu0
    %v9570 = vadd.f32 %v9557, %v9569
    %v9571 = vpop.f32.mrf.mxu0
    %9572 = vdwg.mxu0
    %9573 = vmatpush.bf16.msra.mxu0 %v7205
    %9574 = vmatpush.bf16.msra.mxu0 %v7204
    %9575 = vmatpush.bf16.msra.mxu0 %v7203
    %9576 = vmatpush.bf16.msra.mxu0 %v7202
    %9577 = vmatpush.bf16.msra.mxu0 %v7201
    %9578 = vmatpush.bf16.msra.mxu0 %v7200
    %9579 = vmatpush.bf16.msra.mxu0 %v7199
    %9580 = vmatpush.bf16.msra.mxu0 %v7198
    %9581 = vmatmul.bf16.gmra.mxu0 %v2423
    %v9582 = vpop.f32.mrf.mxu0
    %v9583 = vadd.f32 %v9570, %v9582
    %v9584 = vpop.f32.mrf.mxu0
    %9585 = vdwg.mxu0
    %9586 = vmatpush.bf16.msra.mxu0 %v7213
    %9587 = vmatpush.bf16.msra.mxu0 %v7212
    %9588 = vmatpush.bf16.msra.mxu0 %v7211
    %9589 = vmatpush.bf16.msra.mxu0 %v7210
    %9590 = vmatpush.bf16.msra.mxu0 %v7209
    %9591 = vmatpush.bf16.msra.mxu0 %v7208
    %9592 = vmatpush.bf16.msra.mxu0 %v7207
    %9593 = vmatpush.bf16.msra.mxu0 %v7206
    %9594 = vmatmul.bf16.gmra.mxu0 %v2424
    %v9595 = vpop.f32.mrf.mxu0
    %v9596 = vadd.f32 %v9583, %v9595
    %v9597 = vpop.f32.mrf.mxu0
    %9598 = vdwg.mxu0
    %9599 = vmatpush.bf16.msra.mxu0 %v7221
    %9600 = vmatpush.bf16.msra.mxu0 %v7220
    %9601 = vmatpush.bf16.msra.mxu0 %v7219
    %9602 = vmatpush.bf16.msra.mxu0 %v7218
    %9603 = vmatpush.bf16.msra.mxu0 %v7217
    %9604 = vmatpush.bf16.msra.mxu0 %v7216
    %9605 = vmatpush.bf16.msra.mxu0 %v7215
    %9606 = vmatpush.bf16.msra.mxu0 %v7214
    %9607 = vmatmul.bf16.gmra.mxu0 %v2425
    %v9608 = vpop.f32.mrf.mxu0
    %v9609 = vadd.f32 %v9596, %v9608
    %v9610 = vpop.f32.mrf.mxu0
    %9611 = vdwg.mxu0
    %9612 = vmatpush.bf16.msra.mxu0 %v7229
    %9613 = vmatpush.bf16.msra.mxu0 %v7228
    %9614 = vmatpush.bf16.msra.mxu0 %v7227
    %9615 = vmatpush.bf16.msra.mxu0 %v7226
    %9616 = vmatpush.bf16.msra.mxu0 %v7225
    %9617 = vmatpush.bf16.msra.mxu0 %v7224
    %9618 = vmatpush.bf16.msra.mxu0 %v7223
    %9619 = vmatpush.bf16.msra.mxu0 %v7222
    %9620 = vmatmul.bf16.gmra.mxu0 %v2426
    %v9621 = vpop.f32.mrf.mxu0
    %v9622 = vadd.f32 %v9609, %v9621
    %v9623 = vpop.f32.mrf.mxu0
    %9624 = vdwg.mxu0
    %9625 = vmatpush.bf16.msra.mxu0 %v7237
    %9626 = vmatpush.bf16.msra.mxu0 %v7236
    %9627 = vmatpush.bf16.msra.mxu0 %v7235
    %9628 = vmatpush.bf16.msra.mxu0 %v7234
    %9629 = vmatpush.bf16.msra.mxu0 %v7233
    %9630 = vmatpush.bf16.msra.mxu0 %v7232
    %9631 = vmatpush.bf16.msra.mxu0 %v7231
    %9632 = vmatpush.bf16.msra.mxu0 %v7230
    %9633 = vmatmul.bf16.gmra.mxu0 %v2427
    %v9634 = vpop.f32.mrf.mxu0
    %v9635 = vadd.f32 %v9622, %v9634
    %v9636 = vpop.f32.mrf.mxu0
    %9637 = vdwg.mxu0
    %9638 = vmatpush.bf16.msra.mxu0 %v7245
    %9639 = vmatpush.bf16.msra.mxu0 %v7244
    %9640 = vmatpush.bf16.msra.mxu0 %v7243
    %9641 = vmatpush.bf16.msra.mxu0 %v7242
    %9642 = vmatpush.bf16.msra.mxu0 %v7241
    %9643 = vmatpush.bf16.msra.mxu0 %v7240
    %9644 = vmatpush.bf16.msra.mxu0 %v7239
    %9645 = vmatpush.bf16.msra.mxu0 %v7238
    %9646 = vmatmul.bf16.gmra.mxu0 %v2428
    %v9647 = vpop.f32.mrf.mxu0
    %v9648 = vadd.f32 %v9635, %v9647
    %v9649 = vpop.f32.mrf.mxu0
    %9650 = vdwg.mxu0
    %9651 = vmatpush.bf16.msra.mxu0 %v7253
    %9652 = vmatpush.bf16.msra.mxu0 %v7252
    %9653 = vmatpush.bf16.msra.mxu0 %v7251
    %9654 = vmatpush.bf16.msra.mxu0 %v7250
    %9655 = vmatpush.bf16.msra.mxu0 %v7249
    %9656 = vmatpush.bf16.msra.mxu0 %v7248
    %9657 = vmatpush.bf16.msra.mxu0 %v7247
    %9658 = vmatpush.bf16.msra.mxu0 %v7246
    %9659 = vmatmul.bf16.gmra.mxu0 %v2429
    %v9660 = vpop.f32.mrf.mxu0
    %v9661 = vadd.f32 %v9648, %v9660
    %v9662 = vpop.f32.mrf.mxu0
    %9663 = vdwg.mxu0
    %9664 = vmatpush.bf16.msra.mxu0 %v7261
    %9665 = vmatpush.bf16.msra.mxu0 %v7260
    %9666 = vmatpush.bf16.msra.mxu0 %v7259
    %9667 = vmatpush.bf16.msra.mxu0 %v7258
    %9668 = vmatpush.bf16.msra.mxu0 %v7257
    %9669 = vmatpush.bf16.msra.mxu0 %v7256
    %9670 = vmatpush.bf16.msra.mxu0 %v7255
    %9671 = vmatpush.bf16.msra.mxu0 %v7254
    %9672 = vmatmul.bf16.gmra.mxu0 %v2430
    %v9673 = vpop.f32.mrf.mxu0
    %v9674 = vadd.f32 %v9661, %v9673
    %v9675 = vpop.f32.mrf.mxu0
    %9676 = vdwg.mxu0
    %9677 = vmatpush.bf16.msra.mxu0 %v7269
    %9678 = vmatpush.bf16.msra.mxu0 %v7268
    %9679 = vmatpush.bf16.msra.mxu0 %v7267
    %9680 = vmatpush.bf16.msra.mxu0 %v7266
    %9681 = vmatpush.bf16.msra.mxu0 %v7265
    %9682 = vmatpush.bf16.msra.mxu0 %v7264
    %9683 = vmatpush.bf16.msra.mxu0 %v7263
    %9684 = vmatpush.bf16.msra.mxu0 %v7262
    %9685 = vmatmul.bf16.gmra.mxu0 %v2431
    %v9686 = vpop.f32.mrf.mxu0
    %v9687 = vadd.f32 %v9674, %v9686
    %v9688 = vpop.f32.mrf.mxu0
    %9689 = vdwg.mxu0
    %9690 = vmatpush.bf16.msra.mxu0 %v7277
    %9691 = vmatpush.bf16.msra.mxu0 %v7276
    %9692 = vmatpush.bf16.msra.mxu0 %v7275
    %9693 = vmatpush.bf16.msra.mxu0 %v7274
    %9694 = vmatpush.bf16.msra.mxu0 %v7273
    %9695 = vmatpush.bf16.msra.mxu0 %v7272
    %9696 = vmatpush.bf16.msra.mxu0 %v7271
    %9697 = vmatpush.bf16.msra.mxu0 %v7270
    %9698 = vmatmul.bf16.gmra.mxu0 %v2432
    %v9699 = vpop.f32.mrf.mxu0
    %v9700 = vadd.f32 %v9687, %v9699
    %v9701 = vpop.f32.mrf.mxu0
    %9702 = vdwg.mxu0
    %9703 = vmatpush.bf16.msra.mxu0 %v7285
    %9704 = vmatpush.bf16.msra.mxu0 %v7284
    %9705 = vmatpush.bf16.msra.mxu0 %v7283
    %9706 = vmatpush.bf16.msra.mxu0 %v7282
    %9707 = vmatpush.bf16.msra.mxu0 %v7281
    %9708 = vmatpush.bf16.msra.mxu0 %v7280
    %9709 = vmatpush.bf16.msra.mxu0 %v7279
    %9710 = vmatpush.bf16.msra.mxu0 %v7278
    %9711 = vmatmul.bf16.gmra.mxu0 %v2433
    %v9712 = vpop.f32.mrf.mxu0
    %v9713 = vadd.f32 %v9700, %v9712
    %v9714 = vpop.f32.mrf.mxu0
    %9715 = vdwg.mxu0
    %9716 = vmatpush.bf16.msra.mxu0 %v7293
    %9717 = vmatpush.bf16.msra.mxu0 %v7292
    %9718 = vmatpush.bf16.msra.mxu0 %v7291
    %9719 = vmatpush.bf16.msra.mxu0 %v7290
    %9720 = vmatpush.bf16.msra.mxu0 %v7289
    %9721 = vmatpush.bf16.msra.mxu0 %v7288
    %9722 = vmatpush.bf16.msra.mxu0 %v7287
    %9723 = vmatpush.bf16.msra.mxu0 %v7286
    %9724 = vmatmul.bf16.gmra.mxu0 %v2434
    %v9725 = vpop.f32.mrf.mxu0
    %v9726 = vadd.f32 %v9713, %v9725
    %v9727 = vpop.f32.mrf.mxu0
    %9728 = vdwg.mxu0
    %9729 = vmatpush.bf16.msra.mxu0 %v7301
    %9730 = vmatpush.bf16.msra.mxu0 %v7300
    %9731 = vmatpush.bf16.msra.mxu0 %v7299
    %9732 = vmatpush.bf16.msra.mxu0 %v7298
    %9733 = vmatpush.bf16.msra.mxu0 %v7297
    %9734 = vmatpush.bf16.msra.mxu0 %v7296
    %9735 = vmatpush.bf16.msra.mxu0 %v7295
    %9736 = vmatpush.bf16.msra.mxu0 %v7294
    %9737 = vmatmul.bf16.gmra.mxu0 %v2435
    %v9738 = vpop.f32.mrf.mxu0
    %v9739 = vadd.f32 %v9726, %v9738
    %v9740 = vpop.f32.mrf.mxu0
    %9741 = vdwg.mxu0
    %9742 = vmatpush.bf16.msra.mxu0 %v7309
    %9743 = vmatpush.bf16.msra.mxu0 %v7308
    %9744 = vmatpush.bf16.msra.mxu0 %v7307
    %9745 = vmatpush.bf16.msra.mxu0 %v7306
    %9746 = vmatpush.bf16.msra.mxu0 %v7305
    %9747 = vmatpush.bf16.msra.mxu0 %v7304
    %9748 = vmatpush.bf16.msra.mxu0 %v7303
    %9749 = vmatpush.bf16.msra.mxu0 %v7302
    %9750 = vmatmul.bf16.gmra.mxu0 %v2436
    %v9751 = vpop.f32.mrf.mxu0
    %v9752 = vadd.f32 %v9739, %v9751
    %v9753 = vpop.f32.mrf.mxu0
    %9754 = vdwg.mxu0
    %9755 = vmatpush.bf16.msra.mxu0 %v7317
    %9756 = vmatpush.bf16.msra.mxu0 %v7316
    %9757 = vmatpush.bf16.msra.mxu0 %v7315
    %9758 = vmatpush.bf16.msra.mxu0 %v7314
    %9759 = vmatpush.bf16.msra.mxu0 %v7313
    %9760 = vmatpush.bf16.msra.mxu0 %v7312
    %9761 = vmatpush.bf16.msra.mxu0 %v7311
    %9762 = vmatpush.bf16.msra.mxu0 %v7310
    %9763 = vmatmul.bf16.gmra.mxu0 %v2437
    %v9764 = vpop.f32.mrf.mxu0
    %v9765 = vadd.f32 %v9752, %v9764
    %v9766 = vpop.f32.mrf.mxu0
    %9767 = vdwg.mxu0
    %9768 = vmatpush.bf16.msra.mxu0 %v7325
    %9769 = vmatpush.bf16.msra.mxu0 %v7324
    %9770 = vmatpush.bf16.msra.mxu0 %v7323
    %9771 = vmatpush.bf16.msra.mxu0 %v7322
    %9772 = vmatpush.bf16.msra.mxu0 %v7321
    %9773 = vmatpush.bf16.msra.mxu0 %v7320
    %9774 = vmatpush.bf16.msra.mxu0 %v7319
    %9775 = vmatpush.bf16.msra.mxu0 %v7318
    %9776 = vmatmul.bf16.gmra.mxu0 %v2438
    %v9777 = vpop.f32.mrf.mxu0
    %v9778 = vadd.f32 %v9765, %v9777
    %v9779 = vpop.f32.mrf.mxu0
    %9780 = vdwg.mxu0
    %9781 = vmatpush.bf16.msra.mxu0 %v7333
    %9782 = vmatpush.bf16.msra.mxu0 %v7332
    %9783 = vmatpush.bf16.msra.mxu0 %v7331
    %9784 = vmatpush.bf16.msra.mxu0 %v7330
    %9785 = vmatpush.bf16.msra.mxu0 %v7329
    %9786 = vmatpush.bf16.msra.mxu0 %v7328
    %9787 = vmatpush.bf16.msra.mxu0 %v7327
    %9788 = vmatpush.bf16.msra.mxu0 %v7326
    %9789 = vmatmul.bf16.gmra.mxu0 %v2439
    %v9790 = vpop.f32.mrf.mxu0
    %v9791 = vadd.f32 %v9778, %v9790
    %v9792 = vpop.f32.mrf.mxu0
    %9793 = vdwg.mxu0
    %9794 = vmatpush.bf16.msra.mxu0 %v7341
    %9795 = vmatpush.bf16.msra.mxu0 %v7340
    %9796 = vmatpush.bf16.msra.mxu0 %v7339
    %9797 = vmatpush.bf16.msra.mxu0 %v7338
    %9798 = vmatpush.bf16.msra.mxu0 %v7337
    %9799 = vmatpush.bf16.msra.mxu0 %v7336
    %9800 = vmatpush.bf16.msra.mxu0 %v7335
    %9801 = vmatpush.bf16.msra.mxu0 %v7334
    %9802 = vmatmul.bf16.gmra.mxu0 %v2440
    %v9803 = vpop.f32.mrf.mxu0
    %v9804 = vadd.f32 %v9791, %v9803
    %v9805 = vpop.f32.mrf.mxu0
    %9806 = vdwg.mxu0
    %9807 = vmatpush.bf16.msra.mxu0 %v7349
    %9808 = vmatpush.bf16.msra.mxu0 %v7348
    %9809 = vmatpush.bf16.msra.mxu0 %v7347
    %9810 = vmatpush.bf16.msra.mxu0 %v7346
    %9811 = vmatpush.bf16.msra.mxu0 %v7345
    %9812 = vmatpush.bf16.msra.mxu0 %v7344
    %9813 = vmatpush.bf16.msra.mxu0 %v7343
    %9814 = vmatpush.bf16.msra.mxu0 %v7342
    %9815 = vmatmul.bf16.gmra.mxu0 %v2441
    %v9816 = vpop.f32.mrf.mxu0
    %v9817 = vadd.f32 %v9804, %v9816
    %v9818 = vpop.f32.mrf.mxu0
    %9819 = vdwg.mxu0
    %9820 = vmatpush.bf16.msra.mxu0 %v7357
    %9821 = vmatpush.bf16.msra.mxu0 %v7356
    %9822 = vmatpush.bf16.msra.mxu0 %v7355
    %9823 = vmatpush.bf16.msra.mxu0 %v7354
    %9824 = vmatpush.bf16.msra.mxu0 %v7353
    %9825 = vmatpush.bf16.msra.mxu0 %v7352
    %9826 = vmatpush.bf16.msra.mxu0 %v7351
    %9827 = vmatpush.bf16.msra.mxu0 %v7350
    %9828 = vmatmul.bf16.gmra.mxu0 %v2442
    %v9829 = vpop.f32.mrf.mxu0
    %v9830 = vadd.f32 %v9817, %v9829
    %v9831 = vpop.f32.mrf.mxu0
    %9832 = vdwg.mxu0
    %9833 = vmatpush.bf16.msra.mxu0 %v7365
    %9834 = vmatpush.bf16.msra.mxu0 %v7364
    %9835 = vmatpush.bf16.msra.mxu0 %v7363
    %9836 = vmatpush.bf16.msra.mxu0 %v7362
    %9837 = vmatpush.bf16.msra.mxu0 %v7361
    %9838 = vmatpush.bf16.msra.mxu0 %v7360
    %9839 = vmatpush.bf16.msra.mxu0 %v7359
    %9840 = vmatpush.bf16.msra.mxu0 %v7358
    %9841 = vmatmul.bf16.gmra.mxu0 %v2443
    %v9842 = vpop.f32.mrf.mxu0
    %v9843 = vadd.f32 %v9830, %v9842
    %v9844 = vpop.f32.mrf.mxu0
    %9845 = vdwg.mxu0
    %9846 = vmatpush.bf16.msra.mxu0 %v7373
    %9847 = vmatpush.bf16.msra.mxu0 %v7372
    %9848 = vmatpush.bf16.msra.mxu0 %v7371
    %9849 = vmatpush.bf16.msra.mxu0 %v7370
    %9850 = vmatpush.bf16.msra.mxu0 %v7369
    %9851 = vmatpush.bf16.msra.mxu0 %v7368
    %9852 = vmatpush.bf16.msra.mxu0 %v7367
    %9853 = vmatpush.bf16.msra.mxu0 %v7366
    %9854 = vmatmul.bf16.gmra.mxu0 %v2444
    %v9855 = vpop.f32.mrf.mxu0
    %v9856 = vadd.f32 %v9843, %v9855
    %v9857 = vpop.f32.mrf.mxu0
    %9858 = vdwg.mxu0
    %9859 = vmatpush.bf16.msra.mxu0 %v7381
    %9860 = vmatpush.bf16.msra.mxu0 %v7380
    %9861 = vmatpush.bf16.msra.mxu0 %v7379
    %9862 = vmatpush.bf16.msra.mxu0 %v7378
    %9863 = vmatpush.bf16.msra.mxu0 %v7377
    %9864 = vmatpush.bf16.msra.mxu0 %v7376
    %9865 = vmatpush.bf16.msra.mxu0 %v7375
    %9866 = vmatpush.bf16.msra.mxu0 %v7374
    %9867 = vmatmul.bf16.gmra.mxu0 %v2445
    %v9868 = vpop.f32.mrf.mxu0
    %v9869 = vadd.f32 %v9856, %v9868
    %v9870 = vpop.f32.mrf.mxu0
    %9871 = vdwg.mxu0
    %9872 = vmatpush.bf16.msra.mxu0 %v7389
    %9873 = vmatpush.bf16.msra.mxu0 %v7388
    %9874 = vmatpush.bf16.msra.mxu0 %v7387
    %9875 = vmatpush.bf16.msra.mxu0 %v7386
    %9876 = vmatpush.bf16.msra.mxu0 %v7385
    %9877 = vmatpush.bf16.msra.mxu0 %v7384
    %9878 = vmatpush.bf16.msra.mxu0 %v7383
    %9879 = vmatpush.bf16.msra.mxu0 %v7382
    %9880 = vmatmul.bf16.gmra.mxu0 %v2446
    %v9881 = vpop.f32.mrf.mxu0
    %v9882 = vadd.f32 %v9869, %v9881
    %v9883 = vpop.f32.mrf.mxu0
    %9884 = vdwg.mxu0
    %9885 = vmatpush.bf16.msra.mxu0 %v7397
    %9886 = vmatpush.bf16.msra.mxu0 %v7396
    %9887 = vmatpush.bf16.msra.mxu0 %v7395
    %9888 = vmatpush.bf16.msra.mxu0 %v7394
    %9889 = vmatpush.bf16.msra.mxu0 %v7393
    %9890 = vmatpush.bf16.msra.mxu0 %v7392
    %9891 = vmatpush.bf16.msra.mxu0 %v7391
    %9892 = vmatpush.bf16.msra.mxu0 %v7390
    %9893 = vmatmul.bf16.gmra.mxu0 %v2447
    %v9894 = vpop.f32.mrf.mxu0
    %v9895 = vadd.f32 %v9882, %v9894
    %v9896 = vpop.f32.mrf.mxu0
    %9897 = vdwg.mxu0
    %9898 = vmatpush.bf16.msra.mxu0 %v7405
    %9899 = vmatpush.bf16.msra.mxu0 %v7404
    %9900 = vmatpush.bf16.msra.mxu0 %v7403
    %9901 = vmatpush.bf16.msra.mxu0 %v7402
    %9902 = vmatpush.bf16.msra.mxu0 %v7401
    %9903 = vmatpush.bf16.msra.mxu0 %v7400
    %9904 = vmatpush.bf16.msra.mxu0 %v7399
    %9905 = vmatpush.bf16.msra.mxu0 %v7398
    %9906 = vmatmul.bf16.gmra.mxu0 %v2448
    %v9907 = vpop.f32.mrf.mxu0
    %v9908 = vadd.f32 %v9895, %v9907
    %v9909 = vpop.f32.mrf.mxu0
    %9910 = vdwg.mxu0
    %9911 = vmatpush.bf16.msra.mxu0 %v7413
    %9912 = vmatpush.bf16.msra.mxu0 %v7412
    %9913 = vmatpush.bf16.msra.mxu0 %v7411
    %9914 = vmatpush.bf16.msra.mxu0 %v7410
    %9915 = vmatpush.bf16.msra.mxu0 %v7409
    %9916 = vmatpush.bf16.msra.mxu0 %v7408
    %9917 = vmatpush.bf16.msra.mxu0 %v7407
    %9918 = vmatpush.bf16.msra.mxu0 %v7406
    %9919 = vmatmul.bf16.gmra.mxu0 %v2449
    %v9920 = vpop.f32.mrf.mxu0
    %v9921 = vadd.f32 %v9908, %v9920
    %v9922 = vpop.f32.mrf.mxu0
    %9923 = vdwg.mxu0
    %9924 = vmatpush.bf16.msra.mxu0 %v7421
    %9925 = vmatpush.bf16.msra.mxu0 %v7420
    %9926 = vmatpush.bf16.msra.mxu0 %v7419
    %9927 = vmatpush.bf16.msra.mxu0 %v7418
    %9928 = vmatpush.bf16.msra.mxu0 %v7417
    %9929 = vmatpush.bf16.msra.mxu0 %v7416
    %9930 = vmatpush.bf16.msra.mxu0 %v7415
    %9931 = vmatpush.bf16.msra.mxu0 %v7414
    %9932 = vmatmul.bf16.gmra.mxu0 %v2450
    %v9933 = vpop.f32.mrf.mxu0
    %v9934 = vadd.f32 %v9921, %v9933
    %v9935 = vpop.f32.mrf.mxu0
    %9936 = vdwg.mxu0
    %9937 = vmatpush.bf16.msra.mxu0 %v7429
    %9938 = vmatpush.bf16.msra.mxu0 %v7428
    %9939 = vmatpush.bf16.msra.mxu0 %v7427
    %9940 = vmatpush.bf16.msra.mxu0 %v7426
    %9941 = vmatpush.bf16.msra.mxu0 %v7425
    %9942 = vmatpush.bf16.msra.mxu0 %v7424
    %9943 = vmatpush.bf16.msra.mxu0 %v7423
    %9944 = vmatpush.bf16.msra.mxu0 %v7422
    %9945 = vmatmul.bf16.gmra.mxu0 %v2451
    %v9946 = vpop.f32.mrf.mxu0
    %v9947 = vadd.f32 %v9934, %v9946
    %v9948 = vpop.f32.mrf.mxu0
    %9949 = vdwg.mxu0
    %9950 = vmatpush.bf16.msra.mxu0 %v7437
    %9951 = vmatpush.bf16.msra.mxu0 %v7436
    %9952 = vmatpush.bf16.msra.mxu0 %v7435
    %9953 = vmatpush.bf16.msra.mxu0 %v7434
    %9954 = vmatpush.bf16.msra.mxu0 %v7433
    %9955 = vmatpush.bf16.msra.mxu0 %v7432
    %9956 = vmatpush.bf16.msra.mxu0 %v7431
    %9957 = vmatpush.bf16.msra.mxu0 %v7430
    %9958 = vmatmul.bf16.gmra.mxu0 %v2452
    %v9959 = vpop.f32.mrf.mxu0
    %v9960 = vadd.f32 %v9947, %v9959
    %v9961 = vpop.f32.mrf.mxu0
    %9962 = vdwg.mxu0
    %9963 = vmatpush.bf16.msra.mxu0 %v7445
    %9964 = vmatpush.bf16.msra.mxu0 %v7444
    %9965 = vmatpush.bf16.msra.mxu0 %v7443
    %9966 = vmatpush.bf16.msra.mxu0 %v7442
    %9967 = vmatpush.bf16.msra.mxu0 %v7441
    %9968 = vmatpush.bf16.msra.mxu0 %v7440
    %9969 = vmatpush.bf16.msra.mxu0 %v7439
    %9970 = vmatpush.bf16.msra.mxu0 %v7438
    %9971 = vmatmul.bf16.gmra.mxu0 %v2453
    %v9972 = vpop.f32.mrf.mxu0
    %v9973 = vadd.f32 %v9960, %v9972
    %v9974 = vpop.f32.mrf.mxu0
    %9975 = vdwg.mxu0
    %9976 = vmatpush.bf16.msra.mxu0 %v7453
    %9977 = vmatpush.bf16.msra.mxu0 %v7452
    %9978 = vmatpush.bf16.msra.mxu0 %v7451
    %9979 = vmatpush.bf16.msra.mxu0 %v7450
    %9980 = vmatpush.bf16.msra.mxu0 %v7449
    %9981 = vmatpush.bf16.msra.mxu0 %v7448
    %9982 = vmatpush.bf16.msra.mxu0 %v7447
    %9983 = vmatpush.bf16.msra.mxu0 %v7446
    %9984 = vmatmul.bf16.gmra.mxu0 %v2454
    %v9985 = vpop.f32.mrf.mxu0
    %v9986 = vadd.f32 %v9973, %v9985
    %v9987 = vpop.f32.mrf.mxu0
    %9988 = vdwg.mxu0
    %9989 = vmatpush.bf16.msra.mxu0 %v7461
    %9990 = vmatpush.bf16.msra.mxu0 %v7460
    %9991 = vmatpush.bf16.msra.mxu0 %v7459
    %9992 = vmatpush.bf16.msra.mxu0 %v7458
    %9993 = vmatpush.bf16.msra.mxu0 %v7457
    %9994 = vmatpush.bf16.msra.mxu0 %v7456
    %9995 = vmatpush.bf16.msra.mxu0 %v7455
    %9996 = vmatpush.bf16.msra.mxu0 %v7454
    %9997 = vmatmul.bf16.gmra.mxu0 %v2455
    %v9998 = vpop.f32.mrf.mxu0
    %v9999 = vadd.f32 %v9986, %v9998
    %v10000 = vpop.f32.mrf.mxu0
    %10001 = vdwg.mxu0
    %10002 = vmatpush.bf16.msra.mxu0 %v7469
    %10003 = vmatpush.bf16.msra.mxu0 %v7468
    %10004 = vmatpush.bf16.msra.mxu0 %v7467
    %10005 = vmatpush.bf16.msra.mxu0 %v7466
    %10006 = vmatpush.bf16.msra.mxu0 %v7465
    %10007 = vmatpush.bf16.msra.mxu0 %v7464
    %10008 = vmatpush.bf16.msra.mxu0 %v7463
    %10009 = vmatpush.bf16.msra.mxu0 %v7462
    %10010 = vmatmul.bf16.gmra.mxu0 %v2456
    %v10011 = vpop.f32.mrf.mxu0
    %v10012 = vadd.f32 %v9999, %v10011
    %v10013 = vpop.f32.mrf.mxu0
    %10014 = vdwg.mxu0
    %10015 = vmatpush.bf16.msra.mxu0 %v7477
    %10016 = vmatpush.bf16.msra.mxu0 %v7476
    %10017 = vmatpush.bf16.msra.mxu0 %v7475
    %10018 = vmatpush.bf16.msra.mxu0 %v7474
    %10019 = vmatpush.bf16.msra.mxu0 %v7473
    %10020 = vmatpush.bf16.msra.mxu0 %v7472
    %10021 = vmatpush.bf16.msra.mxu0 %v7471
    %10022 = vmatpush.bf16.msra.mxu0 %v7470
    %10023 = vmatmul.bf16.gmra.mxu0 %v2457
    %v10024 = vpop.f32.mrf.mxu0
    %v10025 = vadd.f32 %v10012, %v10024
    %v10026 = vpop.f32.mrf.mxu0
    %10027 = vdwg.mxu0
    %10028 = vmatpush.bf16.msra.mxu0 %v7485
    %10029 = vmatpush.bf16.msra.mxu0 %v7484
    %10030 = vmatpush.bf16.msra.mxu0 %v7483
    %10031 = vmatpush.bf16.msra.mxu0 %v7482
    %10032 = vmatpush.bf16.msra.mxu0 %v7481
    %10033 = vmatpush.bf16.msra.mxu0 %v7480
    %10034 = vmatpush.bf16.msra.mxu0 %v7479
    %10035 = vmatpush.bf16.msra.mxu0 %v7478
    %10036 = vmatmul.bf16.gmra.mxu0 %v2458
    %v10037 = vpop.f32.mrf.mxu0
    %v10038 = vadd.f32 %v10025, %v10037
    %v10039 = vpop.f32.mrf.mxu0
    %10040 = vdwg.mxu0
    %10041 = vmatpush.bf16.msra.mxu0 %v7493
    %10042 = vmatpush.bf16.msra.mxu0 %v7492
    %10043 = vmatpush.bf16.msra.mxu0 %v7491
    %10044 = vmatpush.bf16.msra.mxu0 %v7490
    %10045 = vmatpush.bf16.msra.mxu0 %v7489
    %10046 = vmatpush.bf16.msra.mxu0 %v7488
    %10047 = vmatpush.bf16.msra.mxu0 %v7487
    %10048 = vmatpush.bf16.msra.mxu0 %v7486
    %10049 = vmatmul.bf16.gmra.mxu0 %v2459
    %v10050 = vpop.f32.mrf.mxu0
    %v10051 = vadd.f32 %v10038, %v10050
    %v10052 = vpop.f32.mrf.mxu0
    %10053 = vdwg.mxu0
    %10054 = vmatpush.bf16.msra.mxu0 %v7501
    %10055 = vmatpush.bf16.msra.mxu0 %v7500
    %10056 = vmatpush.bf16.msra.mxu0 %v7499
    %10057 = vmatpush.bf16.msra.mxu0 %v7498
    %10058 = vmatpush.bf16.msra.mxu0 %v7497
    %10059 = vmatpush.bf16.msra.mxu0 %v7496
    %10060 = vmatpush.bf16.msra.mxu0 %v7495
    %10061 = vmatpush.bf16.msra.mxu0 %v7494
    %10062 = vmatmul.bf16.gmra.mxu0 %v2460
    %v10063 = vpop.f32.mrf.mxu0
    %v10064 = vadd.f32 %v10051, %v10063
    %v10065 = vpop.f32.mrf.mxu0
    %10066 = vdwg.mxu0
    %10067 = vmatpush.bf16.msra.mxu0 %v7509
    %10068 = vmatpush.bf16.msra.mxu0 %v7508
    %10069 = vmatpush.bf16.msra.mxu0 %v7507
    %10070 = vmatpush.bf16.msra.mxu0 %v7506
    %10071 = vmatpush.bf16.msra.mxu0 %v7505
    %10072 = vmatpush.bf16.msra.mxu0 %v7504
    %10073 = vmatpush.bf16.msra.mxu0 %v7503
    %10074 = vmatpush.bf16.msra.mxu0 %v7502
    %10075 = vmatmul.bf16.gmra.mxu0 %v2461
    %v10076 = vpop.f32.mrf.mxu0
    %v10077 = vadd.f32 %v10064, %v10076
    %v10078 = vpop.f32.mrf.mxu0
    %10079 = vdwg.mxu0
    %10080 = vmatpush.bf16.msra.mxu0 %v7517
    %10081 = vmatpush.bf16.msra.mxu0 %v7516
    %10082 = vmatpush.bf16.msra.mxu0 %v7515
    %10083 = vmatpush.bf16.msra.mxu0 %v7514
    %10084 = vmatpush.bf16.msra.mxu0 %v7513
    %10085 = vmatpush.bf16.msra.mxu0 %v7512
    %10086 = vmatpush.bf16.msra.mxu0 %v7511
    %10087 = vmatpush.bf16.msra.mxu0 %v7510
    %10088 = vmatmul.bf16.gmra.mxu0 %v2462
    %v10089 = vpop.f32.mrf.mxu0
    %v10090 = vadd.f32 %v10077, %v10089
    %v10091 = vpop.f32.mrf.mxu0
    %10092 = vdwg.mxu0
    %10093 = vmatpush.bf16.msra.mxu0 %v7525
    %10094 = vmatpush.bf16.msra.mxu0 %v7524
    %10095 = vmatpush.bf16.msra.mxu0 %v7523
    %10096 = vmatpush.bf16.msra.mxu0 %v7522
    %10097 = vmatpush.bf16.msra.mxu0 %v7521
    %10098 = vmatpush.bf16.msra.mxu0 %v7520
    %10099 = vmatpush.bf16.msra.mxu0 %v7519
    %10100 = vmatpush.bf16.msra.mxu0 %v7518
    %10101 = vmatmul.bf16.gmra.mxu0 %v2463
    %v10102 = vpop.f32.mrf.mxu0
    %v10103 = vadd.f32 %v10090, %v10102
    %v10104 = vpop.f32.mrf.mxu0
    %10105 = vdwg.mxu0
    %10106 = vmatpush.bf16.msra.mxu0 %v7533
    %10107 = vmatpush.bf16.msra.mxu0 %v7532
    %10108 = vmatpush.bf16.msra.mxu0 %v7531
    %10109 = vmatpush.bf16.msra.mxu0 %v7530
    %10110 = vmatpush.bf16.msra.mxu0 %v7529
    %10111 = vmatpush.bf16.msra.mxu0 %v7528
    %10112 = vmatpush.bf16.msra.mxu0 %v7527
    %10113 = vmatpush.bf16.msra.mxu0 %v7526
    %10114 = vmatmul.bf16.gmra.mxu0 %v2464
    %v10115 = vpop.f32.mrf.mxu0
    %v10116 = vadd.f32 %v10103, %v10115
    %v10117 = vpop.f32.mrf.mxu0
    %10118 = vdwg.mxu0
    %10119 = vmatpush.bf16.msra.mxu0 %v7541
    %10120 = vmatpush.bf16.msra.mxu0 %v7540
    %10121 = vmatpush.bf16.msra.mxu0 %v7539
    %10122 = vmatpush.bf16.msra.mxu0 %v7538
    %10123 = vmatpush.bf16.msra.mxu0 %v7537
    %10124 = vmatpush.bf16.msra.mxu0 %v7536
    %10125 = vmatpush.bf16.msra.mxu0 %v7535
    %10126 = vmatpush.bf16.msra.mxu0 %v7534
    %10127 = vmatmul.bf16.gmra.mxu0 %v2465
    %v10128 = vpop.f32.mrf.mxu0
    %v10129 = vadd.f32 %v10116, %v10128
    %v10130 = vpop.f32.mrf.mxu0
    %10131 = vdwg.mxu0
    %10132 = vmatpush.bf16.msra.mxu0 %v7549
    %10133 = vmatpush.bf16.msra.mxu0 %v7548
    %10134 = vmatpush.bf16.msra.mxu0 %v7547
    %10135 = vmatpush.bf16.msra.mxu0 %v7546
    %10136 = vmatpush.bf16.msra.mxu0 %v7545
    %10137 = vmatpush.bf16.msra.mxu0 %v7544
    %10138 = vmatpush.bf16.msra.mxu0 %v7543
    %10139 = vmatpush.bf16.msra.mxu0 %v7542
    %10140 = vmatmul.bf16.gmra.mxu0 %v2466
    %v10141 = vpop.f32.mrf.mxu0
    %v10142 = vadd.f32 %v10129, %v10141
    %v10143 = vpop.f32.mrf.mxu0
    %10144 = vdwg.mxu0
    %10145 = vmatpush.bf16.msra.mxu0 %v7557
    %10146 = vmatpush.bf16.msra.mxu0 %v7556
    %10147 = vmatpush.bf16.msra.mxu0 %v7555
    %10148 = vmatpush.bf16.msra.mxu0 %v7554
    %10149 = vmatpush.bf16.msra.mxu0 %v7553
    %10150 = vmatpush.bf16.msra.mxu0 %v7552
    %10151 = vmatpush.bf16.msra.mxu0 %v7551
    %10152 = vmatpush.bf16.msra.mxu0 %v7550
    %10153 = vmatmul.bf16.gmra.mxu0 %v2467
    %v10154 = vpop.f32.mrf.mxu0
    %v10155 = vadd.f32 %v10142, %v10154
    %v10156 = vpop.f32.mrf.mxu0
    %10157 = vdwg.mxu0
    %10158 = vmatpush.bf16.msra.mxu0 %v7565
    %10159 = vmatpush.bf16.msra.mxu0 %v7564
    %10160 = vmatpush.bf16.msra.mxu0 %v7563
    %10161 = vmatpush.bf16.msra.mxu0 %v7562
    %10162 = vmatpush.bf16.msra.mxu0 %v7561
    %10163 = vmatpush.bf16.msra.mxu0 %v7560
    %10164 = vmatpush.bf16.msra.mxu0 %v7559
    %10165 = vmatpush.bf16.msra.mxu0 %v7558
    %10166 = vmatmul.bf16.gmra.mxu0 %v2468
    %v10167 = vpop.f32.mrf.mxu0
    %v10168 = vadd.f32 %v10155, %v10167
    %v10169 = vpop.f32.mrf.mxu0
    %10170 = vdwg.mxu0
    %10171 = vmatpush.bf16.msra.mxu0 %v7573
    %10172 = vmatpush.bf16.msra.mxu0 %v7572
    %10173 = vmatpush.bf16.msra.mxu0 %v7571
    %10174 = vmatpush.bf16.msra.mxu0 %v7570
    %10175 = vmatpush.bf16.msra.mxu0 %v7569
    %10176 = vmatpush.bf16.msra.mxu0 %v7568
    %10177 = vmatpush.bf16.msra.mxu0 %v7567
    %10178 = vmatpush.bf16.msra.mxu0 %v7566
    %10179 = vmatmul.bf16.gmra.mxu0 %v2469
    %v10180 = vpop.f32.mrf.mxu0
    %v10181 = vadd.f32 %v10168, %v10180
    %v10182 = vpop.f32.mrf.mxu0
    %10183 = vdwg.mxu0
    %10184 = vmatpush.bf16.msra.mxu0 %v7581
    %10185 = vmatpush.bf16.msra.mxu0 %v7580
    %10186 = vmatpush.bf16.msra.mxu0 %v7579
    %10187 = vmatpush.bf16.msra.mxu0 %v7578
    %10188 = vmatpush.bf16.msra.mxu0 %v7577
    %10189 = vmatpush.bf16.msra.mxu0 %v7576
    %10190 = vmatpush.bf16.msra.mxu0 %v7575
    %10191 = vmatpush.bf16.msra.mxu0 %v7574
    %10192 = vmatmul.bf16.gmra.mxu0 %v2470
    %v10193 = vpop.f32.mrf.mxu0
    %v10194 = vadd.f32 %v10181, %v10193
    %v10195 = vpop.f32.mrf.mxu0
    %10196 = vdwg.mxu0
    %10197 = vmatpush.bf16.msra.mxu0 %v7589
    %10198 = vmatpush.bf16.msra.mxu0 %v7588
    %10199 = vmatpush.bf16.msra.mxu0 %v7587
    %10200 = vmatpush.bf16.msra.mxu0 %v7586
    %10201 = vmatpush.bf16.msra.mxu0 %v7585
    %10202 = vmatpush.bf16.msra.mxu0 %v7584
    %10203 = vmatpush.bf16.msra.mxu0 %v7583
    %10204 = vmatpush.bf16.msra.mxu0 %v7582
    %10205 = vmatmul.bf16.gmra.mxu0 %v2471
    %v10206 = vpop.f32.mrf.mxu0
    %v10207 = vadd.f32 %v10194, %v10206
    %v10208 = vpop.f32.mrf.mxu0
    %10209 = vdwg.mxu0
    %10210 = vmatpush.bf16.msra.mxu0 %v7597
    %10211 = vmatpush.bf16.msra.mxu0 %v7596
    %10212 = vmatpush.bf16.msra.mxu0 %v7595
    %10213 = vmatpush.bf16.msra.mxu0 %v7594
    %10214 = vmatpush.bf16.msra.mxu0 %v7593
    %10215 = vmatpush.bf16.msra.mxu0 %v7592
    %10216 = vmatpush.bf16.msra.mxu0 %v7591
    %10217 = vmatpush.bf16.msra.mxu0 %v7590
    %10218 = vmatmul.bf16.gmra.mxu0 %v2472
    %v10219 = vpop.f32.mrf.mxu0
    %v10220 = vadd.f32 %v10207, %v10219
    %v10221 = vpop.f32.mrf.mxu0
    %10222 = vdwg.mxu0
    %v10223 = vmax.f32 %v10220, 0.0
    %v10224 = vld [vmem:[#allocation8] sm:$0xff]
    %v10225 = vld [vmem:[#allocation8 + $0x8] sm:$0xff]
    %v10226 = vld [vmem:[#allocation8 + $0x10] sm:$0xff]
    %v10227 = vld [vmem:[#allocation8 + $0x18] sm:$0xff]
    %v10228 = vld [vmem:[#allocation8 + $0x20] sm:$0xff]
    %v10229 = vld [vmem:[#allocation8 + $0x28] sm:$0xff]
    %v10230 = vld [vmem:[#allocation8 + $0x30] sm:$0xff]
    %v10231 = vld [vmem:[#allocation8 + $0x38] sm:$0xff]
    %v10232 = vld [vmem:[#allocation8 + $0x40] sm:$0xff]
    %v10233 = vld [vmem:[#allocation8 + $0x48] sm:$0xff]
    %v10234 = vld [vmem:[#allocation8 + $0x50] sm:$0xff]
    %v10235 = vld [vmem:[#allocation8 + $0x58] sm:$0xff]
    %v10236 = vld [vmem:[#allocation8 + $0x60] sm:$0xff]
    %v10237 = vld [vmem:[#allocation8 + $0x68] sm:$0xff]
    %v10238 = vld [vmem:[#allocation8 + $0x70] sm:$0xff]
    %v10239 = vld [vmem:[#allocation8 + $0x78] sm:$0xff]
    %v10240 = vld [vmem:[#allocation10] sm:$0x1]
    %v10242 = vperm.slane %v10240, 0
    %10244 = vmatpush.msra.mxu0 %v10239
    %10245 = vmatpush.msra.mxu0 %v10238
    %10246 = vmatpush.msra.mxu0 %v10237
    %10247 = vmatpush.msra.mxu0 %v10236
    %10248 = vmatpush.msra.mxu0 %v10235
    %10249 = vmatpush.msra.mxu0 %v10234
    %10250 = vmatpush.msra.mxu0 %v10233
    %10251 = vmatpush.msra.mxu0 %v10232
    %10252 = vmatpush.msra.mxu0 %v10231
    %10253 = vmatpush.msra.mxu0 %v10230
    %10254 = vmatpush.msra.mxu0 %v10229
    %10255 = vmatpush.msra.mxu0 %v10228
    %10256 = vmatpush.msra.mxu0 %v10227
    %10257 = vmatpush.msra.mxu0 %v10226
    %10258 = vmatpush.msra.mxu0 %v10225
    %10259 = vmatpush.msra.mxu0 %v10224
    %10260 = vmatmul.f32.gmra.mxu0 %v10223
    %v10261 = vpop.f32.mrf.mxu0
    %v10262 = vadd.f32 %v10242, %v10261
    %10263 = vdwg.mxu0
    %10264 = vst [vmem:[#allocation11] sm:$0xff] %v10262
    // Predicated region
    $region42: #{tpu_custom_call.1} parent=1 // pred_check
      _
    $region43: #{tpu_custom_call.1} parent=1 // pred_check_branch
      %10266 = sbr.rel (0) target = $region45
    $region44: #{tpu_custom_call.1} parent=1 // pred_region
      %10268 = vsyncadd [#allocation4], 0
      %s10270 = sshll.u32 [#allocation11], 4
      %s10271 = int_to_ptr.vmem [resolvable:$true] %s10270
      %s10272 = sshll.u32 %s5, 4
      %s10273 = int_to_ptr.hbm [resolvable:$true] %s10272
      %10275 = dma.vmem_to_hbm [thread:$0]  %s10271, 128, %s10273, [#allocation4]
    $region45: #{tpu_custom_call.1} parent=1 // pred_fallthru
      _
    // Predicated region
    $region46: #{tpu_custom_call.1} parent=1 // pred_check
      _
    $region47: #{tpu_custom_call.1} parent=1 // pred_check_branch
      %10277 = sbr.rel (0) target = $region49
    $region48: #{tpu_custom_call.1} parent=1 // pred_region
      %10279 = dma.done [#allocation4], 128
    $region49: #{tpu_custom_call.1} parent=1 // pred_fallthru
      _
    %10280 = vsyncpa [#allocation3], 1
    %10281 = vsyncpa [#allocation6], 1
    %10282 = vsyncpa [#allocation9], 1
    %10283 = vsyncpa [#allocation4], 1

</llo_original>
